<compile_context>
chip_gen: v6e
topology: v6e:2x2x1
jax: 0.10.0
libtpu: 0.0.40
codegen_flags: <defaults>
</compile_context>

<pallas_src>
import functools
import math
from itertools import product

import numpy as np
import jax
import jax.numpy as jnp
from jax import lax
from jax.experimental import pallas as pl
from jax.experimental.pallas import tpu as pltpu


# ----------------------------------------------------------------------------
# SSD300 configuration (matches the PyTorch module / ssd.pytorch defaults)
# ----------------------------------------------------------------------------
BASE_CFG = [64, 64, 'M', 128, 128, 'M', 256, 256, 256, 'C',
            512, 512, 512, 'M', 512, 512, 512]
EXTRAS_CFG = [256, 'S', 512, 128, 'S', 256, 128, 256, 128, 256]
MBOX = [4, 6, 6, 6, 4, 4]
NUM_CLASSES = 21  # voc
VOC = dict(feature_maps=[38, 19, 10, 5, 3, 1],
           min_dim=300,
           steps=[8, 16, 32, 64, 100, 300],
           min_sizes=[30, 60, 111, 162, 213, 264],
           max_sizes=[60, 111, 162, 213, 264, 315],
           aspect_ratios=[[2], [2, 3], [2, 3], [2, 3], [2], [2]],
           clip=True)

FUSION_CHANNELS = [256, 256, 256, 512, 1024, 512]
FUSION_PADDINGS = [0, 1, 1, 1, 1]
FUSION_SHAPES = [(3, 3), (5, 5), (10, 10), (19, 19), (38, 38)]

_CONV_VMEM_LIMIT = 40 * 1024 * 1024      # leaves headroom on v7x (64 MiB/TC)
_MAX_STRIP_BYTES = 6 << 20               # cap on the per-step input block


def _round_up(x, m):
    return (x + m - 1) // m * m


def _default_tn():
    # 256-wide output tiles for v6e/v7x (2x256 MXU), 128 for v5e (4x128 MXU).
    try:
        kind = jax.devices()[0].device_kind.lower()
        if "v5 lite" in kind or "v5e" in kind or "v5lite" in kind:
            return 128
    except Exception:
        pass
    return 256


_TN_PREF = _default_tn()


# ----------------------------------------------------------------------------
# Pallas kernel 1: direct NHWC convolution (stride 1, any k / dilation).
#   x_ref  : (L, K)         bf16   flattened (h*w) rows of one input strip,
#                                  K = Cin (or kw*Cin / kh*kw*Cin when folded)
#   w_ref  : (ntaps, K, tn) bf16
#   b_ref  : (1, tn)        f32
#   o_ref  : (tm, tn)              pseudo-output rows (full padded row pitch)
# Accumulates over the (few, statically unrolled) remaining row taps with
# sublane-aligned shifted slices of the VMEM-resident strip; f32 accumulation.
# ----------------------------------------------------------------------------
def _conv_kernel(x_ref, w_ref, b_ref, o_ref, *, taps, tm, relu):
    acc = jnp.dot(x_ref[taps[0]:taps[0] + tm, :], w_ref[0],
                  preferred_element_type=jnp.float32)
    for t in range(1, len(taps)):
        off = taps[t]
        acc = acc + jnp.dot(x_ref[off:off + tm, :], w_ref[t],
                            preferred_element_type=jnp.float32)
    r = acc + b_ref[...]
    if relu:
        r = jnp.maximum(r, 0.0)
    o_ref[...] = r.astype(o_ref.dtype)


@functools.partial(
    jax.jit,
    static_argnames=("kh", "kw", "padding", "dilation", "relu", "stride",
                     "fold", "out_dtype"))
def _conv2d_impl(x, w, b, *, kh, kw, padding, dilation, relu, stride, fold,
                 out_dtype):
    """x: (N,H,W,Cin) NHWC.  w: (ntaps, K, Cout) bf16 (prep_conv layout)."""
    N, H, W, Cin = x.shape
    ntaps, K, Cout = w.shape
    x = x.astype(jnp.bfloat16)

    p, dil = padding, dilation
    Hp = H + 2 * p
    Wv = W + 2 * p                         # true padded width
    Wp = _round_up(Wv, 8)                  # sublane-aligned row pitch
    Ho = Hp - dil * (kh - 1)
    Wo = Wv - dil * (kw - 1)
    x = jnp.pad(x, ((0, 0), (p, p), (p, p + Wp - Wv), (0, 0)))
    R = Hp * Wp
    xflat = x.reshape(N, R, Cin)

    # which taps were folded into the contraction dim (must match prep_conv)
    if fold == "kw":
        fold_offs = [dj * dil for dj in range(kw)]
        row_offs = [di * dil * Wp for di in range(kh)]
        span_h, span_w = dil * (kh - 1), 0
    elif fold == "all":
        fold_offs = [di * dil * Wp + dj * dil
                     for di in range(kh) for dj in range(kw)]
        row_offs = [0]
        span_h, span_w = 0, 0
    else:  # "none"
        fold_offs = [0]
        row_offs = [di * dil * Wp + dj * dil
                    for di in range(kh) for dj in range(kw)]
        span_h, span_w = dil * (kh - 1), dil * (kw - 1)
    assert ntaps == len(row_offs)

    if len(fold_offs) > 1:
        ext = jnp.pad(xflat, ((0, 0), (0, fold_offs[-1]), (0, 0)))
        xflat = jnp.concatenate(
            [lax.slice_in_dim(ext, o, o + R, axis=1) for o in fold_offs],
            axis=-1)
    if xflat.shape[-1] != K:               # pad contraction (conv1_1: 27 -> 32)
        xflat = jnp.pad(xflat, ((0, 0), (0, 0), (0, K - xflat.shape[-1])))

    # output-channel tiling (lane-dense output blocks)
    tn = _TN_PREF if Cout % _TN_PREF == 0 else (
        128 if Cout % 128 == 0 else Cout)
    ncb = Cout // tn

    # strip decomposition of the output rows: bounds the VMEM block for any
    # image/batch size while keeping big MXU tiles.
    th_cap = max(1, (_MAX_STRIP_BYTES // (K * 2) - span_w) // Wp - span_h)
    th0 = max(1, min(Ho, max(1, 4096 // Wp), th_cap))
    if N * ncb == 1 and Ho > 1:            # >=2 grid blocks (v7x has 2 TCs)
        th0 = min(th0, -(-Ho // 2))
    S = -(-Ho // th0)
    th = -(-Ho // S)
    tm = th * Wp
    L = (th + span_h) * Wp + span_w
    need = (S - 1) * th * Wp + L
    if need > R:
        xflat = jnp.pad(xflat, ((0, 0), (0, need - R), (0, 0)))
    if S == 1:
        strips = xflat[:, :L, :].reshape(N, 1, L, K)
    else:
        strips = jnp.stack(
            [lax.slice_in_dim(xflat, s * th * Wp, s * th * Wp + L, axis=1)
             for s in range(S)], axis=1)
    strips = strips.reshape(N * S, L, K)

    NS = N * S
    kern = functools.partial(_conv_kernel, taps=tuple(row_offs), tm=tm,
                             relu=relu)

    # grid order: keep whichever operand is more expensive to re-stream (per
    # full pass) resident across the inner grid axis.
    w_bytes = ntaps * K * Cout * 2
    a_bytes = NS * L * K * 2
    weight_outer = w_bytes * (NS - 1) > a_bytes * (ncb - 1)
    if weight_outer:
        grid = (ncb, NS)
        x_spec = pl.BlockSpec((None, L, K), lambda j, i: (i, 0, 0))
        w_spec = pl.BlockSpec((ntaps, K, tn), lambda j, i: (0, 0, j))
        b_spec = pl.BlockSpec((1, tn), lambda j, i: (0, j))
        o_spec = pl.BlockSpec((None, tm, tn), lambda j, i: (i, 0, j))
    else:
        grid = (NS, ncb)
        x_spec = pl.BlockSpec((None, L, K), lambda i, j: (i, 0, 0))
        w_spec = pl.BlockSpec((ntaps, K, tn), lambda i, j: (0, 0, j))
        b_spec = pl.BlockSpec((1, tn), lambda i, j: (0, j))
        o_spec = pl.BlockSpec((None, tm, tn), lambda i, j: (i, 0, j))

    out = pl.pallas_call(
        kern,
        out_shape=jax.ShapeDtypeStruct((NS, tm, Cout), out_dtype),
        grid=grid,
        in_specs=[x_spec, w_spec, b_spec],
        out_specs=o_spec,
        compiler_params=pltpu.CompilerParams(
            dimension_semantics=("parallel", "parallel"),
            vmem_limit_bytes=_CONV_VMEM_LIMIT),
    )(strips, w, b)

    # drop the garbage columns of the wide pseudo-output and the row padding
    # (XLA fuses this crop with the next layer's pad/convert fusion).
    out = out.reshape(N, S, th, Wp, Cout)[:, :, :, :Wo, :]
    out = out.reshape(N, S * th, Wo, Cout)[:, :Ho]
    if stride > 1:                         # the two tiny extras 'S' convs
        out = out[:, ::stride, ::stride, :]
    return out


def conv_apply(x, cp, out_dtype=jnp.bfloat16):
    return _conv2d_impl(x, cp['w'], cp['b'],
                        kh=cp['kh'], kw=cp['kw'], padding=cp['padding'],
                        dilation=cp['dilation'], relu=cp['relu'],
                        stride=cp['stride'], fold=cp['fold'],
                        out_dtype=out_dtype)


# ----------------------------------------------------------------------------
# Pallas kernel 2: L2Norm (per-pixel channel L2 normalization * weight), NHWC.
# ----------------------------------------------------------------------------
def _l2norm_kernel(x_ref, w_ref, o_ref):
    x = x_ref[...].astype(jnp.float32)
    norm = jnp.sqrt(jnp.sum(x * x, axis=-1, keepdims=True)) + 1e-10
    o_ref[...] = (x * pl.reciprocal(norm, approx=True) *
                  w_ref[...]).astype(o_ref.dtype)


@jax.jit
def l2norm(x, weight):
    N, H, W, C = x.shape
    M = N * H * W
    x2 = x.reshape(M, C)
    tmr = min(512, _round_up(M, 8))
    Mp = _round_up(M, tmr)
    if Mp > M:
        x2 = jnp.pad(x2, ((0, Mp - M), (0, 0)))
    out = pl.pallas_call(
        _l2norm_kernel,
        out_shape=jax.ShapeDtypeStruct((Mp, C), x.dtype),
        grid=(Mp // tmr,),
        in_specs=[pl.BlockSpec((tmr, C), lambda i: (i, 0)),
                  pl.BlockSpec((1, C), lambda i: (0, 0))],
        out_specs=pl.BlockSpec((tmr, C), lambda i: (i, 0)),
        compiler_params=pltpu.CompilerParams(
            dimension_semantics=("parallel",)),
    )(x2, weight)
    return out[:M].reshape(N, H, W, C)


# ----------------------------------------------------------------------------
# Pallas kernels 3a/3b: train-mode BatchNorm + ReLU of the two fusion branches
# summed.  Stats are grid-accumulated over row chunks (batch-scalable, safe on
# v7x VMEM), variance is clamped >= 0 before rsqrt.
# ----------------------------------------------------------------------------
def _bn_stats_kernel(xd_ref, xl_ref, o_ref):
    m = pl.program_id(1)
    xd = xd_ref[...].astype(jnp.float32)
    xl = xl_ref[...].astype(jnp.float32)
    upd = jnp.concatenate([
        jnp.sum(xd, axis=0, keepdims=True),
        jnp.sum(xd * xd, axis=0, keepdims=True),
        jnp.sum(xl, axis=0, keepdims=True),
        jnp.sum(xl * xl, axis=0, keepdims=True)], axis=0)

    @pl.when(m == 0)
    def _():
        o_ref[...] = upd

    @pl.when(m > 0)
    def _():
        o_ref[...] += upd


def _bn_apply_kernel(xd_ref, xl_ref, st_ref, gd_ref, bd_ref, gl_ref, bl_ref,
                     o_ref, *, count, eps):
    st = st_ref[...]

    def bn_relu(x, s, ss, g, b):
        mean = s / count
        var = jnp.maximum(ss / count - mean * mean, 0.0)
        inv = lax.rsqrt(var + eps)
        return jnp.maximum((x - mean) * (inv * g) + b, 0.0)

    xd = xd_ref[...].astype(jnp.float32)
    xl = xl_ref[...].astype(jnp.float32)
    y = (bn_relu(xd, st[0:1], st[1:2], gd_ref[...], bd_ref[...]) +
         bn_relu(xl, st[2:3], st[3:4], gl_ref[...], bl_ref[...]))
    o_ref[...] = y.astype(o_ref.dtype)


@jax.jit
def fused_bn_relu_add(xd, xl, gd, bd, gl, bl):
    N, H, W, C = xd.shape
    M = N * H * W
    tmr = min(512, _round_up(M, 8))
    Mp = _round_up(M, tmr)
    tc = 256 if C % 256 == 0 else (128 if C % 128 == 0 else C)
    xd2 = xd.reshape(M, C)
    xl2 = xl.reshape(M, C)
    if Mp > M:
        xd2 = jnp.pad(xd2, ((0, Mp - M), (0, 0)))
        xl2 = jnp.pad(xl2, ((0, Mp - M), (0, 0)))
    nmb = Mp // tmr
    ncb = C // tc

    stats = pl.pallas_call(
        _bn_stats_kernel,
        out_shape=jax.ShapeDtypeStruct((4, C), jnp.float32),
        grid=(ncb, nmb),
        in_specs=[pl.BlockSpec((tmr, tc), lambda j, m: (m, j)),
                  pl.BlockSpec((tmr, tc), lambda j, m: (m, j))],
        out_specs=pl.BlockSpec((4, tc), lambda j, m: (0, j)),
        compiler_params=pltpu.CompilerParams(
            dimension_semantics=("parallel", "arbitrary")),
    )(xd2, xl2)

    out = pl.pallas_call(
        functools.partial(_bn_apply_kernel, count=float(M), eps=1e-5),
        out_shape=jax.ShapeDtypeStruct((Mp, C), xd.dtype),
        grid=(nmb, ncb),
        in_specs=[pl.BlockSpec((tmr, tc), lambda i, j: (i, j)),
                  pl.BlockSpec((tmr, tc), lambda i, j: (i, j)),
                  pl.BlockSpec((4, tc), lambda i, j: (0, j)),
                  pl.BlockSpec((1, tc), lambda i, j: (0, j)),
                  pl.BlockSpec((1, tc), lambda i, j: (0, j)),
                  pl.BlockSpec((1, tc), lambda i, j: (0, j)),
                  pl.BlockSpec((1, tc), lambda i, j: (0, j))],
        out_specs=pl.BlockSpec((tmr, tc), lambda i, j: (i, j)),
        compiler_params=pltpu.CompilerParams(
            dimension_semantics=("parallel", "parallel")),
    )(xd2, xl2, stats, gd, bd, gl, bl)
    return out[:M].reshape(N, H, W, C)


# ----------------------------------------------------------------------------
# Max pooling (NHWC) -- plain-JAX glue, negligible cost.
# ----------------------------------------------------------------------------
@functools.partial(jax.jit, static_argnames=("k", "s", "p", "ceil_mode"))
def max_pool2d(x, *, k, s, p=0, ceil_mode=False):
    N, H, W, C = x.shape

    def out_size(n):
        if ceil_mode:
            o = int(math.ceil((n + 2 * p - k) / s)) + 1
            if (o - 1) * s >= n + p:
                o -= 1
        else:
            o = (n + 2 * p - k) // s + 1
        return o

    Ho, Wo = out_size(H), out_size(W)
    ph = max(0, (Ho - 1) * s + k - H - p)
    pw = max(0, (Wo - 1) * s + k - W - p)
    return lax.reduce_window(
        x, jnp.array(-jnp.inf, x.dtype), lax.max,
        (1, k, k, 1), (1, s, s, 1),
        ((0, 0), (p, ph), (p, pw), (0, 0)))


# ----------------------------------------------------------------------------
# Parameter construction (deterministic He-style init, BN gamma=1 beta=0,
# L2Norm weight = 20; weights are pre-packed once into kernel layout).
# ----------------------------------------------------------------------------
def _conv_params(key, cout, cin, kh, kw):
    fan_in = cin * kh * kw
    w = jax.random.normal(key, (cout, cin, kh, kw), jnp.float32) * \
        np.sqrt(2.0 / fan_in)
    b = jnp.zeros((cout,), jnp.float32)
    return w, b


def prep_conv(w, b=None, *, stride=1, padding=0, dilation=1, relu=False,
              fold="auto"):
    """Pack a PyTorch-layout (Cout,Cin,kh,kw) weight for the Pallas conv.

    fold="kw"  : width taps folded into K  -> (kh, kw*Cin, Cout)
    fold="all" : all taps folded (tiny Cin)-> (1, kh*kw*Cin, Cout)
    fold="none": per-tap layout            -> (kh*kw, Cin, Cout)
    """
    Cout, Cin, kh, kw = w.shape
    if fold == "auto":
        if kh == 1 and kw == 1:
            fold = "none"
        elif Cin % 8 == 0:
            fold = "kw"
        else:
            fold = "all"                    # conv1_1 (Cin=3): full fold, K=32
    wk = jnp.transpose(w, (2, 3, 1, 0))     # (kh, kw, Cin, Cout)
    if fold == "kw":
        wk = wk.reshape(kh, kw * Cin, Cout)
    elif fold == "all":
        wk = wk.reshape(1, kh * kw * Cin, Cout)
    else:
        wk = wk.reshape(kh * kw, Cin, Cout)
    K = wk.shape[1]
    Kp = _round_up(max(K, 8), 8)
    if Kp != K:
        wk = jnp.pad(wk, ((0, 0), (0, Kp - K), (0, 0)))
    wk = wk.astype(jnp.bfloat16)
    if b is None:
        b = jnp.zeros((Cout,), jnp.float32)
    bk = b.astype(jnp.float32).reshape(1, Cout)
    return dict(w=wk, b=bk, kh=kh, kw=kw, stride=stride, padding=padding,
                dilation=dilation, relu=relu, fold=fold)


def build_vgg(key, cfg, in_ch=3):
    """Two op lists: through conv4_3(+ReLU) (torch idx 0..22), and the rest."""
    ops_a, ops_b = [], []
    ops = ops_a
    keys = iter(jax.random.split(key, 64))
    c = in_ch
    n_conv = 0
    for v in cfg:
        if v == 'M':
            ops.append(('pool', 2, 2, 0, False))
        elif v == 'C':
            ops.append(('pool', 2, 2, 0, True))
        else:
            w, b = _conv_params(next(keys), v, c, 3, 3)
            ops.append(('conv', prep_conv(w, b, padding=1, relu=True)))
            c = v
            n_conv += 1
            if n_conv == 10:          # conv4_3 (+ fused relu) -> split point
                ops = ops_b
    ops_b.append(('pool', 3, 1, 1, False))                       # pool5
    w, b = _conv_params(next(keys), 1024, 512, 3, 3)              # conv6
    ops_b.append(('conv', prep_conv(w, b, padding=6, dilation=6, relu=True)))
    w, b = _conv_params(next(keys), 1024, 1024, 1, 1)             # conv7
    ops_b.append(('conv', prep_conv(w, b, padding=0, relu=True)))
    return ops_a, ops_b


def build_extras(key, cfg, in_ch=1024):
    layers = []
    keys = iter(jax.random.split(key, 16))
    c = in_ch
    flag = False
    for k, v in enumerate(cfg):
        if c != 'S':
            ksz = (1, 3)[flag]
            if v == 'S':
                w, b = _conv_params(next(keys), cfg[k + 1], c, ksz, ksz)
                layers.append(prep_conv(w, b, stride=2, padding=1, relu=True))
            else:
                w, b = _conv_params(next(keys), v, c, ksz, ksz)
                layers.append(prep_conv(w, b, stride=1, padding=0, relu=True))
            flag = not flag
        c = v
    return layers


def prior_box():
    mean = []
    for k, f in enumerate(VOC['feature_maps']):
        for i, j in product(range(f), repeat=2):
            f_k = VOC['min_dim'] / VOC['steps'][k]
            cx = (j + 0.5) / f_k
            cy = (i + 0.5) / f_k
            s_k = VOC['min_sizes'][k] / VOC['min_dim']
            mean += [cx, cy, s_k, s_k]
            s_k_prime = math.sqrt(s_k * (VOC['max_sizes'][k] / VOC['min_dim']))
            mean += [cx, cy, s_k_prime, s_k_prime]
            for ar in VOC['aspect_ratios'][k]:
                mean += [cx, cy, s_k * math.sqrt(ar), s_k / math.sqrt(ar)]
                mean += [cx, cy, s_k / math.sqrt(ar), s_k * math.sqrt(ar)]
    out = np.asarray(mean, np.float32).reshape(-1, 4)
    if VOC['clip']:
        out = np.clip(out, 0.0, 1.0)
    return jnp.asarray(out)


def init_params(key):
    keys = jax.random.split(key, 8)
    params = {}
    params['vgg_a'], params['vgg_b'] = build_vgg(keys[0], BASE_CFG)
    params['extras'] = build_extras(keys[1], EXTRAS_CFG)
    params['l2norm_w'] = jnp.full((1, 512), 20.0, jnp.float32)

    fkeys = jax.random.split(keys[2], 5)
    lkeys = jax.random.split(keys[3], 5)
    ups, lefts = [], []
    for i in range(5):
        cin, cout = FUSION_CHANNELS[i], FUSION_CHANNELS[i + 1]
        # ConvTranspose2d weight layout: (in_channels, out_channels, 3, 3).
        wt = jax.random.normal(fkeys[i], (cin, cout, 3, 3), jnp.float32) * \
            np.sqrt(2.0 / (cin * 9))
        # equivalent ordinary conv weight (Cout, Cin, 3, 3): flipped kernel
        w_eq = jnp.flip(wt, axis=(2, 3)).transpose(1, 0, 2, 3)
        ups.append(dict(conv=prep_conv(w_eq, None, padding=0, relu=False),
                        gamma=jnp.ones((1, cout), jnp.float32),
                        beta=jnp.zeros((1, cout), jnp.float32),
                        padding=FUSION_PADDINGS[i],
                        out_shape=FUSION_SHAPES[i]))
        wl = jax.random.normal(lkeys[i], (cout, cout, 1, 1), jnp.float32) * \
            np.sqrt(2.0 / cout)
        lefts.append(dict(conv=prep_conv(wl, None, padding=0, relu=False),
                          gamma=jnp.ones((1, cout), jnp.float32),
                          beta=jnp.zeros((1, cout), jnp.float32)))
    params['fusion_ups'] = ups
    params['fusion_lefts'] = lefts

    # loc + conf heads fused into one conv per source (channels concatenated,
    # Cout zero-padded to a multiple of 128 for lane-dense stores).
    src_channels = [512, 1024, 512, 256, 256, 256]
    hkeys = jax.random.split(keys[4], 12)
    heads = []
    for k in range(6):
        lw, lb = _conv_params(hkeys[2 * k], MBOX[k] * 4, src_channels[k], 3, 3)
        cw, cb = _conv_params(hkeys[2 * k + 1], MBOX[k] * NUM_CLASSES,
                              src_channels[k], 3, 3)
        wcat = jnp.concatenate([lw, cw], axis=0)
        bcat = jnp.concatenate([lb, cb], axis=0)
        cout = wcat.shape[0]
        cout_p = _round_up(cout, 128)
        if cout_p != cout:
            wcat = jnp.pad(wcat, ((0, cout_p - cout), (0, 0), (0, 0), (0, 0)))
            bcat = jnp.pad(bcat, ((0, cout_p - cout),))
        heads.append(dict(conv=prep_conv(wcat, bcat, padding=1, relu=False),
                          nloc=MBOX[k] * 4, nconf=MBOX[k] * NUM_CLASSES))
    params['heads'] = heads
    params['priors'] = prior_box()
    return params


# ----------------------------------------------------------------------------
# Forward pass (NHWC everywhere; input transposed once)
# ----------------------------------------------------------------------------
def apply_ops(x, ops):
    for op in ops:
        if op[0] == 'conv':
            x = conv_apply(x, op[1])
        else:
            _, k, s, p, ceil = op
            x = max_pool2d(x, k=k, s=s, p=p, ceil_mode=ceil)
    return x


def fusion_step(x_up, x_left, up, left):
    """relu(bn(ConvTranspose(x_up))) + relu(bn(Conv1x1(x_left))) (train BN)."""
    stride, k = 2, 3
    p = up['padding']
    Ho, Wo = up['out_shape']
    N, H, W, Cin = x_up.shape

    # ConvTranspose2d as zero-insertion + ordinary conv with flipped kernel.
    op_h = Ho - ((H - 1) * stride - 2 * p + k)
    op_w = Wo - ((W - 1) * stride - 2 * p + k)
    xz = jnp.zeros((N, (H - 1) * stride + 1, (W - 1) * stride + 1, Cin),
                   x_up.dtype)
    xz = xz.at[:, ::stride, ::stride, :].set(x_up)
    lo = k - 1 - p
    xz = jnp.pad(xz, ((0, 0), (lo, lo + op_h), (lo, lo + op_w), (0, 0)))

    conv_down = conv_apply(xz, up['conv'])
    conv_left = conv_apply(x_left, left['conv'])
    return fused_bn_relu_add(conv_down, conv_left,
                             up['gamma'], up['beta'],
                             left['gamma'], left['beta'])


def myssd_forward(x, params):
    """phase='train': returns (loc (B,8732,4), conf (B,8732,21), priors)."""
    x = jnp.transpose(x, (0, 2, 3, 1)).astype(jnp.bfloat16)   # NCHW -> NHWC once
    sources, loc, conf = [], [], []

    # VGG up to conv4_3 + relu
    x = apply_ops(x, params['vgg_a'])
    sources.append(l2norm(x, params['l2norm_w']))

    # rest of VGG (pool, conv5_x, pool5, conv6, conv7)
    x = apply_ops(x, params['vgg_b'])
    sources.append(x)

    # extras (ReLU fused into every conv; every 2nd output is a source)
    for k, cp in enumerate(params['extras']):
        x = conv_apply(x, cp)
        if k % 2 == 1:
            sources.append(x)

    # top-down fusion
    n_src = len(sources)
    for i in range(n_src - 1):
        s_i = n_src - 1 - i
        s_next = s_i - 1
        sources[s_next] = fusion_step(sources[s_i], sources[s_next],
                                      params['fusion_ups'][i],
                                      params['fusion_lefts'][i])

    # fused loc/conf heads (one conv per source; padded channels sliced off)
    for src, hd in zip(sources, params['heads']):
        y = conv_apply(src, hd['conv'], out_dtype=jnp.float32)
        n4, ncf = hd['nloc'], hd['nconf']
        B = y.shape[0]
        loc.append(y[..., :n4].reshape(B, -1))
        conf.append(y[..., n4:n4 + ncf].reshape(B, -1))

    loc = jnp.concatenate(loc, axis=1)
    conf = jnp.concatenate(conf, axis=1)
    B = loc.shape[0]
    return (loc.reshape(B, -1, 4),
            conf.reshape(B, -1, NUM_CLASSES),
            params['priors'])


# ----------------------------------------------------------------------------
if __name__ == "__main__":
    key = jax.random.PRNGKey(0)
    pkey, xkey = jax.random.split(key)
    params = init_params(pkey)

    # input image batch, PyTorch-style NCHW, the size the forward implies.
    x = jax.random.normal(xkey, (1, 3, 300, 300), jnp.float32)

    loc, conf, priors = myssd_forward(x, params)
    (loc, conf, priors) = jax.block_until_ready((loc, conf, priors))

    assert loc.shape == (1, 8732, 4), loc.shape
    assert conf.shape == (1, 8732, NUM_CLASSES), conf.shape
    assert priors.shape == (8732, 4), priors.shape
    assert bool(jnp.all(jnp.isfinite(loc))) and bool(jnp.all(jnp.isfinite(conf)))

    print("KERNEL_OK")
</pallas_src>

<mosaic_0001>
module attributes {stable_mosaic.version = 11 : i64} {
  func.func @_conv_kernel(%arg0: i32, %arg1: i32, %arg2: memref<1x3952x32xbf16, #tpu.memory_space<vmem>>, %arg3: memref<1x32x64xbf16, #tpu.memory_space<vmem>>, %arg4: memref<1x64xf32, #tpu.memory_space<vmem>>, %arg5: memref<1x3952x64xbf16, #tpu.memory_space<vmem>>) attributes {dimension_semantics = [#tpu.dimension_semantics<parallel>, #tpu.dimension_semantics<parallel>], iteration_bounds = array<i64: 1, 24>, scalar_prefetch = 0 : i64, scratch_operands = 0 : i64, tpu.core_type = #tpu.core_type<tc>, window_params = [{transform_indices = @transform_0, window_bounds = array<i64: 1, 3952, 32>}, {transform_indices = @transform_1, window_bounds = array<i64: 1, 32, 64>}, {transform_indices = @transform_2, window_bounds = array<i64: 1, 64>}, {transform_indices = @transform_3, window_bounds = array<i64: 1, 3952, 64>}]} {
    %c0 = arith.constant 0 : index
    %c0_0 = arith.constant 0 : index
    %c0_1 = arith.constant 0 : index
    %0 = vector.load %arg2[%c0, %c0_0, %c0_1] : memref<1x3952x32xbf16, #tpu.memory_space<vmem>>, vector<1x3952x32xbf16>
    %1 = vector.shape_cast %0 : vector<1x3952x32xbf16> to vector<3952x32xbf16>
    %c0_2 = arith.constant 0 : index
    %c0_3 = arith.constant 0 : index
    %c0_4 = arith.constant 0 : index
    %2 = vector.load %arg3[%c0_2, %c0_3, %c0_4] : memref<1x32x64xbf16, #tpu.memory_space<vmem>>, vector<1x32x64xbf16>
    %3 = vector.shape_cast %2 : vector<1x32x64xbf16> to vector<32x64xbf16>
    %cst = arith.constant dense<0.000000e+00> : vector<3952x64xf32>
    %4 = tpu.matmul %1, %3, %cst {dimension_numbers = #tpu.dot_dimension_numbers<[1], [0], [0], [1], [0, 0, 1, 1], [], []>} : vector<3952x32xbf16>, vector<32x64xbf16>, vector<3952x64xf32> -> vector<3952x64xf32>
    %c0_5 = arith.constant 0 : index
    %c0_6 = arith.constant 0 : index
    %5 = vector.load %arg4[%c0_5, %c0_6] : memref<1x64xf32, #tpu.memory_space<vmem>>, vector<1x64xf32>
    %6 = vector.broadcast %5 : vector<1x64xf32> to vector<3952x64xf32>
    %7 = arith.addf %4, %6 : vector<3952x64xf32>
    %cst_7 = arith.constant 0.000000e+00 : f32
    %8 = vector.broadcast %cst_7 : f32 to vector<3952x64xf32>
    %9 = arith.maximumf %7, %8 : vector<3952x64xf32>
    %10 = arith.truncf %9 : vector<3952x64xf32> to vector<3952x64xbf16>
    %c0_8 = arith.constant 0 : index
    %c0_9 = arith.constant 0 : index
    %c0_10 = arith.constant 0 : index
    %11 = vector.load %arg5[%c0_8, %c0_9, %c0_10] : memref<1x3952x64xbf16, #tpu.memory_space<vmem>>, vector<1x3952x64xbf16>
    %12 = vector.shape_cast %11 : vector<1x3952x64xbf16> to vector<3952x64xbf16>
    %13 = vector.shape_cast %10 : vector<3952x64xbf16> to vector<1x3952x64xbf16>
    tpu.vector_store %arg5[%c0_8, %c0_9, %c0_10], %13 {strides = array<i32>} : memref<1x3952x64xbf16, #tpu.memory_space<vmem>>, vector<1x3952x64xbf16>,
    return
  }
  func.func @transform_0(%arg0: i32, %arg1: i32) -> (i32, i32, i32) {
    %c0_i32 = arith.constant 0 : i32
    %c0_i32_0 = arith.constant 0 : i32
    %c0_i32_1 = arith.constant 0 : i32
    return %arg1, %c0_i32, %c0_i32_0 : i32, i32, i32
  }
  func.func @transform_1(%arg0: i32, %arg1: i32) -> (i32, i32, i32) {
    %c0_i32 = arith.constant 0 : i32
    %c0_i32_0 = arith.constant 0 : i32
    %c0_i32_1 = arith.constant 0 : i32
    return %c0_i32, %c0_i32_0, %arg0 : i32, i32, i32
  }
  func.func @transform_2(%arg0: i32, %arg1: i32) -> (i32, i32) {
    %c0_i32 = arith.constant 0 : i32
    %c0_i32_0 = arith.constant 0 : i32
    return %c0_i32, %arg0 : i32, i32
  }
  func.func @transform_3(%arg0: i32, %arg1: i32) -> (i32, i32, i32) {
    %c0_i32 = arith.constant 0 : i32
    %c0_i32_0 = arith.constant 0 : i32
    return %arg1, %c0_i32, %arg0 : i32, i32, i32
  }
}

</mosaic_0001>

<llo_original>
// kernel: _conv2d_impl.1
$region0: #{_conv2d_impl.1}
  #allocation0 [shape = 'u32[]', space=smem, size = 0x4, offset = 0x4, fixed_abs, tag = 'smem constant byte address 0x4 - core index']
  #allocation1 [shape = 'u32[144,128]{1,0:T(1,128)}', space=vmem, size = 0x12000, scoped, tag = 'internal scratch']
  %s0 = inlined_call_operand.vmem [shape: bf16[24,3952,32], index: 0, kind: input, shape index: {}]
  %s1 = inlined_call_operand.vmem [shape: bf16[1,32,64], index: 1, kind: input, shape index: {}]
  %s2 = inlined_call_operand.vmem [shape: f32[1,64], index: 2, kind: input, shape index: {}]
  %s3 = inlined_call_operand.vmem [shape: bf16[24,3952,64], index: 3, kind: output, shape index: {}]
  %s4 = sld [smem:[#allocation0]]
  $region45: #{_conv2d_impl.1} parent=0
    _
  %s6 = ssub.s32 1, %s4
  %s7 = scalar_select 0, %s6, %s4
  loop: start=0, step=1, limit=26
  $region2: #{_conv2d_impl.1} parent=0 // loop_pre_header
    _
  $region3: #{_conv2d_impl.1} parent=0 // loop_header
    %s9 = sphi 0, %s13
    %p10 = scmp.ge.s32.totalorder %s9, 26
    %s16 = sphi 0, %s28
    %s17 = sphi 0, %s24
    %s18 = sphi 0, %s16
    %s19 = sphi 0, %s17
    %s20 = sphi 0, %s18
    %s21 = sphi 0, %s19
    %s31 = sphi 0, %s33
    %s34 = sphi 0, %s31
    %s35 = sphi 0, %s34
    %s51 = sphi 0, %s35
    %s57 = sphi 0, %s59
    %s60 = sphi 0, %s57
    %s61 = sphi 0, %s60
    %s77 = sphi 0, %s61
    %s83 = sphi 0, %s85
    %s86 = sphi 0, %s83
    %s87 = sphi 0, %s86
    %s103 = sphi 0, %s87
    %s111 = sphi 0, %s113
    %s114 = sphi 0, %s111
    %s115 = sphi 0, %s114
    %s131 = sphi 0, %s115
  $region4: #{_conv2d_impl.1} parent=0 // loop_header_branch
    %12 = sbr.rel (%p10) target = $region8
  $region5: #{_conv2d_impl.1} parent=0 // loop_body
    %s14 = ssub.s32 %s9, 1
    %s15 = ssub.s32 %s9, 2
    %s22 = sadd.s32 1, %s17
    %p23 = scmp.ge.s32.totalorder %s22, 24
    %s24 = scalar_select %p23, 0, %s22
    %s25 = sadd.s32 1, %s16
    %s26 = scalar_select %p23, %s25, %s16
    %p27 = scmp.ge.s32.totalorder %s26, 1
    %s28 = scalar_select %p27, 0, %s26
    %s29 = ssub.s32 %s17, %s24
    %p30 = scmp.eq.s32.totalorder %s29, 0
    %s32 = sadd.s32 %s31, 1
    %s33 = scalar_select %p30, %s31, %s32
    %p36 = pneg %p30
    %p37 = scmp.eq.s32.totalorder %s9, 23
    %p38 = por %p36, %p37
    %p39 = scmp.ne.s32.totalorder %s31, %s34
    %p40 = scmp.eq.s32.totalorder %s9, 0
    %p41 = por %p39, %p40
    %p42 = scmp.ne.s32.totalorder %s31, %s34
    %p43 = scmp.eq.s32.totalorder %s14, 23
    %p44 = por %p42, %p43
    %p45 = scmp.ne.s32.totalorder %s34, %s35
    %p46 = scmp.eq.s32.totalorder %s14, 0
    %p47 = por %p45, %p46
    %p48 = scmp.ne.s32.totalorder %s34, %s35
    %p49 = scmp.eq.s32.totalorder %s15, 23
    %p50 = por %p48, %p49
    %p52 = scmp.ne.s32.totalorder %s35, %s51
    %p53 = scmp.eq.s32.totalorder %s15, 0
    %p54 = por %p52, %p53
    %s55 = ssub.s32 %s16, %s28
    %p56 = scmp.eq.s32.totalorder %s55, 0
    %s58 = sadd.s32 %s57, 1
    %s59 = scalar_select %p56, %s57, %s58
    %p62 = pneg %p56
    %p63 = scmp.eq.s32.totalorder %s9, 23
    %p64 = por %p62, %p63
    %p65 = scmp.ne.s32.totalorder %s57, %s60
    %p66 = scmp.eq.s32.totalorder %s9, 0
    %p67 = por %p65, %p66
    %p68 = scmp.ne.s32.totalorder %s57, %s60
    %p69 = scmp.eq.s32.totalorder %s14, 23
    %p70 = por %p68, %p69
    %p71 = scmp.ne.s32.totalorder %s60, %s61
    %p72 = scmp.eq.s32.totalorder %s14, 0
    %p73 = por %p71, %p72
    %p74 = scmp.ne.s32.totalorder %s60, %s61
    %p75 = scmp.eq.s32.totalorder %s15, 23
    %p76 = por %p74, %p75
    %p78 = scmp.ne.s32.totalorder %s61, %s77
    %p79 = scmp.eq.s32.totalorder %s15, 0
    %p80 = por %p78, %p79
    %s81 = ssub.s32 %s16, %s28
    %p82 = scmp.eq.s32.totalorder %s81, 0
    %s84 = sadd.s32 %s83, 1
    %s85 = scalar_select %p82, %s83, %s84
    %p88 = pneg %p82
    %p89 = scmp.eq.s32.totalorder %s9, 23
    %p90 = por %p88, %p89
    %p91 = scmp.ne.s32.totalorder %s83, %s86
    %p92 = scmp.eq.s32.totalorder %s9, 0
    %p93 = por %p91, %p92
    %p94 = scmp.ne.s32.totalorder %s83, %s86
    %p95 = scmp.eq.s32.totalorder %s14, 23
    %p96 = por %p94, %p95
    %p97 = scmp.ne.s32.totalorder %s86, %s87
    %p98 = scmp.eq.s32.totalorder %s14, 0
    %p99 = por %p97, %p98
    %p100 = scmp.ne.s32.totalorder %s86, %s87
    %p101 = scmp.eq.s32.totalorder %s15, 23
    %p102 = por %p100, %p101
    %p104 = scmp.ne.s32.totalorder %s87, %s103
    %p105 = scmp.eq.s32.totalorder %s15, 0
    %p106 = por %p104, %p105
    %s107 = ssub.s32 %s17, %s24
    %s108 = ssub.s32 %s16, %s28
    %s109 = sor.u32 %s107, %s108
    %p110 = scmp.eq.s32.totalorder %s109, 0
    %s112 = sadd.s32 %s111, 1
    %s113 = scalar_select %p110, %s111, %s112
    %p116 = pneg %p110
    %p117 = scmp.eq.s32.totalorder %s9, 23
    %p118 = por %p116, %p117
    %p119 = scmp.ne.s32.totalorder %s111, %s114
    %p120 = scmp.eq.s32.totalorder %s9, 0
    %p121 = por %p119, %p120
    %p122 = scmp.ne.s32.totalorder %s111, %s114
    %p123 = scmp.eq.s32.totalorder %s14, 23
    %p124 = por %p122, %p123
    %p125 = scmp.ne.s32.totalorder %s114, %s115
    %p126 = scmp.eq.s32.totalorder %s14, 0
    %p127 = por %p125, %p126
    %p128 = scmp.ne.s32.totalorder %s114, %s115
    %p129 = scmp.eq.s32.totalorder %s15, 23
    %p130 = por %p128, %p129
    %p132 = scmp.ne.s32.totalorder %s115, %s131
    %p133 = scmp.eq.s32.totalorder %s15, 0
    %p134 = por %p132, %p133
    %p135 = scmp.le.s32.totalorder 1, %s9
    %p136 = scmp.lt.s32.totalorder %s9, 25
    %p137 = pnand %p135, %p136
    %p138 = pneg %p137
    // Predicated region
    $region9: #{_conv2d_impl.1} parent=5 // pred_check
      _
    $region10: #{_conv2d_impl.1} parent=5 // pred_check_branch
      %140 = sbr.rel (%p137) target = $region12
    $region11: #{_conv2d_impl.1} parent=5 // pred_region
      %s141 = ssub.s32 %s9, 1
      // Predicated region
      $region13: #{_conv2d_impl.1} parent=11 // pred_check
        %p142 = pneg %p73
      $region14: #{_conv2d_impl.1} parent=11 // pred_check_branch
        %144 = sbr.rel (%p142) target = $region16
      $region15: #{_conv2d_impl.1} parent=11 // pred_region
        %p145 = scmp.lt.s32.totalorder %s18, 0
        %s146 = scalar_select %p145, %s18, 0
        %s147 = smul.addr %s146, 4
        %s148 = scalar_lea.vmem %s1, %s147
      $region16: #{_conv2d_impl.1} parent=11 // pred_fallthru
        _
      // Predicated region
      $region17: #{_conv2d_impl.1} parent=11 // pred_check
        %p149 = pneg %p99
      $region18: #{_conv2d_impl.1} parent=11 // pred_check_branch
        %151 = sbr.rel (%p149) target = $region20
      $region19: #{_conv2d_impl.1} parent=11 // pred_region
        %p152 = scmp.lt.s32.totalorder %s18, 0
        %s153 = scalar_select %p152, %s18, 0
        %s154 = scalar_lea.vmem %s2, %s153
      $region20: #{_conv2d_impl.1} parent=11 // pred_fallthru
        _
    $region12: #{_conv2d_impl.1} parent=5 // pred_fallthru
      _
    %p155 = scmp.lt.s32.totalorder %s9, 24
    // Predicated region
    $region21: #{_conv2d_impl.1} parent=5 // pred_check
      %p156 = pneg %p155
    $region22: #{_conv2d_impl.1} parent=5 // pred_check_branch
      %158 = sbr.rel (%p156) target = $region24
    $region23: #{_conv2d_impl.1} parent=5 // pred_region
      // Predicated region
      $region25: #{_conv2d_impl.1} parent=23 // pred_check
        %p159 = pneg %p41
      $region26: #{_conv2d_impl.1} parent=23 // pred_check_branch
        %161 = sbr.rel (%p159) target = $region28
      $region27: #{_conv2d_impl.1} parent=23 // pred_region
        %p162 = scmp.lt.s32.totalorder %s17, 23
        %s163 = scalar_select %p162, %s17, 23
        %s164 = smul.addr %s163, 494
        %s165 = smul.addr %s164, 4
        %s166 = scalar_lea.vmem %s0, %s165
      $region28: #{_conv2d_impl.1} parent=23 // pred_fallthru
        _
    $region24: #{_conv2d_impl.1} parent=5 // pred_fallthru
      _
    %p167 = scmp.le.s32.totalorder 1, %s9
    %p168 = scmp.lt.s32.totalorder %s9, 25
    %p169 = pnand %p167, %p168
    %p170 = pneg %p169
    // Predicated region
    $region29: #{_conv2d_impl.1} parent=5 // pred_check
      _
    $region30: #{_conv2d_impl.1} parent=5 // pred_check_branch
      %172 = sbr.rel (%p169) target = $region32
    $region31: #{_conv2d_impl.1} parent=5 // pred_region
      %s173 = ssub.s32 %s9, 1
      %p174 = scmp.lt.s32.totalorder %s19, 23
      %s175 = scalar_select %p174, %s19, 23
      %s176 = smul.addr %s175, 494
      %s177 = smul.addr %s176, 4
      %s178 = scalar_lea.vmem %s0, %s177
      %p179 = pneg %p47
      %p180 = pneg %p44
      %p181 = scmp.lt.s32.totalorder %s18, 0
      %s182 = scalar_select %p181, %s18, 0
      %s183 = smul.addr %s182, 4
      %s184 = scalar_lea.vmem %s1, %s183
      %p185 = pneg %p73
      %p186 = pneg %p70
      %p187 = scmp.lt.s32.totalorder %s18, 0
      %s188 = scalar_select %p187, %s18, 0
      %s189 = scalar_lea.vmem %s2, %s188
      %p190 = pneg %p99
      %p191 = pneg %p96
      %p192 = pneg %p127
      %p193 = pneg %p124
      %p194 = scmp.lt.s32.totalorder %s19, 23
      %s195 = scalar_select %p194, %s19, 23
      %p196 = scmp.lt.s32.totalorder %s18, 0
      %s197 = scalar_select %p196, %s18, 0
      %s198 = smul.addr %s195, 494
      %s199 = sadd.s32 %s197, %s198
      %s200 = smul.addr %s199, 4
      %s201 = scalar_lea.vmem %s3, %s200
      %p202 = scmp.lt.s32.totalorder %s19, 23
      %s203 = scalar_select %p202, %s19, 23
      %s204 = smul.addr %s203, 494
      %s205 = smul.addr %s204, 4
      %s206 = scalar_lea.vmem %s0, %s205
      %p207 = scmp.lt.s32.totalorder %s18, 0
      %s208 = scalar_select %p207, %s18, 0
      %s209 = smul.addr %s208, 4
      %s210 = scalar_lea.vmem %s1, %s209
      %p211 = scmp.lt.s32.totalorder %s18, 0
      %s212 = scalar_select %p211, %s18, 0
      %s213 = scalar_lea.vmem %s2, %s212
      %p214 = scmp.lt.s32.totalorder %s19, 23
      %s215 = scalar_select %p214, %s19, 23
      %p216 = scmp.lt.s32.totalorder %s18, 0
      %s217 = scalar_select %p216, %s18, 0
      %s218 = smul.addr %s215, 494
      %s219 = sadd.s32 %s217, %s218
      %s220 = smul.addr %s219, 4
      %s221 = scalar_lea.vmem %s3, %s220
      %v223 = vld [vmem:[%s206] sm:$0xf]
      %v224 = vld [vmem:[%s206 + $0x4] sm:$0xf]
      %v225 = vld [vmem:[%s206 + $0x8] sm:$0xf]
      %v226 = vld [vmem:[%s206 + $0xc] sm:$0xf]
      %v227 = vld [vmem:[%s206 + $0x10] sm:$0xf]
      %v228 = vld [vmem:[%s206 + $0x14] sm:$0xf]
      %v229 = vld [vmem:[%s206 + $0x18] sm:$0xf]
      %v230 = vld [vmem:[%s206 + $0x1c] sm:$0xf]
      %v231 = vld [vmem:[%s206 + $0x20] sm:$0xf]
      %v232 = vld [vmem:[%s206 + $0x24] sm:$0xf]
      %v233 = vld [vmem:[%s206 + $0x28] sm:$0xf]
      %v234 = vld [vmem:[%s206 + $0x2c] sm:$0xf]
      %v235 = vld [vmem:[%s206 + $0x30] sm:$0xf]
      %v236 = vld [vmem:[%s206 + $0x34] sm:$0xf]
      %v237 = vld [vmem:[%s206 + $0x38] sm:$0xf]
      %v238 = vld [vmem:[%s206 + $0x3c] sm:$0xf]
      %v239 = vld [vmem:[%s206 + $0x40] sm:$0xf]
      %v240 = vld [vmem:[%s206 + $0x44] sm:$0xf]
      %v241 = vld [vmem:[%s206 + $0x48] sm:$0xf]
      %v242 = vld [vmem:[%s206 + $0x4c] sm:$0xf]
      %v243 = vld [vmem:[%s206 + $0x50] sm:$0xf]
      %v244 = vld [vmem:[%s206 + $0x54] sm:$0xf]
      %v245 = vld [vmem:[%s206 + $0x58] sm:$0xf]
      %v246 = vld [vmem:[%s206 + $0x5c] sm:$0xf]
      %v247 = vld [vmem:[%s206 + $0x60] sm:$0xf]
      %v248 = vld [vmem:[%s206 + $0x64] sm:$0xf]
      %v249 = vld [vmem:[%s206 + $0x68] sm:$0xf]
      %v250 = vld [vmem:[%s206 + $0x6c] sm:$0xf]
      %v251 = vld [vmem:[%s206 + $0x70] sm:$0xf]
      %v252 = vld [vmem:[%s206 + $0x74] sm:$0xf]
      %v253 = vld [vmem:[%s206 + $0x78] sm:$0xf]
      %v254 = vld [vmem:[%s206 + $0x7c] sm:$0xf]
      %v255 = vld [vmem:[%s206 + $0x80] sm:$0xf]
      %v256 = vld [vmem:[%s206 + $0x84] sm:$0xf]
      %v257 = vld [vmem:[%s206 + $0x88] sm:$0xf]
      %v258 = vld [vmem:[%s206 + $0x8c] sm:$0xf]
      %v259 = vld [vmem:[%s206 + $0x90] sm:$0xf]
      %v260 = vld [vmem:[%s206 + $0x94] sm:$0xf]
      %v261 = vld [vmem:[%s206 + $0x98] sm:$0xf]
      %v262 = vld [vmem:[%s206 + $0x9c] sm:$0xf]
      %v263 = vld [vmem:[%s206 + $0xa0] sm:$0xf]
      %v264 = vld [vmem:[%s206 + $0xa4] sm:$0xf]
      %v265 = vld [vmem:[%s206 + $0xa8] sm:$0xf]
      %v266 = vld [vmem:[%s206 + $0xac] sm:$0xf]
      %v267 = vld [vmem:[%s206 + $0xb0] sm:$0xf]
      %v268 = vld [vmem:[%s206 + $0xb4] sm:$0xf]
      %v269 = vld [vmem:[%s206 + $0xb8] sm:$0xf]
      %v270 = vld [vmem:[%s206 + $0xbc] sm:$0xf]
      %v271 = vld [vmem:[%s206 + $0xc0] sm:$0xf]
      %v272 = vld [vmem:[%s206 + $0xc4] sm:$0xf]
      %v273 = vld [vmem:[%s206 + $0xc8] sm:$0xf]
      %v274 = vld [vmem:[%s206 + $0xcc] sm:$0xf]
      %v275 = vld [vmem:[%s206 + $0xd0] sm:$0xf]
      %v276 = vld [vmem:[%s206 + $0xd4] sm:$0xf]
      %v277 = vld [vmem:[%s206 + $0xd8] sm:$0xf]
      %v278 = vld [vmem:[%s206 + $0xdc] sm:$0xf]
      %v279 = vld [vmem:[%s206 + $0xe0] sm:$0xf]
      %v280 = vld [vmem:[%s206 + $0xe4] sm:$0xf]
      %v281 = vld [vmem:[%s206 + $0xe8] sm:$0xf]
      %v282 = vld [vmem:[%s206 + $0xec] sm:$0xf]
      %v283 = vld [vmem:[%s206 + $0xf0] sm:$0xf]
      %v284 = vld [vmem:[%s206 + $0xf4] sm:$0xf]
      %v285 = vld [vmem:[%s206 + $0xf8] sm:$0xf]
      %v286 = vld [vmem:[%s206 + $0xfc] sm:$0xf]
      %v287 = vld [vmem:[%s206 + $0x100] sm:$0xf]
      %v288 = vld [vmem:[%s206 + $0x104] sm:$0xf]
      %v289 = vld [vmem:[%s206 + $0x108] sm:$0xf]
      %v290 = vld [vmem:[%s206 + $0x10c] sm:$0xf]
      %v291 = vld [vmem:[%s206 + $0x110] sm:$0xf]
      %v292 = vld [vmem:[%s206 + $0x114] sm:$0xf]
      %v293 = vld [vmem:[%s206 + $0x118] sm:$0xf]
      %v294 = vld [vmem:[%s206 + $0x11c] sm:$0xf]
      %v295 = vld [vmem:[%s206 + $0x120] sm:$0xf]
      %v296 = vld [vmem:[%s206 + $0x124] sm:$0xf]
      %v297 = vld [vmem:[%s206 + $0x128] sm:$0xf]
      %v298 = vld [vmem:[%s206 + $0x12c] sm:$0xf]
      %v299 = vld [vmem:[%s206 + $0x130] sm:$0xf]
      %v300 = vld [vmem:[%s206 + $0x134] sm:$0xf]
      %v301 = vld [vmem:[%s206 + $0x138] sm:$0xf]
      %v302 = vld [vmem:[%s206 + $0x13c] sm:$0xf]
      %v303 = vld [vmem:[%s206 + $0x140] sm:$0xf]
      %v304 = vld [vmem:[%s206 + $0x144] sm:$0xf]
      %v305 = vld [vmem:[%s206 + $0x148] sm:$0xf]
      %v306 = vld [vmem:[%s206 + $0x14c] sm:$0xf]
      %v307 = vld [vmem:[%s206 + $0x150] sm:$0xf]
      %v308 = vld [vmem:[%s206 + $0x154] sm:$0xf]
      %v309 = vld [vmem:[%s206 + $0x158] sm:$0xf]
      %v310 = vld [vmem:[%s206 + $0x15c] sm:$0xf]
      %v311 = vld [vmem:[%s206 + $0x160] sm:$0xf]
      %v312 = vld [vmem:[%s206 + $0x164] sm:$0xf]
      %v313 = vld [vmem:[%s206 + $0x168] sm:$0xf]
      %v314 = vld [vmem:[%s206 + $0x16c] sm:$0xf]
      %v315 = vld [vmem:[%s206 + $0x170] sm:$0xf]
      %v316 = vld [vmem:[%s206 + $0x174] sm:$0xf]
      %v317 = vld [vmem:[%s206 + $0x178] sm:$0xf]
      %v318 = vld [vmem:[%s206 + $0x17c] sm:$0xf]
      %v319 = vld [vmem:[%s206 + $0x180] sm:$0xf]
      %v320 = vld [vmem:[%s206 + $0x184] sm:$0xf]
      %v321 = vld [vmem:[%s206 + $0x188] sm:$0xf]
      %v322 = vld [vmem:[%s206 + $0x18c] sm:$0xf]
      %v323 = vld [vmem:[%s206 + $0x190] sm:$0xf]
      %v324 = vld [vmem:[%s206 + $0x194] sm:$0xf]
      %v325 = vld [vmem:[%s206 + $0x198] sm:$0xf]
      %v326 = vld [vmem:[%s206 + $0x19c] sm:$0xf]
      %v327 = vld [vmem:[%s206 + $0x1a0] sm:$0xf]
      %v328 = vld [vmem:[%s206 + $0x1a4] sm:$0xf]
      %v329 = vld [vmem:[%s206 + $0x1a8] sm:$0xf]
      %v330 = vld [vmem:[%s206 + $0x1ac] sm:$0xf]
      %v331 = vld [vmem:[%s206 + $0x1b0] sm:$0xf]
      %v332 = vld [vmem:[%s206 + $0x1b4] sm:$0xf]
      %v333 = vld [vmem:[%s206 + $0x1b8] sm:$0xf]
      %v334 = vld [vmem:[%s206 + $0x1bc] sm:$0xf]
      %v335 = vld [vmem:[%s206 + $0x1c0] sm:$0xf]
      %v336 = vld [vmem:[%s206 + $0x1c4] sm:$0xf]
      %v337 = vld [vmem:[%s206 + $0x1c8] sm:$0xf]
      %v338 = vld [vmem:[%s206 + $0x1cc] sm:$0xf]
      %v339 = vld [vmem:[%s206 + $0x1d0] sm:$0xf]
      %v340 = vld [vmem:[%s206 + $0x1d4] sm:$0xf]
      %v341 = vld [vmem:[%s206 + $0x1d8] sm:$0xf]
      %v342 = vld [vmem:[%s206 + $0x1dc] sm:$0xf]
      %v343 = vld [vmem:[%s206 + $0x1e0] sm:$0xf]
      %v344 = vld [vmem:[%s206 + $0x1e4] sm:$0xf]
      %v345 = vld [vmem:[%s206 + $0x1e8] sm:$0xf]
      %v346 = vld [vmem:[%s206 + $0x1ec] sm:$0xf]
      %v347 = vld [vmem:[%s206 + $0x1f0] sm:$0xf]
      %v348 = vld [vmem:[%s206 + $0x1f4] sm:$0xf]
      %v349 = vld [vmem:[%s206 + $0x1f8] sm:$0xf]
      %v350 = vld [vmem:[%s206 + $0x1fc] sm:$0xf]
      %v351 = vld [vmem:[%s206 + $0x200] sm:$0xf]
      %v352 = vld [vmem:[%s206 + $0x204] sm:$0xf]
      %v353 = vld [vmem:[%s206 + $0x208] sm:$0xf]
      %v354 = vld [vmem:[%s206 + $0x20c] sm:$0xf]
      %v355 = vld [vmem:[%s206 + $0x210] sm:$0xf]
      %v356 = vld [vmem:[%s206 + $0x214] sm:$0xf]
      %v357 = vld [vmem:[%s206 + $0x218] sm:$0xf]
      %v358 = vld [vmem:[%s206 + $0x21c] sm:$0xf]
      %v359 = vld [vmem:[%s206 + $0x220] sm:$0xf]
      %v360 = vld [vmem:[%s206 + $0x224] sm:$0xf]
      %v361 = vld [vmem:[%s206 + $0x228] sm:$0xf]
      %v362 = vld [vmem:[%s206 + $0x22c] sm:$0xf]
      %v363 = vld [vmem:[%s206 + $0x230] sm:$0xf]
      %v364 = vld [vmem:[%s206 + $0x234] sm:$0xf]
      %v365 = vld [vmem:[%s206 + $0x238] sm:$0xf]
      %v366 = vld [vmem:[%s206 + $0x23c] sm:$0xf]
      %v367 = vld [vmem:[%s206 + $0x240] sm:$0xf]
      %v368 = vld [vmem:[%s206 + $0x244] sm:$0xf]
      %v369 = vld [vmem:[%s206 + $0x248] sm:$0xf]
      %v370 = vld [vmem:[%s206 + $0x24c] sm:$0xf]
      %v371 = vld [vmem:[%s206 + $0x250] sm:$0xf]
      %v372 = vld [vmem:[%s206 + $0x254] sm:$0xf]
      %v373 = vld [vmem:[%s206 + $0x258] sm:$0xf]
      %v374 = vld [vmem:[%s206 + $0x25c] sm:$0xf]
      %v375 = vld [vmem:[%s206 + $0x260] sm:$0xf]
      %v376 = vld [vmem:[%s206 + $0x264] sm:$0xf]
      %v377 = vld [vmem:[%s206 + $0x268] sm:$0xf]
      %v378 = vld [vmem:[%s206 + $0x26c] sm:$0xf]
      %v379 = vld [vmem:[%s206 + $0x270] sm:$0xf]
      %v380 = vld [vmem:[%s206 + $0x274] sm:$0xf]
      %v381 = vld [vmem:[%s206 + $0x278] sm:$0xf]
      %v382 = vld [vmem:[%s206 + $0x27c] sm:$0xf]
      %v383 = vld [vmem:[%s206 + $0x280] sm:$0xf]
      %v384 = vld [vmem:[%s206 + $0x284] sm:$0xf]
      %v385 = vld [vmem:[%s206 + $0x288] sm:$0xf]
      %v386 = vld [vmem:[%s206 + $0x28c] sm:$0xf]
      %v387 = vld [vmem:[%s206 + $0x290] sm:$0xf]
      %v388 = vld [vmem:[%s206 + $0x294] sm:$0xf]
      %v389 = vld [vmem:[%s206 + $0x298] sm:$0xf]
      %v390 = vld [vmem:[%s206 + $0x29c] sm:$0xf]
      %v391 = vld [vmem:[%s206 + $0x2a0] sm:$0xf]
      %v392 = vld [vmem:[%s206 + $0x2a4] sm:$0xf]
      %v393 = vld [vmem:[%s206 + $0x2a8] sm:$0xf]
      %v394 = vld [vmem:[%s206 + $0x2ac] sm:$0xf]
      %v395 = vld [vmem:[%s206 + $0x2b0] sm:$0xf]
      %v396 = vld [vmem:[%s206 + $0x2b4] sm:$0xf]
      %v397 = vld [vmem:[%s206 + $0x2b8] sm:$0xf]
      %v398 = vld [vmem:[%s206 + $0x2bc] sm:$0xf]
      %v399 = vld [vmem:[%s206 + $0x2c0] sm:$0xf]
      %v400 = vld [vmem:[%s206 + $0x2c4] sm:$0xf]
      %v401 = vld [vmem:[%s206 + $0x2c8] sm:$0xf]
      %v402 = vld [vmem:[%s206 + $0x2cc] sm:$0xf]
      %v403 = vld [vmem:[%s206 + $0x2d0] sm:$0xf]
      %v404 = vld [vmem:[%s206 + $0x2d4] sm:$0xf]
      %v405 = vld [vmem:[%s206 + $0x2d8] sm:$0xf]
      %v406 = vld [vmem:[%s206 + $0x2dc] sm:$0xf]
      %v407 = vld [vmem:[%s206 + $0x2e0] sm:$0xf]
      %v408 = vld [vmem:[%s206 + $0x2e4] sm:$0xf]
      %v409 = vld [vmem:[%s206 + $0x2e8] sm:$0xf]
      %v410 = vld [vmem:[%s206 + $0x2ec] sm:$0xf]
      %v411 = vld [vmem:[%s206 + $0x2f0] sm:$0xf]
      %v412 = vld [vmem:[%s206 + $0x2f4] sm:$0xf]
      %v413 = vld [vmem:[%s206 + $0x2f8] sm:$0xf]
      %v414 = vld [vmem:[%s206 + $0x2fc] sm:$0xf]
      %v415 = vld [vmem:[%s206 + $0x300] sm:$0xf]
      %v416 = vld [vmem:[%s206 + $0x304] sm:$0xf]
      %v417 = vld [vmem:[%s206 + $0x308] sm:$0xf]
      %v418 = vld [vmem:[%s206 + $0x30c] sm:$0xf]
      %v419 = vld [vmem:[%s206 + $0x310] sm:$0xf]
      %v420 = vld [vmem:[%s206 + $0x314] sm:$0xf]
      %v421 = vld [vmem:[%s206 + $0x318] sm:$0xf]
      %v422 = vld [vmem:[%s206 + $0x31c] sm:$0xf]
      %v423 = vld [vmem:[%s206 + $0x320] sm:$0xf]
      %v424 = vld [vmem:[%s206 + $0x324] sm:$0xf]
      %v425 = vld [vmem:[%s206 + $0x328] sm:$0xf]
      %v426 = vld [vmem:[%s206 + $0x32c] sm:$0xf]
      %v427 = vld [vmem:[%s206 + $0x330] sm:$0xf]
      %v428 = vld [vmem:[%s206 + $0x334] sm:$0xf]
      %v429 = vld [vmem:[%s206 + $0x338] sm:$0xf]
      %v430 = vld [vmem:[%s206 + $0x33c] sm:$0xf]
      %v431 = vld [vmem:[%s206 + $0x340] sm:$0xf]
      %v432 = vld [vmem:[%s206 + $0x344] sm:$0xf]
      %v433 = vld [vmem:[%s206 + $0x348] sm:$0xf]
      %v434 = vld [vmem:[%s206 + $0x34c] sm:$0xf]
      %v435 = vld [vmem:[%s206 + $0x350] sm:$0xf]
      %v436 = vld [vmem:[%s206 + $0x354] sm:$0xf]
      %v437 = vld [vmem:[%s206 + $0x358] sm:$0xf]
      %v438 = vld [vmem:[%s206 + $0x35c] sm:$0xf]
      %v439 = vld [vmem:[%s206 + $0x360] sm:$0xf]
      %v440 = vld [vmem:[%s206 + $0x364] sm:$0xf]
      %v441 = vld [vmem:[%s206 + $0x368] sm:$0xf]
      %v442 = vld [vmem:[%s206 + $0x36c] sm:$0xf]
      %v443 = vld [vmem:[%s206 + $0x370] sm:$0xf]
      %v444 = vld [vmem:[%s206 + $0x374] sm:$0xf]
      %v445 = vld [vmem:[%s206 + $0x378] sm:$0xf]
      %v446 = vld [vmem:[%s206 + $0x37c] sm:$0xf]
      %v447 = vld [vmem:[%s206 + $0x380] sm:$0xf]
      %v448 = vld [vmem:[%s206 + $0x384] sm:$0xf]
      %v449 = vld [vmem:[%s206 + $0x388] sm:$0xf]
      %v450 = vld [vmem:[%s206 + $0x38c] sm:$0xf]
      %v451 = vld [vmem:[%s206 + $0x390] sm:$0xf]
      %v452 = vld [vmem:[%s206 + $0x394] sm:$0xf]
      %v453 = vld [vmem:[%s206 + $0x398] sm:$0xf]
      %v454 = vld [vmem:[%s206 + $0x39c] sm:$0xf]
      %v455 = vld [vmem:[%s206 + $0x3a0] sm:$0xf]
      %v456 = vld [vmem:[%s206 + $0x3a4] sm:$0xf]
      %v457 = vld [vmem:[%s206 + $0x3a8] sm:$0xf]
      %v458 = vld [vmem:[%s206 + $0x3ac] sm:$0xf]
      %v459 = vld [vmem:[%s206 + $0x3b0] sm:$0xf]
      %v460 = vld [vmem:[%s206 + $0x3b4] sm:$0xf]
      %v461 = vld [vmem:[%s206 + $0x3b8] sm:$0xf]
      %v462 = vld [vmem:[%s206 + $0x3bc] sm:$0xf]
      %v463 = vld [vmem:[%s206 + $0x3c0] sm:$0xf]
      %v464 = vld [vmem:[%s206 + $0x3c4] sm:$0xf]
      %v465 = vld [vmem:[%s206 + $0x3c8] sm:$0xf]
      %v466 = vld [vmem:[%s206 + $0x3cc] sm:$0xf]
      %v467 = vld [vmem:[%s206 + $0x3d0] sm:$0xf]
      %v468 = vld [vmem:[%s206 + $0x3d4] sm:$0xf]
      %v469 = vld [vmem:[%s206 + $0x3d8] sm:$0xf]
      %v470 = vld [vmem:[%s206 + $0x3dc] sm:$0xf]
      %v471 = vld [vmem:[%s206 + $0x3e0] sm:$0xf]
      %v472 = vld [vmem:[%s206 + $0x3e4] sm:$0xf]
      %v473 = vld [vmem:[%s206 + $0x3e8] sm:$0xf]
      %v474 = vld [vmem:[%s206 + $0x3ec] sm:$0xf]
      %v475 = vld [vmem:[%s206 + $0x3f0] sm:$0xf]
      %v476 = vld [vmem:[%s206 + $0x3f4] sm:$0xf]
      %v477 = vld [vmem:[%s206 + $0x3f8] sm:$0xf]
      %v478 = vld [vmem:[%s206 + $0x3fc] sm:$0xf]
      %v479 = vld [vmem:[%s206 + $0x400] sm:$0xf]
      %v480 = vld [vmem:[%s206 + $0x404] sm:$0xf]
      %v481 = vld [vmem:[%s206 + $0x408] sm:$0xf]
      %v482 = vld [vmem:[%s206 + $0x40c] sm:$0xf]
      %v483 = vld [vmem:[%s206 + $0x410] sm:$0xf]
      %v484 = vld [vmem:[%s206 + $0x414] sm:$0xf]
      %v485 = vld [vmem:[%s206 + $0x418] sm:$0xf]
      %v486 = vld [vmem:[%s206 + $0x41c] sm:$0xf]
      %v487 = vld [vmem:[%s206 + $0x420] sm:$0xf]
      %v488 = vld [vmem:[%s206 + $0x424] sm:$0xf]
      %v489 = vld [vmem:[%s206 + $0x428] sm:$0xf]
      %v490 = vld [vmem:[%s206 + $0x42c] sm:$0xf]
      %v491 = vld [vmem:[%s206 + $0x430] sm:$0xf]
      %v492 = vld [vmem:[%s206 + $0x434] sm:$0xf]
      %v493 = vld [vmem:[%s206 + $0x438] sm:$0xf]
      %v494 = vld [vmem:[%s206 + $0x43c] sm:$0xf]
      %v495 = vld [vmem:[%s206 + $0x440] sm:$0xf]
      %v496 = vld [vmem:[%s206 + $0x444] sm:$0xf]
      %v497 = vld [vmem:[%s206 + $0x448] sm:$0xf]
      %v498 = vld [vmem:[%s206 + $0x44c] sm:$0xf]
      %v499 = vld [vmem:[%s206 + $0x450] sm:$0xf]
      %v500 = vld [vmem:[%s206 + $0x454] sm:$0xf]
      %v501 = vld [vmem:[%s206 + $0x458] sm:$0xf]
      %v502 = vld [vmem:[%s206 + $0x45c] sm:$0xf]
      %v503 = vld [vmem:[%s206 + $0x460] sm:$0xf]
      %v504 = vld [vmem:[%s206 + $0x464] sm:$0xf]
      %v505 = vld [vmem:[%s206 + $0x468] sm:$0xf]
      %v506 = vld [vmem:[%s206 + $0x46c] sm:$0xf]
      %v507 = vld [vmem:[%s206 + $0x470] sm:$0xf]
      %v508 = vld [vmem:[%s206 + $0x474] sm:$0xf]
      %v509 = vld [vmem:[%s206 + $0x478] sm:$0xf]
      %v510 = vld [vmem:[%s206 + $0x47c] sm:$0xf]
      %v511 = vld [vmem:[%s206 + $0x480] sm:$0xf]
      %v512 = vld [vmem:[%s206 + $0x484] sm:$0xf]
      %v513 = vld [vmem:[%s206 + $0x488] sm:$0xf]
      %v514 = vld [vmem:[%s206 + $0x48c] sm:$0xf]
      %v515 = vld [vmem:[%s206 + $0x490] sm:$0xf]
      %v516 = vld [vmem:[%s206 + $0x494] sm:$0xf]
      %v517 = vld [vmem:[%s206 + $0x498] sm:$0xf]
      %v518 = vld [vmem:[%s206 + $0x49c] sm:$0xf]
      %v519 = vld [vmem:[%s206 + $0x4a0] sm:$0xf]
      %v520 = vld [vmem:[%s206 + $0x4a4] sm:$0xf]
      %v521 = vld [vmem:[%s206 + $0x4a8] sm:$0xf]
      %v522 = vld [vmem:[%s206 + $0x4ac] sm:$0xf]
      %v523 = vld [vmem:[%s206 + $0x4b0] sm:$0xf]
      %v524 = vld [vmem:[%s206 + $0x4b4] sm:$0xf]
      %v525 = vld [vmem:[%s206 + $0x4b8] sm:$0xf]
      %v526 = vld [vmem:[%s206 + $0x4bc] sm:$0xf]
      %v527 = vld [vmem:[%s206 + $0x4c0] sm:$0xf]
      %v528 = vld [vmem:[%s206 + $0x4c4] sm:$0xf]
      %v529 = vld [vmem:[%s206 + $0x4c8] sm:$0xf]
      %v530 = vld [vmem:[%s206 + $0x4cc] sm:$0xf]
      %v531 = vld [vmem:[%s206 + $0x4d0] sm:$0xf]
      %v532 = vld [vmem:[%s206 + $0x4d4] sm:$0xf]
      %v533 = vld [vmem:[%s206 + $0x4d8] sm:$0xf]
      %v534 = vld [vmem:[%s206 + $0x4dc] sm:$0xf]
      %v535 = vld [vmem:[%s206 + $0x4e0] sm:$0xf]
      %v536 = vld [vmem:[%s206 + $0x4e4] sm:$0xf]
      %v537 = vld [vmem:[%s206 + $0x4e8] sm:$0xf]
      %v538 = vld [vmem:[%s206 + $0x4ec] sm:$0xf]
      %v539 = vld [vmem:[%s206 + $0x4f0] sm:$0xf]
      %v540 = vld [vmem:[%s206 + $0x4f4] sm:$0xf]
      %v541 = vld [vmem:[%s206 + $0x4f8] sm:$0xf]
      %v542 = vld [vmem:[%s206 + $0x4fc] sm:$0xf]
      %v543 = vld [vmem:[%s206 + $0x500] sm:$0xf]
      %v544 = vld [vmem:[%s206 + $0x504] sm:$0xf]
      %v545 = vld [vmem:[%s206 + $0x508] sm:$0xf]
      %v546 = vld [vmem:[%s206 + $0x50c] sm:$0xf]
      %v547 = vld [vmem:[%s206 + $0x510] sm:$0xf]
      %v548 = vld [vmem:[%s206 + $0x514] sm:$0xf]
      %v549 = vld [vmem:[%s206 + $0x518] sm:$0xf]
      %v550 = vld [vmem:[%s206 + $0x51c] sm:$0xf]
      %v551 = vld [vmem:[%s206 + $0x520] sm:$0xf]
      %v552 = vld [vmem:[%s206 + $0x524] sm:$0xf]
      %v553 = vld [vmem:[%s206 + $0x528] sm:$0xf]
      %v554 = vld [vmem:[%s206 + $0x52c] sm:$0xf]
      %v555 = vld [vmem:[%s206 + $0x530] sm:$0xf]
      %v556 = vld [vmem:[%s206 + $0x534] sm:$0xf]
      %v557 = vld [vmem:[%s206 + $0x538] sm:$0xf]
      %v558 = vld [vmem:[%s206 + $0x53c] sm:$0xf]
      %v559 = vld [vmem:[%s206 + $0x540] sm:$0xf]
      %v560 = vld [vmem:[%s206 + $0x544] sm:$0xf]
      %v561 = vld [vmem:[%s206 + $0x548] sm:$0xf]
      %v562 = vld [vmem:[%s206 + $0x54c] sm:$0xf]
      %v563 = vld [vmem:[%s206 + $0x550] sm:$0xf]
      %v564 = vld [vmem:[%s206 + $0x554] sm:$0xf]
      %v565 = vld [vmem:[%s206 + $0x558] sm:$0xf]
      %v566 = vld [vmem:[%s206 + $0x55c] sm:$0xf]
      %v567 = vld [vmem:[%s206 + $0x560] sm:$0xf]
      %v568 = vld [vmem:[%s206 + $0x564] sm:$0xf]
      %v569 = vld [vmem:[%s206 + $0x568] sm:$0xf]
      %v570 = vld [vmem:[%s206 + $0x56c] sm:$0xf]
      %v571 = vld [vmem:[%s206 + $0x570] sm:$0xf]
      %v572 = vld [vmem:[%s206 + $0x574] sm:$0xf]
      %v573 = vld [vmem:[%s206 + $0x578] sm:$0xf]
      %v574 = vld [vmem:[%s206 + $0x57c] sm:$0xf]
      %v575 = vld [vmem:[%s206 + $0x580] sm:$0xf]
      %v576 = vld [vmem:[%s206 + $0x584] sm:$0xf]
      %v577 = vld [vmem:[%s206 + $0x588] sm:$0xf]
      %v578 = vld [vmem:[%s206 + $0x58c] sm:$0xf]
      %v579 = vld [vmem:[%s206 + $0x590] sm:$0xf]
      %v580 = vld [vmem:[%s206 + $0x594] sm:$0xf]
      %v581 = vld [vmem:[%s206 + $0x598] sm:$0xf]
      %v582 = vld [vmem:[%s206 + $0x59c] sm:$0xf]
      %v583 = vld [vmem:[%s206 + $0x5a0] sm:$0xf]
      %v584 = vld [vmem:[%s206 + $0x5a4] sm:$0xf]
      %v585 = vld [vmem:[%s206 + $0x5a8] sm:$0xf]
      %v586 = vld [vmem:[%s206 + $0x5ac] sm:$0xf]
      %v587 = vld [vmem:[%s206 + $0x5b0] sm:$0xf]
      %v588 = vld [vmem:[%s206 + $0x5b4] sm:$0xf]
      %v589 = vld [vmem:[%s206 + $0x5b8] sm:$0xf]
      %v590 = vld [vmem:[%s206 + $0x5bc] sm:$0xf]
      %v591 = vld [vmem:[%s206 + $0x5c0] sm:$0xf]
      %v592 = vld [vmem:[%s206 + $0x5c4] sm:$0xf]
      %v593 = vld [vmem:[%s206 + $0x5c8] sm:$0xf]
      %v594 = vld [vmem:[%s206 + $0x5cc] sm:$0xf]
      %v595 = vld [vmem:[%s206 + $0x5d0] sm:$0xf]
      %v596 = vld [vmem:[%s206 + $0x5d4] sm:$0xf]
      %v597 = vld [vmem:[%s206 + $0x5d8] sm:$0xf]
      %v598 = vld [vmem:[%s206 + $0x5dc] sm:$0xf]
      %v599 = vld [vmem:[%s206 + $0x5e0] sm:$0xf]
      %v600 = vld [vmem:[%s206 + $0x5e4] sm:$0xf]
      %v601 = vld [vmem:[%s206 + $0x5e8] sm:$0xf]
      %v602 = vld [vmem:[%s206 + $0x5ec] sm:$0xf]
      %v603 = vld [vmem:[%s206 + $0x5f0] sm:$0xf]
      %v604 = vld [vmem:[%s206 + $0x5f4] sm:$0xf]
      %v605 = vld [vmem:[%s206 + $0x5f8] sm:$0xf]
      %v606 = vld [vmem:[%s206 + $0x5fc] sm:$0xf]
      %v607 = vld [vmem:[%s206 + $0x600] sm:$0xf]
      %v608 = vld [vmem:[%s206 + $0x604] sm:$0xf]
      %v609 = vld [vmem:[%s206 + $0x608] sm:$0xf]
      %v610 = vld [vmem:[%s206 + $0x60c] sm:$0xf]
      %v611 = vld [vmem:[%s206 + $0x610] sm:$0xf]
      %v612 = vld [vmem:[%s206 + $0x614] sm:$0xf]
      %v613 = vld [vmem:[%s206 + $0x618] sm:$0xf]
      %v614 = vld [vmem:[%s206 + $0x61c] sm:$0xf]
      %v615 = vld [vmem:[%s206 + $0x620] sm:$0xf]
      %v616 = vld [vmem:[%s206 + $0x624] sm:$0xf]
      %v617 = vld [vmem:[%s206 + $0x628] sm:$0xf]
      %v618 = vld [vmem:[%s206 + $0x62c] sm:$0xf]
      %v619 = vld [vmem:[%s206 + $0x630] sm:$0xf]
      %v620 = vld [vmem:[%s206 + $0x634] sm:$0xf]
      %v621 = vld [vmem:[%s206 + $0x638] sm:$0xf]
      %v622 = vld [vmem:[%s206 + $0x63c] sm:$0xf]
      %v623 = vld [vmem:[%s206 + $0x640] sm:$0xf]
      %v624 = vld [vmem:[%s206 + $0x644] sm:$0xf]
      %v625 = vld [vmem:[%s206 + $0x648] sm:$0xf]
      %v626 = vld [vmem:[%s206 + $0x64c] sm:$0xf]
      %v627 = vld [vmem:[%s206 + $0x650] sm:$0xf]
      %v628 = vld [vmem:[%s206 + $0x654] sm:$0xf]
      %v629 = vld [vmem:[%s206 + $0x658] sm:$0xf]
      %v630 = vld [vmem:[%s206 + $0x65c] sm:$0xf]
      %v631 = vld [vmem:[%s206 + $0x660] sm:$0xf]
      %v632 = vld [vmem:[%s206 + $0x664] sm:$0xf]
      %v633 = vld [vmem:[%s206 + $0x668] sm:$0xf]
      %v634 = vld [vmem:[%s206 + $0x66c] sm:$0xf]
      %v635 = vld [vmem:[%s206 + $0x670] sm:$0xf]
      %v636 = vld [vmem:[%s206 + $0x674] sm:$0xf]
      %v637 = vld [vmem:[%s206 + $0x678] sm:$0xf]
      %v638 = vld [vmem:[%s206 + $0x67c] sm:$0xf]
      %v639 = vld [vmem:[%s206 + $0x680] sm:$0xf]
      %v640 = vld [vmem:[%s206 + $0x684] sm:$0xf]
      %v641 = vld [vmem:[%s206 + $0x688] sm:$0xf]
      %v642 = vld [vmem:[%s206 + $0x68c] sm:$0xf]
      %v643 = vld [vmem:[%s206 + $0x690] sm:$0xf]
      %v644 = vld [vmem:[%s206 + $0x694] sm:$0xf]
      %v645 = vld [vmem:[%s206 + $0x698] sm:$0xf]
      %v646 = vld [vmem:[%s206 + $0x69c] sm:$0xf]
      %v647 = vld [vmem:[%s206 + $0x6a0] sm:$0xf]
      %v648 = vld [vmem:[%s206 + $0x6a4] sm:$0xf]
      %v649 = vld [vmem:[%s206 + $0x6a8] sm:$0xf]
      %v650 = vld [vmem:[%s206 + $0x6ac] sm:$0xf]
      %v651 = vld [vmem:[%s206 + $0x6b0] sm:$0xf]
      %v652 = vld [vmem:[%s206 + $0x6b4] sm:$0xf]
      %v653 = vld [vmem:[%s206 + $0x6b8] sm:$0xf]
      %v654 = vld [vmem:[%s206 + $0x6bc] sm:$0xf]
      %v655 = vld [vmem:[%s206 + $0x6c0] sm:$0xf]
      %v656 = vld [vmem:[%s206 + $0x6c4] sm:$0xf]
      %v657 = vld [vmem:[%s206 + $0x6c8] sm:$0xf]
      %v658 = vld [vmem:[%s206 + $0x6cc] sm:$0xf]
      %v659 = vld [vmem:[%s206 + $0x6d0] sm:$0xf]
      %v660 = vld [vmem:[%s206 + $0x6d4] sm:$0xf]
      %v661 = vld [vmem:[%s206 + $0x6d8] sm:$0xf]
      %v662 = vld [vmem:[%s206 + $0x6dc] sm:$0xf]
      %v663 = vld [vmem:[%s206 + $0x6e0] sm:$0xf]
      %v664 = vld [vmem:[%s206 + $0x6e4] sm:$0xf]
      %v665 = vld [vmem:[%s206 + $0x6e8] sm:$0xf]
      %v666 = vld [vmem:[%s206 + $0x6ec] sm:$0xf]
      %v667 = vld [vmem:[%s206 + $0x6f0] sm:$0xf]
      %v668 = vld [vmem:[%s206 + $0x6f4] sm:$0xf]
      %v669 = vld [vmem:[%s206 + $0x6f8] sm:$0xf]
      %v670 = vld [vmem:[%s206 + $0x6fc] sm:$0xf]
      %v671 = vld [vmem:[%s206 + $0x700] sm:$0xf]
      %v672 = vld [vmem:[%s206 + $0x704] sm:$0xf]
      %v673 = vld [vmem:[%s206 + $0x708] sm:$0xf]
      %v674 = vld [vmem:[%s206 + $0x70c] sm:$0xf]
      %v675 = vld [vmem:[%s206 + $0x710] sm:$0xf]
      %v676 = vld [vmem:[%s206 + $0x714] sm:$0xf]
      %v677 = vld [vmem:[%s206 + $0x718] sm:$0xf]
      %v678 = vld [vmem:[%s206 + $0x71c] sm:$0xf]
      %v679 = vld [vmem:[%s206 + $0x720] sm:$0xf]
      %v680 = vld [vmem:[%s206 + $0x724] sm:$0xf]
      %v681 = vld [vmem:[%s206 + $0x728] sm:$0xf]
      %v682 = vld [vmem:[%s206 + $0x72c] sm:$0xf]
      %v683 = vld [vmem:[%s206 + $0x730] sm:$0xf]
      %v684 = vld [vmem:[%s206 + $0x734] sm:$0xf]
      %v685 = vld [vmem:[%s206 + $0x738] sm:$0xf]
      %v686 = vld [vmem:[%s206 + $0x73c] sm:$0xf]
      %v687 = vld [vmem:[%s206 + $0x740] sm:$0xf]
      %v688 = vld [vmem:[%s206 + $0x744] sm:$0xf]
      %v689 = vld [vmem:[%s206 + $0x748] sm:$0xf]
      %v690 = vld [vmem:[%s206 + $0x74c] sm:$0xf]
      %v691 = vld [vmem:[%s206 + $0x750] sm:$0xf]
      %v692 = vld [vmem:[%s206 + $0x754] sm:$0xf]
      %v693 = vld [vmem:[%s206 + $0x758] sm:$0xf]
      %v694 = vld [vmem:[%s206 + $0x75c] sm:$0xf]
      %v695 = vld [vmem:[%s206 + $0x760] sm:$0xf]
      %v696 = vld [vmem:[%s206 + $0x764] sm:$0xf]
      %v697 = vld [vmem:[%s206 + $0x768] sm:$0xf]
      %v698 = vld [vmem:[%s206 + $0x76c] sm:$0xf]
      %v699 = vld [vmem:[%s206 + $0x770] sm:$0xf]
      %v700 = vld [vmem:[%s206 + $0x774] sm:$0xf]
      %v701 = vld [vmem:[%s206 + $0x778] sm:$0xf]
      %v702 = vld [vmem:[%s206 + $0x77c] sm:$0xf]
      %v703 = vld [vmem:[%s206 + $0x780] sm:$0xf]
      %v704 = vld [vmem:[%s206 + $0x784] sm:$0xf]
      %v705 = vld [vmem:[%s206 + $0x788] sm:$0xf]
      %v706 = vld [vmem:[%s206 + $0x78c] sm:$0xf]
      %v707 = vld [vmem:[%s206 + $0x790] sm:$0xf]
      %v708 = vld [vmem:[%s206 + $0x794] sm:$0xf]
      %v709 = vld [vmem:[%s206 + $0x798] sm:$0xf]
      %v710 = vld [vmem:[%s206 + $0x79c] sm:$0xf]
      %v711 = vld [vmem:[%s206 + $0x7a0] sm:$0xf]
      %v712 = vld [vmem:[%s206 + $0x7a4] sm:$0xf]
      %v713 = vld [vmem:[%s206 + $0x7a8] sm:$0xf]
      %v714 = vld [vmem:[%s206 + $0x7ac] sm:$0xf]
      %v715 = vld [vmem:[%s206 + $0x7b0] sm:$0xf]
      %v716 = vld [vmem:[%s206 + $0x7b4] sm:$0xf]
      %v717 = vld [vmem:[%s210] sm:$0xf]
      %v718 = vld [vmem:[%s210 + $0x4] sm:$0xf]
      %v719 = vld [vmem:[%s210 + $0x8] sm:$0xf]
      %v720 = vld [vmem:[%s210 + $0xc] sm:$0xf]
      %v721 = vld [vmem:[%s213] sm:$0x1]
      %v723 = vlaneseq
      %v724 = vshrl.u32 %v723, 7
      %v725 = vsub.s32 0, %v724
      %v726 = vrot.slane %v721, %v725
      %v1222 = vunpack.c.l.b16 %v223
      %v1223 = vunpack.c.l.b16 %v224
      %v1224 = vunpack.c.l.b16 %v225
      %v1225 = vunpack.c.l.b16 %v226
      %v1226 = vunpack.c.l.b16 %v227
      %v1227 = vunpack.c.l.b16 %v228
      %v1228 = vunpack.c.l.b16 %v229
      %v1229 = vunpack.c.l.b16 %v230
      %v1230 = vunpack.c.l.b16 %v231
      %v1231 = vunpack.c.l.b16 %v232
      %v1232 = vunpack.c.l.b16 %v233
      %v1233 = vunpack.c.l.b16 %v234
      %v1234 = vunpack.c.l.b16 %v235
      %v1235 = vunpack.c.l.b16 %v236
      %v1236 = vunpack.c.l.b16 %v237
      %v1237 = vunpack.c.l.b16 %v238
      %v1238 = vunpack.c.l.b16 %v239
      %v1239 = vunpack.c.l.b16 %v240
      %v1240 = vunpack.c.l.b16 %v241
      %v1241 = vunpack.c.l.b16 %v242
      %v1242 = vunpack.c.l.b16 %v243
      %v1243 = vunpack.c.l.b16 %v244
      %v1244 = vunpack.c.l.b16 %v245
      %v1245 = vunpack.c.l.b16 %v246
      %v1246 = vunpack.c.l.b16 %v247
      %v1247 = vunpack.c.l.b16 %v248
      %v1248 = vunpack.c.l.b16 %v249
      %v1249 = vunpack.c.l.b16 %v250
      %v1250 = vunpack.c.l.b16 %v251
      %v1251 = vunpack.c.l.b16 %v252
      %v1252 = vunpack.c.l.b16 %v253
      %v1253 = vunpack.c.l.b16 %v254
      %v1254 = vunpack.c.l.b16 %v255
      %v1255 = vunpack.c.l.b16 %v256
      %v1256 = vunpack.c.l.b16 %v257
      %v1257 = vunpack.c.l.b16 %v258
      %v1258 = vunpack.c.l.b16 %v259
      %v1259 = vunpack.c.l.b16 %v260
      %v1260 = vunpack.c.l.b16 %v261
      %v1261 = vunpack.c.l.b16 %v262
      %v1262 = vunpack.c.l.b16 %v263
      %v1263 = vunpack.c.l.b16 %v264
      %v1264 = vunpack.c.l.b16 %v265
      %v1265 = vunpack.c.l.b16 %v266
      %v1266 = vunpack.c.l.b16 %v267
      %v1267 = vunpack.c.l.b16 %v268
      %v1268 = vunpack.c.l.b16 %v269
      %v1269 = vunpack.c.l.b16 %v270
      %v1270 = vunpack.c.l.b16 %v271
      %v1271 = vunpack.c.l.b16 %v272
      %v1272 = vunpack.c.l.b16 %v273
      %v1273 = vunpack.c.l.b16 %v274
      %v1274 = vunpack.c.l.b16 %v275
      %v1275 = vunpack.c.l.b16 %v276
      %v1276 = vunpack.c.l.b16 %v277
      %v1277 = vunpack.c.l.b16 %v278
      %v1278 = vunpack.c.l.b16 %v279
      %v1279 = vunpack.c.l.b16 %v280
      %v1280 = vunpack.c.l.b16 %v281
      %v1281 = vunpack.c.l.b16 %v282
      %v1282 = vunpack.c.l.b16 %v283
      %v1283 = vunpack.c.l.b16 %v284
      %v1284 = vunpack.c.l.b16 %v285
      %v1285 = vunpack.c.l.b16 %v286
      %v1286 = vunpack.c.l.b16 %v287
      %v1287 = vunpack.c.l.b16 %v288
      %v1288 = vunpack.c.l.b16 %v289
      %v1289 = vunpack.c.l.b16 %v290
      %v1290 = vunpack.c.l.b16 %v291
      %v1291 = vunpack.c.l.b16 %v292
      %v1292 = vunpack.c.l.b16 %v293
      %v1293 = vunpack.c.l.b16 %v294
      %v1294 = vunpack.c.l.b16 %v295
      %v1295 = vunpack.c.l.b16 %v296
      %v1296 = vunpack.c.l.b16 %v297
      %v1297 = vunpack.c.l.b16 %v298
      %v1298 = vunpack.c.l.b16 %v299
      %v1299 = vunpack.c.l.b16 %v300
      %v1300 = vunpack.c.l.b16 %v301
      %v1301 = vunpack.c.l.b16 %v302
      %v1302 = vunpack.c.l.b16 %v303
      %v1303 = vunpack.c.l.b16 %v304
      %v1304 = vunpack.c.l.b16 %v305
      %v1305 = vunpack.c.l.b16 %v306
      %v1306 = vunpack.c.l.b16 %v307
      %v1307 = vunpack.c.l.b16 %v308
      %v1308 = vunpack.c.l.b16 %v309
      %v1309 = vunpack.c.l.b16 %v310
      %v1310 = vunpack.c.l.b16 %v311
      %v1311 = vunpack.c.l.b16 %v312
      %v1312 = vunpack.c.l.b16 %v313
      %v1313 = vunpack.c.l.b16 %v314
      %v1314 = vunpack.c.l.b16 %v315
      %v1315 = vunpack.c.l.b16 %v316
      %v1316 = vunpack.c.l.b16 %v317
      %v1317 = vunpack.c.l.b16 %v318
      %v1318 = vunpack.c.l.b16 %v319
      %v1319 = vunpack.c.l.b16 %v320
      %v1320 = vunpack.c.l.b16 %v321
      %v1321 = vunpack.c.l.b16 %v322
      %v1322 = vunpack.c.l.b16 %v323
      %v1323 = vunpack.c.l.b16 %v324
      %v1324 = vunpack.c.l.b16 %v325
      %v1325 = vunpack.c.l.b16 %v326
      %v1326 = vunpack.c.l.b16 %v327
      %v1327 = vunpack.c.l.b16 %v328
      %v1328 = vunpack.c.l.b16 %v329
      %v1329 = vunpack.c.l.b16 %v330
      %v1330 = vunpack.c.l.b16 %v331
      %v1331 = vunpack.c.l.b16 %v332
      %v1332 = vunpack.c.l.b16 %v333
      %v1333 = vunpack.c.l.b16 %v334
      %v1334 = vunpack.c.l.b16 %v335
      %v1335 = vunpack.c.l.b16 %v336
      %v1336 = vunpack.c.l.b16 %v337
      %v1337 = vunpack.c.l.b16 %v338
      %v1338 = vunpack.c.l.b16 %v339
      %v1339 = vunpack.c.l.b16 %v340
      %v1340 = vunpack.c.l.b16 %v341
      %v1341 = vunpack.c.l.b16 %v342
      %v1342 = vunpack.c.l.b16 %v343
      %v1343 = vunpack.c.l.b16 %v344
      %v1344 = vunpack.c.l.b16 %v345
      %v1345 = vunpack.c.l.b16 %v346
      %v1346 = vunpack.c.l.b16 %v347
      %v1347 = vunpack.c.l.b16 %v348
      %v1348 = vunpack.c.l.b16 %v349
      %v1349 = vunpack.c.l.b16 %v350
      %v1350 = vunpack.c.l.b16 %v351
      %v1351 = vunpack.c.l.b16 %v352
      %v1352 = vunpack.c.l.b16 %v353
      %v1353 = vunpack.c.l.b16 %v354
      %v1354 = vunpack.c.l.b16 %v355
      %v1355 = vunpack.c.l.b16 %v356
      %v1356 = vunpack.c.l.b16 %v357
      %v1357 = vunpack.c.l.b16 %v358
      %v1358 = vunpack.c.l.b16 %v359
      %v1359 = vunpack.c.l.b16 %v360
      %v1360 = vunpack.c.l.b16 %v361
      %v1361 = vunpack.c.l.b16 %v362
      %v1362 = vunpack.c.l.b16 %v363
      %v1363 = vunpack.c.l.b16 %v364
      %v1364 = vunpack.c.l.b16 %v365
      %v1365 = vunpack.c.l.b16 %v366
      %v1366 = vunpack.c.l.b16 %v367
      %v1367 = vunpack.c.l.b16 %v368
      %v1368 = vunpack.c.l.b16 %v369
      %v1369 = vunpack.c.l.b16 %v370
      %v1370 = vunpack.c.l.b16 %v371
      %v1371 = vunpack.c.l.b16 %v372
      %v1372 = vunpack.c.l.b16 %v373
      %v1373 = vunpack.c.l.b16 %v374
      %v1374 = vunpack.c.l.b16 %v375
      %v1375 = vunpack.c.l.b16 %v376
      %v1376 = vunpack.c.l.b16 %v377
      %v1377 = vunpack.c.l.b16 %v378
      %v1378 = vunpack.c.l.b16 %v379
      %v1379 = vunpack.c.l.b16 %v380
      %v1380 = vunpack.c.l.b16 %v381
      %v1381 = vunpack.c.l.b16 %v382
      %v1382 = vunpack.c.l.b16 %v383
      %v1383 = vunpack.c.l.b16 %v384
      %v1384 = vunpack.c.l.b16 %v385
      %v1385 = vunpack.c.l.b16 %v386
      %v1386 = vunpack.c.l.b16 %v387
      %v1387 = vunpack.c.l.b16 %v388
      %v1388 = vunpack.c.l.b16 %v389
      %v1389 = vunpack.c.l.b16 %v390
      %v1390 = vunpack.c.l.b16 %v391
      %v1391 = vunpack.c.l.b16 %v392
      %v1392 = vunpack.c.l.b16 %v393
      %v1393 = vunpack.c.l.b16 %v394
      %v1394 = vunpack.c.l.b16 %v395
      %v1395 = vunpack.c.l.b16 %v396
      %v1396 = vunpack.c.l.b16 %v397
      %v1397 = vunpack.c.l.b16 %v398
      %v1398 = vunpack.c.l.b16 %v399
      %v1399 = vunpack.c.l.b16 %v400
      %v1400 = vunpack.c.l.b16 %v401
      %v1401 = vunpack.c.l.b16 %v402
      %v1402 = vunpack.c.l.b16 %v403
      %v1403 = vunpack.c.l.b16 %v404
      %v1404 = vunpack.c.l.b16 %v405
      %v1405 = vunpack.c.l.b16 %v406
      %v1406 = vunpack.c.l.b16 %v407
      %v1407 = vunpack.c.l.b16 %v408
      %v1408 = vunpack.c.l.b16 %v409
      %v1409 = vunpack.c.l.b16 %v410
      %v1410 = vunpack.c.l.b16 %v411
      %v1411 = vunpack.c.l.b16 %v412
      %v1412 = vunpack.c.l.b16 %v413
      %v1413 = vunpack.c.l.b16 %v414
      %v1414 = vunpack.c.l.b16 %v415
      %v1415 = vunpack.c.l.b16 %v416
      %v1416 = vunpack.c.l.b16 %v417
      %v1417 = vunpack.c.l.b16 %v418
      %v1418 = vunpack.c.l.b16 %v419
      %v1419 = vunpack.c.l.b16 %v420
      %v1420 = vunpack.c.l.b16 %v421
      %v1421 = vunpack.c.l.b16 %v422
      %v1422 = vunpack.c.l.b16 %v423
      %v1423 = vunpack.c.l.b16 %v424
      %v1424 = vunpack.c.l.b16 %v425
      %v1425 = vunpack.c.l.b16 %v426
      %v1426 = vunpack.c.l.b16 %v427
      %v1427 = vunpack.c.l.b16 %v428
      %v1428 = vunpack.c.l.b16 %v429
      %v1429 = vunpack.c.l.b16 %v430
      %v1430 = vunpack.c.l.b16 %v431
      %v1431 = vunpack.c.l.b16 %v432
      %v1432 = vunpack.c.l.b16 %v433
      %v1433 = vunpack.c.l.b16 %v434
      %v1434 = vunpack.c.l.b16 %v435
      %v1435 = vunpack.c.l.b16 %v436
      %v1436 = vunpack.c.l.b16 %v437
      %v1437 = vunpack.c.l.b16 %v438
      %v1438 = vunpack.c.l.b16 %v439
      %v1439 = vunpack.c.l.b16 %v440
      %v1440 = vunpack.c.l.b16 %v441
      %v1441 = vunpack.c.l.b16 %v442
      %v1442 = vunpack.c.l.b16 %v443
      %v1443 = vunpack.c.l.b16 %v444
      %v1444 = vunpack.c.l.b16 %v445
      %v1445 = vunpack.c.l.b16 %v446
      %v1446 = vunpack.c.l.b16 %v447
      %v1447 = vunpack.c.l.b16 %v448
      %v1448 = vunpack.c.l.b16 %v449
      %v1449 = vunpack.c.l.b16 %v450
      %v1450 = vunpack.c.l.b16 %v451
      %v1451 = vunpack.c.l.b16 %v452
      %v1452 = vunpack.c.l.b16 %v453
      %v1453 = vunpack.c.l.b16 %v454
      %v1454 = vunpack.c.l.b16 %v455
      %v1455 = vunpack.c.l.b16 %v456
      %v1456 = vunpack.c.l.b16 %v457
      %v1457 = vunpack.c.l.b16 %v458
      %v1458 = vunpack.c.l.b16 %v459
      %v1459 = vunpack.c.l.b16 %v460
      %v1460 = vunpack.c.l.b16 %v461
      %v1461 = vunpack.c.l.b16 %v462
      %v1462 = vunpack.c.l.b16 %v463
      %v1463 = vunpack.c.l.b16 %v464
      %v1464 = vunpack.c.l.b16 %v465
      %v1465 = vunpack.c.l.b16 %v466
      %v1466 = vunpack.c.l.b16 %v467
      %v1467 = vunpack.c.l.b16 %v468
      %v1468 = vunpack.c.l.b16 %v469
      %v1469 = vunpack.c.l.b16 %v470
      %v1470 = vunpack.c.l.b16 %v471
      %v1471 = vunpack.c.l.b16 %v472
      %v1472 = vunpack.c.l.b16 %v473
      %v1473 = vunpack.c.l.b16 %v474
      %v1474 = vunpack.c.l.b16 %v475
      %v1475 = vunpack.c.l.b16 %v476
      %v1476 = vunpack.c.l.b16 %v477
      %v1477 = vunpack.c.l.b16 %v478
      %v1478 = vunpack.c.l.b16 %v479
      %v1479 = vunpack.c.l.b16 %v480
      %v1480 = vunpack.c.l.b16 %v481
      %v1481 = vunpack.c.l.b16 %v482
      %v1482 = vunpack.c.l.b16 %v483
      %v1483 = vunpack.c.l.b16 %v484
      %v1484 = vunpack.c.l.b16 %v485
      %v1485 = vunpack.c.l.b16 %v486
      %v1486 = vunpack.c.l.b16 %v487
      %v1487 = vunpack.c.l.b16 %v488
      %v1488 = vunpack.c.l.b16 %v489
      %v1489 = vunpack.c.l.b16 %v490
      %v1490 = vunpack.c.l.b16 %v491
      %v1491 = vunpack.c.l.b16 %v492
      %v1492 = vunpack.c.l.b16 %v493
      %v1493 = vunpack.c.l.b16 %v494
      %v1494 = vunpack.c.l.b16 %v495
      %v1495 = vunpack.c.l.b16 %v496
      %v1496 = vunpack.c.l.b16 %v497
      %v1497 = vunpack.c.l.b16 %v498
      %v1498 = vunpack.c.l.b16 %v499
      %v1499 = vunpack.c.l.b16 %v500
      %v1500 = vunpack.c.l.b16 %v501
      %v1501 = vunpack.c.l.b16 %v502
      %v1502 = vunpack.c.l.b16 %v503
      %v1503 = vunpack.c.l.b16 %v504
      %v1504 = vunpack.c.l.b16 %v505
      %v1505 = vunpack.c.l.b16 %v506
      %v1506 = vunpack.c.l.b16 %v507
      %v1507 = vunpack.c.l.b16 %v508
      %v1508 = vunpack.c.l.b16 %v509
      %v1509 = vunpack.c.l.b16 %v510
      %v1510 = vunpack.c.l.b16 %v511
      %v1511 = vunpack.c.l.b16 %v512
      %v1512 = vunpack.c.l.b16 %v513
      %v1513 = vunpack.c.l.b16 %v514
      %v1514 = vunpack.c.l.b16 %v515
      %v1515 = vunpack.c.l.b16 %v516
      %v1516 = vunpack.c.l.b16 %v517
      %v1517 = vunpack.c.l.b16 %v518
      %v1518 = vunpack.c.l.b16 %v519
      %v1519 = vunpack.c.l.b16 %v520
      %v1520 = vunpack.c.l.b16 %v521
      %v1521 = vunpack.c.l.b16 %v522
      %v1522 = vunpack.c.l.b16 %v523
      %v1523 = vunpack.c.l.b16 %v524
      %v1524 = vunpack.c.l.b16 %v525
      %v1525 = vunpack.c.l.b16 %v526
      %v1526 = vunpack.c.l.b16 %v527
      %v1527 = vunpack.c.l.b16 %v528
      %v1528 = vunpack.c.l.b16 %v529
      %v1529 = vunpack.c.l.b16 %v530
      %v1530 = vunpack.c.l.b16 %v531
      %v1531 = vunpack.c.l.b16 %v532
      %v1532 = vunpack.c.l.b16 %v533
      %v1533 = vunpack.c.l.b16 %v534
      %v1534 = vunpack.c.l.b16 %v535
      %v1535 = vunpack.c.l.b16 %v536
      %v1536 = vunpack.c.l.b16 %v537
      %v1537 = vunpack.c.l.b16 %v538
      %v1538 = vunpack.c.l.b16 %v539
      %v1539 = vunpack.c.l.b16 %v540
      %v1540 = vunpack.c.l.b16 %v541
      %v1541 = vunpack.c.l.b16 %v542
      %v1542 = vunpack.c.l.b16 %v543
      %v1543 = vunpack.c.l.b16 %v544
      %v1544 = vunpack.c.l.b16 %v545
      %v1545 = vunpack.c.l.b16 %v546
      %v1546 = vunpack.c.l.b16 %v547
      %v1547 = vunpack.c.l.b16 %v548
      %v1548 = vunpack.c.l.b16 %v549
      %v1549 = vunpack.c.l.b16 %v550
      %v1550 = vunpack.c.l.b16 %v551
      %v1551 = vunpack.c.l.b16 %v552
      %v1552 = vunpack.c.l.b16 %v553
      %v1553 = vunpack.c.l.b16 %v554
      %v1554 = vunpack.c.l.b16 %v555
      %v1555 = vunpack.c.l.b16 %v556
      %v1556 = vunpack.c.l.b16 %v557
      %v1557 = vunpack.c.l.b16 %v558
      %v1558 = vunpack.c.l.b16 %v559
      %v1559 = vunpack.c.l.b16 %v560
      %v1560 = vunpack.c.l.b16 %v561
      %v1561 = vunpack.c.l.b16 %v562
      %v1562 = vunpack.c.l.b16 %v563
      %v1563 = vunpack.c.l.b16 %v564
      %v1564 = vunpack.c.l.b16 %v565
      %v1565 = vunpack.c.l.b16 %v566
      %v1566 = vunpack.c.l.b16 %v567
      %v1567 = vunpack.c.l.b16 %v568
      %v1568 = vunpack.c.l.b16 %v569
      %v1569 = vunpack.c.l.b16 %v570
      %v1570 = vunpack.c.l.b16 %v571
      %v1571 = vunpack.c.l.b16 %v572
      %v1572 = vunpack.c.l.b16 %v573
      %v1573 = vunpack.c.l.b16 %v574
      %v1574 = vunpack.c.l.b16 %v575
      %v1575 = vunpack.c.l.b16 %v576
      %v1576 = vunpack.c.l.b16 %v577
      %v1577 = vunpack.c.l.b16 %v578
      %v1578 = vunpack.c.l.b16 %v579
      %v1579 = vunpack.c.l.b16 %v580
      %v1580 = vunpack.c.l.b16 %v581
      %v1581 = vunpack.c.l.b16 %v582
      %v1582 = vunpack.c.l.b16 %v583
      %v1583 = vunpack.c.l.b16 %v584
      %v1584 = vunpack.c.l.b16 %v585
      %v1585 = vunpack.c.l.b16 %v586
      %v1586 = vunpack.c.l.b16 %v587
      %v1587 = vunpack.c.l.b16 %v588
      %v1588 = vunpack.c.l.b16 %v589
      %v1589 = vunpack.c.l.b16 %v590
      %v1590 = vunpack.c.l.b16 %v591
      %v1591 = vunpack.c.l.b16 %v592
      %v1592 = vunpack.c.l.b16 %v593
      %v1593 = vunpack.c.l.b16 %v594
      %v1594 = vunpack.c.l.b16 %v595
      %v1595 = vunpack.c.l.b16 %v596
      %v1596 = vunpack.c.l.b16 %v597
      %v1597 = vunpack.c.l.b16 %v598
      %v1598 = vunpack.c.l.b16 %v599
      %v1599 = vunpack.c.l.b16 %v600
      %v1600 = vunpack.c.l.b16 %v601
      %v1601 = vunpack.c.l.b16 %v602
      %v1602 = vunpack.c.l.b16 %v603
      %v1603 = vunpack.c.l.b16 %v604
      %v1604 = vunpack.c.l.b16 %v605
      %v1605 = vunpack.c.l.b16 %v606
      %v1606 = vunpack.c.l.b16 %v607
      %v1607 = vunpack.c.l.b16 %v608
      %v1608 = vunpack.c.l.b16 %v609
      %v1609 = vunpack.c.l.b16 %v610
      %v1610 = vunpack.c.l.b16 %v611
      %v1611 = vunpack.c.l.b16 %v612
      %v1612 = vunpack.c.l.b16 %v613
      %v1613 = vunpack.c.l.b16 %v614
      %v1614 = vunpack.c.l.b16 %v615
      %v1615 = vunpack.c.l.b16 %v616
      %v1616 = vunpack.c.l.b16 %v617
      %v1617 = vunpack.c.l.b16 %v618
      %v1618 = vunpack.c.l.b16 %v619
      %v1619 = vunpack.c.l.b16 %v620
      %v1620 = vunpack.c.l.b16 %v621
      %v1621 = vunpack.c.l.b16 %v622
      %v1622 = vunpack.c.l.b16 %v623
      %v1623 = vunpack.c.l.b16 %v624
      %v1624 = vunpack.c.l.b16 %v625
      %v1625 = vunpack.c.l.b16 %v626
      %v1626 = vunpack.c.l.b16 %v627
      %v1627 = vunpack.c.l.b16 %v628
      %v1628 = vunpack.c.l.b16 %v629
      %v1629 = vunpack.c.l.b16 %v630
      %v1630 = vunpack.c.l.b16 %v631
      %v1631 = vunpack.c.l.b16 %v632
      %v1632 = vunpack.c.l.b16 %v633
      %v1633 = vunpack.c.l.b16 %v634
      %v1634 = vunpack.c.l.b16 %v635
      %v1635 = vunpack.c.l.b16 %v636
      %v1636 = vunpack.c.l.b16 %v637
      %v1637 = vunpack.c.l.b16 %v638
      %v1638 = vunpack.c.l.b16 %v639
      %v1639 = vunpack.c.l.b16 %v640
      %v1640 = vunpack.c.l.b16 %v641
      %v1641 = vunpack.c.l.b16 %v642
      %v1642 = vunpack.c.l.b16 %v643
      %v1643 = vunpack.c.l.b16 %v644
      %v1644 = vunpack.c.l.b16 %v645
      %v1645 = vunpack.c.l.b16 %v646
      %v1646 = vunpack.c.l.b16 %v647
      %v1647 = vunpack.c.l.b16 %v648
      %v1648 = vunpack.c.l.b16 %v649
      %v1649 = vunpack.c.l.b16 %v650
      %v1650 = vunpack.c.l.b16 %v651
      %v1651 = vunpack.c.l.b16 %v652
      %v1652 = vunpack.c.l.b16 %v653
      %v1653 = vunpack.c.l.b16 %v654
      %v1654 = vunpack.c.l.b16 %v655
      %v1655 = vunpack.c.l.b16 %v656
      %v1656 = vunpack.c.l.b16 %v657
      %v1657 = vunpack.c.l.b16 %v658
      %v1658 = vunpack.c.l.b16 %v659
      %v1659 = vunpack.c.l.b16 %v660
      %v1660 = vunpack.c.l.b16 %v661
      %v1661 = vunpack.c.l.b16 %v662
      %v1662 = vunpack.c.l.b16 %v663
      %v1663 = vunpack.c.l.b16 %v664
      %v1664 = vunpack.c.l.b16 %v665
      %v1665 = vunpack.c.l.b16 %v666
      %v1666 = vunpack.c.l.b16 %v667
      %v1667 = vunpack.c.l.b16 %v668
      %v1668 = vunpack.c.l.b16 %v669
      %v1669 = vunpack.c.l.b16 %v670
      %v1670 = vunpack.c.l.b16 %v671
      %v1671 = vunpack.c.l.b16 %v672
      %v1672 = vunpack.c.l.b16 %v673
      %v1673 = vunpack.c.l.b16 %v674
      %v1674 = vunpack.c.l.b16 %v675
      %v1675 = vunpack.c.l.b16 %v676
      %v1676 = vunpack.c.l.b16 %v677
      %v1677 = vunpack.c.l.b16 %v678
      %v1678 = vunpack.c.l.b16 %v679
      %v1679 = vunpack.c.l.b16 %v680
      %v1680 = vunpack.c.l.b16 %v681
      %v1681 = vunpack.c.l.b16 %v682
      %v1682 = vunpack.c.l.b16 %v683
      %v1683 = vunpack.c.l.b16 %v684
      %v1684 = vunpack.c.l.b16 %v685
      %v1685 = vunpack.c.l.b16 %v686
      %v1686 = vunpack.c.l.b16 %v687
      %v1687 = vunpack.c.l.b16 %v688
      %v1688 = vunpack.c.l.b16 %v689
      %v1689 = vunpack.c.l.b16 %v690
      %v1690 = vunpack.c.l.b16 %v691
      %v1691 = vunpack.c.l.b16 %v692
      %v1692 = vunpack.c.l.b16 %v693
      %v1693 = vunpack.c.l.b16 %v694
      %v1694 = vunpack.c.l.b16 %v695
      %v1695 = vunpack.c.l.b16 %v696
      %v1696 = vunpack.c.l.b16 %v697
      %v1697 = vunpack.c.l.b16 %v698
      %v1698 = vunpack.c.l.b16 %v699
      %v1699 = vunpack.c.l.b16 %v700
      %v1700 = vunpack.c.l.b16 %v701
      %v1701 = vunpack.c.l.b16 %v702
      %v1702 = vunpack.c.l.b16 %v703
      %v1703 = vunpack.c.l.b16 %v704
      %v1704 = vunpack.c.l.b16 %v705
      %v1705 = vunpack.c.l.b16 %v706
      %v1706 = vunpack.c.l.b16 %v707
      %v1707 = vunpack.c.l.b16 %v708
      %v1708 = vunpack.c.l.b16 %v709
      %v1709 = vunpack.c.l.b16 %v710
      %v1710 = vunpack.c.l.b16 %v711
      %v1711 = vunpack.c.l.b16 %v712
      %v1712 = vunpack.c.l.b16 %v713
      %v1713 = vunpack.c.l.b16 %v714
      %v1714 = vunpack.c.l.b16 %v715
      %v1715 = vunpack.c.l.b16 %v716
      %v1716 = vpack.c.b16 %v1223, %v1222
      %v1717 = vpack.c.b16 %v1225, %v1224
      %v1718 = vpack.c.b16 %v1227, %v1226
      %v1719 = vpack.c.b16 %v1229, %v1228
      %v1720 = vpack.c.b16 %v1231, %v1230
      %v1721 = vpack.c.b16 %v1233, %v1232
      %v1722 = vpack.c.b16 %v1235, %v1234
      %v1723 = vpack.c.b16 %v1237, %v1236
      %v1724 = vpack.c.b16 %v1239, %v1238
      %v1725 = vpack.c.b16 %v1241, %v1240
      %v1726 = vpack.c.b16 %v1243, %v1242
      %v1727 = vpack.c.b16 %v1245, %v1244
      %v1728 = vpack.c.b16 %v1247, %v1246
      %v1729 = vpack.c.b16 %v1249, %v1248
      %v1730 = vpack.c.b16 %v1251, %v1250
      %v1731 = vpack.c.b16 %v1253, %v1252
      %v1732 = vpack.c.b16 %v1255, %v1254
      %v1733 = vpack.c.b16 %v1257, %v1256
      %v1734 = vpack.c.b16 %v1259, %v1258
      %v1735 = vpack.c.b16 %v1261, %v1260
      %v1736 = vpack.c.b16 %v1263, %v1262
      %v1737 = vpack.c.b16 %v1265, %v1264
      %v1738 = vpack.c.b16 %v1267, %v1266
      %v1739 = vpack.c.b16 %v1269, %v1268
      %v1740 = vpack.c.b16 %v1271, %v1270
      %v1741 = vpack.c.b16 %v1273, %v1272
      %v1742 = vpack.c.b16 %v1275, %v1274
      %v1743 = vpack.c.b16 %v1277, %v1276
      %v1744 = vpack.c.b16 %v1279, %v1278
      %v1745 = vpack.c.b16 %v1281, %v1280
      %v1746 = vpack.c.b16 %v1283, %v1282
      %v1747 = vpack.c.b16 %v1285, %v1284
      %v1748 = vpack.c.b16 %v1287, %v1286
      %v1749 = vpack.c.b16 %v1289, %v1288
      %v1750 = vpack.c.b16 %v1291, %v1290
      %v1751 = vpack.c.b16 %v1293, %v1292
      %v1752 = vpack.c.b16 %v1295, %v1294
      %v1753 = vpack.c.b16 %v1297, %v1296
      %v1754 = vpack.c.b16 %v1299, %v1298
      %v1755 = vpack.c.b16 %v1301, %v1300
      %v1756 = vpack.c.b16 %v1303, %v1302
      %v1757 = vpack.c.b16 %v1305, %v1304
      %v1758 = vpack.c.b16 %v1307, %v1306
      %v1759 = vpack.c.b16 %v1309, %v1308
      %v1760 = vpack.c.b16 %v1311, %v1310
      %v1761 = vpack.c.b16 %v1313, %v1312
      %v1762 = vpack.c.b16 %v1315, %v1314
      %v1763 = vpack.c.b16 %v1317, %v1316
      %v1764 = vpack.c.b16 %v1319, %v1318
      %v1765 = vpack.c.b16 %v1321, %v1320
      %v1766 = vpack.c.b16 %v1323, %v1322
      %v1767 = vpack.c.b16 %v1325, %v1324
      %v1768 = vpack.c.b16 %v1327, %v1326
      %v1769 = vpack.c.b16 %v1329, %v1328
      %v1770 = vpack.c.b16 %v1331, %v1330
      %v1771 = vpack.c.b16 %v1333, %v1332
      %v1772 = vpack.c.b16 %v1335, %v1334
      %v1773 = vpack.c.b16 %v1337, %v1336
      %v1774 = vpack.c.b16 %v1339, %v1338
      %v1775 = vpack.c.b16 %v1341, %v1340
      %v1776 = vpack.c.b16 %v1343, %v1342
      %v1777 = vpack.c.b16 %v1345, %v1344
      %v1778 = vpack.c.b16 %v1347, %v1346
      %v1779 = vpack.c.b16 %v1349, %v1348
      %v1780 = vpack.c.b16 %v1351, %v1350
      %v1781 = vpack.c.b16 %v1353, %v1352
      %v1782 = vpack.c.b16 %v1355, %v1354
      %v1783 = vpack.c.b16 %v1357, %v1356
      %v1784 = vpack.c.b16 %v1359, %v1358
      %v1785 = vpack.c.b16 %v1361, %v1360
      %v1786 = vpack.c.b16 %v1363, %v1362
      %v1787 = vpack.c.b16 %v1365, %v1364
      %v1788 = vpack.c.b16 %v1367, %v1366
      %v1789 = vpack.c.b16 %v1369, %v1368
      %v1790 = vpack.c.b16 %v1371, %v1370
      %v1791 = vpack.c.b16 %v1373, %v1372
      %v1792 = vpack.c.b16 %v1375, %v1374
      %v1793 = vpack.c.b16 %v1377, %v1376
      %v1794 = vpack.c.b16 %v1379, %v1378
      %v1795 = vpack.c.b16 %v1381, %v1380
      %v1796 = vpack.c.b16 %v1383, %v1382
      %v1797 = vpack.c.b16 %v1385, %v1384
      %v1798 = vpack.c.b16 %v1387, %v1386
      %v1799 = vpack.c.b16 %v1389, %v1388
      %v1800 = vpack.c.b16 %v1391, %v1390
      %v1801 = vpack.c.b16 %v1393, %v1392
      %v1802 = vpack.c.b16 %v1395, %v1394
      %v1803 = vpack.c.b16 %v1397, %v1396
      %v1804 = vpack.c.b16 %v1399, %v1398
      %v1805 = vpack.c.b16 %v1401, %v1400
      %v1806 = vpack.c.b16 %v1403, %v1402
      %v1807 = vpack.c.b16 %v1405, %v1404
      %v1808 = vpack.c.b16 %v1407, %v1406
      %v1809 = vpack.c.b16 %v1409, %v1408
      %v1810 = vpack.c.b16 %v1411, %v1410
      %v1811 = vpack.c.b16 %v1413, %v1412
      %v1812 = vpack.c.b16 %v1415, %v1414
      %v1813 = vpack.c.b16 %v1417, %v1416
      %v1814 = vpack.c.b16 %v1419, %v1418
      %v1815 = vpack.c.b16 %v1421, %v1420
      %v1816 = vpack.c.b16 %v1423, %v1422
      %v1817 = vpack.c.b16 %v1425, %v1424
      %v1818 = vpack.c.b16 %v1427, %v1426
      %v1819 = vpack.c.b16 %v1429, %v1428
      %v1820 = vpack.c.b16 %v1431, %v1430
      %v1821 = vpack.c.b16 %v1433, %v1432
      %v1822 = vpack.c.b16 %v1435, %v1434
      %v1823 = vpack.c.b16 %v1437, %v1436
      %v1824 = vpack.c.b16 %v1439, %v1438
      %v1825 = vpack.c.b16 %v1441, %v1440
      %v1826 = vpack.c.b16 %v1443, %v1442
      %v1827 = vpack.c.b16 %v1445, %v1444
      %v1828 = vpack.c.b16 %v1447, %v1446
      %v1829 = vpack.c.b16 %v1449, %v1448
      %v1830 = vpack.c.b16 %v1451, %v1450
      %v1831 = vpack.c.b16 %v1453, %v1452
      %v1832 = vpack.c.b16 %v1455, %v1454
      %v1833 = vpack.c.b16 %v1457, %v1456
      %v1834 = vpack.c.b16 %v1459, %v1458
      %v1835 = vpack.c.b16 %v1461, %v1460
      %v1836 = vpack.c.b16 %v1463, %v1462
      %v1837 = vpack.c.b16 %v1465, %v1464
      %v1838 = vpack.c.b16 %v1467, %v1466
      %v1839 = vpack.c.b16 %v1469, %v1468
      %v1840 = vpack.c.b16 %v1471, %v1470
      %v1841 = vpack.c.b16 %v1473, %v1472
      %v1842 = vpack.c.b16 %v1475, %v1474
      %v1843 = vpack.c.b16 %v1477, %v1476
      %v1844 = vpack.c.b16 %v1479, %v1478
      %v1845 = vpack.c.b16 %v1481, %v1480
      %v1846 = vpack.c.b16 %v1483, %v1482
      %v1847 = vpack.c.b16 %v1485, %v1484
      %v1848 = vpack.c.b16 %v1487, %v1486
      %v1849 = vpack.c.b16 %v1489, %v1488
      %v1850 = vpack.c.b16 %v1491, %v1490
      %v1851 = vpack.c.b16 %v1493, %v1492
      %v1852 = vpack.c.b16 %v1495, %v1494
      %v1853 = vpack.c.b16 %v1497, %v1496
      %v1854 = vpack.c.b16 %v1499, %v1498
      %v1855 = vpack.c.b16 %v1501, %v1500
      %v1856 = vpack.c.b16 %v1503, %v1502
      %v1857 = vpack.c.b16 %v1505, %v1504
      %v1858 = vpack.c.b16 %v1507, %v1506
      %v1859 = vpack.c.b16 %v1509, %v1508
      %v1860 = vpack.c.b16 %v1511, %v1510
      %v1861 = vpack.c.b16 %v1513, %v1512
      %v1862 = vpack.c.b16 %v1515, %v1514
      %v1863 = vpack.c.b16 %v1517, %v1516
      %v1864 = vpack.c.b16 %v1519, %v1518
      %v1865 = vpack.c.b16 %v1521, %v1520
      %v1866 = vpack.c.b16 %v1523, %v1522
      %v1867 = vpack.c.b16 %v1525, %v1524
      %v1868 = vpack.c.b16 %v1527, %v1526
      %v1869 = vpack.c.b16 %v1529, %v1528
      %v1870 = vpack.c.b16 %v1531, %v1530
      %v1871 = vpack.c.b16 %v1533, %v1532
      %v1872 = vpack.c.b16 %v1535, %v1534
      %v1873 = vpack.c.b16 %v1537, %v1536
      %v1874 = vpack.c.b16 %v1539, %v1538
      %v1875 = vpack.c.b16 %v1541, %v1540
      %v1876 = vpack.c.b16 %v1543, %v1542
      %v1877 = vpack.c.b16 %v1545, %v1544
      %v1878 = vpack.c.b16 %v1547, %v1546
      %v1879 = vpack.c.b16 %v1549, %v1548
      %v1880 = vpack.c.b16 %v1551, %v1550
      %v1881 = vpack.c.b16 %v1553, %v1552
      %v1882 = vpack.c.b16 %v1555, %v1554
      %v1883 = vpack.c.b16 %v1557, %v1556
      %v1884 = vpack.c.b16 %v1559, %v1558
      %v1885 = vpack.c.b16 %v1561, %v1560
      %v1886 = vpack.c.b16 %v1563, %v1562
      %v1887 = vpack.c.b16 %v1565, %v1564
      %v1888 = vpack.c.b16 %v1567, %v1566
      %v1889 = vpack.c.b16 %v1569, %v1568
      %v1890 = vpack.c.b16 %v1571, %v1570
      %v1891 = vpack.c.b16 %v1573, %v1572
      %v1892 = vpack.c.b16 %v1575, %v1574
      %v1893 = vpack.c.b16 %v1577, %v1576
      %v1894 = vpack.c.b16 %v1579, %v1578
      %v1895 = vpack.c.b16 %v1581, %v1580
      %v1896 = vpack.c.b16 %v1583, %v1582
      %v1897 = vpack.c.b16 %v1585, %v1584
      %v1898 = vpack.c.b16 %v1587, %v1586
      %v1899 = vpack.c.b16 %v1589, %v1588
      %v1900 = vpack.c.b16 %v1591, %v1590
      %v1901 = vpack.c.b16 %v1593, %v1592
      %v1902 = vpack.c.b16 %v1595, %v1594
      %v1903 = vpack.c.b16 %v1597, %v1596
      %v1904 = vpack.c.b16 %v1599, %v1598
      %v1905 = vpack.c.b16 %v1601, %v1600
      %v1906 = vpack.c.b16 %v1603, %v1602
      %v1907 = vpack.c.b16 %v1605, %v1604
      %v1908 = vpack.c.b16 %v1607, %v1606
      %v1909 = vpack.c.b16 %v1609, %v1608
      %v1910 = vpack.c.b16 %v1611, %v1610
      %v1911 = vpack.c.b16 %v1613, %v1612
      %v1912 = vpack.c.b16 %v1615, %v1614
      %v1913 = vpack.c.b16 %v1617, %v1616
      %v1914 = vpack.c.b16 %v1619, %v1618
      %v1915 = vpack.c.b16 %v1621, %v1620
      %v1916 = vpack.c.b16 %v1623, %v1622
      %v1917 = vpack.c.b16 %v1625, %v1624
      %v1918 = vpack.c.b16 %v1627, %v1626
      %v1919 = vpack.c.b16 %v1629, %v1628
      %v1920 = vpack.c.b16 %v1631, %v1630
      %v1921 = vpack.c.b16 %v1633, %v1632
      %v1922 = vpack.c.b16 %v1635, %v1634
      %v1923 = vpack.c.b16 %v1637, %v1636
      %v1924 = vpack.c.b16 %v1639, %v1638
      %v1925 = vpack.c.b16 %v1641, %v1640
      %v1926 = vpack.c.b16 %v1643, %v1642
      %v1927 = vpack.c.b16 %v1645, %v1644
      %v1928 = vpack.c.b16 %v1647, %v1646
      %v1929 = vpack.c.b16 %v1649, %v1648
      %v1930 = vpack.c.b16 %v1651, %v1650
      %v1931 = vpack.c.b16 %v1653, %v1652
      %v1932 = vpack.c.b16 %v1655, %v1654
      %v1933 = vpack.c.b16 %v1657, %v1656
      %v1934 = vpack.c.b16 %v1659, %v1658
      %v1935 = vpack.c.b16 %v1661, %v1660
      %v1936 = vpack.c.b16 %v1663, %v1662
      %v1937 = vpack.c.b16 %v1665, %v1664
      %v1938 = vpack.c.b16 %v1667, %v1666
      %v1939 = vpack.c.b16 %v1669, %v1668
      %v1940 = vpack.c.b16 %v1671, %v1670
      %v1941 = vpack.c.b16 %v1673, %v1672
      %v1942 = vpack.c.b16 %v1675, %v1674
      %v1943 = vpack.c.b16 %v1677, %v1676
      %v1944 = vpack.c.b16 %v1679, %v1678
      %v1945 = vpack.c.b16 %v1681, %v1680
      %v1946 = vpack.c.b16 %v1683, %v1682
      %v1947 = vpack.c.b16 %v1685, %v1684
      %v1948 = vpack.c.b16 %v1687, %v1686
      %v1949 = vpack.c.b16 %v1689, %v1688
      %v1950 = vpack.c.b16 %v1691, %v1690
      %v1951 = vpack.c.b16 %v1693, %v1692
      %v1952 = vpack.c.b16 %v1695, %v1694
      %v1953 = vpack.c.b16 %v1697, %v1696
      %v1954 = vpack.c.b16 %v1699, %v1698
      %v1955 = vpack.c.b16 %v1701, %v1700
      %v1956 = vpack.c.b16 %v1703, %v1702
      %v1957 = vpack.c.b16 %v1705, %v1704
      %v1958 = vpack.c.b16 %v1707, %v1706
      %v1959 = vpack.c.b16 %v1709, %v1708
      %v1960 = vpack.c.b16 %v1711, %v1710
      %v1961 = vpack.c.b16 %v1713, %v1712
      %v1962 = vpack.c.b16 %v1715, %v1714
      %v1967 = vunpack.c.l.b16 %v717
      %v1968 = vunpack.c.l.b16 %v718
      %v1969 = vunpack.c.l.b16 %v719
      %v1970 = vunpack.c.l.b16 %v720
      %v1971 = vpack.c.b16 %v1968, %v1967
      %v1972 = vpack.c.b16 %v1970, %v1969
      %vm1975 = vcmask 261120
      %v1977 = vsel %vm1975, %v1716, 0
      %v1980 = vsel %vm1975, %v1717, 0
      %v1983 = vsel %vm1975, %v1718, 0
      %v1986 = vsel %vm1975, %v1719, 0
      %v1989 = vsel %vm1975, %v1720, 0
      %v1992 = vsel %vm1975, %v1721, 0
      %v1995 = vsel %vm1975, %v1722, 0
      %v1998 = vsel %vm1975, %v1723, 0
      %v2001 = vsel %vm1975, %v1724, 0
      %v2004 = vsel %vm1975, %v1725, 0
      %v2007 = vsel %vm1975, %v1726, 0
      %v2010 = vsel %vm1975, %v1727, 0
      %v2013 = vsel %vm1975, %v1728, 0
      %v2016 = vsel %vm1975, %v1729, 0
      %v2019 = vsel %vm1975, %v1730, 0
      %v2022 = vsel %vm1975, %v1731, 0
      %v2025 = vsel %vm1975, %v1732, 0
      %v2028 = vsel %vm1975, %v1733, 0
      %v2031 = vsel %vm1975, %v1734, 0
      %v2034 = vsel %vm1975, %v1735, 0
      %v2037 = vsel %vm1975, %v1736, 0
      %v2040 = vsel %vm1975, %v1737, 0
      %v2043 = vsel %vm1975, %v1738, 0
      %v2046 = vsel %vm1975, %v1739, 0
      %v2049 = vsel %vm1975, %v1740, 0
      %v2052 = vsel %vm1975, %v1741, 0
      %v2055 = vsel %vm1975, %v1742, 0
      %v2058 = vsel %vm1975, %v1743, 0
      %v2061 = vsel %vm1975, %v1744, 0
      %v2064 = vsel %vm1975, %v1745, 0
      %v2067 = vsel %vm1975, %v1746, 0
      %v2070 = vsel %vm1975, %v1747, 0
      %v2073 = vsel %vm1975, %v1748, 0
      %v2076 = vsel %vm1975, %v1749, 0
      %v2079 = vsel %vm1975, %v1750, 0
      %v2082 = vsel %vm1975, %v1751, 0
      %v2085 = vsel %vm1975, %v1752, 0
      %v2088 = vsel %vm1975, %v1753, 0
      %v2091 = vsel %vm1975, %v1754, 0
      %v2094 = vsel %vm1975, %v1755, 0
      %v2097 = vsel %vm1975, %v1756, 0
      %v2100 = vsel %vm1975, %v1757, 0
      %v2103 = vsel %vm1975, %v1758, 0
      %v2106 = vsel %vm1975, %v1759, 0
      %v2109 = vsel %vm1975, %v1760, 0
      %v2112 = vsel %vm1975, %v1761, 0
      %v2115 = vsel %vm1975, %v1762, 0
      %v2118 = vsel %vm1975, %v1763, 0
      %v2121 = vsel %vm1975, %v1764, 0
      %v2124 = vsel %vm1975, %v1765, 0
      %v2127 = vsel %vm1975, %v1766, 0
      %v2130 = vsel %vm1975, %v1767, 0
      %v2133 = vsel %vm1975, %v1768, 0
      %v2136 = vsel %vm1975, %v1769, 0
      %v2139 = vsel %vm1975, %v1770, 0
      %v2142 = vsel %vm1975, %v1771, 0
      %v2145 = vsel %vm1975, %v1772, 0
      %v2148 = vsel %vm1975, %v1773, 0
      %v2151 = vsel %vm1975, %v1774, 0
      %v2154 = vsel %vm1975, %v1775, 0
      %v2157 = vsel %vm1975, %v1776, 0
      %v2160 = vsel %vm1975, %v1777, 0
      %v2163 = vsel %vm1975, %v1778, 0
      %v2166 = vsel %vm1975, %v1779, 0
      %v2169 = vsel %vm1975, %v1780, 0
      %v2172 = vsel %vm1975, %v1781, 0
      %v2175 = vsel %vm1975, %v1782, 0
      %v2178 = vsel %vm1975, %v1783, 0
      %v2181 = vsel %vm1975, %v1784, 0
      %v2184 = vsel %vm1975, %v1785, 0
      %v2187 = vsel %vm1975, %v1786, 0
      %v2190 = vsel %vm1975, %v1787, 0
      %v2193 = vsel %vm1975, %v1788, 0
      %v2196 = vsel %vm1975, %v1789, 0
      %v2199 = vsel %vm1975, %v1790, 0
      %v2202 = vsel %vm1975, %v1791, 0
      %v2205 = vsel %vm1975, %v1792, 0
      %v2208 = vsel %vm1975, %v1793, 0
      %v2211 = vsel %vm1975, %v1794, 0
      %v2214 = vsel %vm1975, %v1795, 0
      %v2217 = vsel %vm1975, %v1796, 0
      %v2220 = vsel %vm1975, %v1797, 0
      %v2223 = vsel %vm1975, %v1798, 0
      %v2226 = vsel %vm1975, %v1799, 0
      %v2229 = vsel %vm1975, %v1800, 0
      %v2232 = vsel %vm1975, %v1801, 0
      %v2235 = vsel %vm1975, %v1802, 0
      %v2238 = vsel %vm1975, %v1803, 0
      %v2241 = vsel %vm1975, %v1804, 0
      %v2244 = vsel %vm1975, %v1805, 0
      %v2247 = vsel %vm1975, %v1806, 0
      %v2250 = vsel %vm1975, %v1807, 0
      %v2253 = vsel %vm1975, %v1808, 0
      %v2256 = vsel %vm1975, %v1809, 0
      %v2259 = vsel %vm1975, %v1810, 0
      %v2262 = vsel %vm1975, %v1811, 0
      %v2265 = vsel %vm1975, %v1812, 0
      %v2268 = vsel %vm1975, %v1813, 0
      %v2271 = vsel %vm1975, %v1814, 0
      %v2274 = vsel %vm1975, %v1815, 0
      %v2277 = vsel %vm1975, %v1816, 0
      %v2280 = vsel %vm1975, %v1817, 0
      %v2283 = vsel %vm1975, %v1818, 0
      %v2286 = vsel %vm1975, %v1819, 0
      %v2289 = vsel %vm1975, %v1820, 0
      %v2292 = vsel %vm1975, %v1821, 0
      %v2295 = vsel %vm1975, %v1822, 0
      %v2298 = vsel %vm1975, %v1823, 0
      %v2301 = vsel %vm1975, %v1824, 0
      %v2304 = vsel %vm1975, %v1825, 0
      %v2307 = vsel %vm1975, %v1826, 0
      %v2310 = vsel %vm1975, %v1827, 0
      %v2313 = vsel %vm1975, %v1828, 0
      %v2316 = vsel %vm1975, %v1829, 0
      %v2319 = vsel %vm1975, %v1830, 0
      %v2322 = vsel %vm1975, %v1831, 0
      %v2325 = vsel %vm1975, %v1832, 0
      %v2328 = vsel %vm1975, %v1833, 0
      %v2331 = vsel %vm1975, %v1834, 0
      %v2334 = vsel %vm1975, %v1835, 0
      %v2337 = vsel %vm1975, %v1836, 0
      %v2340 = vsel %vm1975, %v1837, 0
      %v2343 = vsel %vm1975, %v1838, 0
      %v2346 = vsel %vm1975, %v1839, 0
      %v2349 = vsel %vm1975, %v1840, 0
      %v2352 = vsel %vm1975, %v1841, 0
      %v2355 = vsel %vm1975, %v1842, 0
      %v2358 = vsel %vm1975, %v1843, 0
      %v2361 = vsel %vm1975, %v1844, 0
      %v2364 = vsel %vm1975, %v1845, 0
      %v2367 = vsel %vm1975, %v1846, 0
      %v2370 = vsel %vm1975, %v1847, 0
      %v2373 = vsel %vm1975, %v1848, 0
      %v2376 = vsel %vm1975, %v1849, 0
      %v2379 = vsel %vm1975, %v1850, 0
      %v2382 = vsel %vm1975, %v1851, 0
      %v2385 = vsel %vm1975, %v1852, 0
      %v2388 = vsel %vm1975, %v1853, 0
      %v2391 = vsel %vm1975, %v1854, 0
      %v2394 = vsel %vm1975, %v1855, 0
      %v2397 = vsel %vm1975, %v1856, 0
      %v2400 = vsel %vm1975, %v1857, 0
      %v2403 = vsel %vm1975, %v1858, 0
      %v2406 = vsel %vm1975, %v1859, 0
      %v2409 = vsel %vm1975, %v1860, 0
      %v2412 = vsel %vm1975, %v1861, 0
      %v2415 = vsel %vm1975, %v1862, 0
      %v2418 = vsel %vm1975, %v1863, 0
      %v2421 = vsel %vm1975, %v1864, 0
      %v2424 = vsel %vm1975, %v1865, 0
      %v2427 = vsel %vm1975, %v1866, 0
      %v2430 = vsel %vm1975, %v1867, 0
      %v2433 = vsel %vm1975, %v1868, 0
      %v2436 = vsel %vm1975, %v1869, 0
      %v2439 = vsel %vm1975, %v1870, 0
      %v2442 = vsel %vm1975, %v1871, 0
      %v2445 = vsel %vm1975, %v1872, 0
      %v2448 = vsel %vm1975, %v1873, 0
      %v2451 = vsel %vm1975, %v1874, 0
      %v2454 = vsel %vm1975, %v1875, 0
      %v2457 = vsel %vm1975, %v1876, 0
      %v2460 = vsel %vm1975, %v1877, 0
      %v2463 = vsel %vm1975, %v1878, 0
      %v2466 = vsel %vm1975, %v1879, 0
      %v2469 = vsel %vm1975, %v1880, 0
      %v2472 = vsel %vm1975, %v1881, 0
      %v2475 = vsel %vm1975, %v1882, 0
      %v2478 = vsel %vm1975, %v1883, 0
      %v2481 = vsel %vm1975, %v1884, 0
      %v2484 = vsel %vm1975, %v1885, 0
      %v2487 = vsel %vm1975, %v1886, 0
      %v2490 = vsel %vm1975, %v1887, 0
      %v2493 = vsel %vm1975, %v1888, 0
      %v2496 = vsel %vm1975, %v1889, 0
      %v2499 = vsel %vm1975, %v1890, 0
      %v2502 = vsel %vm1975, %v1891, 0
      %v2505 = vsel %vm1975, %v1892, 0
      %v2508 = vsel %vm1975, %v1893, 0
      %v2511 = vsel %vm1975, %v1894, 0
      %v2514 = vsel %vm1975, %v1895, 0
      %v2517 = vsel %vm1975, %v1896, 0
      %v2520 = vsel %vm1975, %v1897, 0
      %v2523 = vsel %vm1975, %v1898, 0
      %v2526 = vsel %vm1975, %v1899, 0
      %v2529 = vsel %vm1975, %v1900, 0
      %v2532 = vsel %vm1975, %v1901, 0
      %v2535 = vsel %vm1975, %v1902, 0
      %v2538 = vsel %vm1975, %v1903, 0
      %v2541 = vsel %vm1975, %v1904, 0
      %v2544 = vsel %vm1975, %v1905, 0
      %v2547 = vsel %vm1975, %v1906, 0
      %v2550 = vsel %vm1975, %v1907, 0
      %v2553 = vsel %vm1975, %v1908, 0
      %v2556 = vsel %vm1975, %v1909, 0
      %v2559 = vsel %vm1975, %v1910, 0
      %v2562 = vsel %vm1975, %v1911, 0
      %v2565 = vsel %vm1975, %v1912, 0
      %v2568 = vsel %vm1975, %v1913, 0
      %v2571 = vsel %vm1975, %v1914, 0
      %v2574 = vsel %vm1975, %v1915, 0
      %v2577 = vsel %vm1975, %v1916, 0
      %v2580 = vsel %vm1975, %v1917, 0
      %v2583 = vsel %vm1975, %v1918, 0
      %v2586 = vsel %vm1975, %v1919, 0
      %v2589 = vsel %vm1975, %v1920, 0
      %v2592 = vsel %vm1975, %v1921, 0
      %v2595 = vsel %vm1975, %v1922, 0
      %v2598 = vsel %vm1975, %v1923, 0
      %v2601 = vsel %vm1975, %v1924, 0
      %v2604 = vsel %vm1975, %v1925, 0
      %v2607 = vsel %vm1975, %v1926, 0
      %v2610 = vsel %vm1975, %v1927, 0
      %v2613 = vsel %vm1975, %v1928, 0
      %v2616 = vsel %vm1975, %v1929, 0
      %v2619 = vsel %vm1975, %v1930, 0
      %v2622 = vsel %vm1975, %v1931, 0
      %v2625 = vsel %vm1975, %v1932, 0
      %v2628 = vsel %vm1975, %v1933, 0
      %v2631 = vsel %vm1975, %v1934, 0
      %v2634 = vsel %vm1975, %v1935, 0
      %v2637 = vsel %vm1975, %v1936, 0
      %v2640 = vsel %vm1975, %v1937, 0
      %v2643 = vsel %vm1975, %v1938, 0
      %v2646 = vsel %vm1975, %v1939, 0
      %v2649 = vsel %vm1975, %v1940, 0
      %v2652 = vsel %vm1975, %v1941, 0
      %v2655 = vsel %vm1975, %v1942, 0
      %v2658 = vsel %vm1975, %v1943, 0
      %v2661 = vsel %vm1975, %v1944, 0
      %v2664 = vsel %vm1975, %v1945, 0
      %v2667 = vsel %vm1975, %v1946, 0
      %v2670 = vsel %vm1975, %v1947, 0
      %v2673 = vsel %vm1975, %v1948, 0
      %v2676 = vsel %vm1975, %v1949, 0
      %v2679 = vsel %vm1975, %v1950, 0
      %v2682 = vsel %vm1975, %v1951, 0
      %v2685 = vsel %vm1975, %v1952, 0
      %v2688 = vsel %vm1975, %v1953, 0
      %v2691 = vsel %vm1975, %v1954, 0
      %v2694 = vsel %vm1975, %v1955, 0
      %v2697 = vsel %vm1975, %v1956, 0
      %v2700 = vsel %vm1975, %v1957, 0
      %v2703 = vsel %vm1975, %v1958, 0
      %v2706 = vsel %vm1975, %v1959, 0
      %v2709 = vsel %vm1975, %v1960, 0
      %v2712 = vsel %vm1975, %v1961, 0
      %v2715 = vsel %vm1975, %v1962, 0
      %2717 = vmatprep.subr.bf16.mxu0 0
      %2718 = vmatpush1.bf16.msra.mxu0 0
      %2719 = vmatprep.subr.bf16.mxu0 0
      %2720 = vmatpush1.bf16.msra.mxu0 0
      %2721 = vmatprep.subr.bf16.mxu0 0
      %2722 = vmatpush1.bf16.msra.mxu0 0
      %2723 = vmatprep.subr.bf16.mxu0 0
      %2724 = vmatpush1.bf16.msra.mxu0 0
      %2725 = vmatprep.subr.bf16.mxu0 0
      %2726 = vmatpush1.bf16.msra.mxu0 0
      %2727 = vmatprep.subr.bf16.mxu0 0
      %2728 = vmatpush1.bf16.msra.mxu0 0
      %2729 = vmatprep.subr.bf16.mxu0 0
      %2730 = vmatpush1.bf16.msra.mxu0 %v1972
      %2731 = vmatprep.subr.bf16.mxu0 0
      %2732 = vmatpush1.bf16.msra.mxu0 %v1971
      %2733 = vmatprep.subr.bf16.mxu0 0
      %2734 = vmatpush2.bf16.msra.mxu0 0
      %2735 = vmatprep.subr.bf16.mxu0 0
      %2736 = vmatpush2.bf16.msra.mxu0 0
      %2737 = vmatprep.subr.bf16.mxu0 0
      %2738 = vmatpush2.bf16.msra.mxu0 0
      %2739 = vmatprep.subr.bf16.mxu0 0
      %2740 = vmatpush2.bf16.msra.mxu0 0
      %2741 = vmatprep.subr.bf16.mxu0 0
      %2742 = vmatpush2.bf16.msra.mxu0 0
      %2743 = vmatprep.subr.bf16.mxu0 0
      %2744 = vmatpush2.bf16.msra.mxu0 0
      %2745 = vmatprep.subr.bf16.mxu0 0
      %2746 = vmatpush2.bf16.msra.mxu0 0
      %2747 = vmatprep.subr.bf16.mxu0 0
      %2748 = vmatpush2.bf16.msra.mxu0 0
      %2749 = vmatprep.mubr.bf16.mxu0 0
      %2750 = vmatmul.mubr.bf16.gmra.mxu0 %v1977
      %v2751 = vpop.f32.mrf.mxu0
      %v2752 = vadd.f32 %v726, %v2751
      %v2753 = vpop.f32.mrf.mxu0
      %v2754 = vpop.f32.mrf.mxu0
      %v2755 = vadd.f32 %v726, %v2754
      %v2756 = vpop.f32.mrf.mxu0
      %2757 = vmatprep.mubr.bf16.mxu0 0
      %2758 = vmatmul.mubr.bf16.gmra.mxu0 %v1980
      %v2759 = vpop.f32.mrf.mxu0
      %v2760 = vadd.f32 %v726, %v2759
      %v2761 = vpop.f32.mrf.mxu0
      %v2762 = vpop.f32.mrf.mxu0
      %v2763 = vadd.f32 %v726, %v2762
      %v2764 = vpop.f32.mrf.mxu0
      %2765 = vmatprep.mubr.bf16.mxu0 0
      %2766 = vmatmul.mubr.bf16.gmra.mxu0 %v1983
      %v2767 = vpop.f32.mrf.mxu0
      %v2768 = vadd.f32 %v726, %v2767
      %v2769 = vpop.f32.mrf.mxu0
      %v2770 = vpop.f32.mrf.mxu0
      %v2771 = vadd.f32 %v726, %v2770
      %v2772 = vpop.f32.mrf.mxu0
      %2773 = vmatprep.mubr.bf16.mxu0 0
      %2774 = vmatmul.mubr.bf16.gmra.mxu0 %v1986
      %v2775 = vpop.f32.mrf.mxu0
      %v2776 = vadd.f32 %v726, %v2775
      %v2777 = vpop.f32.mrf.mxu0
      %v2778 = vpop.f32.mrf.mxu0
      %v2779 = vadd.f32 %v726, %v2778
      %v2780 = vpop.f32.mrf.mxu0
      %2781 = vmatprep.mubr.bf16.mxu0 0
      %2782 = vmatmul.mubr.bf16.gmra.mxu0 %v1989
      %v2783 = vpop.f32.mrf.mxu0
      %v2784 = vadd.f32 %v726, %v2783
      %v2785 = vpop.f32.mrf.mxu0
      %v2786 = vpop.f32.mrf.mxu0
      %v2787 = vadd.f32 %v726, %v2786
      %v2788 = vpop.f32.mrf.mxu0
      %2789 = vmatprep.mubr.bf16.mxu0 0
      %2790 = vmatmul.mubr.bf16.gmra.mxu0 %v1992
      %v2791 = vpop.f32.mrf.mxu0
      %v2792 = vadd.f32 %v726, %v2791
      %v2793 = vpop.f32.mrf.mxu0
      %v2794 = vpop.f32.mrf.mxu0
      %v2795 = vadd.f32 %v726, %v2794
      %v2796 = vpop.f32.mrf.mxu0
      %2797 = vmatprep.mubr.bf16.mxu0 0
      %2798 = vmatmul.mubr.bf16.gmra.mxu0 %v1995
      %v2799 = vpop.f32.mrf.mxu0
      %v2800 = vadd.f32 %v726, %v2799
      %v2801 = vpop.f32.mrf.mxu0
      %v2802 = vpop.f32.mrf.mxu0
      %v2803 = vadd.f32 %v726, %v2802
      %v2804 = vpop.f32.mrf.mxu0
      %2805 = vmatprep.mubr.bf16.mxu0 0
      %2806 = vmatmul.mubr.bf16.gmra.mxu0 %v1998
      %v2807 = vpop.f32.mrf.mxu0
      %v2808 = vadd.f32 %v726, %v2807
      %v2809 = vpop.f32.mrf.mxu0
      %v2810 = vpop.f32.mrf.mxu0
      %v2811 = vadd.f32 %v726, %v2810
      %v2812 = vpop.f32.mrf.mxu0
      %2813 = vmatprep.mubr.bf16.mxu0 0
      %2814 = vmatmul.mubr.bf16.gmra.mxu0 %v2001
      %v2815 = vpop.f32.mrf.mxu0
      %v2816 = vadd.f32 %v726, %v2815
      %v2817 = vpop.f32.mrf.mxu0
      %v2818 = vpop.f32.mrf.mxu0
      %v2819 = vadd.f32 %v726, %v2818
      %v2820 = vpop.f32.mrf.mxu0
      %2821 = vmatprep.mubr.bf16.mxu0 0
      %2822 = vmatmul.mubr.bf16.gmra.mxu0 %v2004
      %v2823 = vpop.f32.mrf.mxu0
      %v2824 = vadd.f32 %v726, %v2823
      %v2825 = vpop.f32.mrf.mxu0
      %v2826 = vpop.f32.mrf.mxu0
      %v2827 = vadd.f32 %v726, %v2826
      %v2828 = vpop.f32.mrf.mxu0
      %2829 = vmatprep.mubr.bf16.mxu0 0
      %2830 = vmatmul.mubr.bf16.gmra.mxu0 %v2007
      %v2831 = vpop.f32.mrf.mxu0
      %v2832 = vadd.f32 %v726, %v2831
      %v2833 = vpop.f32.mrf.mxu0
      %v2834 = vpop.f32.mrf.mxu0
      %v2835 = vadd.f32 %v726, %v2834
      %v2836 = vpop.f32.mrf.mxu0
      %2837 = vmatprep.mubr.bf16.mxu0 0
      %2838 = vmatmul.mubr.bf16.gmra.mxu0 %v2010
      %v2839 = vpop.f32.mrf.mxu0
      %v2840 = vadd.f32 %v726, %v2839
      %v2841 = vpop.f32.mrf.mxu0
      %v2842 = vpop.f32.mrf.mxu0
      %v2843 = vadd.f32 %v726, %v2842
      %v2844 = vpop.f32.mrf.mxu0
      %2845 = vmatprep.mubr.bf16.mxu0 0
      %2846 = vmatmul.mubr.bf16.gmra.mxu0 %v2013
      %v2847 = vpop.f32.mrf.mxu0
      %v2848 = vadd.f32 %v726, %v2847
      %v2849 = vpop.f32.mrf.mxu0
      %v2850 = vpop.f32.mrf.mxu0
      %v2851 = vadd.f32 %v726, %v2850
      %v2852 = vpop.f32.mrf.mxu0
      %2853 = vmatprep.mubr.bf16.mxu0 0
      %2854 = vmatmul.mubr.bf16.gmra.mxu0 %v2016
      %v2855 = vpop.f32.mrf.mxu0
      %v2856 = vadd.f32 %v726, %v2855
      %v2857 = vpop.f32.mrf.mxu0
      %v2858 = vpop.f32.mrf.mxu0
      %v2859 = vadd.f32 %v726, %v2858
      %v2860 = vpop.f32.mrf.mxu0
      %2861 = vmatprep.mubr.bf16.mxu0 0
      %2862 = vmatmul.mubr.bf16.gmra.mxu0 %v2019
      %v2863 = vpop.f32.mrf.mxu0
      %v2864 = vadd.f32 %v726, %v2863
      %v2865 = vpop.f32.mrf.mxu0
      %v2866 = vpop.f32.mrf.mxu0
      %v2867 = vadd.f32 %v726, %v2866
      %v2868 = vpop.f32.mrf.mxu0
      %2869 = vmatprep.mubr.bf16.mxu0 0
      %2870 = vmatmul.mubr.bf16.gmra.mxu0 %v2022
      %v2871 = vpop.f32.mrf.mxu0
      %v2872 = vadd.f32 %v726, %v2871
      %v2873 = vpop.f32.mrf.mxu0
      %v2874 = vpop.f32.mrf.mxu0
      %v2875 = vadd.f32 %v726, %v2874
      %v2876 = vpop.f32.mrf.mxu0
      %2877 = vmatprep.mubr.bf16.mxu0 0
      %2878 = vmatmul.mubr.bf16.gmra.mxu0 %v2025
      %v2879 = vpop.f32.mrf.mxu0
      %v2880 = vadd.f32 %v726, %v2879
      %v2881 = vpop.f32.mrf.mxu0
      %v2882 = vpop.f32.mrf.mxu0
      %v2883 = vadd.f32 %v726, %v2882
      %v2884 = vpop.f32.mrf.mxu0
      %2885 = vmatprep.mubr.bf16.mxu0 0
      %2886 = vmatmul.mubr.bf16.gmra.mxu0 %v2028
      %v2887 = vpop.f32.mrf.mxu0
      %v2888 = vadd.f32 %v726, %v2887
      %v2889 = vpop.f32.mrf.mxu0
      %v2890 = vpop.f32.mrf.mxu0
      %v2891 = vadd.f32 %v726, %v2890
      %v2892 = vpop.f32.mrf.mxu0
      %2893 = vmatprep.mubr.bf16.mxu0 0
      %2894 = vmatmul.mubr.bf16.gmra.mxu0 %v2031
      %v2895 = vpop.f32.mrf.mxu0
      %v2896 = vadd.f32 %v726, %v2895
      %v2897 = vpop.f32.mrf.mxu0
      %v2898 = vpop.f32.mrf.mxu0
      %v2899 = vadd.f32 %v726, %v2898
      %v2900 = vpop.f32.mrf.mxu0
      %2901 = vmatprep.mubr.bf16.mxu0 0
      %2902 = vmatmul.mubr.bf16.gmra.mxu0 %v2034
      %v2903 = vpop.f32.mrf.mxu0
      %v2904 = vadd.f32 %v726, %v2903
      %v2905 = vpop.f32.mrf.mxu0
      %v2906 = vpop.f32.mrf.mxu0
      %v2907 = vadd.f32 %v726, %v2906
      %v2908 = vpop.f32.mrf.mxu0
      %2909 = vmatprep.mubr.bf16.mxu0 0
      %2910 = vmatmul.mubr.bf16.gmra.mxu0 %v2037
      %v2911 = vpop.f32.mrf.mxu0
      %v2912 = vadd.f32 %v726, %v2911
      %v2913 = vpop.f32.mrf.mxu0
      %v2914 = vpop.f32.mrf.mxu0
      %v2915 = vadd.f32 %v726, %v2914
      %v2916 = vpop.f32.mrf.mxu0
      %2917 = vmatprep.mubr.bf16.mxu0 0
      %2918 = vmatmul.mubr.bf16.gmra.mxu0 %v2040
      %v2919 = vpop.f32.mrf.mxu0
      %v2920 = vadd.f32 %v726, %v2919
      %v2921 = vpop.f32.mrf.mxu0
      %v2922 = vpop.f32.mrf.mxu0
      %v2923 = vadd.f32 %v726, %v2922
      %v2924 = vpop.f32.mrf.mxu0
      %2925 = vmatprep.mubr.bf16.mxu0 0
      %2926 = vmatmul.mubr.bf16.gmra.mxu0 %v2043
      %v2927 = vpop.f32.mrf.mxu0
      %v2928 = vadd.f32 %v726, %v2927
      %v2929 = vpop.f32.mrf.mxu0
      %v2930 = vpop.f32.mrf.mxu0
      %v2931 = vadd.f32 %v726, %v2930
      %v2932 = vpop.f32.mrf.mxu0
      %2933 = vmatprep.mubr.bf16.mxu0 0
      %2934 = vmatmul.mubr.bf16.gmra.mxu0 %v2046
      %v2935 = vpop.f32.mrf.mxu0
      %v2936 = vadd.f32 %v726, %v2935
      %v2937 = vpop.f32.mrf.mxu0
      %v2938 = vpop.f32.mrf.mxu0
      %v2939 = vadd.f32 %v726, %v2938
      %v2940 = vpop.f32.mrf.mxu0
      %2941 = vmatprep.mubr.bf16.mxu0 0
      %2942 = vmatmul.mubr.bf16.gmra.mxu0 %v2049
      %v2943 = vpop.f32.mrf.mxu0
      %v2944 = vadd.f32 %v726, %v2943
      %v2945 = vpop.f32.mrf.mxu0
      %v2946 = vpop.f32.mrf.mxu0
      %v2947 = vadd.f32 %v726, %v2946
      %v2948 = vpop.f32.mrf.mxu0
      %2949 = vmatprep.mubr.bf16.mxu0 0
      %2950 = vmatmul.mubr.bf16.gmra.mxu0 %v2052
      %v2951 = vpop.f32.mrf.mxu0
      %v2952 = vadd.f32 %v726, %v2951
      %v2953 = vpop.f32.mrf.mxu0
      %v2954 = vpop.f32.mrf.mxu0
      %v2955 = vadd.f32 %v726, %v2954
      %v2956 = vpop.f32.mrf.mxu0
      %2957 = vmatprep.mubr.bf16.mxu0 0
      %2958 = vmatmul.mubr.bf16.gmra.mxu0 %v2055
      %v2959 = vpop.f32.mrf.mxu0
      %v2960 = vadd.f32 %v726, %v2959
      %v2961 = vpop.f32.mrf.mxu0
      %v2962 = vpop.f32.mrf.mxu0
      %v2963 = vadd.f32 %v726, %v2962
      %v2964 = vpop.f32.mrf.mxu0
      %2965 = vmatprep.mubr.bf16.mxu0 0
      %2966 = vmatmul.mubr.bf16.gmra.mxu0 %v2058
      %v2967 = vpop.f32.mrf.mxu0
      %v2968 = vadd.f32 %v726, %v2967
      %v2969 = vpop.f32.mrf.mxu0
      %v2970 = vpop.f32.mrf.mxu0
      %v2971 = vadd.f32 %v726, %v2970
      %v2972 = vpop.f32.mrf.mxu0
      %2973 = vmatprep.mubr.bf16.mxu0 0
      %2974 = vmatmul.mubr.bf16.gmra.mxu0 %v2061
      %v2975 = vpop.f32.mrf.mxu0
      %v2976 = vadd.f32 %v726, %v2975
      %v2977 = vpop.f32.mrf.mxu0
      %v2978 = vpop.f32.mrf.mxu0
      %v2979 = vadd.f32 %v726, %v2978
      %v2980 = vpop.f32.mrf.mxu0
      %2981 = vmatprep.mubr.bf16.mxu0 0
      %2982 = vmatmul.mubr.bf16.gmra.mxu0 %v2064
      %v2983 = vpop.f32.mrf.mxu0
      %v2984 = vadd.f32 %v726, %v2983
      %v2985 = vpop.f32.mrf.mxu0
      %v2986 = vpop.f32.mrf.mxu0
      %v2987 = vadd.f32 %v726, %v2986
      %v2988 = vpop.f32.mrf.mxu0
      %2989 = vmatprep.mubr.bf16.mxu0 0
      %2990 = vmatmul.mubr.bf16.gmra.mxu0 %v2067
      %v2991 = vpop.f32.mrf.mxu0
      %v2992 = vadd.f32 %v726, %v2991
      %v2993 = vpop.f32.mrf.mxu0
      %v2994 = vpop.f32.mrf.mxu0
      %v2995 = vadd.f32 %v726, %v2994
      %v2996 = vpop.f32.mrf.mxu0
      %2997 = vmatprep.mubr.bf16.mxu0 0
      %2998 = vmatmul.mubr.bf16.gmra.mxu0 %v2070
      %v2999 = vpop.f32.mrf.mxu0
      %v3000 = vadd.f32 %v726, %v2999
      %v3001 = vpop.f32.mrf.mxu0
      %v3002 = vpop.f32.mrf.mxu0
      %v3003 = vadd.f32 %v726, %v3002
      %v3004 = vpop.f32.mrf.mxu0
      %3005 = vmatprep.mubr.bf16.mxu0 0
      %3006 = vmatmul.mubr.bf16.gmra.mxu0 %v2073
      %v3007 = vpop.f32.mrf.mxu0
      %v3008 = vadd.f32 %v726, %v3007
      %v3009 = vpop.f32.mrf.mxu0
      %v3010 = vpop.f32.mrf.mxu0
      %v3011 = vadd.f32 %v726, %v3010
      %v3012 = vpop.f32.mrf.mxu0
      %3013 = vmatprep.mubr.bf16.mxu0 0
      %3014 = vmatmul.mubr.bf16.gmra.mxu0 %v2076
      %v3015 = vpop.f32.mrf.mxu0
      %v3016 = vadd.f32 %v726, %v3015
      %v3017 = vpop.f32.mrf.mxu0
      %v3018 = vpop.f32.mrf.mxu0
      %v3019 = vadd.f32 %v726, %v3018
      %v3020 = vpop.f32.mrf.mxu0
      %3021 = vmatprep.mubr.bf16.mxu0 0
      %3022 = vmatmul.mubr.bf16.gmra.mxu0 %v2079
      %v3023 = vpop.f32.mrf.mxu0
      %v3024 = vadd.f32 %v726, %v3023
      %v3025 = vpop.f32.mrf.mxu0
      %v3026 = vpop.f32.mrf.mxu0
      %v3027 = vadd.f32 %v726, %v3026
      %v3028 = vpop.f32.mrf.mxu0
      %3029 = vmatprep.mubr.bf16.mxu0 0
      %3030 = vmatmul.mubr.bf16.gmra.mxu0 %v2082
      %v3031 = vpop.f32.mrf.mxu0
      %v3032 = vadd.f32 %v726, %v3031
      %v3033 = vpop.f32.mrf.mxu0
      %v3034 = vpop.f32.mrf.mxu0
      %v3035 = vadd.f32 %v726, %v3034
      %v3036 = vpop.f32.mrf.mxu0
      %3037 = vmatprep.mubr.bf16.mxu0 0
      %3038 = vmatmul.mubr.bf16.gmra.mxu0 %v2085
      %v3039 = vpop.f32.mrf.mxu0
      %v3040 = vadd.f32 %v726, %v3039
      %v3041 = vpop.f32.mrf.mxu0
      %v3042 = vpop.f32.mrf.mxu0
      %v3043 = vadd.f32 %v726, %v3042
      %v3044 = vpop.f32.mrf.mxu0
      %3045 = vmatprep.mubr.bf16.mxu0 0
      %3046 = vmatmul.mubr.bf16.gmra.mxu0 %v2088
      %v3047 = vpop.f32.mrf.mxu0
      %v3048 = vadd.f32 %v726, %v3047
      %v3049 = vpop.f32.mrf.mxu0
      %v3050 = vpop.f32.mrf.mxu0
      %v3051 = vadd.f32 %v726, %v3050
      %v3052 = vpop.f32.mrf.mxu0
      %3053 = vmatprep.mubr.bf16.mxu0 0
      %3054 = vmatmul.mubr.bf16.gmra.mxu0 %v2091
      %v3055 = vpop.f32.mrf.mxu0
      %v3056 = vadd.f32 %v726, %v3055
      %v3057 = vpop.f32.mrf.mxu0
      %v3058 = vpop.f32.mrf.mxu0
      %v3059 = vadd.f32 %v726, %v3058
      %v3060 = vpop.f32.mrf.mxu0
      %3061 = vmatprep.mubr.bf16.mxu0 0
      %3062 = vmatmul.mubr.bf16.gmra.mxu0 %v2094
      %v3063 = vpop.f32.mrf.mxu0
      %v3064 = vadd.f32 %v726, %v3063
      %v3065 = vpop.f32.mrf.mxu0
      %v3066 = vpop.f32.mrf.mxu0
      %v3067 = vadd.f32 %v726, %v3066
      %v3068 = vpop.f32.mrf.mxu0
      %3069 = vmatprep.mubr.bf16.mxu0 0
      %3070 = vmatmul.mubr.bf16.gmra.mxu0 %v2097
      %v3071 = vpop.f32.mrf.mxu0
      %v3072 = vadd.f32 %v726, %v3071
      %v3073 = vpop.f32.mrf.mxu0
      %v3074 = vpop.f32.mrf.mxu0
      %v3075 = vadd.f32 %v726, %v3074
      %v3076 = vpop.f32.mrf.mxu0
      %3077 = vmatprep.mubr.bf16.mxu0 0
      %3078 = vmatmul.mubr.bf16.gmra.mxu0 %v2100
      %v3079 = vpop.f32.mrf.mxu0
      %v3080 = vadd.f32 %v726, %v3079
      %v3081 = vpop.f32.mrf.mxu0
      %v3082 = vpop.f32.mrf.mxu0
      %v3083 = vadd.f32 %v726, %v3082
      %v3084 = vpop.f32.mrf.mxu0
      %3085 = vmatprep.mubr.bf16.mxu0 0
      %3086 = vmatmul.mubr.bf16.gmra.mxu0 %v2103
      %v3087 = vpop.f32.mrf.mxu0
      %v3088 = vadd.f32 %v726, %v3087
      %v3089 = vpop.f32.mrf.mxu0
      %v3090 = vpop.f32.mrf.mxu0
      %v3091 = vadd.f32 %v726, %v3090
      %v3092 = vpop.f32.mrf.mxu0
      %3093 = vmatprep.mubr.bf16.mxu0 0
      %3094 = vmatmul.mubr.bf16.gmra.mxu0 %v2106
      %v3095 = vpop.f32.mrf.mxu0
      %v3096 = vadd.f32 %v726, %v3095
      %v3097 = vpop.f32.mrf.mxu0
      %v3098 = vpop.f32.mrf.mxu0
      %v3099 = vadd.f32 %v726, %v3098
      %v3100 = vpop.f32.mrf.mxu0
      %3101 = vmatprep.mubr.bf16.mxu0 0
      %3102 = vmatmul.mubr.bf16.gmra.mxu0 %v2109
      %v3103 = vpop.f32.mrf.mxu0
      %v3104 = vadd.f32 %v726, %v3103
      %v3105 = vpop.f32.mrf.mxu0
      %v3106 = vpop.f32.mrf.mxu0
      %v3107 = vadd.f32 %v726, %v3106
      %v3108 = vpop.f32.mrf.mxu0
      %3109 = vmatprep.mubr.bf16.mxu0 0
      %3110 = vmatmul.mubr.bf16.gmra.mxu0 %v2112
      %v3111 = vpop.f32.mrf.mxu0
      %v3112 = vadd.f32 %v726, %v3111
      %v3113 = vpop.f32.mrf.mxu0
      %v3114 = vpop.f32.mrf.mxu0
      %v3115 = vadd.f32 %v726, %v3114
      %v3116 = vpop.f32.mrf.mxu0
      %3117 = vmatprep.mubr.bf16.mxu0 0
      %3118 = vmatmul.mubr.bf16.gmra.mxu0 %v2115
      %v3119 = vpop.f32.mrf.mxu0
      %v3120 = vadd.f32 %v726, %v3119
      %v3121 = vpop.f32.mrf.mxu0
      %v3122 = vpop.f32.mrf.mxu0
      %v3123 = vadd.f32 %v726, %v3122
      %v3124 = vpop.f32.mrf.mxu0
      %3125 = vmatprep.mubr.bf16.mxu0 0
      %3126 = vmatmul.mubr.bf16.gmra.mxu0 %v2118
      %v3127 = vpop.f32.mrf.mxu0
      %v3128 = vadd.f32 %v726, %v3127
      %v3129 = vpop.f32.mrf.mxu0
      %v3130 = vpop.f32.mrf.mxu0
      %v3131 = vadd.f32 %v726, %v3130
      %v3132 = vpop.f32.mrf.mxu0
      %3133 = vmatprep.mubr.bf16.mxu0 0
      %3134 = vmatmul.mubr.bf16.gmra.mxu0 %v2121
      %v3135 = vpop.f32.mrf.mxu0
      %v3136 = vadd.f32 %v726, %v3135
      %v3137 = vpop.f32.mrf.mxu0
      %v3138 = vpop.f32.mrf.mxu0
      %v3139 = vadd.f32 %v726, %v3138
      %v3140 = vpop.f32.mrf.mxu0
      %3141 = vmatprep.mubr.bf16.mxu0 0
      %3142 = vmatmul.mubr.bf16.gmra.mxu0 %v2124
      %v3143 = vpop.f32.mrf.mxu0
      %v3144 = vadd.f32 %v726, %v3143
      %v3145 = vpop.f32.mrf.mxu0
      %v3146 = vpop.f32.mrf.mxu0
      %v3147 = vadd.f32 %v726, %v3146
      %v3148 = vpop.f32.mrf.mxu0
      %3149 = vmatprep.mubr.bf16.mxu0 0
      %3150 = vmatmul.mubr.bf16.gmra.mxu0 %v2127
      %v3151 = vpop.f32.mrf.mxu0
      %v3152 = vadd.f32 %v726, %v3151
      %v3153 = vpop.f32.mrf.mxu0
      %v3154 = vpop.f32.mrf.mxu0
      %v3155 = vadd.f32 %v726, %v3154
      %v3156 = vpop.f32.mrf.mxu0
      %3157 = vmatprep.mubr.bf16.mxu0 0
      %3158 = vmatmul.mubr.bf16.gmra.mxu0 %v2130
      %v3159 = vpop.f32.mrf.mxu0
      %v3160 = vadd.f32 %v726, %v3159
      %v3161 = vpop.f32.mrf.mxu0
      %v3162 = vpop.f32.mrf.mxu0
      %v3163 = vadd.f32 %v726, %v3162
      %v3164 = vpop.f32.mrf.mxu0
      %3165 = vmatprep.mubr.bf16.mxu0 0
      %3166 = vmatmul.mubr.bf16.gmra.mxu0 %v2133
      %v3167 = vpop.f32.mrf.mxu0
      %v3168 = vadd.f32 %v726, %v3167
      %v3169 = vpop.f32.mrf.mxu0
      %v3170 = vpop.f32.mrf.mxu0
      %v3171 = vadd.f32 %v726, %v3170
      %v3172 = vpop.f32.mrf.mxu0
      %3173 = vmatprep.mubr.bf16.mxu0 0
      %3174 = vmatmul.mubr.bf16.gmra.mxu0 %v2136
      %v3175 = vpop.f32.mrf.mxu0
      %v3176 = vadd.f32 %v726, %v3175
      %v3177 = vpop.f32.mrf.mxu0
      %v3178 = vpop.f32.mrf.mxu0
      %v3179 = vadd.f32 %v726, %v3178
      %v3180 = vpop.f32.mrf.mxu0
      %3181 = vmatprep.mubr.bf16.mxu0 0
      %3182 = vmatmul.mubr.bf16.gmra.mxu0 %v2139
      %v3183 = vpop.f32.mrf.mxu0
      %v3184 = vadd.f32 %v726, %v3183
      %v3185 = vpop.f32.mrf.mxu0
      %v3186 = vpop.f32.mrf.mxu0
      %v3187 = vadd.f32 %v726, %v3186
      %v3188 = vpop.f32.mrf.mxu0
      %3189 = vmatprep.mubr.bf16.mxu0 0
      %3190 = vmatmul.mubr.bf16.gmra.mxu0 %v2142
      %v3191 = vpop.f32.mrf.mxu0
      %v3192 = vadd.f32 %v726, %v3191
      %v3193 = vpop.f32.mrf.mxu0
      %v3194 = vpop.f32.mrf.mxu0
      %v3195 = vadd.f32 %v726, %v3194
      %v3196 = vpop.f32.mrf.mxu0
      %3197 = vmatprep.mubr.bf16.mxu0 0
      %3198 = vmatmul.mubr.bf16.gmra.mxu0 %v2145
      %v3199 = vpop.f32.mrf.mxu0
      %v3200 = vadd.f32 %v726, %v3199
      %v3201 = vpop.f32.mrf.mxu0
      %v3202 = vpop.f32.mrf.mxu0
      %v3203 = vadd.f32 %v726, %v3202
      %v3204 = vpop.f32.mrf.mxu0
      %3205 = vmatprep.mubr.bf16.mxu0 0
      %3206 = vmatmul.mubr.bf16.gmra.mxu0 %v2148
      %v3207 = vpop.f32.mrf.mxu0
      %v3208 = vadd.f32 %v726, %v3207
      %v3209 = vpop.f32.mrf.mxu0
      %v3210 = vpop.f32.mrf.mxu0
      %v3211 = vadd.f32 %v726, %v3210
      %v3212 = vpop.f32.mrf.mxu0
      %3213 = vmatprep.mubr.bf16.mxu0 0
      %3214 = vmatmul.mubr.bf16.gmra.mxu0 %v2151
      %v3215 = vpop.f32.mrf.mxu0
      %v3216 = vadd.f32 %v726, %v3215
      %v3217 = vpop.f32.mrf.mxu0
      %v3218 = vpop.f32.mrf.mxu0
      %v3219 = vadd.f32 %v726, %v3218
      %v3220 = vpop.f32.mrf.mxu0
      %3221 = vmatprep.mubr.bf16.mxu0 0
      %3222 = vmatmul.mubr.bf16.gmra.mxu0 %v2154
      %v3223 = vpop.f32.mrf.mxu0
      %v3224 = vadd.f32 %v726, %v3223
      %v3225 = vpop.f32.mrf.mxu0
      %v3226 = vpop.f32.mrf.mxu0
      %v3227 = vadd.f32 %v726, %v3226
      %v3228 = vpop.f32.mrf.mxu0
      %3229 = vmatprep.mubr.bf16.mxu0 0
      %3230 = vmatmul.mubr.bf16.gmra.mxu0 %v2157
      %v3231 = vpop.f32.mrf.mxu0
      %v3232 = vadd.f32 %v726, %v3231
      %v3233 = vpop.f32.mrf.mxu0
      %v3234 = vpop.f32.mrf.mxu0
      %v3235 = vadd.f32 %v726, %v3234
      %v3236 = vpop.f32.mrf.mxu0
      %3237 = vmatprep.mubr.bf16.mxu0 0
      %3238 = vmatmul.mubr.bf16.gmra.mxu0 %v2160
      %v3239 = vpop.f32.mrf.mxu0
      %v3240 = vadd.f32 %v726, %v3239
      %v3241 = vpop.f32.mrf.mxu0
      %v3242 = vpop.f32.mrf.mxu0
      %v3243 = vadd.f32 %v726, %v3242
      %v3244 = vpop.f32.mrf.mxu0
      %3245 = vmatprep.mubr.bf16.mxu0 0
      %3246 = vmatmul.mubr.bf16.gmra.mxu0 %v2163
      %v3247 = vpop.f32.mrf.mxu0
      %v3248 = vadd.f32 %v726, %v3247
      %v3249 = vpop.f32.mrf.mxu0
      %v3250 = vpop.f32.mrf.mxu0
      %v3251 = vadd.f32 %v726, %v3250
      %v3252 = vpop.f32.mrf.mxu0
      %3253 = vmatprep.mubr.bf16.mxu0 0
      %3254 = vmatmul.mubr.bf16.gmra.mxu0 %v2166
      %v3255 = vpop.f32.mrf.mxu0
      %v3256 = vadd.f32 %v726, %v3255
      %v3257 = vpop.f32.mrf.mxu0
      %v3258 = vpop.f32.mrf.mxu0
      %v3259 = vadd.f32 %v726, %v3258
      %v3260 = vpop.f32.mrf.mxu0
      %3261 = vmatprep.mubr.bf16.mxu0 0
      %3262 = vmatmul.mubr.bf16.gmra.mxu0 %v2169
      %v3263 = vpop.f32.mrf.mxu0
      %v3264 = vadd.f32 %v726, %v3263
      %v3265 = vpop.f32.mrf.mxu0
      %v3266 = vpop.f32.mrf.mxu0
      %v3267 = vadd.f32 %v726, %v3266
      %v3268 = vpop.f32.mrf.mxu0
      %3269 = vmatprep.mubr.bf16.mxu0 0
      %3270 = vmatmul.mubr.bf16.gmra.mxu0 %v2172
      %v3271 = vpop.f32.mrf.mxu0
      %v3272 = vadd.f32 %v726, %v3271
      %v3273 = vpop.f32.mrf.mxu0
      %v3274 = vpop.f32.mrf.mxu0
      %v3275 = vadd.f32 %v726, %v3274
      %v3276 = vpop.f32.mrf.mxu0
      %3277 = vmatprep.mubr.bf16.mxu0 0
      %3278 = vmatmul.mubr.bf16.gmra.mxu0 %v2175
      %v3279 = vpop.f32.mrf.mxu0
      %v3280 = vadd.f32 %v726, %v3279
      %v3281 = vpop.f32.mrf.mxu0
      %v3282 = vpop.f32.mrf.mxu0
      %v3283 = vadd.f32 %v726, %v3282
      %v3284 = vpop.f32.mrf.mxu0
      %3285 = vmatprep.mubr.bf16.mxu0 0
      %3286 = vmatmul.mubr.bf16.gmra.mxu0 %v2178
      %v3287 = vpop.f32.mrf.mxu0
      %v3288 = vadd.f32 %v726, %v3287
      %v3289 = vpop.f32.mrf.mxu0
      %v3290 = vpop.f32.mrf.mxu0
      %v3291 = vadd.f32 %v726, %v3290
      %v3292 = vpop.f32.mrf.mxu0
      %3293 = vmatprep.mubr.bf16.mxu0 0
      %3294 = vmatmul.mubr.bf16.gmra.mxu0 %v2181
      %v3295 = vpop.f32.mrf.mxu0
      %v3296 = vadd.f32 %v726, %v3295
      %v3297 = vpop.f32.mrf.mxu0
      %v3298 = vpop.f32.mrf.mxu0
      %v3299 = vadd.f32 %v726, %v3298
      %v3300 = vpop.f32.mrf.mxu0
      %3301 = vmatprep.mubr.bf16.mxu0 0
      %3302 = vmatmul.mubr.bf16.gmra.mxu0 %v2184
      %v3303 = vpop.f32.mrf.mxu0
      %v3304 = vadd.f32 %v726, %v3303
      %v3305 = vpop.f32.mrf.mxu0
      %v3306 = vpop.f32.mrf.mxu0
      %v3307 = vadd.f32 %v726, %v3306
      %v3308 = vpop.f32.mrf.mxu0
      %3309 = vmatprep.mubr.bf16.mxu0 0
      %3310 = vmatmul.mubr.bf16.gmra.mxu0 %v2187
      %v3311 = vpop.f32.mrf.mxu0
      %v3312 = vadd.f32 %v726, %v3311
      %v3313 = vpop.f32.mrf.mxu0
      %v3314 = vpop.f32.mrf.mxu0
      %v3315 = vadd.f32 %v726, %v3314
      %v3316 = vpop.f32.mrf.mxu0
      %3317 = vmatprep.mubr.bf16.mxu0 0
      %3318 = vmatmul.mubr.bf16.gmra.mxu0 %v2190
      %v3319 = vpop.f32.mrf.mxu0
      %v3320 = vadd.f32 %v726, %v3319
      %v3321 = vpop.f32.mrf.mxu0
      %v3322 = vpop.f32.mrf.mxu0
      %v3323 = vadd.f32 %v726, %v3322
      %v3324 = vpop.f32.mrf.mxu0
      %3325 = vmatprep.mubr.bf16.mxu0 0
      %3326 = vmatmul.mubr.bf16.gmra.mxu0 %v2193
      %v3327 = vpop.f32.mrf.mxu0
      %v3328 = vadd.f32 %v726, %v3327
      %v3329 = vpop.f32.mrf.mxu0
      %v3330 = vpop.f32.mrf.mxu0
      %v3331 = vadd.f32 %v726, %v3330
      %v3332 = vpop.f32.mrf.mxu0
      %3333 = vmatprep.mubr.bf16.mxu0 0
      %3334 = vmatmul.mubr.bf16.gmra.mxu0 %v2196
      %v3335 = vpop.f32.mrf.mxu0
      %v3336 = vadd.f32 %v726, %v3335
      %v3337 = vpop.f32.mrf.mxu0
      %v3338 = vpop.f32.mrf.mxu0
      %v3339 = vadd.f32 %v726, %v3338
      %v3340 = vpop.f32.mrf.mxu0
      %3341 = vmatprep.mubr.bf16.mxu0 0
      %3342 = vmatmul.mubr.bf16.gmra.mxu0 %v2199
      %v3343 = vpop.f32.mrf.mxu0
      %v3344 = vadd.f32 %v726, %v3343
      %v3345 = vpop.f32.mrf.mxu0
      %v3346 = vpop.f32.mrf.mxu0
      %v3347 = vadd.f32 %v726, %v3346
      %v3348 = vpop.f32.mrf.mxu0
      %3349 = vmatprep.mubr.bf16.mxu0 0
      %3350 = vmatmul.mubr.bf16.gmra.mxu0 %v2202
      %v3351 = vpop.f32.mrf.mxu0
      %v3352 = vadd.f32 %v726, %v3351
      %v3353 = vpop.f32.mrf.mxu0
      %v3354 = vpop.f32.mrf.mxu0
      %v3355 = vadd.f32 %v726, %v3354
      %v3356 = vpop.f32.mrf.mxu0
      %3357 = vmatprep.mubr.bf16.mxu0 0
      %3358 = vmatmul.mubr.bf16.gmra.mxu0 %v2205
      %v3359 = vpop.f32.mrf.mxu0
      %v3360 = vadd.f32 %v726, %v3359
      %v3361 = vpop.f32.mrf.mxu0
      %v3362 = vpop.f32.mrf.mxu0
      %v3363 = vadd.f32 %v726, %v3362
      %v3364 = vpop.f32.mrf.mxu0
      %3365 = vmatprep.mubr.bf16.mxu0 0
      %3366 = vmatmul.mubr.bf16.gmra.mxu0 %v2208
      %v3367 = vpop.f32.mrf.mxu0
      %v3368 = vadd.f32 %v726, %v3367
      %v3369 = vpop.f32.mrf.mxu0
      %v3370 = vpop.f32.mrf.mxu0
      %v3371 = vadd.f32 %v726, %v3370
      %v3372 = vpop.f32.mrf.mxu0
      %3373 = vmatprep.mubr.bf16.mxu0 0
      %3374 = vmatmul.mubr.bf16.gmra.mxu0 %v2211
      %v3375 = vpop.f32.mrf.mxu0
      %v3376 = vadd.f32 %v726, %v3375
      %v3377 = vpop.f32.mrf.mxu0
      %v3378 = vpop.f32.mrf.mxu0
      %v3379 = vadd.f32 %v726, %v3378
      %v3380 = vpop.f32.mrf.mxu0
      %3381 = vmatprep.mubr.bf16.mxu0 0
      %3382 = vmatmul.mubr.bf16.gmra.mxu0 %v2214
      %v3383 = vpop.f32.mrf.mxu0
      %v3384 = vadd.f32 %v726, %v3383
      %v3385 = vpop.f32.mrf.mxu0
      %v3386 = vpop.f32.mrf.mxu0
      %v3387 = vadd.f32 %v726, %v3386
      %v3388 = vpop.f32.mrf.mxu0
      %3389 = vmatprep.mubr.bf16.mxu0 0
      %3390 = vmatmul.mubr.bf16.gmra.mxu0 %v2217
      %v3391 = vpop.f32.mrf.mxu0
      %v3392 = vadd.f32 %v726, %v3391
      %v3393 = vpop.f32.mrf.mxu0
      %v3394 = vpop.f32.mrf.mxu0
      %v3395 = vadd.f32 %v726, %v3394
      %v3396 = vpop.f32.mrf.mxu0
      %3397 = vmatprep.mubr.bf16.mxu0 0
      %3398 = vmatmul.mubr.bf16.gmra.mxu0 %v2220
      %v3399 = vpop.f32.mrf.mxu0
      %v3400 = vadd.f32 %v726, %v3399
      %v3401 = vpop.f32.mrf.mxu0
      %v3402 = vpop.f32.mrf.mxu0
      %v3403 = vadd.f32 %v726, %v3402
      %v3404 = vpop.f32.mrf.mxu0
      %3405 = vmatprep.mubr.bf16.mxu0 0
      %3406 = vmatmul.mubr.bf16.gmra.mxu0 %v2223
      %v3407 = vpop.f32.mrf.mxu0
      %v3408 = vadd.f32 %v726, %v3407
      %v3409 = vpop.f32.mrf.mxu0
      %v3410 = vpop.f32.mrf.mxu0
      %v3411 = vadd.f32 %v726, %v3410
      %v3412 = vpop.f32.mrf.mxu0
      %3413 = vmatprep.mubr.bf16.mxu0 0
      %3414 = vmatmul.mubr.bf16.gmra.mxu0 %v2226
      %v3415 = vpop.f32.mrf.mxu0
      %v3416 = vadd.f32 %v726, %v3415
      %v3417 = vpop.f32.mrf.mxu0
      %v3418 = vpop.f32.mrf.mxu0
      %v3419 = vadd.f32 %v726, %v3418
      %v3420 = vpop.f32.mrf.mxu0
      %3421 = vmatprep.mubr.bf16.mxu0 0
      %3422 = vmatmul.mubr.bf16.gmra.mxu0 %v2229
      %v3423 = vpop.f32.mrf.mxu0
      %v3424 = vadd.f32 %v726, %v3423
      %v3425 = vpop.f32.mrf.mxu0
      %v3426 = vpop.f32.mrf.mxu0
      %v3427 = vadd.f32 %v726, %v3426
      %v3428 = vpop.f32.mrf.mxu0
      %3429 = vmatprep.mubr.bf16.mxu0 0
      %3430 = vmatmul.mubr.bf16.gmra.mxu0 %v2232
      %v3431 = vpop.f32.mrf.mxu0
      %v3432 = vadd.f32 %v726, %v3431
      %v3433 = vpop.f32.mrf.mxu0
      %v3434 = vpop.f32.mrf.mxu0
      %v3435 = vadd.f32 %v726, %v3434
      %v3436 = vpop.f32.mrf.mxu0
      %3437 = vmatprep.mubr.bf16.mxu0 0
      %3438 = vmatmul.mubr.bf16.gmra.mxu0 %v2235
      %v3439 = vpop.f32.mrf.mxu0
      %v3440 = vadd.f32 %v726, %v3439
      %v3441 = vpop.f32.mrf.mxu0
      %v3442 = vpop.f32.mrf.mxu0
      %v3443 = vadd.f32 %v726, %v3442
      %v3444 = vpop.f32.mrf.mxu0
      %3445 = vmatprep.mubr.bf16.mxu0 0
      %3446 = vmatmul.mubr.bf16.gmra.mxu0 %v2238
      %v3447 = vpop.f32.mrf.mxu0
      %v3448 = vadd.f32 %v726, %v3447
      %v3449 = vpop.f32.mrf.mxu0
      %v3450 = vpop.f32.mrf.mxu0
      %v3451 = vadd.f32 %v726, %v3450
      %v3452 = vpop.f32.mrf.mxu0
      %3453 = vmatprep.mubr.bf16.mxu0 0
      %3454 = vmatmul.mubr.bf16.gmra.mxu0 %v2241
      %v3455 = vpop.f32.mrf.mxu0
      %v3456 = vadd.f32 %v726, %v3455
      %v3457 = vpop.f32.mrf.mxu0
      %v3458 = vpop.f32.mrf.mxu0
      %v3459 = vadd.f32 %v726, %v3458
      %v3460 = vpop.f32.mrf.mxu0
      %3461 = vmatprep.mubr.bf16.mxu0 0
      %3462 = vmatmul.mubr.bf16.gmra.mxu0 %v2244
      %v3463 = vpop.f32.mrf.mxu0
      %v3464 = vadd.f32 %v726, %v3463
      %v3465 = vpop.f32.mrf.mxu0
      %v3466 = vpop.f32.mrf.mxu0
      %v3467 = vadd.f32 %v726, %v3466
      %v3468 = vpop.f32.mrf.mxu0
      %3469 = vmatprep.mubr.bf16.mxu0 0
      %3470 = vmatmul.mubr.bf16.gmra.mxu0 %v2247
      %v3471 = vpop.f32.mrf.mxu0
      %v3472 = vadd.f32 %v726, %v3471
      %v3473 = vpop.f32.mrf.mxu0
      %v3474 = vpop.f32.mrf.mxu0
      %v3475 = vadd.f32 %v726, %v3474
      %v3476 = vpop.f32.mrf.mxu0
      %3477 = vmatprep.mubr.bf16.mxu0 0
      %3478 = vmatmul.mubr.bf16.gmra.mxu0 %v2250
      %v3479 = vpop.f32.mrf.mxu0
      %v3480 = vadd.f32 %v726, %v3479
      %v3481 = vpop.f32.mrf.mxu0
      %v3482 = vpop.f32.mrf.mxu0
      %v3483 = vadd.f32 %v726, %v3482
      %v3484 = vpop.f32.mrf.mxu0
      %3485 = vmatprep.mubr.bf16.mxu0 0
      %3486 = vmatmul.mubr.bf16.gmra.mxu0 %v2253
      %v3487 = vpop.f32.mrf.mxu0
      %v3488 = vadd.f32 %v726, %v3487
      %v3489 = vpop.f32.mrf.mxu0
      %v3490 = vpop.f32.mrf.mxu0
      %v3491 = vadd.f32 %v726, %v3490
      %v3492 = vpop.f32.mrf.mxu0
      %3493 = vmatprep.mubr.bf16.mxu0 0
      %3494 = vmatmul.mubr.bf16.gmra.mxu0 %v2256
      %v3495 = vpop.f32.mrf.mxu0
      %v3496 = vadd.f32 %v726, %v3495
      %v3497 = vpop.f32.mrf.mxu0
      %v3498 = vpop.f32.mrf.mxu0
      %v3499 = vadd.f32 %v726, %v3498
      %v3500 = vpop.f32.mrf.mxu0
      %3501 = vmatprep.mubr.bf16.mxu0 0
      %3502 = vmatmul.mubr.bf16.gmra.mxu0 %v2259
      %v3503 = vpop.f32.mrf.mxu0
      %v3504 = vadd.f32 %v726, %v3503
      %v3505 = vpop.f32.mrf.mxu0
      %v3506 = vpop.f32.mrf.mxu0
      %v3507 = vadd.f32 %v726, %v3506
      %v3508 = vpop.f32.mrf.mxu0
      %3509 = vmatprep.mubr.bf16.mxu0 0
      %3510 = vmatmul.mubr.bf16.gmra.mxu0 %v2262
      %v3511 = vpop.f32.mrf.mxu0
      %v3512 = vadd.f32 %v726, %v3511
      %v3513 = vpop.f32.mrf.mxu0
      %v3514 = vpop.f32.mrf.mxu0
      %v3515 = vadd.f32 %v726, %v3514
      %v3516 = vpop.f32.mrf.mxu0
      %3517 = vmatprep.mubr.bf16.mxu0 0
      %3518 = vmatmul.mubr.bf16.gmra.mxu0 %v2265
      %v3519 = vpop.f32.mrf.mxu0
      %v3520 = vadd.f32 %v726, %v3519
      %v3521 = vpop.f32.mrf.mxu0
      %v3522 = vpop.f32.mrf.mxu0
      %v3523 = vadd.f32 %v726, %v3522
      %v3524 = vpop.f32.mrf.mxu0
      %3525 = vmatprep.mubr.bf16.mxu0 0
      %3526 = vmatmul.mubr.bf16.gmra.mxu0 %v2268
      %v3527 = vpop.f32.mrf.mxu0
      %v3528 = vadd.f32 %v726, %v3527
      %v3529 = vpop.f32.mrf.mxu0
      %v3530 = vpop.f32.mrf.mxu0
      %v3531 = vadd.f32 %v726, %v3530
      %v3532 = vpop.f32.mrf.mxu0
      %3533 = vmatprep.mubr.bf16.mxu0 0
      %3534 = vmatmul.mubr.bf16.gmra.mxu0 %v2271
      %v3535 = vpop.f32.mrf.mxu0
      %v3536 = vadd.f32 %v726, %v3535
      %v3537 = vpop.f32.mrf.mxu0
      %v3538 = vpop.f32.mrf.mxu0
      %v3539 = vadd.f32 %v726, %v3538
      %v3540 = vpop.f32.mrf.mxu0
      %3541 = vmatprep.mubr.bf16.mxu0 0
      %3542 = vmatmul.mubr.bf16.gmra.mxu0 %v2274
      %v3543 = vpop.f32.mrf.mxu0
      %v3544 = vadd.f32 %v726, %v3543
      %v3545 = vpop.f32.mrf.mxu0
      %v3546 = vpop.f32.mrf.mxu0
      %v3547 = vadd.f32 %v726, %v3546
      %v3548 = vpop.f32.mrf.mxu0
      %3549 = vmatprep.mubr.bf16.mxu0 0
      %3550 = vmatmul.mubr.bf16.gmra.mxu0 %v2277
      %v3551 = vpop.f32.mrf.mxu0
      %v3552 = vadd.f32 %v726, %v3551
      %v3553 = vpop.f32.mrf.mxu0
      %v3554 = vpop.f32.mrf.mxu0
      %v3555 = vadd.f32 %v726, %v3554
      %v3556 = vpop.f32.mrf.mxu0
      %3557 = vmatprep.mubr.bf16.mxu0 0
      %3558 = vmatmul.mubr.bf16.gmra.mxu0 %v2280
      %v3559 = vpop.f32.mrf.mxu0
      %v3560 = vadd.f32 %v726, %v3559
      %v3561 = vpop.f32.mrf.mxu0
      %v3562 = vpop.f32.mrf.mxu0
      %v3563 = vadd.f32 %v726, %v3562
      %v3564 = vpop.f32.mrf.mxu0
      %3565 = vmatprep.mubr.bf16.mxu0 0
      %3566 = vmatmul.mubr.bf16.gmra.mxu0 %v2283
      %v3567 = vpop.f32.mrf.mxu0
      %v3568 = vadd.f32 %v726, %v3567
      %v3569 = vpop.f32.mrf.mxu0
      %v3570 = vpop.f32.mrf.mxu0
      %v3571 = vadd.f32 %v726, %v3570
      %v3572 = vpop.f32.mrf.mxu0
      %3573 = vmatprep.mubr.bf16.mxu0 0
      %3574 = vmatmul.mubr.bf16.gmra.mxu0 %v2286
      %v3575 = vpop.f32.mrf.mxu0
      %v3576 = vadd.f32 %v726, %v3575
      %v3577 = vpop.f32.mrf.mxu0
      %v3578 = vpop.f32.mrf.mxu0
      %v3579 = vadd.f32 %v726, %v3578
      %v3580 = vpop.f32.mrf.mxu0
      %3581 = vmatprep.mubr.bf16.mxu0 0
      %3582 = vmatmul.mubr.bf16.gmra.mxu0 %v2289
      %v3583 = vpop.f32.mrf.mxu0
      %v3584 = vadd.f32 %v726, %v3583
      %v3585 = vpop.f32.mrf.mxu0
      %v3586 = vpop.f32.mrf.mxu0
      %v3587 = vadd.f32 %v726, %v3586
      %v3588 = vpop.f32.mrf.mxu0
      %3589 = vmatprep.mubr.bf16.mxu0 0
      %3590 = vmatmul.mubr.bf16.gmra.mxu0 %v2292
      %v3591 = vpop.f32.mrf.mxu0
      %v3592 = vadd.f32 %v726, %v3591
      %v3593 = vpop.f32.mrf.mxu0
      %v3594 = vpop.f32.mrf.mxu0
      %v3595 = vadd.f32 %v726, %v3594
      %v3596 = vpop.f32.mrf.mxu0
      %3597 = vmatprep.mubr.bf16.mxu0 0
      %3598 = vmatmul.mubr.bf16.gmra.mxu0 %v2295
      %v3599 = vpop.f32.mrf.mxu0
      %v3600 = vadd.f32 %v726, %v3599
      %v3601 = vpop.f32.mrf.mxu0
      %v3602 = vpop.f32.mrf.mxu0
      %v3603 = vadd.f32 %v726, %v3602
      %v3604 = vpop.f32.mrf.mxu0
      %3605 = vmatprep.mubr.bf16.mxu0 0
      %3606 = vmatmul.mubr.bf16.gmra.mxu0 %v2298
      %v3607 = vpop.f32.mrf.mxu0
      %v3608 = vadd.f32 %v726, %v3607
      %v3609 = vpop.f32.mrf.mxu0
      %v3610 = vpop.f32.mrf.mxu0
      %v3611 = vadd.f32 %v726, %v3610
      %v3612 = vpop.f32.mrf.mxu0
      %3613 = vmatprep.mubr.bf16.mxu0 0
      %3614 = vmatmul.mubr.bf16.gmra.mxu0 %v2301
      %v3615 = vpop.f32.mrf.mxu0
      %v3616 = vadd.f32 %v726, %v3615
      %v3617 = vpop.f32.mrf.mxu0
      %v3618 = vpop.f32.mrf.mxu0
      %v3619 = vadd.f32 %v726, %v3618
      %v3620 = vpop.f32.mrf.mxu0
      %3621 = vmatprep.mubr.bf16.mxu0 0
      %3622 = vmatmul.mubr.bf16.gmra.mxu0 %v2304
      %v3623 = vpop.f32.mrf.mxu0
      %v3624 = vadd.f32 %v726, %v3623
      %v3625 = vpop.f32.mrf.mxu0
      %v3626 = vpop.f32.mrf.mxu0
      %v3627 = vadd.f32 %v726, %v3626
      %v3628 = vpop.f32.mrf.mxu0
      %3629 = vmatprep.mubr.bf16.mxu0 0
      %3630 = vmatmul.mubr.bf16.gmra.mxu0 %v2307
      %v3631 = vpop.f32.mrf.mxu0
      %v3632 = vadd.f32 %v726, %v3631
      %v3633 = vpop.f32.mrf.mxu0
      %v3634 = vpop.f32.mrf.mxu0
      %v3635 = vadd.f32 %v726, %v3634
      %v3636 = vpop.f32.mrf.mxu0
      %3637 = vmatprep.mubr.bf16.mxu0 0
      %3638 = vmatmul.mubr.bf16.gmra.mxu0 %v2310
      %v3639 = vpop.f32.mrf.mxu0
      %v3640 = vadd.f32 %v726, %v3639
      %v3641 = vpop.f32.mrf.mxu0
      %v3642 = vpop.f32.mrf.mxu0
      %v3643 = vadd.f32 %v726, %v3642
      %v3644 = vpop.f32.mrf.mxu0
      %3645 = vmatprep.mubr.bf16.mxu0 0
      %3646 = vmatmul.mubr.bf16.gmra.mxu0 %v2313
      %v3647 = vpop.f32.mrf.mxu0
      %v3648 = vadd.f32 %v726, %v3647
      %v3649 = vpop.f32.mrf.mxu0
      %v3650 = vpop.f32.mrf.mxu0
      %v3651 = vadd.f32 %v726, %v3650
      %v3652 = vpop.f32.mrf.mxu0
      %3653 = vmatprep.mubr.bf16.mxu0 0
      %3654 = vmatmul.mubr.bf16.gmra.mxu0 %v2316
      %v3655 = vpop.f32.mrf.mxu0
      %v3656 = vadd.f32 %v726, %v3655
      %v3657 = vpop.f32.mrf.mxu0
      %v3658 = vpop.f32.mrf.mxu0
      %v3659 = vadd.f32 %v726, %v3658
      %v3660 = vpop.f32.mrf.mxu0
      %3661 = vmatprep.mubr.bf16.mxu0 0
      %3662 = vmatmul.mubr.bf16.gmra.mxu0 %v2319
      %v3663 = vpop.f32.mrf.mxu0
      %v3664 = vadd.f32 %v726, %v3663
      %v3665 = vpop.f32.mrf.mxu0
      %v3666 = vpop.f32.mrf.mxu0
      %v3667 = vadd.f32 %v726, %v3666
      %v3668 = vpop.f32.mrf.mxu0
      %3669 = vmatprep.mubr.bf16.mxu0 0
      %3670 = vmatmul.mubr.bf16.gmra.mxu0 %v2322
      %v3671 = vpop.f32.mrf.mxu0
      %v3672 = vadd.f32 %v726, %v3671
      %v3673 = vpop.f32.mrf.mxu0
      %v3674 = vpop.f32.mrf.mxu0
      %v3675 = vadd.f32 %v726, %v3674
      %v3676 = vpop.f32.mrf.mxu0
      %3677 = vmatprep.mubr.bf16.mxu0 0
      %3678 = vmatmul.mubr.bf16.gmra.mxu0 %v2325
      %v3679 = vpop.f32.mrf.mxu0
      %v3680 = vadd.f32 %v726, %v3679
      %v3681 = vpop.f32.mrf.mxu0
      %v3682 = vpop.f32.mrf.mxu0
      %v3683 = vadd.f32 %v726, %v3682
      %v3684 = vpop.f32.mrf.mxu0
      %3685 = vmatprep.mubr.bf16.mxu0 0
      %3686 = vmatmul.mubr.bf16.gmra.mxu0 %v2328
      %v3687 = vpop.f32.mrf.mxu0
      %v3688 = vadd.f32 %v726, %v3687
      %v3689 = vpop.f32.mrf.mxu0
      %v3690 = vpop.f32.mrf.mxu0
      %v3691 = vadd.f32 %v726, %v3690
      %v3692 = vpop.f32.mrf.mxu0
      %3693 = vmatprep.mubr.bf16.mxu0 0
      %3694 = vmatmul.mubr.bf16.gmra.mxu0 %v2331
      %v3695 = vpop.f32.mrf.mxu0
      %v3696 = vadd.f32 %v726, %v3695
      %v3697 = vpop.f32.mrf.mxu0
      %v3698 = vpop.f32.mrf.mxu0
      %v3699 = vadd.f32 %v726, %v3698
      %v3700 = vpop.f32.mrf.mxu0
      %3701 = vmatprep.mubr.bf16.mxu0 0
      %3702 = vmatmul.mubr.bf16.gmra.mxu0 %v2334
      %v3703 = vpop.f32.mrf.mxu0
      %v3704 = vadd.f32 %v726, %v3703
      %v3705 = vpop.f32.mrf.mxu0
      %v3706 = vpop.f32.mrf.mxu0
      %v3707 = vadd.f32 %v726, %v3706
      %v3708 = vpop.f32.mrf.mxu0
      %3709 = vmatprep.mubr.bf16.mxu0 0
      %3710 = vmatmul.mubr.bf16.gmra.mxu0 %v2337
      %v3711 = vpop.f32.mrf.mxu0
      %v3712 = vadd.f32 %v726, %v3711
      %v3713 = vpop.f32.mrf.mxu0
      %v3714 = vpop.f32.mrf.mxu0
      %v3715 = vadd.f32 %v726, %v3714
      %v3716 = vpop.f32.mrf.mxu0
      %3717 = vmatprep.mubr.bf16.mxu0 0
      %3718 = vmatmul.mubr.bf16.gmra.mxu0 %v2340
      %v3719 = vpop.f32.mrf.mxu0
      %v3720 = vadd.f32 %v726, %v3719
      %v3721 = vpop.f32.mrf.mxu0
      %v3722 = vpop.f32.mrf.mxu0
      %v3723 = vadd.f32 %v726, %v3722
      %v3724 = vpop.f32.mrf.mxu0
      %3725 = vmatprep.mubr.bf16.mxu0 0
      %3726 = vmatmul.mubr.bf16.gmra.mxu0 %v2343
      %v3727 = vpop.f32.mrf.mxu0
      %v3728 = vadd.f32 %v726, %v3727
      %v3729 = vpop.f32.mrf.mxu0
      %v3730 = vpop.f32.mrf.mxu0
      %v3731 = vadd.f32 %v726, %v3730
      %v3732 = vpop.f32.mrf.mxu0
      %3733 = vmatprep.mubr.bf16.mxu0 0
      %3734 = vmatmul.mubr.bf16.gmra.mxu0 %v2346
      %v3735 = vpop.f32.mrf.mxu0
      %v3736 = vadd.f32 %v726, %v3735
      %v3737 = vpop.f32.mrf.mxu0
      %v3738 = vpop.f32.mrf.mxu0
      %v3739 = vadd.f32 %v726, %v3738
      %v3740 = vpop.f32.mrf.mxu0
      %3741 = vmatprep.mubr.bf16.mxu0 0
      %3742 = vmatmul.mubr.bf16.gmra.mxu0 %v2349
      %v3743 = vpop.f32.mrf.mxu0
      %v3744 = vadd.f32 %v726, %v3743
      %v3745 = vpop.f32.mrf.mxu0
      %v3746 = vpop.f32.mrf.mxu0
      %v3747 = vadd.f32 %v726, %v3746
      %v3748 = vpop.f32.mrf.mxu0
      %3749 = vmatprep.mubr.bf16.mxu0 0
      %3750 = vmatmul.mubr.bf16.gmra.mxu0 %v2352
      %v3751 = vpop.f32.mrf.mxu0
      %v3752 = vadd.f32 %v726, %v3751
      %v3753 = vpop.f32.mrf.mxu0
      %v3754 = vpop.f32.mrf.mxu0
      %v3755 = vadd.f32 %v726, %v3754
      %v3756 = vpop.f32.mrf.mxu0
      %3757 = vmatprep.mubr.bf16.mxu0 0
      %3758 = vmatmul.mubr.bf16.gmra.mxu0 %v2355
      %v3759 = vpop.f32.mrf.mxu0
      %v3760 = vadd.f32 %v726, %v3759
      %v3761 = vpop.f32.mrf.mxu0
      %v3762 = vpop.f32.mrf.mxu0
      %v3763 = vadd.f32 %v726, %v3762
      %v3764 = vpop.f32.mrf.mxu0
      %3765 = vmatprep.mubr.bf16.mxu0 0
      %3766 = vmatmul.mubr.bf16.gmra.mxu0 %v2358
      %v3767 = vpop.f32.mrf.mxu0
      %v3768 = vadd.f32 %v726, %v3767
      %v3769 = vpop.f32.mrf.mxu0
      %v3770 = vpop.f32.mrf.mxu0
      %v3771 = vadd.f32 %v726, %v3770
      %v3772 = vpop.f32.mrf.mxu0
      %3773 = vmatprep.mubr.bf16.mxu0 0
      %3774 = vmatmul.mubr.bf16.gmra.mxu0 %v2361
      %v3775 = vpop.f32.mrf.mxu0
      %v3776 = vadd.f32 %v726, %v3775
      %v3777 = vpop.f32.mrf.mxu0
      %v3778 = vpop.f32.mrf.mxu0
      %v3779 = vadd.f32 %v726, %v3778
      %v3780 = vpop.f32.mrf.mxu0
      %3781 = vmatprep.mubr.bf16.mxu0 0
      %3782 = vmatmul.mubr.bf16.gmra.mxu0 %v2364
      %v3783 = vpop.f32.mrf.mxu0
      %v3784 = vadd.f32 %v726, %v3783
      %v3785 = vpop.f32.mrf.mxu0
      %v3786 = vpop.f32.mrf.mxu0
      %v3787 = vadd.f32 %v726, %v3786
      %v3788 = vpop.f32.mrf.mxu0
      %3789 = vmatprep.mubr.bf16.mxu0 0
      %3790 = vmatmul.mubr.bf16.gmra.mxu0 %v2367
      %v3791 = vpop.f32.mrf.mxu0
      %v3792 = vadd.f32 %v726, %v3791
      %v3793 = vpop.f32.mrf.mxu0
      %v3794 = vpop.f32.mrf.mxu0
      %v3795 = vadd.f32 %v726, %v3794
      %v3796 = vpop.f32.mrf.mxu0
      %3797 = vmatprep.mubr.bf16.mxu0 0
      %3798 = vmatmul.mubr.bf16.gmra.mxu0 %v2370
      %v3799 = vpop.f32.mrf.mxu0
      %v3800 = vadd.f32 %v726, %v3799
      %v3801 = vpop.f32.mrf.mxu0
      %v3802 = vpop.f32.mrf.mxu0
      %v3803 = vadd.f32 %v726, %v3802
      %v3804 = vpop.f32.mrf.mxu0
      %3805 = vmatprep.mubr.bf16.mxu0 0
      %3806 = vmatmul.mubr.bf16.gmra.mxu0 %v2373
      %v3807 = vpop.f32.mrf.mxu0
      %v3808 = vadd.f32 %v726, %v3807
      %v3809 = vpop.f32.mrf.mxu0
      %v3810 = vpop.f32.mrf.mxu0
      %v3811 = vadd.f32 %v726, %v3810
      %v3812 = vpop.f32.mrf.mxu0
      %3813 = vmatprep.mubr.bf16.mxu0 0
      %3814 = vmatmul.mubr.bf16.gmra.mxu0 %v2376
      %v3815 = vpop.f32.mrf.mxu0
      %v3816 = vadd.f32 %v726, %v3815
      %v3817 = vpop.f32.mrf.mxu0
      %v3818 = vpop.f32.mrf.mxu0
      %v3819 = vadd.f32 %v726, %v3818
      %v3820 = vpop.f32.mrf.mxu0
      %3821 = vmatprep.mubr.bf16.mxu0 0
      %3822 = vmatmul.mubr.bf16.gmra.mxu0 %v2379
      %v3823 = vpop.f32.mrf.mxu0
      %v3824 = vadd.f32 %v726, %v3823
      %v3825 = vpop.f32.mrf.mxu0
      %v3826 = vpop.f32.mrf.mxu0
      %v3827 = vadd.f32 %v726, %v3826
      %v3828 = vpop.f32.mrf.mxu0
      %3829 = vmatprep.mubr.bf16.mxu0 0
      %3830 = vmatmul.mubr.bf16.gmra.mxu0 %v2382
      %v3831 = vpop.f32.mrf.mxu0
      %v3832 = vadd.f32 %v726, %v3831
      %v3833 = vpop.f32.mrf.mxu0
      %v3834 = vpop.f32.mrf.mxu0
      %v3835 = vadd.f32 %v726, %v3834
      %v3836 = vpop.f32.mrf.mxu0
      %3837 = vmatprep.mubr.bf16.mxu0 0
      %3838 = vmatmul.mubr.bf16.gmra.mxu0 %v2385
      %v3839 = vpop.f32.mrf.mxu0
      %v3840 = vadd.f32 %v726, %v3839
      %v3841 = vpop.f32.mrf.mxu0
      %v3842 = vpop.f32.mrf.mxu0
      %v3843 = vadd.f32 %v726, %v3842
      %v3844 = vpop.f32.mrf.mxu0
      %3845 = vmatprep.mubr.bf16.mxu0 0
      %3846 = vmatmul.mubr.bf16.gmra.mxu0 %v2388
      %v3847 = vpop.f32.mrf.mxu0
      %v3848 = vadd.f32 %v726, %v3847
      %v3849 = vpop.f32.mrf.mxu0
      %v3850 = vpop.f32.mrf.mxu0
      %v3851 = vadd.f32 %v726, %v3850
      %v3852 = vpop.f32.mrf.mxu0
      %3853 = vmatprep.mubr.bf16.mxu0 0
      %3854 = vmatmul.mubr.bf16.gmra.mxu0 %v2391
      %v3855 = vpop.f32.mrf.mxu0
      %v3856 = vadd.f32 %v726, %v3855
      %v3857 = vpop.f32.mrf.mxu0
      %v3858 = vpop.f32.mrf.mxu0
      %v3859 = vadd.f32 %v726, %v3858
      %v3860 = vpop.f32.mrf.mxu0
      %3861 = vmatprep.mubr.bf16.mxu0 0
      %3862 = vmatmul.mubr.bf16.gmra.mxu0 %v2394
      %v3863 = vpop.f32.mrf.mxu0
      %v3864 = vadd.f32 %v726, %v3863
      %v3865 = vpop.f32.mrf.mxu0
      %v3866 = vpop.f32.mrf.mxu0
      %v3867 = vadd.f32 %v726, %v3866
      %v3868 = vpop.f32.mrf.mxu0
      %3869 = vmatprep.mubr.bf16.mxu0 0
      %3870 = vmatmul.mubr.bf16.gmra.mxu0 %v2397
      %v3871 = vpop.f32.mrf.mxu0
      %v3872 = vadd.f32 %v726, %v3871
      %v3873 = vpop.f32.mrf.mxu0
      %v3874 = vpop.f32.mrf.mxu0
      %v3875 = vadd.f32 %v726, %v3874
      %v3876 = vpop.f32.mrf.mxu0
      %3877 = vmatprep.mubr.bf16.mxu0 0
      %3878 = vmatmul.mubr.bf16.gmra.mxu0 %v2400
      %v3879 = vpop.f32.mrf.mxu0
      %v3880 = vadd.f32 %v726, %v3879
      %v3881 = vpop.f32.mrf.mxu0
      %v3882 = vpop.f32.mrf.mxu0
      %v3883 = vadd.f32 %v726, %v3882
      %v3884 = vpop.f32.mrf.mxu0
      %3885 = vmatprep.mubr.bf16.mxu0 0
      %3886 = vmatmul.mubr.bf16.gmra.mxu0 %v2403
      %v3887 = vpop.f32.mrf.mxu0
      %v3888 = vadd.f32 %v726, %v3887
      %v3889 = vpop.f32.mrf.mxu0
      %v3890 = vpop.f32.mrf.mxu0
      %v3891 = vadd.f32 %v726, %v3890
      %v3892 = vpop.f32.mrf.mxu0
      %3893 = vmatprep.mubr.bf16.mxu0 0
      %3894 = vmatmul.mubr.bf16.gmra.mxu0 %v2406
      %v3895 = vpop.f32.mrf.mxu0
      %v3896 = vadd.f32 %v726, %v3895
      %v3897 = vpop.f32.mrf.mxu0
      %v3898 = vpop.f32.mrf.mxu0
      %v3899 = vadd.f32 %v726, %v3898
      %v3900 = vpop.f32.mrf.mxu0
      %3901 = vmatprep.mubr.bf16.mxu0 0
      %3902 = vmatmul.mubr.bf16.gmra.mxu0 %v2409
      %v3903 = vpop.f32.mrf.mxu0
      %v3904 = vadd.f32 %v726, %v3903
      %v3905 = vpop.f32.mrf.mxu0
      %v3906 = vpop.f32.mrf.mxu0
      %v3907 = vadd.f32 %v726, %v3906
      %v3908 = vpop.f32.mrf.mxu0
      %3909 = vmatprep.mubr.bf16.mxu0 0
      %3910 = vmatmul.mubr.bf16.gmra.mxu0 %v2412
      %v3911 = vpop.f32.mrf.mxu0
      %v3912 = vadd.f32 %v726, %v3911
      %v3913 = vpop.f32.mrf.mxu0
      %v3914 = vpop.f32.mrf.mxu0
      %v3915 = vadd.f32 %v726, %v3914
      %v3916 = vpop.f32.mrf.mxu0
      %3917 = vmatprep.mubr.bf16.mxu0 0
      %3918 = vmatmul.mubr.bf16.gmra.mxu0 %v2415
      %v3919 = vpop.f32.mrf.mxu0
      %v3920 = vadd.f32 %v726, %v3919
      %v3921 = vpop.f32.mrf.mxu0
      %v3922 = vpop.f32.mrf.mxu0
      %v3923 = vadd.f32 %v726, %v3922
      %v3924 = vpop.f32.mrf.mxu0
      %3925 = vmatprep.mubr.bf16.mxu0 0
      %3926 = vmatmul.mubr.bf16.gmra.mxu0 %v2418
      %v3927 = vpop.f32.mrf.mxu0
      %v3928 = vadd.f32 %v726, %v3927
      %v3929 = vpop.f32.mrf.mxu0
      %v3930 = vpop.f32.mrf.mxu0
      %v3931 = vadd.f32 %v726, %v3930
      %v3932 = vpop.f32.mrf.mxu0
      %3933 = vmatprep.mubr.bf16.mxu0 0
      %3934 = vmatmul.mubr.bf16.gmra.mxu0 %v2421
      %v3935 = vpop.f32.mrf.mxu0
      %v3936 = vadd.f32 %v726, %v3935
      %v3937 = vpop.f32.mrf.mxu0
      %v3938 = vpop.f32.mrf.mxu0
      %v3939 = vadd.f32 %v726, %v3938
      %v3940 = vpop.f32.mrf.mxu0
      %3941 = vmatprep.mubr.bf16.mxu0 0
      %3942 = vmatmul.mubr.bf16.gmra.mxu0 %v2424
      %v3943 = vpop.f32.mrf.mxu0
      %v3944 = vadd.f32 %v726, %v3943
      %v3945 = vpop.f32.mrf.mxu0
      %v3946 = vpop.f32.mrf.mxu0
      %v3947 = vadd.f32 %v726, %v3946
      %v3948 = vpop.f32.mrf.mxu0
      %3949 = vmatprep.mubr.bf16.mxu0 0
      %3950 = vmatmul.mubr.bf16.gmra.mxu0 %v2427
      %v3951 = vpop.f32.mrf.mxu0
      %v3952 = vadd.f32 %v726, %v3951
      %v3953 = vpop.f32.mrf.mxu0
      %v3954 = vpop.f32.mrf.mxu0
      %v3955 = vadd.f32 %v726, %v3954
      %v3956 = vpop.f32.mrf.mxu0
      %3957 = vmatprep.mubr.bf16.mxu0 0
      %3958 = vmatmul.mubr.bf16.gmra.mxu0 %v2430
      %v3959 = vpop.f32.mrf.mxu0
      %v3960 = vadd.f32 %v726, %v3959
      %v3961 = vpop.f32.mrf.mxu0
      %v3962 = vpop.f32.mrf.mxu0
      %v3963 = vadd.f32 %v726, %v3962
      %v3964 = vpop.f32.mrf.mxu0
      %3965 = vmatprep.mubr.bf16.mxu0 0
      %3966 = vmatmul.mubr.bf16.gmra.mxu0 %v2433
      %v3967 = vpop.f32.mrf.mxu0
      %v3968 = vadd.f32 %v726, %v3967
      %v3969 = vpop.f32.mrf.mxu0
      %v3970 = vpop.f32.mrf.mxu0
      %v3971 = vadd.f32 %v726, %v3970
      %v3972 = vpop.f32.mrf.mxu0
      %3973 = vmatprep.mubr.bf16.mxu0 0
      %3974 = vmatmul.mubr.bf16.gmra.mxu0 %v2436
      %v3975 = vpop.f32.mrf.mxu0
      %v3976 = vadd.f32 %v726, %v3975
      %v3977 = vpop.f32.mrf.mxu0
      %v3978 = vpop.f32.mrf.mxu0
      %v3979 = vadd.f32 %v726, %v3978
      %v3980 = vpop.f32.mrf.mxu0
      %3981 = vmatprep.mubr.bf16.mxu0 0
      %3982 = vmatmul.mubr.bf16.gmra.mxu0 %v2439
      %v3983 = vpop.f32.mrf.mxu0
      %v3984 = vadd.f32 %v726, %v3983
      %v3985 = vpop.f32.mrf.mxu0
      %v3986 = vpop.f32.mrf.mxu0
      %v3987 = vadd.f32 %v726, %v3986
      %v3988 = vpop.f32.mrf.mxu0
      %3989 = vmatprep.mubr.bf16.mxu0 0
      %3990 = vmatmul.mubr.bf16.gmra.mxu0 %v2442
      %v3991 = vpop.f32.mrf.mxu0
      %v3992 = vadd.f32 %v726, %v3991
      %v3993 = vpop.f32.mrf.mxu0
      %v3994 = vpop.f32.mrf.mxu0
      %v3995 = vadd.f32 %v726, %v3994
      %v3996 = vpop.f32.mrf.mxu0
      %3997 = vmatprep.mubr.bf16.mxu0 0
      %3998 = vmatmul.mubr.bf16.gmra.mxu0 %v2445
      %v3999 = vpop.f32.mrf.mxu0
      %v4000 = vadd.f32 %v726, %v3999
      %v4001 = vpop.f32.mrf.mxu0
      %v4002 = vpop.f32.mrf.mxu0
      %v4003 = vadd.f32 %v726, %v4002
      %v4004 = vpop.f32.mrf.mxu0
      %4005 = vmatprep.mubr.bf16.mxu0 0
      %4006 = vmatmul.mubr.bf16.gmra.mxu0 %v2448
      %v4007 = vpop.f32.mrf.mxu0
      %v4008 = vadd.f32 %v726, %v4007
      %v4009 = vpop.f32.mrf.mxu0
      %v4010 = vpop.f32.mrf.mxu0
      %v4011 = vadd.f32 %v726, %v4010
      %v4012 = vpop.f32.mrf.mxu0
      %4013 = vmatprep.mubr.bf16.mxu0 0
      %4014 = vmatmul.mubr.bf16.gmra.mxu0 %v2451
      %v4015 = vpop.f32.mrf.mxu0
      %v4016 = vadd.f32 %v726, %v4015
      %v4017 = vpop.f32.mrf.mxu0
      %v4018 = vpop.f32.mrf.mxu0
      %v4019 = vadd.f32 %v726, %v4018
      %v4020 = vpop.f32.mrf.mxu0
      %4021 = vmatprep.mubr.bf16.mxu0 0
      %4022 = vmatmul.mubr.bf16.gmra.mxu0 %v2454
      %v4023 = vpop.f32.mrf.mxu0
      %v4024 = vadd.f32 %v726, %v4023
      %v4025 = vpop.f32.mrf.mxu0
      %v4026 = vpop.f32.mrf.mxu0
      %v4027 = vadd.f32 %v726, %v4026
      %v4028 = vpop.f32.mrf.mxu0
      %4029 = vmatprep.mubr.bf16.mxu0 0
      %4030 = vmatmul.mubr.bf16.gmra.mxu0 %v2457
      %v4031 = vpop.f32.mrf.mxu0
      %v4032 = vadd.f32 %v726, %v4031
      %v4033 = vpop.f32.mrf.mxu0
      %v4034 = vpop.f32.mrf.mxu0
      %v4035 = vadd.f32 %v726, %v4034
      %v4036 = vpop.f32.mrf.mxu0
      %4037 = vmatprep.mubr.bf16.mxu0 0
      %4038 = vmatmul.mubr.bf16.gmra.mxu0 %v2460
      %v4039 = vpop.f32.mrf.mxu0
      %v4040 = vadd.f32 %v726, %v4039
      %v4041 = vpop.f32.mrf.mxu0
      %v4042 = vpop.f32.mrf.mxu0
      %v4043 = vadd.f32 %v726, %v4042
      %v4044 = vpop.f32.mrf.mxu0
      %4045 = vmatprep.mubr.bf16.mxu0 0
      %4046 = vmatmul.mubr.bf16.gmra.mxu0 %v2463
      %v4047 = vpop.f32.mrf.mxu0
      %v4048 = vadd.f32 %v726, %v4047
      %v4049 = vpop.f32.mrf.mxu0
      %v4050 = vpop.f32.mrf.mxu0
      %v4051 = vadd.f32 %v726, %v4050
      %v4052 = vpop.f32.mrf.mxu0
      %4053 = vmatprep.mubr.bf16.mxu0 0
      %4054 = vmatmul.mubr.bf16.gmra.mxu0 %v2466
      %v4055 = vpop.f32.mrf.mxu0
      %v4056 = vadd.f32 %v726, %v4055
      %v4057 = vpop.f32.mrf.mxu0
      %v4058 = vpop.f32.mrf.mxu0
      %v4059 = vadd.f32 %v726, %v4058
      %v4060 = vpop.f32.mrf.mxu0
      %4061 = vmatprep.mubr.bf16.mxu0 0
      %4062 = vmatmul.mubr.bf16.gmra.mxu0 %v2469
      %v4063 = vpop.f32.mrf.mxu0
      %v4064 = vadd.f32 %v726, %v4063
      %v4065 = vpop.f32.mrf.mxu0
      %v4066 = vpop.f32.mrf.mxu0
      %v4067 = vadd.f32 %v726, %v4066
      %v4068 = vpop.f32.mrf.mxu0
      %4069 = vmatprep.mubr.bf16.mxu0 0
      %4070 = vmatmul.mubr.bf16.gmra.mxu0 %v2472
      %v4071 = vpop.f32.mrf.mxu0
      %v4072 = vadd.f32 %v726, %v4071
      %v4073 = vpop.f32.mrf.mxu0
      %v4074 = vpop.f32.mrf.mxu0
      %v4075 = vadd.f32 %v726, %v4074
      %v4076 = vpop.f32.mrf.mxu0
      %4077 = vmatprep.mubr.bf16.mxu0 0
      %4078 = vmatmul.mubr.bf16.gmra.mxu0 %v2475
      %v4079 = vpop.f32.mrf.mxu0
      %v4080 = vadd.f32 %v726, %v4079
      %v4081 = vpop.f32.mrf.mxu0
      %v4082 = vpop.f32.mrf.mxu0
      %v4083 = vadd.f32 %v726, %v4082
      %v4084 = vpop.f32.mrf.mxu0
      %4085 = vmatprep.mubr.bf16.mxu0 0
      %4086 = vmatmul.mubr.bf16.gmra.mxu0 %v2478
      %v4087 = vpop.f32.mrf.mxu0
      %v4088 = vadd.f32 %v726, %v4087
      %v4089 = vpop.f32.mrf.mxu0
      %v4090 = vpop.f32.mrf.mxu0
      %v4091 = vadd.f32 %v726, %v4090
      %v4092 = vpop.f32.mrf.mxu0
      %4093 = vmatprep.mubr.bf16.mxu0 0
      %4094 = vmatmul.mubr.bf16.gmra.mxu0 %v2481
      %v4095 = vpop.f32.mrf.mxu0
      %v4096 = vadd.f32 %v726, %v4095
      %v4097 = vpop.f32.mrf.mxu0
      %v4098 = vpop.f32.mrf.mxu0
      %v4099 = vadd.f32 %v726, %v4098
      %v4100 = vpop.f32.mrf.mxu0
      %4101 = vmatprep.mubr.bf16.mxu0 0
      %4102 = vmatmul.mubr.bf16.gmra.mxu0 %v2484
      %v4103 = vpop.f32.mrf.mxu0
      %v4104 = vadd.f32 %v726, %v4103
      %v4105 = vpop.f32.mrf.mxu0
      %v4106 = vpop.f32.mrf.mxu0
      %v4107 = vadd.f32 %v726, %v4106
      %v4108 = vpop.f32.mrf.mxu0
      %4109 = vmatprep.mubr.bf16.mxu0 0
      %4110 = vmatmul.mubr.bf16.gmra.mxu0 %v2487
      %v4111 = vpop.f32.mrf.mxu0
      %v4112 = vadd.f32 %v726, %v4111
      %v4113 = vpop.f32.mrf.mxu0
      %v4114 = vpop.f32.mrf.mxu0
      %v4115 = vadd.f32 %v726, %v4114
      %v4116 = vpop.f32.mrf.mxu0
      %4117 = vmatprep.mubr.bf16.mxu0 0
      %4118 = vmatmul.mubr.bf16.gmra.mxu0 %v2490
      %v4119 = vpop.f32.mrf.mxu0
      %v4120 = vadd.f32 %v726, %v4119
      %v4121 = vpop.f32.mrf.mxu0
      %v4122 = vpop.f32.mrf.mxu0
      %v4123 = vadd.f32 %v726, %v4122
      %v4124 = vpop.f32.mrf.mxu0
      %4125 = vmatprep.mubr.bf16.mxu0 0
      %4126 = vmatmul.mubr.bf16.gmra.mxu0 %v2493
      %v4127 = vpop.f32.mrf.mxu0
      %v4128 = vadd.f32 %v726, %v4127
      %v4129 = vpop.f32.mrf.mxu0
      %v4130 = vpop.f32.mrf.mxu0
      %v4131 = vadd.f32 %v726, %v4130
      %v4132 = vpop.f32.mrf.mxu0
      %4133 = vmatprep.mubr.bf16.mxu0 0
      %4134 = vmatmul.mubr.bf16.gmra.mxu0 %v2496
      %v4135 = vpop.f32.mrf.mxu0
      %v4136 = vadd.f32 %v726, %v4135
      %v4137 = vpop.f32.mrf.mxu0
      %v4138 = vpop.f32.mrf.mxu0
      %v4139 = vadd.f32 %v726, %v4138
      %v4140 = vpop.f32.mrf.mxu0
      %4141 = vmatprep.mubr.bf16.mxu0 0
      %4142 = vmatmul.mubr.bf16.gmra.mxu0 %v2499
      %v4143 = vpop.f32.mrf.mxu0
      %v4144 = vadd.f32 %v726, %v4143
      %v4145 = vpop.f32.mrf.mxu0
      %v4146 = vpop.f32.mrf.mxu0
      %v4147 = vadd.f32 %v726, %v4146
      %v4148 = vpop.f32.mrf.mxu0
      %4149 = vmatprep.mubr.bf16.mxu0 0
      %4150 = vmatmul.mubr.bf16.gmra.mxu0 %v2502
      %v4151 = vpop.f32.mrf.mxu0
      %v4152 = vadd.f32 %v726, %v4151
      %v4153 = vpop.f32.mrf.mxu0
      %v4154 = vpop.f32.mrf.mxu0
      %v4155 = vadd.f32 %v726, %v4154
      %v4156 = vpop.f32.mrf.mxu0
      %4157 = vmatprep.mubr.bf16.mxu0 0
      %4158 = vmatmul.mubr.bf16.gmra.mxu0 %v2505
      %v4159 = vpop.f32.mrf.mxu0
      %v4160 = vadd.f32 %v726, %v4159
      %v4161 = vpop.f32.mrf.mxu0
      %v4162 = vpop.f32.mrf.mxu0
      %v4163 = vadd.f32 %v726, %v4162
      %v4164 = vpop.f32.mrf.mxu0
      %4165 = vmatprep.mubr.bf16.mxu0 0
      %4166 = vmatmul.mubr.bf16.gmra.mxu0 %v2508
      %v4167 = vpop.f32.mrf.mxu0
      %v4168 = vadd.f32 %v726, %v4167
      %v4169 = vpop.f32.mrf.mxu0
      %v4170 = vpop.f32.mrf.mxu0
      %v4171 = vadd.f32 %v726, %v4170
      %v4172 = vpop.f32.mrf.mxu0
      %4173 = vmatprep.mubr.bf16.mxu0 0
      %4174 = vmatmul.mubr.bf16.gmra.mxu0 %v2511
      %v4175 = vpop.f32.mrf.mxu0
      %v4176 = vadd.f32 %v726, %v4175
      %v4177 = vpop.f32.mrf.mxu0
      %v4178 = vpop.f32.mrf.mxu0
      %v4179 = vadd.f32 %v726, %v4178
      %v4180 = vpop.f32.mrf.mxu0
      %4181 = vmatprep.mubr.bf16.mxu0 0
      %4182 = vmatmul.mubr.bf16.gmra.mxu0 %v2514
      %v4183 = vpop.f32.mrf.mxu0
      %v4184 = vadd.f32 %v726, %v4183
      %v4185 = vpop.f32.mrf.mxu0
      %v4186 = vpop.f32.mrf.mxu0
      %v4187 = vadd.f32 %v726, %v4186
      %v4188 = vpop.f32.mrf.mxu0
      %4189 = vmatprep.mubr.bf16.mxu0 0
      %4190 = vmatmul.mubr.bf16.gmra.mxu0 %v2517
      %v4191 = vpop.f32.mrf.mxu0
      %v4192 = vadd.f32 %v726, %v4191
      %v4193 = vpop.f32.mrf.mxu0
      %v4194 = vpop.f32.mrf.mxu0
      %v4195 = vadd.f32 %v726, %v4194
      %v4196 = vpop.f32.mrf.mxu0
      %4197 = vmatprep.mubr.bf16.mxu0 0
      %4198 = vmatmul.mubr.bf16.gmra.mxu0 %v2520
      %v4199 = vpop.f32.mrf.mxu0
      %v4200 = vadd.f32 %v726, %v4199
      %v4201 = vpop.f32.mrf.mxu0
      %v4202 = vpop.f32.mrf.mxu0
      %v4203 = vadd.f32 %v726, %v4202
      %v4204 = vpop.f32.mrf.mxu0
      %4205 = vmatprep.mubr.bf16.mxu0 0
      %4206 = vmatmul.mubr.bf16.gmra.mxu0 %v2523
      %v4207 = vpop.f32.mrf.mxu0
      %v4208 = vadd.f32 %v726, %v4207
      %v4209 = vpop.f32.mrf.mxu0
      %v4210 = vpop.f32.mrf.mxu0
      %v4211 = vadd.f32 %v726, %v4210
      %v4212 = vpop.f32.mrf.mxu0
      %4213 = vmatprep.mubr.bf16.mxu0 0
      %4214 = vmatmul.mubr.bf16.gmra.mxu0 %v2526
      %v4215 = vpop.f32.mrf.mxu0
      %v4216 = vadd.f32 %v726, %v4215
      %v4217 = vpop.f32.mrf.mxu0
      %v4218 = vpop.f32.mrf.mxu0
      %v4219 = vadd.f32 %v726, %v4218
      %v4220 = vpop.f32.mrf.mxu0
      %4221 = vmatprep.mubr.bf16.mxu0 0
      %4222 = vmatmul.mubr.bf16.gmra.mxu0 %v2529
      %v4223 = vpop.f32.mrf.mxu0
      %v4224 = vadd.f32 %v726, %v4223
      %v4225 = vpop.f32.mrf.mxu0
      %v4226 = vpop.f32.mrf.mxu0
      %v4227 = vadd.f32 %v726, %v4226
      %v4228 = vpop.f32.mrf.mxu0
      %4229 = vmatprep.mubr.bf16.mxu0 0
      %4230 = vmatmul.mubr.bf16.gmra.mxu0 %v2532
      %v4231 = vpop.f32.mrf.mxu0
      %v4232 = vadd.f32 %v726, %v4231
      %v4233 = vpop.f32.mrf.mxu0
      %v4234 = vpop.f32.mrf.mxu0
      %v4235 = vadd.f32 %v726, %v4234
      %v4236 = vpop.f32.mrf.mxu0
      %4237 = vmatprep.mubr.bf16.mxu0 0
      %4238 = vmatmul.mubr.bf16.gmra.mxu0 %v2535
      %v4239 = vpop.f32.mrf.mxu0
      %v4240 = vadd.f32 %v726, %v4239
      %v4241 = vpop.f32.mrf.mxu0
      %v4242 = vpop.f32.mrf.mxu0
      %v4243 = vadd.f32 %v726, %v4242
      %v4244 = vpop.f32.mrf.mxu0
      %4245 = vmatprep.mubr.bf16.mxu0 0
      %4246 = vmatmul.mubr.bf16.gmra.mxu0 %v2538
      %v4247 = vpop.f32.mrf.mxu0
      %v4248 = vadd.f32 %v726, %v4247
      %v4249 = vpop.f32.mrf.mxu0
      %v4250 = vpop.f32.mrf.mxu0
      %v4251 = vadd.f32 %v726, %v4250
      %v4252 = vpop.f32.mrf.mxu0
      %4253 = vmatprep.mubr.bf16.mxu0 0
      %4254 = vmatmul.mubr.bf16.gmra.mxu0 %v2541
      %v4255 = vpop.f32.mrf.mxu0
      %v4256 = vadd.f32 %v726, %v4255
      %v4257 = vpop.f32.mrf.mxu0
      %v4258 = vpop.f32.mrf.mxu0
      %v4259 = vadd.f32 %v726, %v4258
      %v4260 = vpop.f32.mrf.mxu0
      %4261 = vmatprep.mubr.bf16.mxu0 0
      %4262 = vmatmul.mubr.bf16.gmra.mxu0 %v2544
      %v4263 = vpop.f32.mrf.mxu0
      %v4264 = vadd.f32 %v726, %v4263
      %v4265 = vpop.f32.mrf.mxu0
      %v4266 = vpop.f32.mrf.mxu0
      %v4267 = vadd.f32 %v726, %v4266
      %v4268 = vpop.f32.mrf.mxu0
      %4269 = vmatprep.mubr.bf16.mxu0 0
      %4270 = vmatmul.mubr.bf16.gmra.mxu0 %v2547
      %v4271 = vpop.f32.mrf.mxu0
      %v4272 = vadd.f32 %v726, %v4271
      %v4273 = vpop.f32.mrf.mxu0
      %v4274 = vpop.f32.mrf.mxu0
      %v4275 = vadd.f32 %v726, %v4274
      %v4276 = vpop.f32.mrf.mxu0
      %4277 = vmatprep.mubr.bf16.mxu0 0
      %4278 = vmatmul.mubr.bf16.gmra.mxu0 %v2550
      %v4279 = vpop.f32.mrf.mxu0
      %v4280 = vadd.f32 %v726, %v4279
      %v4281 = vpop.f32.mrf.mxu0
      %v4282 = vpop.f32.mrf.mxu0
      %v4283 = vadd.f32 %v726, %v4282
      %v4284 = vpop.f32.mrf.mxu0
      %4285 = vmatprep.mubr.bf16.mxu0 0
      %4286 = vmatmul.mubr.bf16.gmra.mxu0 %v2553
      %v4287 = vpop.f32.mrf.mxu0
      %v4288 = vadd.f32 %v726, %v4287
      %v4289 = vpop.f32.mrf.mxu0
      %v4290 = vpop.f32.mrf.mxu0
      %v4291 = vadd.f32 %v726, %v4290
      %v4292 = vpop.f32.mrf.mxu0
      %4293 = vmatprep.mubr.bf16.mxu0 0
      %4294 = vmatmul.mubr.bf16.gmra.mxu0 %v2556
      %v4295 = vpop.f32.mrf.mxu0
      %v4296 = vadd.f32 %v726, %v4295
      %v4297 = vpop.f32.mrf.mxu0
      %v4298 = vpop.f32.mrf.mxu0
      %v4299 = vadd.f32 %v726, %v4298
      %v4300 = vpop.f32.mrf.mxu0
      %4301 = vmatprep.mubr.bf16.mxu0 0
      %4302 = vmatmul.mubr.bf16.gmra.mxu0 %v2559
      %v4303 = vpop.f32.mrf.mxu0
      %v4304 = vadd.f32 %v726, %v4303
      %v4305 = vpop.f32.mrf.mxu0
      %v4306 = vpop.f32.mrf.mxu0
      %v4307 = vadd.f32 %v726, %v4306
      %v4308 = vpop.f32.mrf.mxu0
      %4309 = vmatprep.mubr.bf16.mxu0 0
      %4310 = vmatmul.mubr.bf16.gmra.mxu0 %v2562
      %v4311 = vpop.f32.mrf.mxu0
      %v4312 = vadd.f32 %v726, %v4311
      %v4313 = vpop.f32.mrf.mxu0
      %v4314 = vpop.f32.mrf.mxu0
      %v4315 = vadd.f32 %v726, %v4314
      %v4316 = vpop.f32.mrf.mxu0
      %4317 = vmatprep.mubr.bf16.mxu0 0
      %4318 = vmatmul.mubr.bf16.gmra.mxu0 %v2565
      %v4319 = vpop.f32.mrf.mxu0
      %v4320 = vadd.f32 %v726, %v4319
      %v4321 = vpop.f32.mrf.mxu0
      %v4322 = vpop.f32.mrf.mxu0
      %v4323 = vadd.f32 %v726, %v4322
      %v4324 = vpop.f32.mrf.mxu0
      %4325 = vmatprep.mubr.bf16.mxu0 0
      %4326 = vmatmul.mubr.bf16.gmra.mxu0 %v2568
      %v4327 = vpop.f32.mrf.mxu0
      %v4328 = vadd.f32 %v726, %v4327
      %v4329 = vpop.f32.mrf.mxu0
      %v4330 = vpop.f32.mrf.mxu0
      %v4331 = vadd.f32 %v726, %v4330
      %v4332 = vpop.f32.mrf.mxu0
      %4333 = vmatprep.mubr.bf16.mxu0 0
      %4334 = vmatmul.mubr.bf16.gmra.mxu0 %v2571
      %v4335 = vpop.f32.mrf.mxu0
      %v4336 = vadd.f32 %v726, %v4335
      %v4337 = vpop.f32.mrf.mxu0
      %v4338 = vpop.f32.mrf.mxu0
      %v4339 = vadd.f32 %v726, %v4338
      %v4340 = vpop.f32.mrf.mxu0
      %4341 = vmatprep.mubr.bf16.mxu0 0
      %4342 = vmatmul.mubr.bf16.gmra.mxu0 %v2574
      %v4343 = vpop.f32.mrf.mxu0
      %v4344 = vadd.f32 %v726, %v4343
      %v4345 = vpop.f32.mrf.mxu0
      %v4346 = vpop.f32.mrf.mxu0
      %v4347 = vadd.f32 %v726, %v4346
      %v4348 = vpop.f32.mrf.mxu0
      %4349 = vmatprep.mubr.bf16.mxu0 0
      %4350 = vmatmul.mubr.bf16.gmra.mxu0 %v2577
      %v4351 = vpop.f32.mrf.mxu0
      %v4352 = vadd.f32 %v726, %v4351
      %v4353 = vpop.f32.mrf.mxu0
      %v4354 = vpop.f32.mrf.mxu0
      %v4355 = vadd.f32 %v726, %v4354
      %v4356 = vpop.f32.mrf.mxu0
      %4357 = vmatprep.mubr.bf16.mxu0 0
      %4358 = vmatmul.mubr.bf16.gmra.mxu0 %v2580
      %v4359 = vpop.f32.mrf.mxu0
      %v4360 = vadd.f32 %v726, %v4359
      %v4361 = vpop.f32.mrf.mxu0
      %v4362 = vpop.f32.mrf.mxu0
      %v4363 = vadd.f32 %v726, %v4362
      %v4364 = vpop.f32.mrf.mxu0
      %4365 = vmatprep.mubr.bf16.mxu0 0
      %4366 = vmatmul.mubr.bf16.gmra.mxu0 %v2583
      %v4367 = vpop.f32.mrf.mxu0
      %v4368 = vadd.f32 %v726, %v4367
      %v4369 = vpop.f32.mrf.mxu0
      %v4370 = vpop.f32.mrf.mxu0
      %v4371 = vadd.f32 %v726, %v4370
      %v4372 = vpop.f32.mrf.mxu0
      %4373 = vmatprep.mubr.bf16.mxu0 0
      %4374 = vmatmul.mubr.bf16.gmra.mxu0 %v2586
      %v4375 = vpop.f32.mrf.mxu0
      %v4376 = vadd.f32 %v726, %v4375
      %v4377 = vpop.f32.mrf.mxu0
      %v4378 = vpop.f32.mrf.mxu0
      %v4379 = vadd.f32 %v726, %v4378
      %v4380 = vpop.f32.mrf.mxu0
      %4381 = vmatprep.mubr.bf16.mxu0 0
      %4382 = vmatmul.mubr.bf16.gmra.mxu0 %v2589
      %v4383 = vpop.f32.mrf.mxu0
      %v4384 = vadd.f32 %v726, %v4383
      %v4385 = vpop.f32.mrf.mxu0
      %v4386 = vpop.f32.mrf.mxu0
      %v4387 = vadd.f32 %v726, %v4386
      %v4388 = vpop.f32.mrf.mxu0
      %4389 = vmatprep.mubr.bf16.mxu0 0
      %4390 = vmatmul.mubr.bf16.gmra.mxu0 %v2592
      %v4391 = vpop.f32.mrf.mxu0
      %v4392 = vadd.f32 %v726, %v4391
      %v4393 = vpop.f32.mrf.mxu0
      %v4394 = vpop.f32.mrf.mxu0
      %v4395 = vadd.f32 %v726, %v4394
      %v4396 = vpop.f32.mrf.mxu0
      %4397 = vmatprep.mubr.bf16.mxu0 0
      %4398 = vmatmul.mubr.bf16.gmra.mxu0 %v2595
      %v4399 = vpop.f32.mrf.mxu0
      %v4400 = vadd.f32 %v726, %v4399
      %v4401 = vpop.f32.mrf.mxu0
      %v4402 = vpop.f32.mrf.mxu0
      %v4403 = vadd.f32 %v726, %v4402
      %v4404 = vpop.f32.mrf.mxu0
      %4405 = vmatprep.mubr.bf16.mxu0 0
      %4406 = vmatmul.mubr.bf16.gmra.mxu0 %v2598
      %v4407 = vpop.f32.mrf.mxu0
      %v4408 = vadd.f32 %v726, %v4407
      %v4409 = vpop.f32.mrf.mxu0
      %v4410 = vpop.f32.mrf.mxu0
      %v4411 = vadd.f32 %v726, %v4410
      %v4412 = vpop.f32.mrf.mxu0
      %4413 = vmatprep.mubr.bf16.mxu0 0
      %4414 = vmatmul.mubr.bf16.gmra.mxu0 %v2601
      %v4415 = vpop.f32.mrf.mxu0
      %v4416 = vadd.f32 %v726, %v4415
      %v4417 = vpop.f32.mrf.mxu0
      %v4418 = vpop.f32.mrf.mxu0
      %v4419 = vadd.f32 %v726, %v4418
      %v4420 = vpop.f32.mrf.mxu0
      %4421 = vmatprep.mubr.bf16.mxu0 0
      %4422 = vmatmul.mubr.bf16.gmra.mxu0 %v2604
      %v4423 = vpop.f32.mrf.mxu0
      %v4424 = vadd.f32 %v726, %v4423
      %v4425 = vpop.f32.mrf.mxu0
      %v4426 = vpop.f32.mrf.mxu0
      %v4427 = vadd.f32 %v726, %v4426
      %v4428 = vpop.f32.mrf.mxu0
      %4429 = vmatprep.mubr.bf16.mxu0 0
      %4430 = vmatmul.mubr.bf16.gmra.mxu0 %v2607
      %v4431 = vpop.f32.mrf.mxu0
      %v4432 = vadd.f32 %v726, %v4431
      %v4433 = vpop.f32.mrf.mxu0
      %v4434 = vpop.f32.mrf.mxu0
      %v4435 = vadd.f32 %v726, %v4434
      %v4436 = vpop.f32.mrf.mxu0
      %4437 = vmatprep.mubr.bf16.mxu0 0
      %4438 = vmatmul.mubr.bf16.gmra.mxu0 %v2610
      %v4439 = vpop.f32.mrf.mxu0
      %v4440 = vadd.f32 %v726, %v4439
      %v4441 = vpop.f32.mrf.mxu0
      %v4442 = vpop.f32.mrf.mxu0
      %v4443 = vadd.f32 %v726, %v4442
      %v4444 = vpop.f32.mrf.mxu0
      %4445 = vmatprep.mubr.bf16.mxu0 0
      %4446 = vmatmul.mubr.bf16.gmra.mxu0 %v2613
      %v4447 = vpop.f32.mrf.mxu0
      %v4448 = vadd.f32 %v726, %v4447
      %v4449 = vpop.f32.mrf.mxu0
      %v4450 = vpop.f32.mrf.mxu0
      %v4451 = vadd.f32 %v726, %v4450
      %v4452 = vpop.f32.mrf.mxu0
      %4453 = vmatprep.mubr.bf16.mxu0 0
      %4454 = vmatmul.mubr.bf16.gmra.mxu0 %v2616
      %v4455 = vpop.f32.mrf.mxu0
      %v4456 = vadd.f32 %v726, %v4455
      %v4457 = vpop.f32.mrf.mxu0
      %v4458 = vpop.f32.mrf.mxu0
      %v4459 = vadd.f32 %v726, %v4458
      %v4460 = vpop.f32.mrf.mxu0
      %4461 = vmatprep.mubr.bf16.mxu0 0
      %4462 = vmatmul.mubr.bf16.gmra.mxu0 %v2619
      %v4463 = vpop.f32.mrf.mxu0
      %v4464 = vadd.f32 %v726, %v4463
      %v4465 = vpop.f32.mrf.mxu0
      %v4466 = vpop.f32.mrf.mxu0
      %v4467 = vadd.f32 %v726, %v4466
      %v4468 = vpop.f32.mrf.mxu0
      %4469 = vmatprep.mubr.bf16.mxu0 0
      %4470 = vmatmul.mubr.bf16.gmra.mxu0 %v2622
      %v4471 = vpop.f32.mrf.mxu0
      %v4472 = vadd.f32 %v726, %v4471
      %v4473 = vpop.f32.mrf.mxu0
      %v4474 = vpop.f32.mrf.mxu0
      %v4475 = vadd.f32 %v726, %v4474
      %v4476 = vpop.f32.mrf.mxu0
      %4477 = vmatprep.mubr.bf16.mxu0 0
      %4478 = vmatmul.mubr.bf16.gmra.mxu0 %v2625
      %v4479 = vpop.f32.mrf.mxu0
      %v4480 = vadd.f32 %v726, %v4479
      %v4481 = vpop.f32.mrf.mxu0
      %v4482 = vpop.f32.mrf.mxu0
      %v4483 = vadd.f32 %v726, %v4482
      %v4484 = vpop.f32.mrf.mxu0
      %4485 = vmatprep.mubr.bf16.mxu0 0
      %4486 = vmatmul.mubr.bf16.gmra.mxu0 %v2628
      %v4487 = vpop.f32.mrf.mxu0
      %v4488 = vadd.f32 %v726, %v4487
      %v4489 = vpop.f32.mrf.mxu0
      %v4490 = vpop.f32.mrf.mxu0
      %v4491 = vadd.f32 %v726, %v4490
      %v4492 = vpop.f32.mrf.mxu0
      %4493 = vmatprep.mubr.bf16.mxu0 0
      %4494 = vmatmul.mubr.bf16.gmra.mxu0 %v2631
      %v4495 = vpop.f32.mrf.mxu0
      %v4496 = vadd.f32 %v726, %v4495
      %v4497 = vpop.f32.mrf.mxu0
      %v4498 = vpop.f32.mrf.mxu0
      %v4499 = vadd.f32 %v726, %v4498
      %v4500 = vpop.f32.mrf.mxu0
      %4501 = vmatprep.mubr.bf16.mxu0 0
      %4502 = vmatmul.mubr.bf16.gmra.mxu0 %v2634
      %v4503 = vpop.f32.mrf.mxu0
      %v4504 = vadd.f32 %v726, %v4503
      %v4505 = vpop.f32.mrf.mxu0
      %v4506 = vpop.f32.mrf.mxu0
      %v4507 = vadd.f32 %v726, %v4506
      %v4508 = vpop.f32.mrf.mxu0
      %4509 = vmatprep.mubr.bf16.mxu0 0
      %4510 = vmatmul.mubr.bf16.gmra.mxu0 %v2637
      %v4511 = vpop.f32.mrf.mxu0
      %v4512 = vadd.f32 %v726, %v4511
      %v4513 = vpop.f32.mrf.mxu0
      %v4514 = vpop.f32.mrf.mxu0
      %v4515 = vadd.f32 %v726, %v4514
      %v4516 = vpop.f32.mrf.mxu0
      %4517 = vmatprep.mubr.bf16.mxu0 0
      %4518 = vmatmul.mubr.bf16.gmra.mxu0 %v2640
      %v4519 = vpop.f32.mrf.mxu0
      %v4520 = vadd.f32 %v726, %v4519
      %v4521 = vpop.f32.mrf.mxu0
      %v4522 = vpop.f32.mrf.mxu0
      %v4523 = vadd.f32 %v726, %v4522
      %v4524 = vpop.f32.mrf.mxu0
      %4525 = vmatprep.mubr.bf16.mxu0 0
      %4526 = vmatmul.mubr.bf16.gmra.mxu0 %v2643
      %v4527 = vpop.f32.mrf.mxu0
      %v4528 = vadd.f32 %v726, %v4527
      %v4529 = vpop.f32.mrf.mxu0
      %v4530 = vpop.f32.mrf.mxu0
      %v4531 = vadd.f32 %v726, %v4530
      %v4532 = vpop.f32.mrf.mxu0
      %4533 = vmatprep.mubr.bf16.mxu0 0
      %4534 = vmatmul.mubr.bf16.gmra.mxu0 %v2646
      %v4535 = vpop.f32.mrf.mxu0
      %v4536 = vadd.f32 %v726, %v4535
      %v4537 = vpop.f32.mrf.mxu0
      %v4538 = vpop.f32.mrf.mxu0
      %v4539 = vadd.f32 %v726, %v4538
      %v4540 = vpop.f32.mrf.mxu0
      %4541 = vmatprep.mubr.bf16.mxu0 0
      %4542 = vmatmul.mubr.bf16.gmra.mxu0 %v2649
      %v4543 = vpop.f32.mrf.mxu0
      %v4544 = vadd.f32 %v726, %v4543
      %v4545 = vpop.f32.mrf.mxu0
      %v4546 = vpop.f32.mrf.mxu0
      %v4547 = vadd.f32 %v726, %v4546
      %v4548 = vpop.f32.mrf.mxu0
      %4549 = vmatprep.mubr.bf16.mxu0 0
      %4550 = vmatmul.mubr.bf16.gmra.mxu0 %v2652
      %v4551 = vpop.f32.mrf.mxu0
      %v4552 = vadd.f32 %v726, %v4551
      %v4553 = vpop.f32.mrf.mxu0
      %v4554 = vpop.f32.mrf.mxu0
      %v4555 = vadd.f32 %v726, %v4554
      %v4556 = vpop.f32.mrf.mxu0
      %4557 = vmatprep.mubr.bf16.mxu0 0
      %4558 = vmatmul.mubr.bf16.gmra.mxu0 %v2655
      %v4559 = vpop.f32.mrf.mxu0
      %v4560 = vadd.f32 %v726, %v4559
      %v4561 = vpop.f32.mrf.mxu0
      %v4562 = vpop.f32.mrf.mxu0
      %v4563 = vadd.f32 %v726, %v4562
      %v4564 = vpop.f32.mrf.mxu0
      %4565 = vmatprep.mubr.bf16.mxu0 0
      %4566 = vmatmul.mubr.bf16.gmra.mxu0 %v2658
      %v4567 = vpop.f32.mrf.mxu0
      %v4568 = vadd.f32 %v726, %v4567
      %v4569 = vpop.f32.mrf.mxu0
      %v4570 = vpop.f32.mrf.mxu0
      %v4571 = vadd.f32 %v726, %v4570
      %v4572 = vpop.f32.mrf.mxu0
      %4573 = vmatprep.mubr.bf16.mxu0 0
      %4574 = vmatmul.mubr.bf16.gmra.mxu0 %v2661
      %v4575 = vpop.f32.mrf.mxu0
      %v4576 = vadd.f32 %v726, %v4575
      %v4577 = vpop.f32.mrf.mxu0
      %v4578 = vpop.f32.mrf.mxu0
      %v4579 = vadd.f32 %v726, %v4578
      %v4580 = vpop.f32.mrf.mxu0
      %4581 = vmatprep.mubr.bf16.mxu0 0
      %4582 = vmatmul.mubr.bf16.gmra.mxu0 %v2664
      %v4583 = vpop.f32.mrf.mxu0
      %v4584 = vadd.f32 %v726, %v4583
      %v4585 = vpop.f32.mrf.mxu0
      %v4586 = vpop.f32.mrf.mxu0
      %v4587 = vadd.f32 %v726, %v4586
      %v4588 = vpop.f32.mrf.mxu0
      %4589 = vmatprep.mubr.bf16.mxu0 0
      %4590 = vmatmul.mubr.bf16.gmra.mxu0 %v2667
      %v4591 = vpop.f32.mrf.mxu0
      %v4592 = vadd.f32 %v726, %v4591
      %v4593 = vpop.f32.mrf.mxu0
      %v4594 = vpop.f32.mrf.mxu0
      %v4595 = vadd.f32 %v726, %v4594
      %v4596 = vpop.f32.mrf.mxu0
      %4597 = vmatprep.mubr.bf16.mxu0 0
      %4598 = vmatmul.mubr.bf16.gmra.mxu0 %v2670
      %v4599 = vpop.f32.mrf.mxu0
      %v4600 = vadd.f32 %v726, %v4599
      %v4601 = vpop.f32.mrf.mxu0
      %v4602 = vpop.f32.mrf.mxu0
      %v4603 = vadd.f32 %v726, %v4602
      %v4604 = vpop.f32.mrf.mxu0
      %4605 = vmatprep.mubr.bf16.mxu0 0
      %4606 = vmatmul.mubr.bf16.gmra.mxu0 %v2673
      %v4607 = vpop.f32.mrf.mxu0
      %v4608 = vadd.f32 %v726, %v4607
      %v4609 = vpop.f32.mrf.mxu0
      %v4610 = vpop.f32.mrf.mxu0
      %v4611 = vadd.f32 %v726, %v4610
      %v4612 = vpop.f32.mrf.mxu0
      %4613 = vmatprep.mubr.bf16.mxu0 0
      %4614 = vmatmul.mubr.bf16.gmra.mxu0 %v2676
      %v4615 = vpop.f32.mrf.mxu0
      %v4616 = vadd.f32 %v726, %v4615
      %v4617 = vpop.f32.mrf.mxu0
      %v4618 = vpop.f32.mrf.mxu0
      %v4619 = vadd.f32 %v726, %v4618
      %v4620 = vpop.f32.mrf.mxu0
      %4621 = vmatprep.mubr.bf16.mxu0 0
      %4622 = vmatmul.mubr.bf16.gmra.mxu0 %v2679
      %v4623 = vpop.f32.mrf.mxu0
      %v4624 = vadd.f32 %v726, %v4623
      %v4625 = vpop.f32.mrf.mxu0
      %v4626 = vpop.f32.mrf.mxu0
      %v4627 = vadd.f32 %v726, %v4626
      %v4628 = vpop.f32.mrf.mxu0
      %4629 = vmatprep.mubr.bf16.mxu0 0
      %4630 = vmatmul.mubr.bf16.gmra.mxu0 %v2682
      %v4631 = vpop.f32.mrf.mxu0
      %v4632 = vadd.f32 %v726, %v4631
      %v4633 = vpop.f32.mrf.mxu0
      %v4634 = vpop.f32.mrf.mxu0
      %v4635 = vadd.f32 %v726, %v4634
      %v4636 = vpop.f32.mrf.mxu0
      %4637 = vmatprep.mubr.bf16.mxu0 0
      %4638 = vmatmul.mubr.bf16.gmra.mxu0 %v2685
      %v4639 = vpop.f32.mrf.mxu0
      %v4640 = vadd.f32 %v726, %v4639
      %v4641 = vpop.f32.mrf.mxu0
      %v4642 = vpop.f32.mrf.mxu0
      %v4643 = vadd.f32 %v726, %v4642
      %v4644 = vpop.f32.mrf.mxu0
      %4645 = vmatprep.mubr.bf16.mxu0 0
      %4646 = vmatmul.mubr.bf16.gmra.mxu0 %v2688
      %v4647 = vpop.f32.mrf.mxu0
      %v4648 = vadd.f32 %v726, %v4647
      %v4649 = vpop.f32.mrf.mxu0
      %v4650 = vpop.f32.mrf.mxu0
      %v4651 = vadd.f32 %v726, %v4650
      %v4652 = vpop.f32.mrf.mxu0
      %4653 = vmatprep.mubr.bf16.mxu0 0
      %4654 = vmatmul.mubr.bf16.gmra.mxu0 %v2691
      %v4655 = vpop.f32.mrf.mxu0
      %v4656 = vadd.f32 %v726, %v4655
      %v4657 = vpop.f32.mrf.mxu0
      %v4658 = vpop.f32.mrf.mxu0
      %v4659 = vadd.f32 %v726, %v4658
      %v4660 = vpop.f32.mrf.mxu0
      %4661 = vmatprep.mubr.bf16.mxu0 0
      %4662 = vmatmul.mubr.bf16.gmra.mxu0 %v2694
      %v4663 = vpop.f32.mrf.mxu0
      %v4664 = vadd.f32 %v726, %v4663
      %v4665 = vpop.f32.mrf.mxu0
      %v4666 = vpop.f32.mrf.mxu0
      %v4667 = vadd.f32 %v726, %v4666
      %v4668 = vpop.f32.mrf.mxu0
      %4669 = vmatprep.mubr.bf16.mxu0 0
      %4670 = vmatmul.mubr.bf16.gmra.mxu0 %v2697
      %v4671 = vpop.f32.mrf.mxu0
      %v4672 = vadd.f32 %v726, %v4671
      %v4673 = vpop.f32.mrf.mxu0
      %v4674 = vpop.f32.mrf.mxu0
      %v4675 = vadd.f32 %v726, %v4674
      %v4676 = vpop.f32.mrf.mxu0
      %4677 = vmatprep.mubr.bf16.mxu0 0
      %4678 = vmatmul.mubr.bf16.gmra.mxu0 %v2700
      %v4679 = vpop.f32.mrf.mxu0
      %v4680 = vadd.f32 %v726, %v4679
      %v4681 = vpop.f32.mrf.mxu0
      %v4682 = vpop.f32.mrf.mxu0
      %v4683 = vadd.f32 %v726, %v4682
      %v4684 = vpop.f32.mrf.mxu0
      %4685 = vmatprep.mubr.bf16.mxu0 0
      %4686 = vmatmul.mubr.bf16.gmra.mxu0 %v2703
      %v4687 = vpop.f32.mrf.mxu0
      %v4688 = vadd.f32 %v726, %v4687
      %v4689 = vpop.f32.mrf.mxu0
      %v4690 = vpop.f32.mrf.mxu0
      %v4691 = vadd.f32 %v726, %v4690
      %v4692 = vpop.f32.mrf.mxu0
      %4693 = vmatprep.mubr.bf16.mxu0 0
      %4694 = vmatmul.mubr.bf16.gmra.mxu0 %v2706
      %v4695 = vpop.f32.mrf.mxu0
      %v4696 = vadd.f32 %v726, %v4695
      %v4697 = vpop.f32.mrf.mxu0
      %v4698 = vpop.f32.mrf.mxu0
      %v4699 = vadd.f32 %v726, %v4698
      %v4700 = vpop.f32.mrf.mxu0
      %4701 = vmatprep.mubr.bf16.mxu0 0
      %4702 = vmatmul.mubr.bf16.gmra.mxu0 %v2709
      %v4703 = vpop.f32.mrf.mxu0
      %v4704 = vadd.f32 %v726, %v4703
      %v4705 = vpop.f32.mrf.mxu0
      %v4706 = vpop.f32.mrf.mxu0
      %v4707 = vadd.f32 %v726, %v4706
      %v4708 = vpop.f32.mrf.mxu0
      %4709 = vmatprep.mubr.bf16.mxu0 0
      %4710 = vmatmul.mubr.bf16.gmra.mxu0 %v2712
      %v4711 = vpop.f32.mrf.mxu0
      %v4712 = vadd.f32 %v726, %v4711
      %v4713 = vpop.f32.mrf.mxu0
      %v4714 = vpop.f32.mrf.mxu0
      %v4715 = vadd.f32 %v726, %v4714
      %v4716 = vpop.f32.mrf.mxu0
      %4717 = vmatprep.mubr.bf16.mxu0 0
      %4718 = vmatmul.mubr.bf16.gmra.mxu0 %v2715
      %v4719 = vpop.f32.mrf.mxu0
      %v4720 = vadd.f32 %v726, %v4719
      %v4721 = vpop.f32.mrf.mxu0
      %v4722 = vpop.f32.mrf.mxu0
      %v4723 = vadd.f32 %v726, %v4722
      %v4724 = vpop.f32.mrf.mxu0
      %4725 = vdwg.mxu0
      %v4726 = vmax.f32 %v2752, 0.0
      %v4727 = vmax.f32 %v2755, 0.0
      %v4728 = vmax.f32 %v2760, 0.0
      %v4729 = vmax.f32 %v2763, 0.0
      %v4730 = vmax.f32 %v2768, 0.0
      %v4731 = vmax.f32 %v2771, 0.0
      %v4732 = vmax.f32 %v2776, 0.0
      %v4733 = vmax.f32 %v2779, 0.0
      %v4734 = vmax.f32 %v2784, 0.0
      %v4735 = vmax.f32 %v2787, 0.0
      %v4736 = vmax.f32 %v2792, 0.0
      %v4737 = vmax.f32 %v2795, 0.0
      %v4738 = vmax.f32 %v2800, 0.0
      %v4739 = vmax.f32 %v2803, 0.0
      %v4740 = vmax.f32 %v2808, 0.0
      %v4741 = vmax.f32 %v2811, 0.0
      %v4742 = vmax.f32 %v2816, 0.0
      %v4743 = vmax.f32 %v2819, 0.0
      %v4744 = vmax.f32 %v2824, 0.0
      %v4745 = vmax.f32 %v2827, 0.0
      %v4746 = vmax.f32 %v2832, 0.0
      %v4747 = vmax.f32 %v2835, 0.0
      %v4748 = vmax.f32 %v2840, 0.0
      %v4749 = vmax.f32 %v2843, 0.0
      %v4750 = vmax.f32 %v2848, 0.0
      %v4751 = vmax.f32 %v2851, 0.0
      %v4752 = vmax.f32 %v2856, 0.0
      %v4753 = vmax.f32 %v2859, 0.0
      %v4754 = vmax.f32 %v2864, 0.0
      %v4755 = vmax.f32 %v2867, 0.0
      %v4756 = vmax.f32 %v2872, 0.0
      %v4757 = vmax.f32 %v2875, 0.0
      %v4758 = vmax.f32 %v2880, 0.0
      %v4759 = vmax.f32 %v2883, 0.0
      %v4760 = vmax.f32 %v2888, 0.0
      %v4761 = vmax.f32 %v2891, 0.0
      %v4762 = vmax.f32 %v2896, 0.0
      %v4763 = vmax.f32 %v2899, 0.0
      %v4764 = vmax.f32 %v2904, 0.0
      %v4765 = vmax.f32 %v2907, 0.0
      %v4766 = vmax.f32 %v2912, 0.0
      %v4767 = vmax.f32 %v2915, 0.0
      %v4768 = vmax.f32 %v2920, 0.0
      %v4769 = vmax.f32 %v2923, 0.0
      %v4770 = vmax.f32 %v2928, 0.0
      %v4771 = vmax.f32 %v2931, 0.0
      %v4772 = vmax.f32 %v2936, 0.0
      %v4773 = vmax.f32 %v2939, 0.0
      %v4774 = vmax.f32 %v2944, 0.0
      %v4775 = vmax.f32 %v2947, 0.0
      %v4776 = vmax.f32 %v2952, 0.0
      %v4777 = vmax.f32 %v2955, 0.0
      %v4778 = vmax.f32 %v2960, 0.0
      %v4779 = vmax.f32 %v2963, 0.0
      %v4780 = vmax.f32 %v2968, 0.0
      %v4781 = vmax.f32 %v2971, 0.0
      %v4782 = vmax.f32 %v2976, 0.0
      %v4783 = vmax.f32 %v2979, 0.0
      %v4784 = vmax.f32 %v2984, 0.0
      %v4785 = vmax.f32 %v2987, 0.0
      %v4786 = vmax.f32 %v2992, 0.0
      %v4787 = vmax.f32 %v2995, 0.0
      %v4788 = vmax.f32 %v3000, 0.0
      %v4789 = vmax.f32 %v3003, 0.0
      %v4790 = vmax.f32 %v3008, 0.0
      %v4791 = vmax.f32 %v3011, 0.0
      %v4792 = vmax.f32 %v3016, 0.0
      %v4793 = vmax.f32 %v3019, 0.0
      %v4794 = vmax.f32 %v3024, 0.0
      %v4795 = vmax.f32 %v3027, 0.0
      %v4796 = vmax.f32 %v3032, 0.0
      %v4797 = vmax.f32 %v3035, 0.0
      %v4798 = vmax.f32 %v3040, 0.0
      %v4799 = vmax.f32 %v3043, 0.0
      %v4800 = vmax.f32 %v3048, 0.0
      %v4801 = vmax.f32 %v3051, 0.0
      %v4802 = vmax.f32 %v3056, 0.0
      %v4803 = vmax.f32 %v3059, 0.0
      %v4804 = vmax.f32 %v3064, 0.0
      %v4805 = vmax.f32 %v3067, 0.0
      %v4806 = vmax.f32 %v3072, 0.0
      %v4807 = vmax.f32 %v3075, 0.0
      %v4808 = vmax.f32 %v3080, 0.0
      %v4809 = vmax.f32 %v3083, 0.0
      %v4810 = vmax.f32 %v3088, 0.0
      %v4811 = vmax.f32 %v3091, 0.0
      %v4812 = vmax.f32 %v3096, 0.0
      %v4813 = vmax.f32 %v3099, 0.0
      %v4814 = vmax.f32 %v3104, 0.0
      %v4815 = vmax.f32 %v3107, 0.0
      %v4816 = vmax.f32 %v3112, 0.0
      %v4817 = vmax.f32 %v3115, 0.0
      %v4818 = vmax.f32 %v3120, 0.0
      %v4819 = vmax.f32 %v3123, 0.0
      %v4820 = vmax.f32 %v3128, 0.0
      %v4821 = vmax.f32 %v3131, 0.0
      %v4822 = vmax.f32 %v3136, 0.0
      %v4823 = vmax.f32 %v3139, 0.0
      %v4824 = vmax.f32 %v3144, 0.0
      %v4825 = vmax.f32 %v3147, 0.0
      %v4826 = vmax.f32 %v3152, 0.0
      %v4827 = vmax.f32 %v3155, 0.0
      %v4828 = vmax.f32 %v3160, 0.0
      %v4829 = vmax.f32 %v3163, 0.0
      %v4830 = vmax.f32 %v3168, 0.0
      %v4831 = vmax.f32 %v3171, 0.0
      %v4832 = vmax.f32 %v3176, 0.0
      %v4833 = vmax.f32 %v3179, 0.0
      %v4834 = vmax.f32 %v3184, 0.0
      %v4835 = vmax.f32 %v3187, 0.0
      %v4836 = vmax.f32 %v3192, 0.0
      %v4837 = vmax.f32 %v3195, 0.0
      %v4838 = vmax.f32 %v3200, 0.0
      %v4839 = vmax.f32 %v3203, 0.0
      %v4840 = vmax.f32 %v3208, 0.0
      %v4841 = vmax.f32 %v3211, 0.0
      %v4842 = vmax.f32 %v3216, 0.0
      %v4843 = vmax.f32 %v3219, 0.0
      %v4844 = vmax.f32 %v3224, 0.0
      %v4845 = vmax.f32 %v3227, 0.0
      %v4846 = vmax.f32 %v3232, 0.0
      %v4847 = vmax.f32 %v3235, 0.0
      %v4848 = vmax.f32 %v3240, 0.0
      %v4849 = vmax.f32 %v3243, 0.0
      %v4850 = vmax.f32 %v3248, 0.0
      %v4851 = vmax.f32 %v3251, 0.0
      %v4852 = vmax.f32 %v3256, 0.0
      %v4853 = vmax.f32 %v3259, 0.0
      %v4854 = vmax.f32 %v3264, 0.0
      %v4855 = vmax.f32 %v3267, 0.0
      %v4856 = vmax.f32 %v3272, 0.0
      %v4857 = vmax.f32 %v3275, 0.0
      %v4858 = vmax.f32 %v3280, 0.0
      %v4859 = vmax.f32 %v3283, 0.0
      %v4860 = vmax.f32 %v3288, 0.0
      %v4861 = vmax.f32 %v3291, 0.0
      %v4862 = vmax.f32 %v3296, 0.0
      %v4863 = vmax.f32 %v3299, 0.0
      %v4864 = vmax.f32 %v3304, 0.0
      %v4865 = vmax.f32 %v3307, 0.0
      %v4866 = vmax.f32 %v3312, 0.0
      %v4867 = vmax.f32 %v3315, 0.0
      %v4868 = vmax.f32 %v3320, 0.0
      %v4869 = vmax.f32 %v3323, 0.0
      %v4870 = vmax.f32 %v3328, 0.0
      %v4871 = vmax.f32 %v3331, 0.0
      %v4872 = vmax.f32 %v3336, 0.0
      %v4873 = vmax.f32 %v3339, 0.0
      %v4874 = vmax.f32 %v3344, 0.0
      %v4875 = vmax.f32 %v3347, 0.0
      %v4876 = vmax.f32 %v3352, 0.0
      %v4877 = vmax.f32 %v3355, 0.0
      %v4878 = vmax.f32 %v3360, 0.0
      %v4879 = vmax.f32 %v3363, 0.0
      %v4880 = vmax.f32 %v3368, 0.0
      %v4881 = vmax.f32 %v3371, 0.0
      %v4882 = vmax.f32 %v3376, 0.0
      %v4883 = vmax.f32 %v3379, 0.0
      %v4884 = vmax.f32 %v3384, 0.0
      %v4885 = vmax.f32 %v3387, 0.0
      %v4886 = vmax.f32 %v3392, 0.0
      %v4887 = vmax.f32 %v3395, 0.0
      %v4888 = vmax.f32 %v3400, 0.0
      %v4889 = vmax.f32 %v3403, 0.0
      %v4890 = vmax.f32 %v3408, 0.0
      %v4891 = vmax.f32 %v3411, 0.0
      %v4892 = vmax.f32 %v3416, 0.0
      %v4893 = vmax.f32 %v3419, 0.0
      %v4894 = vmax.f32 %v3424, 0.0
      %v4895 = vmax.f32 %v3427, 0.0
      %v4896 = vmax.f32 %v3432, 0.0
      %v4897 = vmax.f32 %v3435, 0.0
      %v4898 = vmax.f32 %v3440, 0.0
      %v4899 = vmax.f32 %v3443, 0.0
      %v4900 = vmax.f32 %v3448, 0.0
      %v4901 = vmax.f32 %v3451, 0.0
      %v4902 = vmax.f32 %v3456, 0.0
      %v4903 = vmax.f32 %v3459, 0.0
      %v4904 = vmax.f32 %v3464, 0.0
      %v4905 = vmax.f32 %v3467, 0.0
      %v4906 = vmax.f32 %v3472, 0.0
      %v4907 = vmax.f32 %v3475, 0.0
      %v4908 = vmax.f32 %v3480, 0.0
      %v4909 = vmax.f32 %v3483, 0.0
      %v4910 = vmax.f32 %v3488, 0.0
      %v4911 = vmax.f32 %v3491, 0.0
      %v4912 = vmax.f32 %v3496, 0.0
      %v4913 = vmax.f32 %v3499, 0.0
      %v4914 = vmax.f32 %v3504, 0.0
      %v4915 = vmax.f32 %v3507, 0.0
      %v4916 = vmax.f32 %v3512, 0.0
      %v4917 = vmax.f32 %v3515, 0.0
      %v4918 = vmax.f32 %v3520, 0.0
      %v4919 = vmax.f32 %v3523, 0.0
      %v4920 = vmax.f32 %v3528, 0.0
      %v4921 = vmax.f32 %v3531, 0.0
      %v4922 = vmax.f32 %v3536, 0.0
      %v4923 = vmax.f32 %v3539, 0.0
      %v4924 = vmax.f32 %v3544, 0.0
      %v4925 = vmax.f32 %v3547, 0.0
      %v4926 = vmax.f32 %v3552, 0.0
      %v4927 = vmax.f32 %v3555, 0.0
      %v4928 = vmax.f32 %v3560, 0.0
      %v4929 = vmax.f32 %v3563, 0.0
      %v4930 = vmax.f32 %v3568, 0.0
      %v4931 = vmax.f32 %v3571, 0.0
      %v4932 = vmax.f32 %v3576, 0.0
      %v4933 = vmax.f32 %v3579, 0.0
      %v4934 = vmax.f32 %v3584, 0.0
      %v4935 = vmax.f32 %v3587, 0.0
      %v4936 = vmax.f32 %v3592, 0.0
      %v4937 = vmax.f32 %v3595, 0.0
      %v4938 = vmax.f32 %v3600, 0.0
      %v4939 = vmax.f32 %v3603, 0.0
      %v4940 = vmax.f32 %v3608, 0.0
      %v4941 = vmax.f32 %v3611, 0.0
      %v4942 = vmax.f32 %v3616, 0.0
      %v4943 = vmax.f32 %v3619, 0.0
      %v4944 = vmax.f32 %v3624, 0.0
      %v4945 = vmax.f32 %v3627, 0.0
      %v4946 = vmax.f32 %v3632, 0.0
      %v4947 = vmax.f32 %v3635, 0.0
      %v4948 = vmax.f32 %v3640, 0.0
      %v4949 = vmax.f32 %v3643, 0.0
      %v4950 = vmax.f32 %v3648, 0.0
      %v4951 = vmax.f32 %v3651, 0.0
      %v4952 = vmax.f32 %v3656, 0.0
      %v4953 = vmax.f32 %v3659, 0.0
      %v4954 = vmax.f32 %v3664, 0.0
      %v4955 = vmax.f32 %v3667, 0.0
      %v4956 = vmax.f32 %v3672, 0.0
      %v4957 = vmax.f32 %v3675, 0.0
      %v4958 = vmax.f32 %v3680, 0.0
      %v4959 = vmax.f32 %v3683, 0.0
      %v4960 = vmax.f32 %v3688, 0.0
      %v4961 = vmax.f32 %v3691, 0.0
      %v4962 = vmax.f32 %v3696, 0.0
      %v4963 = vmax.f32 %v3699, 0.0
      %v4964 = vmax.f32 %v3704, 0.0
      %v4965 = vmax.f32 %v3707, 0.0
      %v4966 = vmax.f32 %v3712, 0.0
      %v4967 = vmax.f32 %v3715, 0.0
      %v4968 = vmax.f32 %v3720, 0.0
      %v4969 = vmax.f32 %v3723, 0.0
      %v4970 = vmax.f32 %v3728, 0.0
      %v4971 = vmax.f32 %v3731, 0.0
      %v4972 = vmax.f32 %v3736, 0.0
      %v4973 = vmax.f32 %v3739, 0.0
      %v4974 = vmax.f32 %v3744, 0.0
      %v4975 = vmax.f32 %v3747, 0.0
      %v4976 = vmax.f32 %v3752, 0.0
      %v4977 = vmax.f32 %v3755, 0.0
      %v4978 = vmax.f32 %v3760, 0.0
      %v4979 = vmax.f32 %v3763, 0.0
      %v4980 = vmax.f32 %v3768, 0.0
      %v4981 = vmax.f32 %v3771, 0.0
      %v4982 = vmax.f32 %v3776, 0.0
      %v4983 = vmax.f32 %v3779, 0.0
      %v4984 = vmax.f32 %v3784, 0.0
      %v4985 = vmax.f32 %v3787, 0.0
      %v4986 = vmax.f32 %v3792, 0.0
      %v4987 = vmax.f32 %v3795, 0.0
      %v4988 = vmax.f32 %v3800, 0.0
      %v4989 = vmax.f32 %v3803, 0.0
      %v4990 = vmax.f32 %v3808, 0.0
      %v4991 = vmax.f32 %v3811, 0.0
      %v4992 = vmax.f32 %v3816, 0.0
      %v4993 = vmax.f32 %v3819, 0.0
      %v4994 = vmax.f32 %v3824, 0.0
      %v4995 = vmax.f32 %v3827, 0.0
      %v4996 = vmax.f32 %v3832, 0.0
      %v4997 = vmax.f32 %v3835, 0.0
      %v4998 = vmax.f32 %v3840, 0.0
      %v4999 = vmax.f32 %v3843, 0.0
      %v5000 = vmax.f32 %v3848, 0.0
      %v5001 = vmax.f32 %v3851, 0.0
      %v5002 = vmax.f32 %v3856, 0.0
      %v5003 = vmax.f32 %v3859, 0.0
      %v5004 = vmax.f32 %v3864, 0.0
      %v5005 = vmax.f32 %v3867, 0.0
      %v5006 = vmax.f32 %v3872, 0.0
      %v5007 = vmax.f32 %v3875, 0.0
      %v5008 = vmax.f32 %v3880, 0.0
      %v5009 = vmax.f32 %v3883, 0.0
      %v5010 = vmax.f32 %v3888, 0.0
      %v5011 = vmax.f32 %v3891, 0.0
      %v5012 = vmax.f32 %v3896, 0.0
      %v5013 = vmax.f32 %v3899, 0.0
      %v5014 = vmax.f32 %v3904, 0.0
      %v5015 = vmax.f32 %v3907, 0.0
      %v5016 = vmax.f32 %v3912, 0.0
      %v5017 = vmax.f32 %v3915, 0.0
      %v5018 = vmax.f32 %v3920, 0.0
      %v5019 = vmax.f32 %v3923, 0.0
      %v5020 = vmax.f32 %v3928, 0.0
      %v5021 = vmax.f32 %v3931, 0.0
      %v5022 = vmax.f32 %v3936, 0.0
      %v5023 = vmax.f32 %v3939, 0.0
      %v5024 = vmax.f32 %v3944, 0.0
      %v5025 = vmax.f32 %v3947, 0.0
      %v5026 = vmax.f32 %v3952, 0.0
      %v5027 = vmax.f32 %v3955, 0.0
      %v5028 = vmax.f32 %v3960, 0.0
      %v5029 = vmax.f32 %v3963, 0.0
      %v5030 = vmax.f32 %v3968, 0.0
      %v5031 = vmax.f32 %v3971, 0.0
      %v5032 = vmax.f32 %v3976, 0.0
      %v5033 = vmax.f32 %v3979, 0.0
      %v5034 = vmax.f32 %v3984, 0.0
      %v5035 = vmax.f32 %v3987, 0.0
      %v5036 = vmax.f32 %v3992, 0.0
      %v5037 = vmax.f32 %v3995, 0.0
      %v5038 = vmax.f32 %v4000, 0.0
      %v5039 = vmax.f32 %v4003, 0.0
      %v5040 = vmax.f32 %v4008, 0.0
      %v5041 = vmax.f32 %v4011, 0.0
      %v5042 = vmax.f32 %v4016, 0.0
      %v5043 = vmax.f32 %v4019, 0.0
      %v5044 = vmax.f32 %v4024, 0.0
      %v5045 = vmax.f32 %v4027, 0.0
      %v5046 = vmax.f32 %v4032, 0.0
      %v5047 = vmax.f32 %v4035, 0.0
      %v5048 = vmax.f32 %v4040, 0.0
      %v5049 = vmax.f32 %v4043, 0.0
      %v5050 = vmax.f32 %v4048, 0.0
      %v5051 = vmax.f32 %v4051, 0.0
      %v5052 = vmax.f32 %v4056, 0.0
      %v5053 = vmax.f32 %v4059, 0.0
      %v5054 = vmax.f32 %v4064, 0.0
      %v5055 = vmax.f32 %v4067, 0.0
      %v5056 = vmax.f32 %v4072, 0.0
      %v5057 = vmax.f32 %v4075, 0.0
      %v5058 = vmax.f32 %v4080, 0.0
      %v5059 = vmax.f32 %v4083, 0.0
      %v5060 = vmax.f32 %v4088, 0.0
      %v5061 = vmax.f32 %v4091, 0.0
      %v5062 = vmax.f32 %v4096, 0.0
      %v5063 = vmax.f32 %v4099, 0.0
      %v5064 = vmax.f32 %v4104, 0.0
      %v5065 = vmax.f32 %v4107, 0.0
      %v5066 = vmax.f32 %v4112, 0.0
      %v5067 = vmax.f32 %v4115, 0.0
      %v5068 = vmax.f32 %v4120, 0.0
      %v5069 = vmax.f32 %v4123, 0.0
      %v5070 = vmax.f32 %v4128, 0.0
      %v5071 = vmax.f32 %v4131, 0.0
      %v5072 = vmax.f32 %v4136, 0.0
      %v5073 = vmax.f32 %v4139, 0.0
      %v5074 = vmax.f32 %v4144, 0.0
      %v5075 = vmax.f32 %v4147, 0.0
      %v5076 = vmax.f32 %v4152, 0.0
      %v5077 = vmax.f32 %v4155, 0.0
      %v5078 = vmax.f32 %v4160, 0.0
      %v5079 = vmax.f32 %v4163, 0.0
      %v5080 = vmax.f32 %v4168, 0.0
      %v5081 = vmax.f32 %v4171, 0.0
      %v5082 = vmax.f32 %v4176, 0.0
      %v5083 = vmax.f32 %v4179, 0.0
      %v5084 = vmax.f32 %v4184, 0.0
      %v5085 = vmax.f32 %v4187, 0.0
      %v5086 = vmax.f32 %v4192, 0.0
      %v5087 = vmax.f32 %v4195, 0.0
      %v5088 = vmax.f32 %v4200, 0.0
      %v5089 = vmax.f32 %v4203, 0.0
      %v5090 = vmax.f32 %v4208, 0.0
      %v5091 = vmax.f32 %v4211, 0.0
      %v5092 = vmax.f32 %v4216, 0.0
      %v5093 = vmax.f32 %v4219, 0.0
      %v5094 = vmax.f32 %v4224, 0.0
      %v5095 = vmax.f32 %v4227, 0.0
      %v5096 = vmax.f32 %v4232, 0.0
      %v5097 = vmax.f32 %v4235, 0.0
      %v5098 = vmax.f32 %v4240, 0.0
      %v5099 = vmax.f32 %v4243, 0.0
      %v5100 = vmax.f32 %v4248, 0.0
      %v5101 = vmax.f32 %v4251, 0.0
      %v5102 = vmax.f32 %v4256, 0.0
      %v5103 = vmax.f32 %v4259, 0.0
      %v5104 = vmax.f32 %v4264, 0.0
      %v5105 = vmax.f32 %v4267, 0.0
      %v5106 = vmax.f32 %v4272, 0.0
      %v5107 = vmax.f32 %v4275, 0.0
      %v5108 = vmax.f32 %v4280, 0.0
      %v5109 = vmax.f32 %v4283, 0.0
      %v5110 = vmax.f32 %v4288, 0.0
      %v5111 = vmax.f32 %v4291, 0.0
      %v5112 = vmax.f32 %v4296, 0.0
      %v5113 = vmax.f32 %v4299, 0.0
      %v5114 = vmax.f32 %v4304, 0.0
      %v5115 = vmax.f32 %v4307, 0.0
      %v5116 = vmax.f32 %v4312, 0.0
      %v5117 = vmax.f32 %v4315, 0.0
      %v5118 = vmax.f32 %v4320, 0.0
      %v5119 = vmax.f32 %v4323, 0.0
      %v5120 = vmax.f32 %v4328, 0.0
      %v5121 = vmax.f32 %v4331, 0.0
      %v5122 = vmax.f32 %v4336, 0.0
      %v5123 = vmax.f32 %v4339, 0.0
      %v5124 = vmax.f32 %v4344, 0.0
      %v5125 = vmax.f32 %v4347, 0.0
      %v5126 = vmax.f32 %v4352, 0.0
      %v5127 = vmax.f32 %v4355, 0.0
      %v5128 = vmax.f32 %v4360, 0.0
      %v5129 = vmax.f32 %v4363, 0.0
      %v5130 = vmax.f32 %v4368, 0.0
      %v5131 = vmax.f32 %v4371, 0.0
      %v5132 = vmax.f32 %v4376, 0.0
      %v5133 = vmax.f32 %v4379, 0.0
      %v5134 = vmax.f32 %v4384, 0.0
      %v5135 = vmax.f32 %v4387, 0.0
      %v5136 = vmax.f32 %v4392, 0.0
      %v5137 = vmax.f32 %v4395, 0.0
      %v5138 = vmax.f32 %v4400, 0.0
      %v5139 = vmax.f32 %v4403, 0.0
      %v5140 = vmax.f32 %v4408, 0.0
      %v5141 = vmax.f32 %v4411, 0.0
      %v5142 = vmax.f32 %v4416, 0.0
      %v5143 = vmax.f32 %v4419, 0.0
      %v5144 = vmax.f32 %v4424, 0.0
      %v5145 = vmax.f32 %v4427, 0.0
      %v5146 = vmax.f32 %v4432, 0.0
      %v5147 = vmax.f32 %v4435, 0.0
      %v5148 = vmax.f32 %v4440, 0.0
      %v5149 = vmax.f32 %v4443, 0.0
      %v5150 = vmax.f32 %v4448, 0.0
      %v5151 = vmax.f32 %v4451, 0.0
      %v5152 = vmax.f32 %v4456, 0.0
      %v5153 = vmax.f32 %v4459, 0.0
      %v5154 = vmax.f32 %v4464, 0.0
      %v5155 = vmax.f32 %v4467, 0.0
      %v5156 = vmax.f32 %v4472, 0.0
      %v5157 = vmax.f32 %v4475, 0.0
      %v5158 = vmax.f32 %v4480, 0.0
      %v5159 = vmax.f32 %v4483, 0.0
      %v5160 = vmax.f32 %v4488, 0.0
      %v5161 = vmax.f32 %v4491, 0.0
      %v5162 = vmax.f32 %v4496, 0.0
      %v5163 = vmax.f32 %v4499, 0.0
      %v5164 = vmax.f32 %v4504, 0.0
      %v5165 = vmax.f32 %v4507, 0.0
      %v5166 = vmax.f32 %v4512, 0.0
      %v5167 = vmax.f32 %v4515, 0.0
      %v5168 = vmax.f32 %v4520, 0.0
      %v5169 = vmax.f32 %v4523, 0.0
      %v5170 = vmax.f32 %v4528, 0.0
      %v5171 = vmax.f32 %v4531, 0.0
      %v5172 = vmax.f32 %v4536, 0.0
      %v5173 = vmax.f32 %v4539, 0.0
      %v5174 = vmax.f32 %v4544, 0.0
      %v5175 = vmax.f32 %v4547, 0.0
      %v5176 = vmax.f32 %v4552, 0.0
      %v5177 = vmax.f32 %v4555, 0.0
      %v5178 = vmax.f32 %v4560, 0.0
      %v5179 = vmax.f32 %v4563, 0.0
      %v5180 = vmax.f32 %v4568, 0.0
      %v5181 = vmax.f32 %v4571, 0.0
      %v5182 = vmax.f32 %v4576, 0.0
      %v5183 = vmax.f32 %v4579, 0.0
      %v5184 = vmax.f32 %v4584, 0.0
      %v5185 = vmax.f32 %v4587, 0.0
      %v5186 = vmax.f32 %v4592, 0.0
      %v5187 = vmax.f32 %v4595, 0.0
      %v5188 = vmax.f32 %v4600, 0.0
      %v5189 = vmax.f32 %v4603, 0.0
      %v5190 = vmax.f32 %v4608, 0.0
      %v5191 = vmax.f32 %v4611, 0.0
      %v5192 = vmax.f32 %v4616, 0.0
      %v5193 = vmax.f32 %v4619, 0.0
      %v5194 = vmax.f32 %v4624, 0.0
      %v5195 = vmax.f32 %v4627, 0.0
      %v5196 = vmax.f32 %v4632, 0.0
      %v5197 = vmax.f32 %v4635, 0.0
      %v5198 = vmax.f32 %v4640, 0.0
      %v5199 = vmax.f32 %v4643, 0.0
      %v5200 = vmax.f32 %v4648, 0.0
      %v5201 = vmax.f32 %v4651, 0.0
      %v5202 = vmax.f32 %v4656, 0.0
      %v5203 = vmax.f32 %v4659, 0.0
      %v5204 = vmax.f32 %v4664, 0.0
      %v5205 = vmax.f32 %v4667, 0.0
      %v5206 = vmax.f32 %v4672, 0.0
      %v5207 = vmax.f32 %v4675, 0.0
      %v5208 = vmax.f32 %v4680, 0.0
      %v5209 = vmax.f32 %v4683, 0.0
      %v5210 = vmax.f32 %v4688, 0.0
      %v5211 = vmax.f32 %v4691, 0.0
      %v5212 = vmax.f32 %v4696, 0.0
      %v5213 = vmax.f32 %v4699, 0.0
      %v5214 = vmax.f32 %v4704, 0.0
      %v5215 = vmax.f32 %v4707, 0.0
      %v5216 = vmax.f32 %v4712, 0.0
      %v5217 = vmax.f32 %v4715, 0.0
      %v5218 = vmax.f32 %v4720, 0.0
      %v5219 = vmax.f32 %v4723, 0.0
      %v5220 = vpack.c.bf16 %v4727, %v4726
      %v5221 = vpack.c.bf16 %v4729, %v4728
      %v5222 = vpack.c.bf16 %v4731, %v4730
      %v5223 = vpack.c.bf16 %v4733, %v4732
      %v5224 = vpack.c.bf16 %v4735, %v4734
      %v5225 = vpack.c.bf16 %v4737, %v4736
      %v5226 = vpack.c.bf16 %v4739, %v4738
      %v5227 = vpack.c.bf16 %v4741, %v4740
      %v5228 = vpack.c.bf16 %v4743, %v4742
      %v5229 = vpack.c.bf16 %v4745, %v4744
      %v5230 = vpack.c.bf16 %v4747, %v4746
      %v5231 = vpack.c.bf16 %v4749, %v4748
      %v5232 = vpack.c.bf16 %v4751, %v4750
      %v5233 = vpack.c.bf16 %v4753, %v4752
      %v5234 = vpack.c.bf16 %v4755, %v4754
      %v5235 = vpack.c.bf16 %v4757, %v4756
      %v5236 = vpack.c.bf16 %v4759, %v4758
      %v5237 = vpack.c.bf16 %v4761, %v4760
      %v5238 = vpack.c.bf16 %v4763, %v4762
      %v5239 = vpack.c.bf16 %v4765, %v4764
      %v5240 = vpack.c.bf16 %v4767, %v4766
      %v5241 = vpack.c.bf16 %v4769, %v4768
      %v5242 = vpack.c.bf16 %v4771, %v4770
      %v5243 = vpack.c.bf16 %v4773, %v4772
      %v5244 = vpack.c.bf16 %v4775, %v4774
      %v5245 = vpack.c.bf16 %v4777, %v4776
      %v5246 = vpack.c.bf16 %v4779, %v4778
      %v5247 = vpack.c.bf16 %v4781, %v4780
      %v5248 = vpack.c.bf16 %v4783, %v4782
      %v5249 = vpack.c.bf16 %v4785, %v4784
      %v5250 = vpack.c.bf16 %v4787, %v4786
      %v5251 = vpack.c.bf16 %v4789, %v4788
      %v5252 = vpack.c.bf16 %v4791, %v4790
      %v5253 = vpack.c.bf16 %v4793, %v4792
      %v5254 = vpack.c.bf16 %v4795, %v4794
      %v5255 = vpack.c.bf16 %v4797, %v4796
      %v5256 = vpack.c.bf16 %v4799, %v4798
      %v5257 = vpack.c.bf16 %v4801, %v4800
      %v5258 = vpack.c.bf16 %v4803, %v4802
      %v5259 = vpack.c.bf16 %v4805, %v4804
      %v5260 = vpack.c.bf16 %v4807, %v4806
      %v5261 = vpack.c.bf16 %v4809, %v4808
      %v5262 = vpack.c.bf16 %v4811, %v4810
      %v5263 = vpack.c.bf16 %v4813, %v4812
      %v5264 = vpack.c.bf16 %v4815, %v4814
      %v5265 = vpack.c.bf16 %v4817, %v4816
      %v5266 = vpack.c.bf16 %v4819, %v4818
      %v5267 = vpack.c.bf16 %v4821, %v4820
      %v5268 = vpack.c.bf16 %v4823, %v4822
      %v5269 = vpack.c.bf16 %v4825, %v4824
      %v5270 = vpack.c.bf16 %v4827, %v4826
      %v5271 = vpack.c.bf16 %v4829, %v4828
      %v5272 = vpack.c.bf16 %v4831, %v4830
      %v5273 = vpack.c.bf16 %v4833, %v4832
      %v5274 = vpack.c.bf16 %v4835, %v4834
      %v5275 = vpack.c.bf16 %v4837, %v4836
      %v5276 = vpack.c.bf16 %v4839, %v4838
      %v5277 = vpack.c.bf16 %v4841, %v4840
      %v5278 = vpack.c.bf16 %v4843, %v4842
      %v5279 = vpack.c.bf16 %v4845, %v4844
      %v5280 = vpack.c.bf16 %v4847, %v4846
      %v5281 = vpack.c.bf16 %v4849, %v4848
      %v5282 = vpack.c.bf16 %v4851, %v4850
      %v5283 = vpack.c.bf16 %v4853, %v4852
      %v5284 = vpack.c.bf16 %v4855, %v4854
      %v5285 = vpack.c.bf16 %v4857, %v4856
      %v5286 = vpack.c.bf16 %v4859, %v4858
      %v5287 = vpack.c.bf16 %v4861, %v4860
      %v5288 = vpack.c.bf16 %v4863, %v4862
      %v5289 = vpack.c.bf16 %v4865, %v4864
      %v5290 = vpack.c.bf16 %v4867, %v4866
      %v5291 = vpack.c.bf16 %v4869, %v4868
      %v5292 = vpack.c.bf16 %v4871, %v4870
      %v5293 = vpack.c.bf16 %v4873, %v4872
      %v5294 = vpack.c.bf16 %v4875, %v4874
      %v5295 = vpack.c.bf16 %v4877, %v4876
      %v5296 = vpack.c.bf16 %v4879, %v4878
      %v5297 = vpack.c.bf16 %v4881, %v4880
      %v5298 = vpack.c.bf16 %v4883, %v4882
      %v5299 = vpack.c.bf16 %v4885, %v4884
      %v5300 = vpack.c.bf16 %v4887, %v4886
      %v5301 = vpack.c.bf16 %v4889, %v4888
      %v5302 = vpack.c.bf16 %v4891, %v4890
      %v5303 = vpack.c.bf16 %v4893, %v4892
      %v5304 = vpack.c.bf16 %v4895, %v4894
      %v5305 = vpack.c.bf16 %v4897, %v4896
      %v5306 = vpack.c.bf16 %v4899, %v4898
      %v5307 = vpack.c.bf16 %v4901, %v4900
      %v5308 = vpack.c.bf16 %v4903, %v4902
      %v5309 = vpack.c.bf16 %v4905, %v4904
      %v5310 = vpack.c.bf16 %v4907, %v4906
      %v5311 = vpack.c.bf16 %v4909, %v4908
      %v5312 = vpack.c.bf16 %v4911, %v4910
      %v5313 = vpack.c.bf16 %v4913, %v4912
      %v5314 = vpack.c.bf16 %v4915, %v4914
      %v5315 = vpack.c.bf16 %v4917, %v4916
      %v5316 = vpack.c.bf16 %v4919, %v4918
      %v5317 = vpack.c.bf16 %v4921, %v4920
      %v5318 = vpack.c.bf16 %v4923, %v4922
      %v5319 = vpack.c.bf16 %v4925, %v4924
      %v5320 = vpack.c.bf16 %v4927, %v4926
      %v5321 = vpack.c.bf16 %v4929, %v4928
      %v5322 = vpack.c.bf16 %v4931, %v4930
      %v5323 = vpack.c.bf16 %v4933, %v4932
      %v5324 = vpack.c.bf16 %v4935, %v4934
      %v5325 = vpack.c.bf16 %v4937, %v4936
      %v5326 = vpack.c.bf16 %v4939, %v4938
      %v5327 = vpack.c.bf16 %v4941, %v4940
      %v5328 = vpack.c.bf16 %v4943, %v4942
      %v5329 = vpack.c.bf16 %v4945, %v4944
      %v5330 = vpack.c.bf16 %v4947, %v4946
      %v5331 = vpack.c.bf16 %v4949, %v4948
      %v5332 = vpack.c.bf16 %v4951, %v4950
      %v5333 = vpack.c.bf16 %v4953, %v4952
      %v5334 = vpack.c.bf16 %v4955, %v4954
      %v5335 = vpack.c.bf16 %v4957, %v4956
      %v5336 = vpack.c.bf16 %v4959, %v4958
      %v5337 = vpack.c.bf16 %v4961, %v4960
      %v5338 = vpack.c.bf16 %v4963, %v4962
      %v5339 = vpack.c.bf16 %v4965, %v4964
      %v5340 = vpack.c.bf16 %v4967, %v4966
      %v5341 = vpack.c.bf16 %v4969, %v4968
      %v5342 = vpack.c.bf16 %v4971, %v4970
      %v5343 = vpack.c.bf16 %v4973, %v4972
      %v5344 = vpack.c.bf16 %v4975, %v4974
      %v5345 = vpack.c.bf16 %v4977, %v4976
      %v5346 = vpack.c.bf16 %v4979, %v4978
      %v5347 = vpack.c.bf16 %v4981, %v4980
      %v5348 = vpack.c.bf16 %v4983, %v4982
      %v5349 = vpack.c.bf16 %v4985, %v4984
      %v5350 = vpack.c.bf16 %v4987, %v4986
      %v5351 = vpack.c.bf16 %v4989, %v4988
      %v5352 = vpack.c.bf16 %v4991, %v4990
      %v5353 = vpack.c.bf16 %v4993, %v4992
      %v5354 = vpack.c.bf16 %v4995, %v4994
      %v5355 = vpack.c.bf16 %v4997, %v4996
      %v5356 = vpack.c.bf16 %v4999, %v4998
      %v5357 = vpack.c.bf16 %v5001, %v5000
      %v5358 = vpack.c.bf16 %v5003, %v5002
      %v5359 = vpack.c.bf16 %v5005, %v5004
      %v5360 = vpack.c.bf16 %v5007, %v5006
      %v5361 = vpack.c.bf16 %v5009, %v5008
      %v5362 = vpack.c.bf16 %v5011, %v5010
      %v5363 = vpack.c.bf16 %v5013, %v5012
      %v5364 = vpack.c.bf16 %v5015, %v5014
      %v5365 = vpack.c.bf16 %v5017, %v5016
      %v5366 = vpack.c.bf16 %v5019, %v5018
      %v5367 = vpack.c.bf16 %v5021, %v5020
      %v5368 = vpack.c.bf16 %v5023, %v5022
      %v5369 = vpack.c.bf16 %v5025, %v5024
      %v5370 = vpack.c.bf16 %v5027, %v5026
      %v5371 = vpack.c.bf16 %v5029, %v5028
      %v5372 = vpack.c.bf16 %v5031, %v5030
      %v5373 = vpack.c.bf16 %v5033, %v5032
      %v5374 = vpack.c.bf16 %v5035, %v5034
      %v5375 = vpack.c.bf16 %v5037, %v5036
      %v5376 = vpack.c.bf16 %v5039, %v5038
      %v5377 = vpack.c.bf16 %v5041, %v5040
      %v5378 = vpack.c.bf16 %v5043, %v5042
      %v5379 = vpack.c.bf16 %v5045, %v5044
      %v5380 = vpack.c.bf16 %v5047, %v5046
      %v5381 = vpack.c.bf16 %v5049, %v5048
      %v5382 = vpack.c.bf16 %v5051, %v5050
      %v5383 = vpack.c.bf16 %v5053, %v5052
      %v5384 = vpack.c.bf16 %v5055, %v5054
      %v5385 = vpack.c.bf16 %v5057, %v5056
      %v5386 = vpack.c.bf16 %v5059, %v5058
      %v5387 = vpack.c.bf16 %v5061, %v5060
      %v5388 = vpack.c.bf16 %v5063, %v5062
      %v5389 = vpack.c.bf16 %v5065, %v5064
      %v5390 = vpack.c.bf16 %v5067, %v5066
      %v5391 = vpack.c.bf16 %v5069, %v5068
      %v5392 = vpack.c.bf16 %v5071, %v5070
      %v5393 = vpack.c.bf16 %v5073, %v5072
      %v5394 = vpack.c.bf16 %v5075, %v5074
      %v5395 = vpack.c.bf16 %v5077, %v5076
      %v5396 = vpack.c.bf16 %v5079, %v5078
      %v5397 = vpack.c.bf16 %v5081, %v5080
      %v5398 = vpack.c.bf16 %v5083, %v5082
      %v5399 = vpack.c.bf16 %v5085, %v5084
      %v5400 = vpack.c.bf16 %v5087, %v5086
      %v5401 = vpack.c.bf16 %v5089, %v5088
      %v5402 = vpack.c.bf16 %v5091, %v5090
      %v5403 = vpack.c.bf16 %v5093, %v5092
      %v5404 = vpack.c.bf16 %v5095, %v5094
      %v5405 = vpack.c.bf16 %v5097, %v5096
      %v5406 = vpack.c.bf16 %v5099, %v5098
      %v5407 = vpack.c.bf16 %v5101, %v5100
      %v5408 = vpack.c.bf16 %v5103, %v5102
      %v5409 = vpack.c.bf16 %v5105, %v5104
      %v5410 = vpack.c.bf16 %v5107, %v5106
      %v5411 = vpack.c.bf16 %v5109, %v5108
      %v5412 = vpack.c.bf16 %v5111, %v5110
      %v5413 = vpack.c.bf16 %v5113, %v5112
      %v5414 = vpack.c.bf16 %v5115, %v5114
      %v5415 = vpack.c.bf16 %v5117, %v5116
      %v5416 = vpack.c.bf16 %v5119, %v5118
      %v5417 = vpack.c.bf16 %v5121, %v5120
      %v5418 = vpack.c.bf16 %v5123, %v5122
      %v5419 = vpack.c.bf16 %v5125, %v5124
      %v5420 = vpack.c.bf16 %v5127, %v5126
      %v5421 = vpack.c.bf16 %v5129, %v5128
      %v5422 = vpack.c.bf16 %v5131, %v5130
      %v5423 = vpack.c.bf16 %v5133, %v5132
      %v5424 = vpack.c.bf16 %v5135, %v5134
      %v5425 = vpack.c.bf16 %v5137, %v5136
      %v5426 = vpack.c.bf16 %v5139, %v5138
      %v5427 = vpack.c.bf16 %v5141, %v5140
      %v5428 = vpack.c.bf16 %v5143, %v5142
      %v5429 = vpack.c.bf16 %v5145, %v5144
      %v5430 = vpack.c.bf16 %v5147, %v5146
      %v5431 = vpack.c.bf16 %v5149, %v5148
      %v5432 = vpack.c.bf16 %v5151, %v5150
      %v5433 = vpack.c.bf16 %v5153, %v5152
      %v5434 = vpack.c.bf16 %v5155, %v5154
      %v5435 = vpack.c.bf16 %v5157, %v5156
      %v5436 = vpack.c.bf16 %v5159, %v5158
      %v5437 = vpack.c.bf16 %v5161, %v5160
      %v5438 = vpack.c.bf16 %v5163, %v5162
      %v5439 = vpack.c.bf16 %v5165, %v5164
      %v5440 = vpack.c.bf16 %v5167, %v5166
      %v5441 = vpack.c.bf16 %v5169, %v5168
      %v5442 = vpack.c.bf16 %v5171, %v5170
      %v5443 = vpack.c.bf16 %v5173, %v5172
      %v5444 = vpack.c.bf16 %v5175, %v5174
      %v5445 = vpack.c.bf16 %v5177, %v5176
      %v5446 = vpack.c.bf16 %v5179, %v5178
      %v5447 = vpack.c.bf16 %v5181, %v5180
      %v5448 = vpack.c.bf16 %v5183, %v5182
      %v5449 = vpack.c.bf16 %v5185, %v5184
      %v5450 = vpack.c.bf16 %v5187, %v5186
      %v5451 = vpack.c.bf16 %v5189, %v5188
      %v5452 = vpack.c.bf16 %v5191, %v5190
      %v5453 = vpack.c.bf16 %v5193, %v5192
      %v5454 = vpack.c.bf16 %v5195, %v5194
      %v5455 = vpack.c.bf16 %v5197, %v5196
      %v5456 = vpack.c.bf16 %v5199, %v5198
      %v5457 = vpack.c.bf16 %v5201, %v5200
      %v5458 = vpack.c.bf16 %v5203, %v5202
      %v5459 = vpack.c.bf16 %v5205, %v5204
      %v5460 = vpack.c.bf16 %v5207, %v5206
      %v5461 = vpack.c.bf16 %v5209, %v5208
      %v5462 = vpack.c.bf16 %v5211, %v5210
      %v5463 = vpack.c.bf16 %v5213, %v5212
      %v5464 = vpack.c.bf16 %v5215, %v5214
      %v5465 = vpack.c.bf16 %v5217, %v5216
      %v5466 = vpack.c.bf16 %v5219, %v5218
      %v5714 = vunpack.c.l.b16 %v5220
      %v5715 = vunpack.c.h.b16 %v5220
      %v5716 = vunpack.c.l.b16 %v5221
      %v5717 = vunpack.c.h.b16 %v5221
      %v5718 = vunpack.c.l.b16 %v5222
      %v5719 = vunpack.c.h.b16 %v5222
      %v5720 = vunpack.c.l.b16 %v5223
      %v5721 = vunpack.c.h.b16 %v5223
      %v5722 = vunpack.c.l.b16 %v5224
      %v5723 = vunpack.c.h.b16 %v5224
      %v5724 = vunpack.c.l.b16 %v5225
      %v5725 = vunpack.c.h.b16 %v5225
      %v5726 = vunpack.c.l.b16 %v5226
      %v5727 = vunpack.c.h.b16 %v5226
      %v5728 = vunpack.c.l.b16 %v5227
      %v5729 = vunpack.c.h.b16 %v5227
      %v5730 = vunpack.c.l.b16 %v5228
      %v5731 = vunpack.c.h.b16 %v5228
      %v5732 = vunpack.c.l.b16 %v5229
      %v5733 = vunpack.c.h.b16 %v5229
      %v5734 = vunpack.c.l.b16 %v5230
      %v5735 = vunpack.c.h.b16 %v5230
      %v5736 = vunpack.c.l.b16 %v5231
      %v5737 = vunpack.c.h.b16 %v5231
      %v5738 = vunpack.c.l.b16 %v5232
      %v5739 = vunpack.c.h.b16 %v5232
      %v5740 = vunpack.c.l.b16 %v5233
      %v5741 = vunpack.c.h.b16 %v5233
      %v5742 = vunpack.c.l.b16 %v5234
      %v5743 = vunpack.c.h.b16 %v5234
      %v5744 = vunpack.c.l.b16 %v5235
      %v5745 = vunpack.c.h.b16 %v5235
      %v5746 = vunpack.c.l.b16 %v5236
      %v5747 = vunpack.c.h.b16 %v5236
      %v5748 = vunpack.c.l.b16 %v5237
      %v5749 = vunpack.c.h.b16 %v5237
      %v5750 = vunpack.c.l.b16 %v5238
      %v5751 = vunpack.c.h.b16 %v5238
      %v5752 = vunpack.c.l.b16 %v5239
      %v5753 = vunpack.c.h.b16 %v5239
      %v5754 = vunpack.c.l.b16 %v5240
      %v5755 = vunpack.c.h.b16 %v5240
      %v5756 = vunpack.c.l.b16 %v5241
      %v5757 = vunpack.c.h.b16 %v5241
      %v5758 = vunpack.c.l.b16 %v5242
      %v5759 = vunpack.c.h.b16 %v5242
      %v5760 = vunpack.c.l.b16 %v5243
      %v5761 = vunpack.c.h.b16 %v5243
      %v5762 = vunpack.c.l.b16 %v5244
      %v5763 = vunpack.c.h.b16 %v5244
      %v5764 = vunpack.c.l.b16 %v5245
      %v5765 = vunpack.c.h.b16 %v5245
      %v5766 = vunpack.c.l.b16 %v5246
      %v5767 = vunpack.c.h.b16 %v5246
      %v5768 = vunpack.c.l.b16 %v5247
      %v5769 = vunpack.c.h.b16 %v5247
      %v5770 = vunpack.c.l.b16 %v5248
      %v5771 = vunpack.c.h.b16 %v5248
      %v5772 = vunpack.c.l.b16 %v5249
      %v5773 = vunpack.c.h.b16 %v5249
      %v5774 = vunpack.c.l.b16 %v5250
      %v5775 = vunpack.c.h.b16 %v5250
      %v5776 = vunpack.c.l.b16 %v5251
      %v5777 = vunpack.c.h.b16 %v5251
      %v5778 = vunpack.c.l.b16 %v5252
      %v5779 = vunpack.c.h.b16 %v5252
      %v5780 = vunpack.c.l.b16 %v5253
      %v5781 = vunpack.c.h.b16 %v5253
      %v5782 = vunpack.c.l.b16 %v5254
      %v5783 = vunpack.c.h.b16 %v5254
      %v5784 = vunpack.c.l.b16 %v5255
      %v5785 = vunpack.c.h.b16 %v5255
      %v5786 = vunpack.c.l.b16 %v5256
      %v5787 = vunpack.c.h.b16 %v5256
      %v5788 = vunpack.c.l.b16 %v5257
      %v5789 = vunpack.c.h.b16 %v5257
      %v5790 = vunpack.c.l.b16 %v5258
      %v5791 = vunpack.c.h.b16 %v5258
      %v5792 = vunpack.c.l.b16 %v5259
      %v5793 = vunpack.c.h.b16 %v5259
      %v5794 = vunpack.c.l.b16 %v5260
      %v5795 = vunpack.c.h.b16 %v5260
      %v5796 = vunpack.c.l.b16 %v5261
      %v5797 = vunpack.c.h.b16 %v5261
      %v5798 = vunpack.c.l.b16 %v5262
      %v5799 = vunpack.c.h.b16 %v5262
      %v5800 = vunpack.c.l.b16 %v5263
      %v5801 = vunpack.c.h.b16 %v5263
      %v5802 = vunpack.c.l.b16 %v5264
      %v5803 = vunpack.c.h.b16 %v5264
      %v5804 = vunpack.c.l.b16 %v5265
      %v5805 = vunpack.c.h.b16 %v5265
      %v5806 = vunpack.c.l.b16 %v5266
      %v5807 = vunpack.c.h.b16 %v5266
      %v5808 = vunpack.c.l.b16 %v5267
      %v5809 = vunpack.c.h.b16 %v5267
      %v5810 = vunpack.c.l.b16 %v5268
      %v5811 = vunpack.c.h.b16 %v5268
      %v5812 = vunpack.c.l.b16 %v5269
      %v5813 = vunpack.c.h.b16 %v5269
      %v5814 = vunpack.c.l.b16 %v5270
      %v5815 = vunpack.c.h.b16 %v5270
      %v5816 = vunpack.c.l.b16 %v5271
      %v5817 = vunpack.c.h.b16 %v5271
      %v5818 = vunpack.c.l.b16 %v5272
      %v5819 = vunpack.c.h.b16 %v5272
      %v5820 = vunpack.c.l.b16 %v5273
      %v5821 = vunpack.c.h.b16 %v5273
      %v5822 = vunpack.c.l.b16 %v5274
      %v5823 = vunpack.c.h.b16 %v5274
      %v5824 = vunpack.c.l.b16 %v5275
      %v5825 = vunpack.c.h.b16 %v5275
      %v5826 = vunpack.c.l.b16 %v5276
      %v5827 = vunpack.c.h.b16 %v5276
      %v5828 = vunpack.c.l.b16 %v5277
      %v5829 = vunpack.c.h.b16 %v5277
      %v5830 = vunpack.c.l.b16 %v5278
      %v5831 = vunpack.c.h.b16 %v5278
      %v5832 = vunpack.c.l.b16 %v5279
      %v5833 = vunpack.c.h.b16 %v5279
      %v5834 = vunpack.c.l.b16 %v5280
      %v5835 = vunpack.c.h.b16 %v5280
      %v5836 = vunpack.c.l.b16 %v5281
      %v5837 = vunpack.c.h.b16 %v5281
      %v5838 = vunpack.c.l.b16 %v5282
      %v5839 = vunpack.c.h.b16 %v5282
      %v5840 = vunpack.c.l.b16 %v5283
      %v5841 = vunpack.c.h.b16 %v5283
      %v5842 = vunpack.c.l.b16 %v5284
      %v5843 = vunpack.c.h.b16 %v5284
      %v5844 = vunpack.c.l.b16 %v5285
      %v5845 = vunpack.c.h.b16 %v5285
      %v5846 = vunpack.c.l.b16 %v5286
      %v5847 = vunpack.c.h.b16 %v5286
      %v5848 = vunpack.c.l.b16 %v5287
      %v5849 = vunpack.c.h.b16 %v5287
      %v5850 = vunpack.c.l.b16 %v5288
      %v5851 = vunpack.c.h.b16 %v5288
      %v5852 = vunpack.c.l.b16 %v5289
      %v5853 = vunpack.c.h.b16 %v5289
      %v5854 = vunpack.c.l.b16 %v5290
      %v5855 = vunpack.c.h.b16 %v5290
      %v5856 = vunpack.c.l.b16 %v5291
      %v5857 = vunpack.c.h.b16 %v5291
      %v5858 = vunpack.c.l.b16 %v5292
      %v5859 = vunpack.c.h.b16 %v5292
      %v5860 = vunpack.c.l.b16 %v5293
      %v5861 = vunpack.c.h.b16 %v5293
      %v5862 = vunpack.c.l.b16 %v5294
      %v5863 = vunpack.c.h.b16 %v5294
      %v5864 = vunpack.c.l.b16 %v5295
      %v5865 = vunpack.c.h.b16 %v5295
      %v5866 = vunpack.c.l.b16 %v5296
      %v5867 = vunpack.c.h.b16 %v5296
      %v5868 = vunpack.c.l.b16 %v5297
      %v5869 = vunpack.c.h.b16 %v5297
      %v5870 = vunpack.c.l.b16 %v5298
      %v5871 = vunpack.c.h.b16 %v5298
      %v5872 = vunpack.c.l.b16 %v5299
      %v5873 = vunpack.c.h.b16 %v5299
      %v5874 = vunpack.c.l.b16 %v5300
      %v5875 = vunpack.c.h.b16 %v5300
      %v5876 = vunpack.c.l.b16 %v5301
      %v5877 = vunpack.c.h.b16 %v5301
      %v5878 = vunpack.c.l.b16 %v5302
      %v5879 = vunpack.c.h.b16 %v5302
      %v5880 = vunpack.c.l.b16 %v5303
      %v5881 = vunpack.c.h.b16 %v5303
      %v5882 = vunpack.c.l.b16 %v5304
      %v5883 = vunpack.c.h.b16 %v5304
      %v5884 = vunpack.c.l.b16 %v5305
      %v5885 = vunpack.c.h.b16 %v5305
      %v5886 = vunpack.c.l.b16 %v5306
      %v5887 = vunpack.c.h.b16 %v5306
      %v5888 = vunpack.c.l.b16 %v5307
      %v5889 = vunpack.c.h.b16 %v5307
      %v5890 = vunpack.c.l.b16 %v5308
      %v5891 = vunpack.c.h.b16 %v5308
      %v5892 = vunpack.c.l.b16 %v5309
      %v5893 = vunpack.c.h.b16 %v5309
      %v5894 = vunpack.c.l.b16 %v5310
      %v5895 = vunpack.c.h.b16 %v5310
      %v5896 = vunpack.c.l.b16 %v5311
      %v5897 = vunpack.c.h.b16 %v5311
      %v5898 = vunpack.c.l.b16 %v5312
      %v5899 = vunpack.c.h.b16 %v5312
      %v5900 = vunpack.c.l.b16 %v5313
      %v5901 = vunpack.c.h.b16 %v5313
      %v5902 = vunpack.c.l.b16 %v5314
      %v5903 = vunpack.c.h.b16 %v5314
      %v5904 = vunpack.c.l.b16 %v5315
      %v5905 = vunpack.c.h.b16 %v5315
      %v5906 = vunpack.c.l.b16 %v5316
      %v5907 = vunpack.c.h.b16 %v5316
      %v5908 = vunpack.c.l.b16 %v5317
      %v5909 = vunpack.c.h.b16 %v5317
      %v5910 = vunpack.c.l.b16 %v5318
      %v5911 = vunpack.c.h.b16 %v5318
      %v5912 = vunpack.c.l.b16 %v5319
      %v5913 = vunpack.c.h.b16 %v5319
      %v5914 = vunpack.c.l.b16 %v5320
      %v5915 = vunpack.c.h.b16 %v5320
      %v5916 = vunpack.c.l.b16 %v5321
      %v5917 = vunpack.c.h.b16 %v5321
      %v5918 = vunpack.c.l.b16 %v5322
      %v5919 = vunpack.c.h.b16 %v5322
      %v5920 = vunpack.c.l.b16 %v5323
      %v5921 = vunpack.c.h.b16 %v5323
      %v5922 = vunpack.c.l.b16 %v5324
      %v5923 = vunpack.c.h.b16 %v5324
      %v5924 = vunpack.c.l.b16 %v5325
      %v5925 = vunpack.c.h.b16 %v5325
      %v5926 = vunpack.c.l.b16 %v5326
      %v5927 = vunpack.c.h.b16 %v5326
      %v5928 = vunpack.c.l.b16 %v5327
      %v5929 = vunpack.c.h.b16 %v5327
      %v5930 = vunpack.c.l.b16 %v5328
      %v5931 = vunpack.c.h.b16 %v5328
      %v5932 = vunpack.c.l.b16 %v5329
      %v5933 = vunpack.c.h.b16 %v5329
      %v5934 = vunpack.c.l.b16 %v5330
      %v5935 = vunpack.c.h.b16 %v5330
      %v5936 = vunpack.c.l.b16 %v5331
      %v5937 = vunpack.c.h.b16 %v5331
      %v5938 = vunpack.c.l.b16 %v5332
      %v5939 = vunpack.c.h.b16 %v5332
      %v5940 = vunpack.c.l.b16 %v5333
      %v5941 = vunpack.c.h.b16 %v5333
      %v5942 = vunpack.c.l.b16 %v5334
      %v5943 = vunpack.c.h.b16 %v5334
      %v5944 = vunpack.c.l.b16 %v5335
      %v5945 = vunpack.c.h.b16 %v5335
      %v5946 = vunpack.c.l.b16 %v5336
      %v5947 = vunpack.c.h.b16 %v5336
      %v5948 = vunpack.c.l.b16 %v5337
      %v5949 = vunpack.c.h.b16 %v5337
      %v5950 = vunpack.c.l.b16 %v5338
      %v5951 = vunpack.c.h.b16 %v5338
      %v5952 = vunpack.c.l.b16 %v5339
      %v5953 = vunpack.c.h.b16 %v5339
      %v5954 = vunpack.c.l.b16 %v5340
      %v5955 = vunpack.c.h.b16 %v5340
      %v5956 = vunpack.c.l.b16 %v5341
      %v5957 = vunpack.c.h.b16 %v5341
      %v5958 = vunpack.c.l.b16 %v5342
      %v5959 = vunpack.c.h.b16 %v5342
      %v5960 = vunpack.c.l.b16 %v5343
      %v5961 = vunpack.c.h.b16 %v5343
      %v5962 = vunpack.c.l.b16 %v5344
      %v5963 = vunpack.c.h.b16 %v5344
      %v5964 = vunpack.c.l.b16 %v5345
      %v5965 = vunpack.c.h.b16 %v5345
      %v5966 = vunpack.c.l.b16 %v5346
      %v5967 = vunpack.c.h.b16 %v5346
      %v5968 = vunpack.c.l.b16 %v5347
      %v5969 = vunpack.c.h.b16 %v5347
      %v5970 = vunpack.c.l.b16 %v5348
      %v5971 = vunpack.c.h.b16 %v5348
      %v5972 = vunpack.c.l.b16 %v5349
      %v5973 = vunpack.c.h.b16 %v5349
      %v5974 = vunpack.c.l.b16 %v5350
      %v5975 = vunpack.c.h.b16 %v5350
      %v5976 = vunpack.c.l.b16 %v5351
      %v5977 = vunpack.c.h.b16 %v5351
      %v5978 = vunpack.c.l.b16 %v5352
      %v5979 = vunpack.c.h.b16 %v5352
      %v5980 = vunpack.c.l.b16 %v5353
      %v5981 = vunpack.c.h.b16 %v5353
      %v5982 = vunpack.c.l.b16 %v5354
      %v5983 = vunpack.c.h.b16 %v5354
      %v5984 = vunpack.c.l.b16 %v5355
      %v5985 = vunpack.c.h.b16 %v5355
      %v5986 = vunpack.c.l.b16 %v5356
      %v5987 = vunpack.c.h.b16 %v5356
      %v5988 = vunpack.c.l.b16 %v5357
      %v5989 = vunpack.c.h.b16 %v5357
      %v5990 = vunpack.c.l.b16 %v5358
      %v5991 = vunpack.c.h.b16 %v5358
      %v5992 = vunpack.c.l.b16 %v5359
      %v5993 = vunpack.c.h.b16 %v5359
      %v5994 = vunpack.c.l.b16 %v5360
      %v5995 = vunpack.c.h.b16 %v5360
      %v5996 = vunpack.c.l.b16 %v5361
      %v5997 = vunpack.c.h.b16 %v5361
      %v5998 = vunpack.c.l.b16 %v5362
      %v5999 = vunpack.c.h.b16 %v5362
      %v6000 = vunpack.c.l.b16 %v5363
      %v6001 = vunpack.c.h.b16 %v5363
      %v6002 = vunpack.c.l.b16 %v5364
      %v6003 = vunpack.c.h.b16 %v5364
      %v6004 = vunpack.c.l.b16 %v5365
      %v6005 = vunpack.c.h.b16 %v5365
      %v6006 = vunpack.c.l.b16 %v5366
      %v6007 = vunpack.c.h.b16 %v5366
      %v6008 = vunpack.c.l.b16 %v5367
      %v6009 = vunpack.c.h.b16 %v5367
      %v6010 = vunpack.c.l.b16 %v5368
      %v6011 = vunpack.c.h.b16 %v5368
      %v6012 = vunpack.c.l.b16 %v5369
      %v6013 = vunpack.c.h.b16 %v5369
      %v6014 = vunpack.c.l.b16 %v5370
      %v6015 = vunpack.c.h.b16 %v5370
      %v6016 = vunpack.c.l.b16 %v5371
      %v6017 = vunpack.c.h.b16 %v5371
      %v6018 = vunpack.c.l.b16 %v5372
      %v6019 = vunpack.c.h.b16 %v5372
      %v6020 = vunpack.c.l.b16 %v5373
      %v6021 = vunpack.c.h.b16 %v5373
      %v6022 = vunpack.c.l.b16 %v5374
      %v6023 = vunpack.c.h.b16 %v5374
      %v6024 = vunpack.c.l.b16 %v5375
      %v6025 = vunpack.c.h.b16 %v5375
      %v6026 = vunpack.c.l.b16 %v5376
      %v6027 = vunpack.c.h.b16 %v5376
      %v6028 = vunpack.c.l.b16 %v5377
      %v6029 = vunpack.c.h.b16 %v5377
      %v6030 = vunpack.c.l.b16 %v5378
      %v6031 = vunpack.c.h.b16 %v5378
      %v6032 = vunpack.c.l.b16 %v5379
      %v6033 = vunpack.c.h.b16 %v5379
      %v6034 = vunpack.c.l.b16 %v5380
      %v6035 = vunpack.c.h.b16 %v5380
      %v6036 = vunpack.c.l.b16 %v5381
      %v6037 = vunpack.c.h.b16 %v5381
      %v6038 = vunpack.c.l.b16 %v5382
      %v6039 = vunpack.c.h.b16 %v5382
      %v6040 = vunpack.c.l.b16 %v5383
      %v6041 = vunpack.c.h.b16 %v5383
      %v6042 = vunpack.c.l.b16 %v5384
      %v6043 = vunpack.c.h.b16 %v5384
      %v6044 = vunpack.c.l.b16 %v5385
      %v6045 = vunpack.c.h.b16 %v5385
      %v6046 = vunpack.c.l.b16 %v5386
      %v6047 = vunpack.c.h.b16 %v5386
      %v6048 = vunpack.c.l.b16 %v5387
      %v6049 = vunpack.c.h.b16 %v5387
      %v6050 = vunpack.c.l.b16 %v5388
      %v6051 = vunpack.c.h.b16 %v5388
      %v6052 = vunpack.c.l.b16 %v5389
      %v6053 = vunpack.c.h.b16 %v5389
      %v6054 = vunpack.c.l.b16 %v5390
      %v6055 = vunpack.c.h.b16 %v5390
      %v6056 = vunpack.c.l.b16 %v5391
      %v6057 = vunpack.c.h.b16 %v5391
      %v6058 = vunpack.c.l.b16 %v5392
      %v6059 = vunpack.c.h.b16 %v5392
      %v6060 = vunpack.c.l.b16 %v5393
      %v6061 = vunpack.c.h.b16 %v5393
      %v6062 = vunpack.c.l.b16 %v5394
      %v6063 = vunpack.c.h.b16 %v5394
      %v6064 = vunpack.c.l.b16 %v5395
      %v6065 = vunpack.c.h.b16 %v5395
      %v6066 = vunpack.c.l.b16 %v5396
      %v6067 = vunpack.c.h.b16 %v5396
      %v6068 = vunpack.c.l.b16 %v5397
      %v6069 = vunpack.c.h.b16 %v5397
      %v6070 = vunpack.c.l.b16 %v5398
      %v6071 = vunpack.c.h.b16 %v5398
      %v6072 = vunpack.c.l.b16 %v5399
      %v6073 = vunpack.c.h.b16 %v5399
      %v6074 = vunpack.c.l.b16 %v5400
      %v6075 = vunpack.c.h.b16 %v5400
      %v6076 = vunpack.c.l.b16 %v5401
      %v6077 = vunpack.c.h.b16 %v5401
      %v6078 = vunpack.c.l.b16 %v5402
      %v6079 = vunpack.c.h.b16 %v5402
      %v6080 = vunpack.c.l.b16 %v5403
      %v6081 = vunpack.c.h.b16 %v5403
      %v6082 = vunpack.c.l.b16 %v5404
      %v6083 = vunpack.c.h.b16 %v5404
      %v6084 = vunpack.c.l.b16 %v5405
      %v6085 = vunpack.c.h.b16 %v5405
      %v6086 = vunpack.c.l.b16 %v5406
      %v6087 = vunpack.c.h.b16 %v5406
      %v6088 = vunpack.c.l.b16 %v5407
      %v6089 = vunpack.c.h.b16 %v5407
      %v6090 = vunpack.c.l.b16 %v5408
      %v6091 = vunpack.c.h.b16 %v5408
      %v6092 = vunpack.c.l.b16 %v5409
      %v6093 = vunpack.c.h.b16 %v5409
      %v6094 = vunpack.c.l.b16 %v5410
      %v6095 = vunpack.c.h.b16 %v5410
      %v6096 = vunpack.c.l.b16 %v5411
      %v6097 = vunpack.c.h.b16 %v5411
      %v6098 = vunpack.c.l.b16 %v5412
      %v6099 = vunpack.c.h.b16 %v5412
      %v6100 = vunpack.c.l.b16 %v5413
      %v6101 = vunpack.c.h.b16 %v5413
      %v6102 = vunpack.c.l.b16 %v5414
      %v6103 = vunpack.c.h.b16 %v5414
      %v6104 = vunpack.c.l.b16 %v5415
      %v6105 = vunpack.c.h.b16 %v5415
      %v6106 = vunpack.c.l.b16 %v5416
      %v6107 = vunpack.c.h.b16 %v5416
      %v6108 = vunpack.c.l.b16 %v5417
      %v6109 = vunpack.c.h.b16 %v5417
      %v6110 = vunpack.c.l.b16 %v5418
      %v6111 = vunpack.c.h.b16 %v5418
      %v6112 = vunpack.c.l.b16 %v5419
      %v6113 = vunpack.c.h.b16 %v5419
      %v6114 = vunpack.c.l.b16 %v5420
      %v6115 = vunpack.c.h.b16 %v5420
      %v6116 = vunpack.c.l.b16 %v5421
      %v6117 = vunpack.c.h.b16 %v5421
      %v6118 = vunpack.c.l.b16 %v5422
      %v6119 = vunpack.c.h.b16 %v5422
      %v6120 = vunpack.c.l.b16 %v5423
      %v6121 = vunpack.c.h.b16 %v5423
      %v6122 = vunpack.c.l.b16 %v5424
      %v6123 = vunpack.c.h.b16 %v5424
      %v6124 = vunpack.c.l.b16 %v5425
      %v6125 = vunpack.c.h.b16 %v5425
      %v6126 = vunpack.c.l.b16 %v5426
      %v6127 = vunpack.c.h.b16 %v5426
      %v6128 = vunpack.c.l.b16 %v5427
      %v6129 = vunpack.c.h.b16 %v5427
      %v6130 = vunpack.c.l.b16 %v5428
      %v6131 = vunpack.c.h.b16 %v5428
      %v6132 = vunpack.c.l.b16 %v5429
      %v6133 = vunpack.c.h.b16 %v5429
      %v6134 = vunpack.c.l.b16 %v5430
      %v6135 = vunpack.c.h.b16 %v5430
      %v6136 = vunpack.c.l.b16 %v5431
      %v6137 = vunpack.c.h.b16 %v5431
      %v6138 = vunpack.c.l.b16 %v5432
      %v6139 = vunpack.c.h.b16 %v5432
      %v6140 = vunpack.c.l.b16 %v5433
      %v6141 = vunpack.c.h.b16 %v5433
      %v6142 = vunpack.c.l.b16 %v5434
      %v6143 = vunpack.c.h.b16 %v5434
      %v6144 = vunpack.c.l.b16 %v5435
      %v6145 = vunpack.c.h.b16 %v5435
      %v6146 = vunpack.c.l.b16 %v5436
      %v6147 = vunpack.c.h.b16 %v5436
      %v6148 = vunpack.c.l.b16 %v5437
      %v6149 = vunpack.c.h.b16 %v5437
      %v6150 = vunpack.c.l.b16 %v5438
      %v6151 = vunpack.c.h.b16 %v5438
      %v6152 = vunpack.c.l.b16 %v5439
      %v6153 = vunpack.c.h.b16 %v5439
      %v6154 = vunpack.c.l.b16 %v5440
      %v6155 = vunpack.c.h.b16 %v5440
      %v6156 = vunpack.c.l.b16 %v5441
      %v6157 = vunpack.c.h.b16 %v5441
      %v6158 = vunpack.c.l.b16 %v5442
      %v6159 = vunpack.c.h.b16 %v5442
      %v6160 = vunpack.c.l.b16 %v5443
      %v6161 = vunpack.c.h.b16 %v5443
      %v6162 = vunpack.c.l.b16 %v5444
      %v6163 = vunpack.c.h.b16 %v5444
      %v6164 = vunpack.c.l.b16 %v5445
      %v6165 = vunpack.c.h.b16 %v5445
      %v6166 = vunpack.c.l.b16 %v5446
      %v6167 = vunpack.c.h.b16 %v5446
      %v6168 = vunpack.c.l.b16 %v5447
      %v6169 = vunpack.c.h.b16 %v5447
      %v6170 = vunpack.c.l.b16 %v5448
      %v6171 = vunpack.c.h.b16 %v5448
      %v6172 = vunpack.c.l.b16 %v5449
      %v6173 = vunpack.c.h.b16 %v5449
      %v6174 = vunpack.c.l.b16 %v5450
      %v6175 = vunpack.c.h.b16 %v5450
      %v6176 = vunpack.c.l.b16 %v5451
      %v6177 = vunpack.c.h.b16 %v5451
      %v6178 = vunpack.c.l.b16 %v5452
      %v6179 = vunpack.c.h.b16 %v5452
      %v6180 = vunpack.c.l.b16 %v5453
      %v6181 = vunpack.c.h.b16 %v5453
      %v6182 = vunpack.c.l.b16 %v5454
      %v6183 = vunpack.c.h.b16 %v5454
      %v6184 = vunpack.c.l.b16 %v5455
      %v6185 = vunpack.c.h.b16 %v5455
      %v6186 = vunpack.c.l.b16 %v5456
      %v6187 = vunpack.c.h.b16 %v5456
      %v6188 = vunpack.c.l.b16 %v5457
      %v6189 = vunpack.c.h.b16 %v5457
      %v6190 = vunpack.c.l.b16 %v5458
      %v6191 = vunpack.c.h.b16 %v5458
      %v6192 = vunpack.c.l.b16 %v5459
      %v6193 = vunpack.c.h.b16 %v5459
      %v6194 = vunpack.c.l.b16 %v5460
      %v6195 = vunpack.c.h.b16 %v5460
      %v6196 = vunpack.c.l.b16 %v5461
      %v6197 = vunpack.c.h.b16 %v5461
      %v6198 = vunpack.c.l.b16 %v5462
      %v6199 = vunpack.c.h.b16 %v5462
      %v6200 = vunpack.c.l.b16 %v5463
      %v6201 = vunpack.c.h.b16 %v5463
      %v6202 = vunpack.c.l.b16 %v5464
      %v6203 = vunpack.c.h.b16 %v5464
      %v6204 = vunpack.c.l.b16 %v5465
      %v6205 = vunpack.c.h.b16 %v5465
      %v6206 = vunpack.c.l.b16 %v5466
      %v6207 = vunpack.c.h.b16 %v5466
      %v6208 = vpack.c.b16 %v5714, %v5714
      %v6209 = vpack.c.b16 %v5715, %v5715
      %v6210 = vpack.c.b16 %v5716, %v5716
      %v6211 = vpack.c.b16 %v5717, %v5717
      %v6212 = vpack.c.b16 %v5718, %v5718
      %v6213 = vpack.c.b16 %v5719, %v5719
      %v6214 = vpack.c.b16 %v5720, %v5720
      %v6215 = vpack.c.b16 %v5721, %v5721
      %v6216 = vpack.c.b16 %v5722, %v5722
      %v6217 = vpack.c.b16 %v5723, %v5723
      %v6218 = vpack.c.b16 %v5724, %v5724
      %v6219 = vpack.c.b16 %v5725, %v5725
      %v6220 = vpack.c.b16 %v5726, %v5726
      %v6221 = vpack.c.b16 %v5727, %v5727
      %v6222 = vpack.c.b16 %v5728, %v5728
      %v6223 = vpack.c.b16 %v5729, %v5729
      %v6224 = vpack.c.b16 %v5730, %v5730
      %v6225 = vpack.c.b16 %v5731, %v5731
      %v6226 = vpack.c.b16 %v5732, %v5732
      %v6227 = vpack.c.b16 %v5733, %v5733
      %v6228 = vpack.c.b16 %v5734, %v5734
      %v6229 = vpack.c.b16 %v5735, %v5735
      %v6230 = vpack.c.b16 %v5736, %v5736
      %v6231 = vpack.c.b16 %v5737, %v5737
      %v6232 = vpack.c.b16 %v5738, %v5738
      %v6233 = vpack.c.b16 %v5739, %v5739
      %v6234 = vpack.c.b16 %v5740, %v5740
      %v6235 = vpack.c.b16 %v5741, %v5741
      %v6236 = vpack.c.b16 %v5742, %v5742
      %v6237 = vpack.c.b16 %v5743, %v5743
      %v6238 = vpack.c.b16 %v5744, %v5744
      %v6239 = vpack.c.b16 %v5745, %v5745
      %v6240 = vpack.c.b16 %v5746, %v5746
      %v6241 = vpack.c.b16 %v5747, %v5747
      %v6242 = vpack.c.b16 %v5748, %v5748
      %v6243 = vpack.c.b16 %v5749, %v5749
      %v6244 = vpack.c.b16 %v5750, %v5750
      %v6245 = vpack.c.b16 %v5751, %v5751
      %v6246 = vpack.c.b16 %v5752, %v5752
      %v6247 = vpack.c.b16 %v5753, %v5753
      %v6248 = vpack.c.b16 %v5754, %v5754
      %v6249 = vpack.c.b16 %v5755, %v5755
      %v6250 = vpack.c.b16 %v5756, %v5756
      %v6251 = vpack.c.b16 %v5757, %v5757
      %v6252 = vpack.c.b16 %v5758, %v5758
      %v6253 = vpack.c.b16 %v5759, %v5759
      %v6254 = vpack.c.b16 %v5760, %v5760
      %v6255 = vpack.c.b16 %v5761, %v5761
      %v6256 = vpack.c.b16 %v5762, %v5762
      %v6257 = vpack.c.b16 %v5763, %v5763
      %v6258 = vpack.c.b16 %v5764, %v5764
      %v6259 = vpack.c.b16 %v5765, %v5765
      %v6260 = vpack.c.b16 %v5766, %v5766
      %v6261 = vpack.c.b16 %v5767, %v5767
      %v6262 = vpack.c.b16 %v5768, %v5768
      %v6263 = vpack.c.b16 %v5769, %v5769
      %v6264 = vpack.c.b16 %v5770, %v5770
      %v6265 = vpack.c.b16 %v5771, %v5771
      %v6266 = vpack.c.b16 %v5772, %v5772
      %v6267 = vpack.c.b16 %v5773, %v5773
      %v6268 = vpack.c.b16 %v5774, %v5774
      %v6269 = vpack.c.b16 %v5775, %v5775
      %v6270 = vpack.c.b16 %v5776, %v5776
      %v6271 = vpack.c.b16 %v5777, %v5777
      %v6272 = vpack.c.b16 %v5778, %v5778
      %v6273 = vpack.c.b16 %v5779, %v5779
      %v6274 = vpack.c.b16 %v5780, %v5780
      %v6275 = vpack.c.b16 %v5781, %v5781
      %v6276 = vpack.c.b16 %v5782, %v5782
      %v6277 = vpack.c.b16 %v5783, %v5783
      %v6278 = vpack.c.b16 %v5784, %v5784
      %v6279 = vpack.c.b16 %v5785, %v5785
      %v6280 = vpack.c.b16 %v5786, %v5786
      %v6281 = vpack.c.b16 %v5787, %v5787
      %v6282 = vpack.c.b16 %v5788, %v5788
      %v6283 = vpack.c.b16 %v5789, %v5789
      %v6284 = vpack.c.b16 %v5790, %v5790
      %v6285 = vpack.c.b16 %v5791, %v5791
      %v6286 = vpack.c.b16 %v5792, %v5792
      %v6287 = vpack.c.b16 %v5793, %v5793
      %v6288 = vpack.c.b16 %v5794, %v5794
      %v6289 = vpack.c.b16 %v5795, %v5795
      %v6290 = vpack.c.b16 %v5796, %v5796
      %v6291 = vpack.c.b16 %v5797, %v5797
      %v6292 = vpack.c.b16 %v5798, %v5798
      %v6293 = vpack.c.b16 %v5799, %v5799
      %v6294 = vpack.c.b16 %v5800, %v5800
      %v6295 = vpack.c.b16 %v5801, %v5801
      %v6296 = vpack.c.b16 %v5802, %v5802
      %v6297 = vpack.c.b16 %v5803, %v5803
      %v6298 = vpack.c.b16 %v5804, %v5804
      %v6299 = vpack.c.b16 %v5805, %v5805
      %v6300 = vpack.c.b16 %v5806, %v5806
      %v6301 = vpack.c.b16 %v5807, %v5807
      %v6302 = vpack.c.b16 %v5808, %v5808
      %v6303 = vpack.c.b16 %v5809, %v5809
      %v6304 = vpack.c.b16 %v5810, %v5810
      %v6305 = vpack.c.b16 %v5811, %v5811
      %v6306 = vpack.c.b16 %v5812, %v5812
      %v6307 = vpack.c.b16 %v5813, %v5813
      %v6308 = vpack.c.b16 %v5814, %v5814
      %v6309 = vpack.c.b16 %v5815, %v5815
      %v6310 = vpack.c.b16 %v5816, %v5816
      %v6311 = vpack.c.b16 %v5817, %v5817
      %v6312 = vpack.c.b16 %v5818, %v5818
      %v6313 = vpack.c.b16 %v5819, %v5819
      %v6314 = vpack.c.b16 %v5820, %v5820
      %v6315 = vpack.c.b16 %v5821, %v5821
      %v6316 = vpack.c.b16 %v5822, %v5822
      %v6317 = vpack.c.b16 %v5823, %v5823
      %v6318 = vpack.c.b16 %v5824, %v5824
      %v6319 = vpack.c.b16 %v5825, %v5825
      %v6320 = vpack.c.b16 %v5826, %v5826
      %v6321 = vpack.c.b16 %v5827, %v5827
      %v6322 = vpack.c.b16 %v5828, %v5828
      %v6323 = vpack.c.b16 %v5829, %v5829
      %v6324 = vpack.c.b16 %v5830, %v5830
      %v6325 = vpack.c.b16 %v5831, %v5831
      %v6326 = vpack.c.b16 %v5832, %v5832
      %v6327 = vpack.c.b16 %v5833, %v5833
      %v6328 = vpack.c.b16 %v5834, %v5834
      %v6329 = vpack.c.b16 %v5835, %v5835
      %v6330 = vpack.c.b16 %v5836, %v5836
      %v6331 = vpack.c.b16 %v5837, %v5837
      %v6332 = vpack.c.b16 %v5838, %v5838
      %v6333 = vpack.c.b16 %v5839, %v5839
      %v6334 = vpack.c.b16 %v5840, %v5840
      %v6335 = vpack.c.b16 %v5841, %v5841
      %v6336 = vpack.c.b16 %v5842, %v5842
      %v6337 = vpack.c.b16 %v5843, %v5843
      %v6338 = vpack.c.b16 %v5844, %v5844
      %v6339 = vpack.c.b16 %v5845, %v5845
      %v6340 = vpack.c.b16 %v5846, %v5846
      %v6341 = vpack.c.b16 %v5847, %v5847
      %v6342 = vpack.c.b16 %v5848, %v5848
      %v6343 = vpack.c.b16 %v5849, %v5849
      %v6344 = vpack.c.b16 %v5850, %v5850
      %v6345 = vpack.c.b16 %v5851, %v5851
      %v6346 = vpack.c.b16 %v5852, %v5852
      %v6347 = vpack.c.b16 %v5853, %v5853
      %v6348 = vpack.c.b16 %v5854, %v5854
      %v6349 = vpack.c.b16 %v5855, %v5855
      %v6350 = vpack.c.b16 %v5856, %v5856
      %v6351 = vpack.c.b16 %v5857, %v5857
      %v6352 = vpack.c.b16 %v5858, %v5858
      %v6353 = vpack.c.b16 %v5859, %v5859
      %v6354 = vpack.c.b16 %v5860, %v5860
      %v6355 = vpack.c.b16 %v5861, %v5861
      %v6356 = vpack.c.b16 %v5862, %v5862
      %v6357 = vpack.c.b16 %v5863, %v5863
      %v6358 = vpack.c.b16 %v5864, %v5864
      %v6359 = vpack.c.b16 %v5865, %v5865
      %v6360 = vpack.c.b16 %v5866, %v5866
      %v6361 = vpack.c.b16 %v5867, %v5867
      %v6362 = vpack.c.b16 %v5868, %v5868
      %v6363 = vpack.c.b16 %v5869, %v5869
      %v6364 = vpack.c.b16 %v5870, %v5870
      %v6365 = vpack.c.b16 %v5871, %v5871
      %v6366 = vpack.c.b16 %v5872, %v5872
      %v6367 = vpack.c.b16 %v5873, %v5873
      %v6368 = vpack.c.b16 %v5874, %v5874
      %v6369 = vpack.c.b16 %v5875, %v5875
      %v6370 = vpack.c.b16 %v5876, %v5876
      %v6371 = vpack.c.b16 %v5877, %v5877
      %v6372 = vpack.c.b16 %v5878, %v5878
      %v6373 = vpack.c.b16 %v5879, %v5879
      %v6374 = vpack.c.b16 %v5880, %v5880
      %v6375 = vpack.c.b16 %v5881, %v5881
      %v6376 = vpack.c.b16 %v5882, %v5882
      %v6377 = vpack.c.b16 %v5883, %v5883
      %v6378 = vpack.c.b16 %v5884, %v5884
      %v6379 = vpack.c.b16 %v5885, %v5885
      %v6380 = vpack.c.b16 %v5886, %v5886
      %v6381 = vpack.c.b16 %v5887, %v5887
      %v6382 = vpack.c.b16 %v5888, %v5888
      %v6383 = vpack.c.b16 %v5889, %v5889
      %v6384 = vpack.c.b16 %v5890, %v5890
      %v6385 = vpack.c.b16 %v5891, %v5891
      %v6386 = vpack.c.b16 %v5892, %v5892
      %v6387 = vpack.c.b16 %v5893, %v5893
      %v6388 = vpack.c.b16 %v5894, %v5894
      %v6389 = vpack.c.b16 %v5895, %v5895
      %v6390 = vpack.c.b16 %v5896, %v5896
      %v6391 = vpack.c.b16 %v5897, %v5897
      %v6392 = vpack.c.b16 %v5898, %v5898
      %v6393 = vpack.c.b16 %v5899, %v5899
      %v6394 = vpack.c.b16 %v5900, %v5900
      %v6395 = vpack.c.b16 %v5901, %v5901
      %v6396 = vpack.c.b16 %v5902, %v5902
      %v6397 = vpack.c.b16 %v5903, %v5903
      %v6398 = vpack.c.b16 %v5904, %v5904
      %v6399 = vpack.c.b16 %v5905, %v5905
      %v6400 = vpack.c.b16 %v5906, %v5906
      %v6401 = vpack.c.b16 %v5907, %v5907
      %v6402 = vpack.c.b16 %v5908, %v5908
      %v6403 = vpack.c.b16 %v5909, %v5909
      %v6404 = vpack.c.b16 %v5910, %v5910
      %v6405 = vpack.c.b16 %v5911, %v5911
      %v6406 = vpack.c.b16 %v5912, %v5912
      %v6407 = vpack.c.b16 %v5913, %v5913
      %v6408 = vpack.c.b16 %v5914, %v5914
      %v6409 = vpack.c.b16 %v5915, %v5915
      %v6410 = vpack.c.b16 %v5916, %v5916
      %v6411 = vpack.c.b16 %v5917, %v5917
      %v6412 = vpack.c.b16 %v5918, %v5918
      %v6413 = vpack.c.b16 %v5919, %v5919
      %v6414 = vpack.c.b16 %v5920, %v5920
      %v6415 = vpack.c.b16 %v5921, %v5921
      %v6416 = vpack.c.b16 %v5922, %v5922
      %v6417 = vpack.c.b16 %v5923, %v5923
      %v6418 = vpack.c.b16 %v5924, %v5924
      %v6419 = vpack.c.b16 %v5925, %v5925
      %v6420 = vpack.c.b16 %v5926, %v5926
      %v6421 = vpack.c.b16 %v5927, %v5927
      %v6422 = vpack.c.b16 %v5928, %v5928
      %v6423 = vpack.c.b16 %v5929, %v5929
      %v6424 = vpack.c.b16 %v5930, %v5930
      %v6425 = vpack.c.b16 %v5931, %v5931
      %v6426 = vpack.c.b16 %v5932, %v5932
      %v6427 = vpack.c.b16 %v5933, %v5933
      %v6428 = vpack.c.b16 %v5934, %v5934
      %v6429 = vpack.c.b16 %v5935, %v5935
      %v6430 = vpack.c.b16 %v5936, %v5936
      %v6431 = vpack.c.b16 %v5937, %v5937
      %v6432 = vpack.c.b16 %v5938, %v5938
      %v6433 = vpack.c.b16 %v5939, %v5939
      %v6434 = vpack.c.b16 %v5940, %v5940
      %v6435 = vpack.c.b16 %v5941, %v5941
      %v6436 = vpack.c.b16 %v5942, %v5942
      %v6437 = vpack.c.b16 %v5943, %v5943
      %v6438 = vpack.c.b16 %v5944, %v5944
      %v6439 = vpack.c.b16 %v5945, %v5945
      %v6440 = vpack.c.b16 %v5946, %v5946
      %v6441 = vpack.c.b16 %v5947, %v5947
      %v6442 = vpack.c.b16 %v5948, %v5948
      %v6443 = vpack.c.b16 %v5949, %v5949
      %v6444 = vpack.c.b16 %v5950, %v5950
      %v6445 = vpack.c.b16 %v5951, %v5951
      %v6446 = vpack.c.b16 %v5952, %v5952
      %v6447 = vpack.c.b16 %v5953, %v5953
      %v6448 = vpack.c.b16 %v5954, %v5954
      %v6449 = vpack.c.b16 %v5955, %v5955
      %v6450 = vpack.c.b16 %v5956, %v5956
      %v6451 = vpack.c.b16 %v5957, %v5957
      %v6452 = vpack.c.b16 %v5958, %v5958
      %v6453 = vpack.c.b16 %v5959, %v5959
      %v6454 = vpack.c.b16 %v5960, %v5960
      %v6455 = vpack.c.b16 %v5961, %v5961
      %v6456 = vpack.c.b16 %v5962, %v5962
      %v6457 = vpack.c.b16 %v5963, %v5963
      %v6458 = vpack.c.b16 %v5964, %v5964
      %v6459 = vpack.c.b16 %v5965, %v5965
      %v6460 = vpack.c.b16 %v5966, %v5966
      %v6461 = vpack.c.b16 %v5967, %v5967
      %v6462 = vpack.c.b16 %v5968, %v5968
      %v6463 = vpack.c.b16 %v5969, %v5969
      %v6464 = vpack.c.b16 %v5970, %v5970
      %v6465 = vpack.c.b16 %v5971, %v5971
      %v6466 = vpack.c.b16 %v5972, %v5972
      %v6467 = vpack.c.b16 %v5973, %v5973
      %v6468 = vpack.c.b16 %v5974, %v5974
      %v6469 = vpack.c.b16 %v5975, %v5975
      %v6470 = vpack.c.b16 %v5976, %v5976
      %v6471 = vpack.c.b16 %v5977, %v5977
      %v6472 = vpack.c.b16 %v5978, %v5978
      %v6473 = vpack.c.b16 %v5979, %v5979
      %v6474 = vpack.c.b16 %v5980, %v5980
      %v6475 = vpack.c.b16 %v5981, %v5981
      %v6476 = vpack.c.b16 %v5982, %v5982
      %v6477 = vpack.c.b16 %v5983, %v5983
      %v6478 = vpack.c.b16 %v5984, %v5984
      %v6479 = vpack.c.b16 %v5985, %v5985
      %v6480 = vpack.c.b16 %v5986, %v5986
      %v6481 = vpack.c.b16 %v5987, %v5987
      %v6482 = vpack.c.b16 %v5988, %v5988
      %v6483 = vpack.c.b16 %v5989, %v5989
      %v6484 = vpack.c.b16 %v5990, %v5990
      %v6485 = vpack.c.b16 %v5991, %v5991
      %v6486 = vpack.c.b16 %v5992, %v5992
      %v6487 = vpack.c.b16 %v5993, %v5993
      %v6488 = vpack.c.b16 %v5994, %v5994
      %v6489 = vpack.c.b16 %v5995, %v5995
      %v6490 = vpack.c.b16 %v5996, %v5996
      %v6491 = vpack.c.b16 %v5997, %v5997
      %v6492 = vpack.c.b16 %v5998, %v5998
      %v6493 = vpack.c.b16 %v5999, %v5999
      %v6494 = vpack.c.b16 %v6000, %v6000
      %v6495 = vpack.c.b16 %v6001, %v6001
      %v6496 = vpack.c.b16 %v6002, %v6002
      %v6497 = vpack.c.b16 %v6003, %v6003
      %v6498 = vpack.c.b16 %v6004, %v6004
      %v6499 = vpack.c.b16 %v6005, %v6005
      %v6500 = vpack.c.b16 %v6006, %v6006
      %v6501 = vpack.c.b16 %v6007, %v6007
      %v6502 = vpack.c.b16 %v6008, %v6008
      %v6503 = vpack.c.b16 %v6009, %v6009
      %v6504 = vpack.c.b16 %v6010, %v6010
      %v6505 = vpack.c.b16 %v6011, %v6011
      %v6506 = vpack.c.b16 %v6012, %v6012
      %v6507 = vpack.c.b16 %v6013, %v6013
      %v6508 = vpack.c.b16 %v6014, %v6014
      %v6509 = vpack.c.b16 %v6015, %v6015
      %v6510 = vpack.c.b16 %v6016, %v6016
      %v6511 = vpack.c.b16 %v6017, %v6017
      %v6512 = vpack.c.b16 %v6018, %v6018
      %v6513 = vpack.c.b16 %v6019, %v6019
      %v6514 = vpack.c.b16 %v6020, %v6020
      %v6515 = vpack.c.b16 %v6021, %v6021
      %v6516 = vpack.c.b16 %v6022, %v6022
      %v6517 = vpack.c.b16 %v6023, %v6023
      %v6518 = vpack.c.b16 %v6024, %v6024
      %v6519 = vpack.c.b16 %v6025, %v6025
      %v6520 = vpack.c.b16 %v6026, %v6026
      %v6521 = vpack.c.b16 %v6027, %v6027
      %v6522 = vpack.c.b16 %v6028, %v6028
      %v6523 = vpack.c.b16 %v6029, %v6029
      %v6524 = vpack.c.b16 %v6030, %v6030
      %v6525 = vpack.c.b16 %v6031, %v6031
      %v6526 = vpack.c.b16 %v6032, %v6032
      %v6527 = vpack.c.b16 %v6033, %v6033
      %v6528 = vpack.c.b16 %v6034, %v6034
      %v6529 = vpack.c.b16 %v6035, %v6035
      %v6530 = vpack.c.b16 %v6036, %v6036
      %v6531 = vpack.c.b16 %v6037, %v6037
      %v6532 = vpack.c.b16 %v6038, %v6038
      %v6533 = vpack.c.b16 %v6039, %v6039
      %v6534 = vpack.c.b16 %v6040, %v6040
      %v6535 = vpack.c.b16 %v6041, %v6041
      %v6536 = vpack.c.b16 %v6042, %v6042
      %v6537 = vpack.c.b16 %v6043, %v6043
      %v6538 = vpack.c.b16 %v6044, %v6044
      %v6539 = vpack.c.b16 %v6045, %v6045
      %v6540 = vpack.c.b16 %v6046, %v6046
      %v6541 = vpack.c.b16 %v6047, %v6047
      %v6542 = vpack.c.b16 %v6048, %v6048
      %v6543 = vpack.c.b16 %v6049, %v6049
      %v6544 = vpack.c.b16 %v6050, %v6050
      %v6545 = vpack.c.b16 %v6051, %v6051
      %v6546 = vpack.c.b16 %v6052, %v6052
      %v6547 = vpack.c.b16 %v6053, %v6053
      %v6548 = vpack.c.b16 %v6054, %v6054
      %v6549 = vpack.c.b16 %v6055, %v6055
      %v6550 = vpack.c.b16 %v6056, %v6056
      %v6551 = vpack.c.b16 %v6057, %v6057
      %v6552 = vpack.c.b16 %v6058, %v6058
      %v6553 = vpack.c.b16 %v6059, %v6059
      %v6554 = vpack.c.b16 %v6060, %v6060
      %v6555 = vpack.c.b16 %v6061, %v6061
      %v6556 = vpack.c.b16 %v6062, %v6062
      %v6557 = vpack.c.b16 %v6063, %v6063
      %v6558 = vpack.c.b16 %v6064, %v6064
      %v6559 = vpack.c.b16 %v6065, %v6065
      %v6560 = vpack.c.b16 %v6066, %v6066
      %v6561 = vpack.c.b16 %v6067, %v6067
      %v6562 = vpack.c.b16 %v6068, %v6068
      %v6563 = vpack.c.b16 %v6069, %v6069
      %v6564 = vpack.c.b16 %v6070, %v6070
      %v6565 = vpack.c.b16 %v6071, %v6071
      %v6566 = vpack.c.b16 %v6072, %v6072
      %v6567 = vpack.c.b16 %v6073, %v6073
      %v6568 = vpack.c.b16 %v6074, %v6074
      %v6569 = vpack.c.b16 %v6075, %v6075
      %v6570 = vpack.c.b16 %v6076, %v6076
      %v6571 = vpack.c.b16 %v6077, %v6077
      %v6572 = vpack.c.b16 %v6078, %v6078
      %v6573 = vpack.c.b16 %v6079, %v6079
      %v6574 = vpack.c.b16 %v6080, %v6080
      %v6575 = vpack.c.b16 %v6081, %v6081
      %v6576 = vpack.c.b16 %v6082, %v6082
      %v6577 = vpack.c.b16 %v6083, %v6083
      %v6578 = vpack.c.b16 %v6084, %v6084
      %v6579 = vpack.c.b16 %v6085, %v6085
      %v6580 = vpack.c.b16 %v6086, %v6086
      %v6581 = vpack.c.b16 %v6087, %v6087
      %v6582 = vpack.c.b16 %v6088, %v6088
      %v6583 = vpack.c.b16 %v6089, %v6089
      %v6584 = vpack.c.b16 %v6090, %v6090
      %v6585 = vpack.c.b16 %v6091, %v6091
      %v6586 = vpack.c.b16 %v6092, %v6092
      %v6587 = vpack.c.b16 %v6093, %v6093
      %v6588 = vpack.c.b16 %v6094, %v6094
      %v6589 = vpack.c.b16 %v6095, %v6095
      %v6590 = vpack.c.b16 %v6096, %v6096
      %v6591 = vpack.c.b16 %v6097, %v6097
      %v6592 = vpack.c.b16 %v6098, %v6098
      %v6593 = vpack.c.b16 %v6099, %v6099
      %v6594 = vpack.c.b16 %v6100, %v6100
      %v6595 = vpack.c.b16 %v6101, %v6101
      %v6596 = vpack.c.b16 %v6102, %v6102
      %v6597 = vpack.c.b16 %v6103, %v6103
      %v6598 = vpack.c.b16 %v6104, %v6104
      %v6599 = vpack.c.b16 %v6105, %v6105
      %v6600 = vpack.c.b16 %v6106, %v6106
      %v6601 = vpack.c.b16 %v6107, %v6107
      %v6602 = vpack.c.b16 %v6108, %v6108
      %v6603 = vpack.c.b16 %v6109, %v6109
      %v6604 = vpack.c.b16 %v6110, %v6110
      %v6605 = vpack.c.b16 %v6111, %v6111
      %v6606 = vpack.c.b16 %v6112, %v6112
      %v6607 = vpack.c.b16 %v6113, %v6113
      %v6608 = vpack.c.b16 %v6114, %v6114
      %v6609 = vpack.c.b16 %v6115, %v6115
      %v6610 = vpack.c.b16 %v6116, %v6116
      %v6611 = vpack.c.b16 %v6117, %v6117
      %v6612 = vpack.c.b16 %v6118, %v6118
      %v6613 = vpack.c.b16 %v6119, %v6119
      %v6614 = vpack.c.b16 %v6120, %v6120
      %v6615 = vpack.c.b16 %v6121, %v6121
      %v6616 = vpack.c.b16 %v6122, %v6122
      %v6617 = vpack.c.b16 %v6123, %v6123
      %v6618 = vpack.c.b16 %v6124, %v6124
      %v6619 = vpack.c.b16 %v6125, %v6125
      %v6620 = vpack.c.b16 %v6126, %v6126
      %v6621 = vpack.c.b16 %v6127, %v6127
      %v6622 = vpack.c.b16 %v6128, %v6128
      %v6623 = vpack.c.b16 %v6129, %v6129
      %v6624 = vpack.c.b16 %v6130, %v6130
      %v6625 = vpack.c.b16 %v6131, %v6131
      %v6626 = vpack.c.b16 %v6132, %v6132
      %v6627 = vpack.c.b16 %v6133, %v6133
      %v6628 = vpack.c.b16 %v6134, %v6134
      %v6629 = vpack.c.b16 %v6135, %v6135
      %v6630 = vpack.c.b16 %v6136, %v6136
      %v6631 = vpack.c.b16 %v6137, %v6137
      %v6632 = vpack.c.b16 %v6138, %v6138
      %v6633 = vpack.c.b16 %v6139, %v6139
      %v6634 = vpack.c.b16 %v6140, %v6140
      %v6635 = vpack.c.b16 %v6141, %v6141
      %v6636 = vpack.c.b16 %v6142, %v6142
      %v6637 = vpack.c.b16 %v6143, %v6143
      %v6638 = vpack.c.b16 %v6144, %v6144
      %v6639 = vpack.c.b16 %v6145, %v6145
      %v6640 = vpack.c.b16 %v6146, %v6146
      %v6641 = vpack.c.b16 %v6147, %v6147
      %v6642 = vpack.c.b16 %v6148, %v6148
      %v6643 = vpack.c.b16 %v6149, %v6149
      %v6644 = vpack.c.b16 %v6150, %v6150
      %v6645 = vpack.c.b16 %v6151, %v6151
      %v6646 = vpack.c.b16 %v6152, %v6152
      %v6647 = vpack.c.b16 %v6153, %v6153
      %v6648 = vpack.c.b16 %v6154, %v6154
      %v6649 = vpack.c.b16 %v6155, %v6155
      %v6650 = vpack.c.b16 %v6156, %v6156
      %v6651 = vpack.c.b16 %v6157, %v6157
      %v6652 = vpack.c.b16 %v6158, %v6158
      %v6653 = vpack.c.b16 %v6159, %v6159
      %v6654 = vpack.c.b16 %v6160, %v6160
      %v6655 = vpack.c.b16 %v6161, %v6161
      %v6656 = vpack.c.b16 %v6162, %v6162
      %v6657 = vpack.c.b16 %v6163, %v6163
      %v6658 = vpack.c.b16 %v6164, %v6164
      %v6659 = vpack.c.b16 %v6165, %v6165
      %v6660 = vpack.c.b16 %v6166, %v6166
      %v6661 = vpack.c.b16 %v6167, %v6167
      %v6662 = vpack.c.b16 %v6168, %v6168
      %v6663 = vpack.c.b16 %v6169, %v6169
      %v6664 = vpack.c.b16 %v6170, %v6170
      %v6665 = vpack.c.b16 %v6171, %v6171
      %v6666 = vpack.c.b16 %v6172, %v6172
      %v6667 = vpack.c.b16 %v6173, %v6173
      %v6668 = vpack.c.b16 %v6174, %v6174
      %v6669 = vpack.c.b16 %v6175, %v6175
      %v6670 = vpack.c.b16 %v6176, %v6176
      %v6671 = vpack.c.b16 %v6177, %v6177
      %v6672 = vpack.c.b16 %v6178, %v6178
      %v6673 = vpack.c.b16 %v6179, %v6179
      %v6674 = vpack.c.b16 %v6180, %v6180
      %v6675 = vpack.c.b16 %v6181, %v6181
      %v6676 = vpack.c.b16 %v6182, %v6182
      %v6677 = vpack.c.b16 %v6183, %v6183
      %v6678 = vpack.c.b16 %v6184, %v6184
      %v6679 = vpack.c.b16 %v6185, %v6185
      %v6680 = vpack.c.b16 %v6186, %v6186
      %v6681 = vpack.c.b16 %v6187, %v6187
      %v6682 = vpack.c.b16 %v6188, %v6188
      %v6683 = vpack.c.b16 %v6189, %v6189
      %v6684 = vpack.c.b16 %v6190, %v6190
      %v6685 = vpack.c.b16 %v6191, %v6191
      %v6686 = vpack.c.b16 %v6192, %v6192
      %v6687 = vpack.c.b16 %v6193, %v6193
      %v6688 = vpack.c.b16 %v6194, %v6194
      %v6689 = vpack.c.b16 %v6195, %v6195
      %v6690 = vpack.c.b16 %v6196, %v6196
      %v6691 = vpack.c.b16 %v6197, %v6197
      %v6692 = vpack.c.b16 %v6198, %v6198
      %v6693 = vpack.c.b16 %v6199, %v6199
      %v6694 = vpack.c.b16 %v6200, %v6200
      %v6695 = vpack.c.b16 %v6201, %v6201
      %v6696 = vpack.c.b16 %v6202, %v6202
      %v6697 = vpack.c.b16 %v6203, %v6203
      %v6698 = vpack.c.b16 %v6204, %v6204
      %v6699 = vpack.c.b16 %v6205, %v6205
      %v6700 = vpack.c.b16 %v6206, %v6206
      %v6701 = vpack.c.b16 %v6207, %v6207
      %vm7196 = vcmask 519168
      %7197 = vst.msk [vmem:[%s221] sm:$0xf] %vm7196, %v6208
      %7198 = vst.msk [vmem:[%s221 + $0x4] sm:$0xf] %vm7196, %v6209
      %7199 = vst.msk [vmem:[%s221 + $0x8] sm:$0xf] %vm7196, %v6210
      %7200 = vst.msk [vmem:[%s221 + $0xc] sm:$0xf] %vm7196, %v6211
      %7201 = vst.msk [vmem:[%s221 + $0x10] sm:$0xf] %vm7196, %v6212
      %7202 = vst.msk [vmem:[%s221 + $0x14] sm:$0xf] %vm7196, %v6213
      %7203 = vst.msk [vmem:[%s221 + $0x18] sm:$0xf] %vm7196, %v6214
      %7204 = vst.msk [vmem:[%s221 + $0x1c] sm:$0xf] %vm7196, %v6215
      %7205 = vst.msk [vmem:[%s221 + $0x20] sm:$0xf] %vm7196, %v6216
      %7206 = vst.msk [vmem:[%s221 + $0x24] sm:$0xf] %vm7196, %v6217
      %7207 = vst.msk [vmem:[%s221 + $0x28] sm:$0xf] %vm7196, %v6218
      %7208 = vst.msk [vmem:[%s221 + $0x2c] sm:$0xf] %vm7196, %v6219
      %7209 = vst.msk [vmem:[%s221 + $0x30] sm:$0xf] %vm7196, %v6220
      %7210 = vst.msk [vmem:[%s221 + $0x34] sm:$0xf] %vm7196, %v6221
      %7211 = vst.msk [vmem:[%s221 + $0x38] sm:$0xf] %vm7196, %v6222
      %7212 = vst.msk [vmem:[%s221 + $0x3c] sm:$0xf] %vm7196, %v6223
      %7213 = vst.msk [vmem:[%s221 + $0x40] sm:$0xf] %vm7196, %v6224
      %7214 = vst.msk [vmem:[%s221 + $0x44] sm:$0xf] %vm7196, %v6225
      %7215 = vst.msk [vmem:[%s221 + $0x48] sm:$0xf] %vm7196, %v6226
      %7216 = vst.msk [vmem:[%s221 + $0x4c] sm:$0xf] %vm7196, %v6227
      %7217 = vst.msk [vmem:[%s221 + $0x50] sm:$0xf] %vm7196, %v6228
      %7218 = vst.msk [vmem:[%s221 + $0x54] sm:$0xf] %vm7196, %v6229
      %7219 = vst.msk [vmem:[%s221 + $0x58] sm:$0xf] %vm7196, %v6230
      %7220 = vst.msk [vmem:[%s221 + $0x5c] sm:$0xf] %vm7196, %v6231
      %7221 = vst.msk [vmem:[%s221 + $0x60] sm:$0xf] %vm7196, %v6232
      %7222 = vst.msk [vmem:[%s221 + $0x64] sm:$0xf] %vm7196, %v6233
      %7223 = vst.msk [vmem:[%s221 + $0x68] sm:$0xf] %vm7196, %v6234
      %7224 = vst.msk [vmem:[%s221 + $0x6c] sm:$0xf] %vm7196, %v6235
      %7225 = vst.msk [vmem:[%s221 + $0x70] sm:$0xf] %vm7196, %v6236
      %7226 = vst.msk [vmem:[%s221 + $0x74] sm:$0xf] %vm7196, %v6237
      %7227 = vst.msk [vmem:[%s221 + $0x78] sm:$0xf] %vm7196, %v6238
      %7228 = vst.msk [vmem:[%s221 + $0x7c] sm:$0xf] %vm7196, %v6239
      %7229 = vst.msk [vmem:[%s221 + $0x80] sm:$0xf] %vm7196, %v6240
      %7230 = vst.msk [vmem:[%s221 + $0x84] sm:$0xf] %vm7196, %v6241
      %7231 = vst.msk [vmem:[%s221 + $0x88] sm:$0xf] %vm7196, %v6242
      %7232 = vst.msk [vmem:[%s221 + $0x8c] sm:$0xf] %vm7196, %v6243
      %7233 = vst.msk [vmem:[%s221 + $0x90] sm:$0xf] %vm7196, %v6244
      %7234 = vst.msk [vmem:[%s221 + $0x94] sm:$0xf] %vm7196, %v6245
      %7235 = vst.msk [vmem:[%s221 + $0x98] sm:$0xf] %vm7196, %v6246
      %7236 = vst.msk [vmem:[%s221 + $0x9c] sm:$0xf] %vm7196, %v6247
      %7237 = vst.msk [vmem:[%s221 + $0xa0] sm:$0xf] %vm7196, %v6248
      %7238 = vst.msk [vmem:[%s221 + $0xa4] sm:$0xf] %vm7196, %v6249
      %7239 = vst.msk [vmem:[%s221 + $0xa8] sm:$0xf] %vm7196, %v6250
      %7240 = vst.msk [vmem:[%s221 + $0xac] sm:$0xf] %vm7196, %v6251
      %7241 = vst.msk [vmem:[%s221 + $0xb0] sm:$0xf] %vm7196, %v6252
      %7242 = vst.msk [vmem:[%s221 + $0xb4] sm:$0xf] %vm7196, %v6253
      %7243 = vst.msk [vmem:[%s221 + $0xb8] sm:$0xf] %vm7196, %v6254
      %7244 = vst.msk [vmem:[%s221 + $0xbc] sm:$0xf] %vm7196, %v6255
      %7245 = vst.msk [vmem:[%s221 + $0xc0] sm:$0xf] %vm7196, %v6256
      %7246 = vst.msk [vmem:[%s221 + $0xc4] sm:$0xf] %vm7196, %v6257
      %7247 = vst.msk [vmem:[%s221 + $0xc8] sm:$0xf] %vm7196, %v6258
      %7248 = vst.msk [vmem:[%s221 + $0xcc] sm:$0xf] %vm7196, %v6259
      %7249 = vst.msk [vmem:[%s221 + $0xd0] sm:$0xf] %vm7196, %v6260
      %7250 = vst.msk [vmem:[%s221 + $0xd4] sm:$0xf] %vm7196, %v6261
      %7251 = vst.msk [vmem:[%s221 + $0xd8] sm:$0xf] %vm7196, %v6262
      %7252 = vst.msk [vmem:[%s221 + $0xdc] sm:$0xf] %vm7196, %v6263
      %7253 = vst.msk [vmem:[%s221 + $0xe0] sm:$0xf] %vm7196, %v6264
      %7254 = vst.msk [vmem:[%s221 + $0xe4] sm:$0xf] %vm7196, %v6265
      %7255 = vst.msk [vmem:[%s221 + $0xe8] sm:$0xf] %vm7196, %v6266
      %7256 = vst.msk [vmem:[%s221 + $0xec] sm:$0xf] %vm7196, %v6267
      %7257 = vst.msk [vmem:[%s221 + $0xf0] sm:$0xf] %vm7196, %v6268
      %7258 = vst.msk [vmem:[%s221 + $0xf4] sm:$0xf] %vm7196, %v6269
      %7259 = vst.msk [vmem:[%s221 + $0xf8] sm:$0xf] %vm7196, %v6270
      %7260 = vst.msk [vmem:[%s221 + $0xfc] sm:$0xf] %vm7196, %v6271
      %7261 = vst.msk [vmem:[%s221 + $0x100] sm:$0xf] %vm7196, %v6272
      %7262 = vst.msk [vmem:[%s221 + $0x104] sm:$0xf] %vm7196, %v6273
      %7263 = vst.msk [vmem:[%s221 + $0x108] sm:$0xf] %vm7196, %v6274
      %7264 = vst.msk [vmem:[%s221 + $0x10c] sm:$0xf] %vm7196, %v6275
      %7265 = vst.msk [vmem:[%s221 + $0x110] sm:$0xf] %vm7196, %v6276
      %7266 = vst.msk [vmem:[%s221 + $0x114] sm:$0xf] %vm7196, %v6277
      %7267 = vst.msk [vmem:[%s221 + $0x118] sm:$0xf] %vm7196, %v6278
      %7268 = vst.msk [vmem:[%s221 + $0x11c] sm:$0xf] %vm7196, %v6279
      %7269 = vst.msk [vmem:[%s221 + $0x120] sm:$0xf] %vm7196, %v6280
      %7270 = vst.msk [vmem:[%s221 + $0x124] sm:$0xf] %vm7196, %v6281
      %7271 = vst.msk [vmem:[%s221 + $0x128] sm:$0xf] %vm7196, %v6282
      %7272 = vst.msk [vmem:[%s221 + $0x12c] sm:$0xf] %vm7196, %v6283
      %7273 = vst.msk [vmem:[%s221 + $0x130] sm:$0xf] %vm7196, %v6284
      %7274 = vst.msk [vmem:[%s221 + $0x134] sm:$0xf] %vm7196, %v6285
      %7275 = vst.msk [vmem:[%s221 + $0x138] sm:$0xf] %vm7196, %v6286
      %7276 = vst.msk [vmem:[%s221 + $0x13c] sm:$0xf] %vm7196, %v6287
      %7277 = vst.msk [vmem:[%s221 + $0x140] sm:$0xf] %vm7196, %v6288
      %7278 = vst.msk [vmem:[%s221 + $0x144] sm:$0xf] %vm7196, %v6289
      %7279 = vst.msk [vmem:[%s221 + $0x148] sm:$0xf] %vm7196, %v6290
      %7280 = vst.msk [vmem:[%s221 + $0x14c] sm:$0xf] %vm7196, %v6291
      %7281 = vst.msk [vmem:[%s221 + $0x150] sm:$0xf] %vm7196, %v6292
      %7282 = vst.msk [vmem:[%s221 + $0x154] sm:$0xf] %vm7196, %v6293
      %7283 = vst.msk [vmem:[%s221 + $0x158] sm:$0xf] %vm7196, %v6294
      %7284 = vst.msk [vmem:[%s221 + $0x15c] sm:$0xf] %vm7196, %v6295
      %7285 = vst.msk [vmem:[%s221 + $0x160] sm:$0xf] %vm7196, %v6296
      %7286 = vst.msk [vmem:[%s221 + $0x164] sm:$0xf] %vm7196, %v6297
      %7287 = vst.msk [vmem:[%s221 + $0x168] sm:$0xf] %vm7196, %v6298
      %7288 = vst.msk [vmem:[%s221 + $0x16c] sm:$0xf] %vm7196, %v6299
      %7289 = vst.msk [vmem:[%s221 + $0x170] sm:$0xf] %vm7196, %v6300
      %7290 = vst.msk [vmem:[%s221 + $0x174] sm:$0xf] %vm7196, %v6301
      %7291 = vst.msk [vmem:[%s221 + $0x178] sm:$0xf] %vm7196, %v6302
      %7292 = vst.msk [vmem:[%s221 + $0x17c] sm:$0xf] %vm7196, %v6303
      %7293 = vst.msk [vmem:[%s221 + $0x180] sm:$0xf] %vm7196, %v6304
      %7294 = vst.msk [vmem:[%s221 + $0x184] sm:$0xf] %vm7196, %v6305
      %7295 = vst.msk [vmem:[%s221 + $0x188] sm:$0xf] %vm7196, %v6306
      %7296 = vst.msk [vmem:[%s221 + $0x18c] sm:$0xf] %vm7196, %v6307
      %7297 = vst.msk [vmem:[%s221 + $0x190] sm:$0xf] %vm7196, %v6308
      %7298 = vst.msk [vmem:[%s221 + $0x194] sm:$0xf] %vm7196, %v6309
      %7299 = vst.msk [vmem:[%s221 + $0x198] sm:$0xf] %vm7196, %v6310
      %7300 = vst.msk [vmem:[%s221 + $0x19c] sm:$0xf] %vm7196, %v6311
      %7301 = vst.msk [vmem:[%s221 + $0x1a0] sm:$0xf] %vm7196, %v6312
      %7302 = vst.msk [vmem:[%s221 + $0x1a4] sm:$0xf] %vm7196, %v6313
      %7303 = vst.msk [vmem:[%s221 + $0x1a8] sm:$0xf] %vm7196, %v6314
      %7304 = vst.msk [vmem:[%s221 + $0x1ac] sm:$0xf] %vm7196, %v6315
      %7305 = vst.msk [vmem:[%s221 + $0x1b0] sm:$0xf] %vm7196, %v6316
      %7306 = vst.msk [vmem:[%s221 + $0x1b4] sm:$0xf] %vm7196, %v6317
      %7307 = vst.msk [vmem:[%s221 + $0x1b8] sm:$0xf] %vm7196, %v6318
      %7308 = vst.msk [vmem:[%s221 + $0x1bc] sm:$0xf] %vm7196, %v6319
      %7309 = vst.msk [vmem:[%s221 + $0x1c0] sm:$0xf] %vm7196, %v6320
      %7310 = vst.msk [vmem:[%s221 + $0x1c4] sm:$0xf] %vm7196, %v6321
      %7311 = vst.msk [vmem:[%s221 + $0x1c8] sm:$0xf] %vm7196, %v6322
      %7312 = vst.msk [vmem:[%s221 + $0x1cc] sm:$0xf] %vm7196, %v6323
      %7313 = vst.msk [vmem:[%s221 + $0x1d0] sm:$0xf] %vm7196, %v6324
      %7314 = vst.msk [vmem:[%s221 + $0x1d4] sm:$0xf] %vm7196, %v6325
      %7315 = vst.msk [vmem:[%s221 + $0x1d8] sm:$0xf] %vm7196, %v6326
      %7316 = vst.msk [vmem:[%s221 + $0x1dc] sm:$0xf] %vm7196, %v6327
      %7317 = vst.msk [vmem:[%s221 + $0x1e0] sm:$0xf] %vm7196, %v6328
      %7318 = vst.msk [vmem:[%s221 + $0x1e4] sm:$0xf] %vm7196, %v6329
      %7319 = vst.msk [vmem:[%s221 + $0x1e8] sm:$0xf] %vm7196, %v6330
      %7320 = vst.msk [vmem:[%s221 + $0x1ec] sm:$0xf] %vm7196, %v6331
      %7321 = vst.msk [vmem:[%s221 + $0x1f0] sm:$0xf] %vm7196, %v6332
      %7322 = vst.msk [vmem:[%s221 + $0x1f4] sm:$0xf] %vm7196, %v6333
      %7323 = vst.msk [vmem:[%s221 + $0x1f8] sm:$0xf] %vm7196, %v6334
      %7324 = vst.msk [vmem:[%s221 + $0x1fc] sm:$0xf] %vm7196, %v6335
      %7325 = vst.msk [vmem:[%s221 + $0x200] sm:$0xf] %vm7196, %v6336
      %7326 = vst.msk [vmem:[%s221 + $0x204] sm:$0xf] %vm7196, %v6337
      %7327 = vst.msk [vmem:[%s221 + $0x208] sm:$0xf] %vm7196, %v6338
      %7328 = vst.msk [vmem:[%s221 + $0x20c] sm:$0xf] %vm7196, %v6339
      %7329 = vst.msk [vmem:[%s221 + $0x210] sm:$0xf] %vm7196, %v6340
      %7330 = vst.msk [vmem:[%s221 + $0x214] sm:$0xf] %vm7196, %v6341
      %7331 = vst.msk [vmem:[%s221 + $0x218] sm:$0xf] %vm7196, %v6342
      %7332 = vst.msk [vmem:[%s221 + $0x21c] sm:$0xf] %vm7196, %v6343
      %7333 = vst.msk [vmem:[%s221 + $0x220] sm:$0xf] %vm7196, %v6344
      %7334 = vst.msk [vmem:[%s221 + $0x224] sm:$0xf] %vm7196, %v6345
      %7335 = vst.msk [vmem:[%s221 + $0x228] sm:$0xf] %vm7196, %v6346
      %7336 = vst.msk [vmem:[%s221 + $0x22c] sm:$0xf] %vm7196, %v6347
      %7337 = vst.msk [vmem:[%s221 + $0x230] sm:$0xf] %vm7196, %v6348
      %7338 = vst.msk [vmem:[%s221 + $0x234] sm:$0xf] %vm7196, %v6349
      %7339 = vst.msk [vmem:[%s221 + $0x238] sm:$0xf] %vm7196, %v6350
      %7340 = vst.msk [vmem:[%s221 + $0x23c] sm:$0xf] %vm7196, %v6351
      %7341 = vst.msk [vmem:[%s221 + $0x240] sm:$0xf] %vm7196, %v6352
      %7342 = vst.msk [vmem:[%s221 + $0x244] sm:$0xf] %vm7196, %v6353
      %7343 = vst.msk [vmem:[%s221 + $0x248] sm:$0xf] %vm7196, %v6354
      %7344 = vst.msk [vmem:[%s221 + $0x24c] sm:$0xf] %vm7196, %v6355
      %7345 = vst.msk [vmem:[%s221 + $0x250] sm:$0xf] %vm7196, %v6356
      %7346 = vst.msk [vmem:[%s221 + $0x254] sm:$0xf] %vm7196, %v6357
      %7347 = vst.msk [vmem:[%s221 + $0x258] sm:$0xf] %vm7196, %v6358
      %7348 = vst.msk [vmem:[%s221 + $0x25c] sm:$0xf] %vm7196, %v6359
      %7349 = vst.msk [vmem:[%s221 + $0x260] sm:$0xf] %vm7196, %v6360
      %7350 = vst.msk [vmem:[%s221 + $0x264] sm:$0xf] %vm7196, %v6361
      %7351 = vst.msk [vmem:[%s221 + $0x268] sm:$0xf] %vm7196, %v6362
      %7352 = vst.msk [vmem:[%s221 + $0x26c] sm:$0xf] %vm7196, %v6363
      %7353 = vst.msk [vmem:[%s221 + $0x270] sm:$0xf] %vm7196, %v6364
      %7354 = vst.msk [vmem:[%s221 + $0x274] sm:$0xf] %vm7196, %v6365
      %7355 = vst.msk [vmem:[%s221 + $0x278] sm:$0xf] %vm7196, %v6366
      %7356 = vst.msk [vmem:[%s221 + $0x27c] sm:$0xf] %vm7196, %v6367
      %7357 = vst.msk [vmem:[%s221 + $0x280] sm:$0xf] %vm7196, %v6368
      %7358 = vst.msk [vmem:[%s221 + $0x284] sm:$0xf] %vm7196, %v6369
      %7359 = vst.msk [vmem:[%s221 + $0x288] sm:$0xf] %vm7196, %v6370
      %7360 = vst.msk [vmem:[%s221 + $0x28c] sm:$0xf] %vm7196, %v6371
      %7361 = vst.msk [vmem:[%s221 + $0x290] sm:$0xf] %vm7196, %v6372
      %7362 = vst.msk [vmem:[%s221 + $0x294] sm:$0xf] %vm7196, %v6373
      %7363 = vst.msk [vmem:[%s221 + $0x298] sm:$0xf] %vm7196, %v6374
      %7364 = vst.msk [vmem:[%s221 + $0x29c] sm:$0xf] %vm7196, %v6375
      %7365 = vst.msk [vmem:[%s221 + $0x2a0] sm:$0xf] %vm7196, %v6376
      %7366 = vst.msk [vmem:[%s221 + $0x2a4] sm:$0xf] %vm7196, %v6377
      %7367 = vst.msk [vmem:[%s221 + $0x2a8] sm:$0xf] %vm7196, %v6378
      %7368 = vst.msk [vmem:[%s221 + $0x2ac] sm:$0xf] %vm7196, %v6379
      %7369 = vst.msk [vmem:[%s221 + $0x2b0] sm:$0xf] %vm7196, %v6380
      %7370 = vst.msk [vmem:[%s221 + $0x2b4] sm:$0xf] %vm7196, %v6381
      %7371 = vst.msk [vmem:[%s221 + $0x2b8] sm:$0xf] %vm7196, %v6382
      %7372 = vst.msk [vmem:[%s221 + $0x2bc] sm:$0xf] %vm7196, %v6383
      %7373 = vst.msk [vmem:[%s221 + $0x2c0] sm:$0xf] %vm7196, %v6384
      %7374 = vst.msk [vmem:[%s221 + $0x2c4] sm:$0xf] %vm7196, %v6385
      %7375 = vst.msk [vmem:[%s221 + $0x2c8] sm:$0xf] %vm7196, %v6386
      %7376 = vst.msk [vmem:[%s221 + $0x2cc] sm:$0xf] %vm7196, %v6387
      %7377 = vst.msk [vmem:[%s221 + $0x2d0] sm:$0xf] %vm7196, %v6388
      %7378 = vst.msk [vmem:[%s221 + $0x2d4] sm:$0xf] %vm7196, %v6389
      %7379 = vst.msk [vmem:[%s221 + $0x2d8] sm:$0xf] %vm7196, %v6390
      %7380 = vst.msk [vmem:[%s221 + $0x2dc] sm:$0xf] %vm7196, %v6391
      %7381 = vst.msk [vmem:[%s221 + $0x2e0] sm:$0xf] %vm7196, %v6392
      %7382 = vst.msk [vmem:[%s221 + $0x2e4] sm:$0xf] %vm7196, %v6393
      %7383 = vst.msk [vmem:[%s221 + $0x2e8] sm:$0xf] %vm7196, %v6394
      %7384 = vst.msk [vmem:[%s221 + $0x2ec] sm:$0xf] %vm7196, %v6395
      %7385 = vst.msk [vmem:[%s221 + $0x2f0] sm:$0xf] %vm7196, %v6396
      %7386 = vst.msk [vmem:[%s221 + $0x2f4] sm:$0xf] %vm7196, %v6397
      %7387 = vst.msk [vmem:[%s221 + $0x2f8] sm:$0xf] %vm7196, %v6398
      %7388 = vst.msk [vmem:[%s221 + $0x2fc] sm:$0xf] %vm7196, %v6399
      %7389 = vst.msk [vmem:[%s221 + $0x300] sm:$0xf] %vm7196, %v6400
      %7390 = vst.msk [vmem:[%s221 + $0x304] sm:$0xf] %vm7196, %v6401
      %7391 = vst.msk [vmem:[%s221 + $0x308] sm:$0xf] %vm7196, %v6402
      %7392 = vst.msk [vmem:[%s221 + $0x30c] sm:$0xf] %vm7196, %v6403
      %7393 = vst.msk [vmem:[%s221 + $0x310] sm:$0xf] %vm7196, %v6404
      %7394 = vst.msk [vmem:[%s221 + $0x314] sm:$0xf] %vm7196, %v6405
      %7395 = vst.msk [vmem:[%s221 + $0x318] sm:$0xf] %vm7196, %v6406
      %7396 = vst.msk [vmem:[%s221 + $0x31c] sm:$0xf] %vm7196, %v6407
      %7397 = vst.msk [vmem:[%s221 + $0x320] sm:$0xf] %vm7196, %v6408
      %7398 = vst.msk [vmem:[%s221 + $0x324] sm:$0xf] %vm7196, %v6409
      %7399 = vst.msk [vmem:[%s221 + $0x328] sm:$0xf] %vm7196, %v6410
      %7400 = vst.msk [vmem:[%s221 + $0x32c] sm:$0xf] %vm7196, %v6411
      %7401 = vst.msk [vmem:[%s221 + $0x330] sm:$0xf] %vm7196, %v6412
      %7402 = vst.msk [vmem:[%s221 + $0x334] sm:$0xf] %vm7196, %v6413
      %7403 = vst.msk [vmem:[%s221 + $0x338] sm:$0xf] %vm7196, %v6414
      %7404 = vst.msk [vmem:[%s221 + $0x33c] sm:$0xf] %vm7196, %v6415
      %7405 = vst.msk [vmem:[%s221 + $0x340] sm:$0xf] %vm7196, %v6416
      %7406 = vst.msk [vmem:[%s221 + $0x344] sm:$0xf] %vm7196, %v6417
      %7407 = vst.msk [vmem:[%s221 + $0x348] sm:$0xf] %vm7196, %v6418
      %7408 = vst.msk [vmem:[%s221 + $0x34c] sm:$0xf] %vm7196, %v6419
      %7409 = vst.msk [vmem:[%s221 + $0x350] sm:$0xf] %vm7196, %v6420
      %7410 = vst.msk [vmem:[%s221 + $0x354] sm:$0xf] %vm7196, %v6421
      %7411 = vst.msk [vmem:[%s221 + $0x358] sm:$0xf] %vm7196, %v6422
      %7412 = vst.msk [vmem:[%s221 + $0x35c] sm:$0xf] %vm7196, %v6423
      %7413 = vst.msk [vmem:[%s221 + $0x360] sm:$0xf] %vm7196, %v6424
      %7414 = vst.msk [vmem:[%s221 + $0x364] sm:$0xf] %vm7196, %v6425
      %7415 = vst.msk [vmem:[%s221 + $0x368] sm:$0xf] %vm7196, %v6426
      %7416 = vst.msk [vmem:[%s221 + $0x36c] sm:$0xf] %vm7196, %v6427
      %7417 = vst.msk [vmem:[%s221 + $0x370] sm:$0xf] %vm7196, %v6428
      %7418 = vst.msk [vmem:[%s221 + $0x374] sm:$0xf] %vm7196, %v6429
      %7419 = vst.msk [vmem:[%s221 + $0x378] sm:$0xf] %vm7196, %v6430
      %7420 = vst.msk [vmem:[%s221 + $0x37c] sm:$0xf] %vm7196, %v6431
      %7421 = vst.msk [vmem:[%s221 + $0x380] sm:$0xf] %vm7196, %v6432
      %7422 = vst.msk [vmem:[%s221 + $0x384] sm:$0xf] %vm7196, %v6433
      %7423 = vst.msk [vmem:[%s221 + $0x388] sm:$0xf] %vm7196, %v6434
      %7424 = vst.msk [vmem:[%s221 + $0x38c] sm:$0xf] %vm7196, %v6435
      %7425 = vst.msk [vmem:[%s221 + $0x390] sm:$0xf] %vm7196, %v6436
      %7426 = vst.msk [vmem:[%s221 + $0x394] sm:$0xf] %vm7196, %v6437
      %7427 = vst.msk [vmem:[%s221 + $0x398] sm:$0xf] %vm7196, %v6438
      %7428 = vst.msk [vmem:[%s221 + $0x39c] sm:$0xf] %vm7196, %v6439
      %7429 = vst.msk [vmem:[%s221 + $0x3a0] sm:$0xf] %vm7196, %v6440
      %7430 = vst.msk [vmem:[%s221 + $0x3a4] sm:$0xf] %vm7196, %v6441
      %7431 = vst.msk [vmem:[%s221 + $0x3a8] sm:$0xf] %vm7196, %v6442
      %7432 = vst.msk [vmem:[%s221 + $0x3ac] sm:$0xf] %vm7196, %v6443
      %7433 = vst.msk [vmem:[%s221 + $0x3b0] sm:$0xf] %vm7196, %v6444
      %7434 = vst.msk [vmem:[%s221 + $0x3b4] sm:$0xf] %vm7196, %v6445
      %7435 = vst.msk [vmem:[%s221 + $0x3b8] sm:$0xf] %vm7196, %v6446
      %7436 = vst.msk [vmem:[%s221 + $0x3bc] sm:$0xf] %vm7196, %v6447
      %7437 = vst.msk [vmem:[%s221 + $0x3c0] sm:$0xf] %vm7196, %v6448
      %7438 = vst.msk [vmem:[%s221 + $0x3c4] sm:$0xf] %vm7196, %v6449
      %7439 = vst.msk [vmem:[%s221 + $0x3c8] sm:$0xf] %vm7196, %v6450
      %7440 = vst.msk [vmem:[%s221 + $0x3cc] sm:$0xf] %vm7196, %v6451
      %7441 = vst.msk [vmem:[%s221 + $0x3d0] sm:$0xf] %vm7196, %v6452
      %7442 = vst.msk [vmem:[%s221 + $0x3d4] sm:$0xf] %vm7196, %v6453
      %7443 = vst.msk [vmem:[%s221 + $0x3d8] sm:$0xf] %vm7196, %v6454
      %7444 = vst.msk [vmem:[%s221 + $0x3dc] sm:$0xf] %vm7196, %v6455
      %7445 = vst.msk [vmem:[%s221 + $0x3e0] sm:$0xf] %vm7196, %v6456
      %7446 = vst.msk [vmem:[%s221 + $0x3e4] sm:$0xf] %vm7196, %v6457
      %7447 = vst.msk [vmem:[%s221 + $0x3e8] sm:$0xf] %vm7196, %v6458
      %7448 = vst.msk [vmem:[%s221 + $0x3ec] sm:$0xf] %vm7196, %v6459
      %7449 = vst.msk [vmem:[%s221 + $0x3f0] sm:$0xf] %vm7196, %v6460
      %7450 = vst.msk [vmem:[%s221 + $0x3f4] sm:$0xf] %vm7196, %v6461
      %7451 = vst.msk [vmem:[%s221 + $0x3f8] sm:$0xf] %vm7196, %v6462
      %7452 = vst.msk [vmem:[%s221 + $0x3fc] sm:$0xf] %vm7196, %v6463
      %7453 = vst.msk [vmem:[%s221 + $0x400] sm:$0xf] %vm7196, %v6464
      %7454 = vst.msk [vmem:[%s221 + $0x404] sm:$0xf] %vm7196, %v6465
      %7455 = vst.msk [vmem:[%s221 + $0x408] sm:$0xf] %vm7196, %v6466
      %7456 = vst.msk [vmem:[%s221 + $0x40c] sm:$0xf] %vm7196, %v6467
      %7457 = vst.msk [vmem:[%s221 + $0x410] sm:$0xf] %vm7196, %v6468
      %7458 = vst.msk [vmem:[%s221 + $0x414] sm:$0xf] %vm7196, %v6469
      %7459 = vst.msk [vmem:[%s221 + $0x418] sm:$0xf] %vm7196, %v6470
      %7460 = vst.msk [vmem:[%s221 + $0x41c] sm:$0xf] %vm7196, %v6471
      %7461 = vst.msk [vmem:[%s221 + $0x420] sm:$0xf] %vm7196, %v6472
      %7462 = vst.msk [vmem:[%s221 + $0x424] sm:$0xf] %vm7196, %v6473
      %7463 = vst.msk [vmem:[%s221 + $0x428] sm:$0xf] %vm7196, %v6474
      %7464 = vst.msk [vmem:[%s221 + $0x42c] sm:$0xf] %vm7196, %v6475
      %7465 = vst.msk [vmem:[%s221 + $0x430] sm:$0xf] %vm7196, %v6476
      %7466 = vst.msk [vmem:[%s221 + $0x434] sm:$0xf] %vm7196, %v6477
      %7467 = vst.msk [vmem:[%s221 + $0x438] sm:$0xf] %vm7196, %v6478
      %7468 = vst.msk [vmem:[%s221 + $0x43c] sm:$0xf] %vm7196, %v6479
      %7469 = vst.msk [vmem:[%s221 + $0x440] sm:$0xf] %vm7196, %v6480
      %7470 = vst.msk [vmem:[%s221 + $0x444] sm:$0xf] %vm7196, %v6481
      %7471 = vst.msk [vmem:[%s221 + $0x448] sm:$0xf] %vm7196, %v6482
      %7472 = vst.msk [vmem:[%s221 + $0x44c] sm:$0xf] %vm7196, %v6483
      %7473 = vst.msk [vmem:[%s221 + $0x450] sm:$0xf] %vm7196, %v6484
      %7474 = vst.msk [vmem:[%s221 + $0x454] sm:$0xf] %vm7196, %v6485
      %7475 = vst.msk [vmem:[%s221 + $0x458] sm:$0xf] %vm7196, %v6486
      %7476 = vst.msk [vmem:[%s221 + $0x45c] sm:$0xf] %vm7196, %v6487
      %7477 = vst.msk [vmem:[%s221 + $0x460] sm:$0xf] %vm7196, %v6488
      %7478 = vst.msk [vmem:[%s221 + $0x464] sm:$0xf] %vm7196, %v6489
      %7479 = vst.msk [vmem:[%s221 + $0x468] sm:$0xf] %vm7196, %v6490
      %7480 = vst.msk [vmem:[%s221 + $0x46c] sm:$0xf] %vm7196, %v6491
      %7481 = vst.msk [vmem:[%s221 + $0x470] sm:$0xf] %vm7196, %v6492
      %7482 = vst.msk [vmem:[%s221 + $0x474] sm:$0xf] %vm7196, %v6493
      %7483 = vst.msk [vmem:[%s221 + $0x478] sm:$0xf] %vm7196, %v6494
      %7484 = vst.msk [vmem:[%s221 + $0x47c] sm:$0xf] %vm7196, %v6495
      %7485 = vst.msk [vmem:[%s221 + $0x480] sm:$0xf] %vm7196, %v6496
      %7486 = vst.msk [vmem:[%s221 + $0x484] sm:$0xf] %vm7196, %v6497
      %7487 = vst.msk [vmem:[%s221 + $0x488] sm:$0xf] %vm7196, %v6498
      %7488 = vst.msk [vmem:[%s221 + $0x48c] sm:$0xf] %vm7196, %v6499
      %7489 = vst.msk [vmem:[%s221 + $0x490] sm:$0xf] %vm7196, %v6500
      %7490 = vst.msk [vmem:[%s221 + $0x494] sm:$0xf] %vm7196, %v6501
      %7491 = vst.msk [vmem:[%s221 + $0x498] sm:$0xf] %vm7196, %v6502
      %7492 = vst.msk [vmem:[%s221 + $0x49c] sm:$0xf] %vm7196, %v6503
      %7493 = vst.msk [vmem:[%s221 + $0x4a0] sm:$0xf] %vm7196, %v6504
      %7494 = vst.msk [vmem:[%s221 + $0x4a4] sm:$0xf] %vm7196, %v6505
      %7495 = vst.msk [vmem:[%s221 + $0x4a8] sm:$0xf] %vm7196, %v6506
      %7496 = vst.msk [vmem:[%s221 + $0x4ac] sm:$0xf] %vm7196, %v6507
      %7497 = vst.msk [vmem:[%s221 + $0x4b0] sm:$0xf] %vm7196, %v6508
      %7498 = vst.msk [vmem:[%s221 + $0x4b4] sm:$0xf] %vm7196, %v6509
      %7499 = vst.msk [vmem:[%s221 + $0x4b8] sm:$0xf] %vm7196, %v6510
      %7500 = vst.msk [vmem:[%s221 + $0x4bc] sm:$0xf] %vm7196, %v6511
      %7501 = vst.msk [vmem:[%s221 + $0x4c0] sm:$0xf] %vm7196, %v6512
      %7502 = vst.msk [vmem:[%s221 + $0x4c4] sm:$0xf] %vm7196, %v6513
      %7503 = vst.msk [vmem:[%s221 + $0x4c8] sm:$0xf] %vm7196, %v6514
      %7504 = vst.msk [vmem:[%s221 + $0x4cc] sm:$0xf] %vm7196, %v6515
      %7505 = vst.msk [vmem:[%s221 + $0x4d0] sm:$0xf] %vm7196, %v6516
      %7506 = vst.msk [vmem:[%s221 + $0x4d4] sm:$0xf] %vm7196, %v6517
      %7507 = vst.msk [vmem:[%s221 + $0x4d8] sm:$0xf] %vm7196, %v6518
      %7508 = vst.msk [vmem:[%s221 + $0x4dc] sm:$0xf] %vm7196, %v6519
      %7509 = vst.msk [vmem:[%s221 + $0x4e0] sm:$0xf] %vm7196, %v6520
      %7510 = vst.msk [vmem:[%s221 + $0x4e4] sm:$0xf] %vm7196, %v6521
      %7511 = vst.msk [vmem:[%s221 + $0x4e8] sm:$0xf] %vm7196, %v6522
      %7512 = vst.msk [vmem:[%s221 + $0x4ec] sm:$0xf] %vm7196, %v6523
      %7513 = vst.msk [vmem:[%s221 + $0x4f0] sm:$0xf] %vm7196, %v6524
      %7514 = vst.msk [vmem:[%s221 + $0x4f4] sm:$0xf] %vm7196, %v6525
      %7515 = vst.msk [vmem:[%s221 + $0x4f8] sm:$0xf] %vm7196, %v6526
      %7516 = vst.msk [vmem:[%s221 + $0x4fc] sm:$0xf] %vm7196, %v6527
      %7517 = vst.msk [vmem:[%s221 + $0x500] sm:$0xf] %vm7196, %v6528
      %7518 = vst.msk [vmem:[%s221 + $0x504] sm:$0xf] %vm7196, %v6529
      %7519 = vst.msk [vmem:[%s221 + $0x508] sm:$0xf] %vm7196, %v6530
      %7520 = vst.msk [vmem:[%s221 + $0x50c] sm:$0xf] %vm7196, %v6531
      %7521 = vst.msk [vmem:[%s221 + $0x510] sm:$0xf] %vm7196, %v6532
      %7522 = vst.msk [vmem:[%s221 + $0x514] sm:$0xf] %vm7196, %v6533
      %7523 = vst.msk [vmem:[%s221 + $0x518] sm:$0xf] %vm7196, %v6534
      %7524 = vst.msk [vmem:[%s221 + $0x51c] sm:$0xf] %vm7196, %v6535
      %7525 = vst.msk [vmem:[%s221 + $0x520] sm:$0xf] %vm7196, %v6536
      %7526 = vst.msk [vmem:[%s221 + $0x524] sm:$0xf] %vm7196, %v6537
      %7527 = vst.msk [vmem:[%s221 + $0x528] sm:$0xf] %vm7196, %v6538
      %7528 = vst.msk [vmem:[%s221 + $0x52c] sm:$0xf] %vm7196, %v6539
      %7529 = vst.msk [vmem:[%s221 + $0x530] sm:$0xf] %vm7196, %v6540
      %7530 = vst.msk [vmem:[%s221 + $0x534] sm:$0xf] %vm7196, %v6541
      %7531 = vst.msk [vmem:[%s221 + $0x538] sm:$0xf] %vm7196, %v6542
      %7532 = vst.msk [vmem:[%s221 + $0x53c] sm:$0xf] %vm7196, %v6543
      %7533 = vst.msk [vmem:[%s221 + $0x540] sm:$0xf] %vm7196, %v6544
      %7534 = vst.msk [vmem:[%s221 + $0x544] sm:$0xf] %vm7196, %v6545
      %7535 = vst.msk [vmem:[%s221 + $0x548] sm:$0xf] %vm7196, %v6546
      %7536 = vst.msk [vmem:[%s221 + $0x54c] sm:$0xf] %vm7196, %v6547
      %7537 = vst.msk [vmem:[%s221 + $0x550] sm:$0xf] %vm7196, %v6548
      %7538 = vst.msk [vmem:[%s221 + $0x554] sm:$0xf] %vm7196, %v6549
      %7539 = vst.msk [vmem:[%s221 + $0x558] sm:$0xf] %vm7196, %v6550
      %7540 = vst.msk [vmem:[%s221 + $0x55c] sm:$0xf] %vm7196, %v6551
      %7541 = vst.msk [vmem:[%s221 + $0x560] sm:$0xf] %vm7196, %v6552
      %7542 = vst.msk [vmem:[%s221 + $0x564] sm:$0xf] %vm7196, %v6553
      %7543 = vst.msk [vmem:[%s221 + $0x568] sm:$0xf] %vm7196, %v6554
      %7544 = vst.msk [vmem:[%s221 + $0x56c] sm:$0xf] %vm7196, %v6555
      %7545 = vst.msk [vmem:[%s221 + $0x570] sm:$0xf] %vm7196, %v6556
      %7546 = vst.msk [vmem:[%s221 + $0x574] sm:$0xf] %vm7196, %v6557
      %7547 = vst.msk [vmem:[%s221 + $0x578] sm:$0xf] %vm7196, %v6558
      %7548 = vst.msk [vmem:[%s221 + $0x57c] sm:$0xf] %vm7196, %v6559
      %7549 = vst.msk [vmem:[%s221 + $0x580] sm:$0xf] %vm7196, %v6560
      %7550 = vst.msk [vmem:[%s221 + $0x584] sm:$0xf] %vm7196, %v6561
      %7551 = vst.msk [vmem:[%s221 + $0x588] sm:$0xf] %vm7196, %v6562
      %7552 = vst.msk [vmem:[%s221 + $0x58c] sm:$0xf] %vm7196, %v6563
      %7553 = vst.msk [vmem:[%s221 + $0x590] sm:$0xf] %vm7196, %v6564
      %7554 = vst.msk [vmem:[%s221 + $0x594] sm:$0xf] %vm7196, %v6565
      %7555 = vst.msk [vmem:[%s221 + $0x598] sm:$0xf] %vm7196, %v6566
      %7556 = vst.msk [vmem:[%s221 + $0x59c] sm:$0xf] %vm7196, %v6567
      %7557 = vst.msk [vmem:[%s221 + $0x5a0] sm:$0xf] %vm7196, %v6568
      %7558 = vst.msk [vmem:[%s221 + $0x5a4] sm:$0xf] %vm7196, %v6569
      %7559 = vst.msk [vmem:[%s221 + $0x5a8] sm:$0xf] %vm7196, %v6570
      %7560 = vst.msk [vmem:[%s221 + $0x5ac] sm:$0xf] %vm7196, %v6571
      %7561 = vst.msk [vmem:[%s221 + $0x5b0] sm:$0xf] %vm7196, %v6572
      %7562 = vst.msk [vmem:[%s221 + $0x5b4] sm:$0xf] %vm7196, %v6573
      %7563 = vst.msk [vmem:[%s221 + $0x5b8] sm:$0xf] %vm7196, %v6574
      %7564 = vst.msk [vmem:[%s221 + $0x5bc] sm:$0xf] %vm7196, %v6575
      %7565 = vst.msk [vmem:[%s221 + $0x5c0] sm:$0xf] %vm7196, %v6576
      %7566 = vst.msk [vmem:[%s221 + $0x5c4] sm:$0xf] %vm7196, %v6577
      %7567 = vst.msk [vmem:[%s221 + $0x5c8] sm:$0xf] %vm7196, %v6578
      %7568 = vst.msk [vmem:[%s221 + $0x5cc] sm:$0xf] %vm7196, %v6579
      %7569 = vst.msk [vmem:[%s221 + $0x5d0] sm:$0xf] %vm7196, %v6580
      %7570 = vst.msk [vmem:[%s221 + $0x5d4] sm:$0xf] %vm7196, %v6581
      %7571 = vst.msk [vmem:[%s221 + $0x5d8] sm:$0xf] %vm7196, %v6582
      %7572 = vst.msk [vmem:[%s221 + $0x5dc] sm:$0xf] %vm7196, %v6583
      %7573 = vst.msk [vmem:[%s221 + $0x5e0] sm:$0xf] %vm7196, %v6584
      %7574 = vst.msk [vmem:[%s221 + $0x5e4] sm:$0xf] %vm7196, %v6585
      %7575 = vst.msk [vmem:[%s221 + $0x5e8] sm:$0xf] %vm7196, %v6586
      %7576 = vst.msk [vmem:[%s221 + $0x5ec] sm:$0xf] %vm7196, %v6587
      %7577 = vst.msk [vmem:[%s221 + $0x5f0] sm:$0xf] %vm7196, %v6588
      %7578 = vst.msk [vmem:[%s221 + $0x5f4] sm:$0xf] %vm7196, %v6589
      %7579 = vst.msk [vmem:[%s221 + $0x5f8] sm:$0xf] %vm7196, %v6590
      %7580 = vst.msk [vmem:[%s221 + $0x5fc] sm:$0xf] %vm7196, %v6591
      %7581 = vst.msk [vmem:[%s221 + $0x600] sm:$0xf] %vm7196, %v6592
      %7582 = vst.msk [vmem:[%s221 + $0x604] sm:$0xf] %vm7196, %v6593
      %7583 = vst.msk [vmem:[%s221 + $0x608] sm:$0xf] %vm7196, %v6594
      %7584 = vst.msk [vmem:[%s221 + $0x60c] sm:$0xf] %vm7196, %v6595
      %7585 = vst.msk [vmem:[%s221 + $0x610] sm:$0xf] %vm7196, %v6596
      %7586 = vst.msk [vmem:[%s221 + $0x614] sm:$0xf] %vm7196, %v6597
      %7587 = vst.msk [vmem:[%s221 + $0x618] sm:$0xf] %vm7196, %v6598
      %7588 = vst.msk [vmem:[%s221 + $0x61c] sm:$0xf] %vm7196, %v6599
      %7589 = vst.msk [vmem:[%s221 + $0x620] sm:$0xf] %vm7196, %v6600
      %7590 = vst.msk [vmem:[%s221 + $0x624] sm:$0xf] %vm7196, %v6601
      %7591 = vst.msk [vmem:[%s221 + $0x628] sm:$0xf] %vm7196, %v6602
      %7592 = vst.msk [vmem:[%s221 + $0x62c] sm:$0xf] %vm7196, %v6603
      %7593 = vst.msk [vmem:[%s221 + $0x630] sm:$0xf] %vm7196, %v6604
      %7594 = vst.msk [vmem:[%s221 + $0x634] sm:$0xf] %vm7196, %v6605
      %7595 = vst.msk [vmem:[%s221 + $0x638] sm:$0xf] %vm7196, %v6606
      %7596 = vst.msk [vmem:[%s221 + $0x63c] sm:$0xf] %vm7196, %v6607
      %7597 = vst.msk [vmem:[%s221 + $0x640] sm:$0xf] %vm7196, %v6608
      %7598 = vst.msk [vmem:[%s221 + $0x644] sm:$0xf] %vm7196, %v6609
      %7599 = vst.msk [vmem:[%s221 + $0x648] sm:$0xf] %vm7196, %v6610
      %7600 = vst.msk [vmem:[%s221 + $0x64c] sm:$0xf] %vm7196, %v6611
      %7601 = vst.msk [vmem:[%s221 + $0x650] sm:$0xf] %vm7196, %v6612
      %7602 = vst.msk [vmem:[%s221 + $0x654] sm:$0xf] %vm7196, %v6613
      %7603 = vst.msk [vmem:[%s221 + $0x658] sm:$0xf] %vm7196, %v6614
      %7604 = vst.msk [vmem:[%s221 + $0x65c] sm:$0xf] %vm7196, %v6615
      %7605 = vst.msk [vmem:[%s221 + $0x660] sm:$0xf] %vm7196, %v6616
      %7606 = vst.msk [vmem:[%s221 + $0x664] sm:$0xf] %vm7196, %v6617
      %7607 = vst.msk [vmem:[%s221 + $0x668] sm:$0xf] %vm7196, %v6618
      %7608 = vst.msk [vmem:[%s221 + $0x66c] sm:$0xf] %vm7196, %v6619
      %7609 = vst.msk [vmem:[%s221 + $0x670] sm:$0xf] %vm7196, %v6620
      %7610 = vst.msk [vmem:[%s221 + $0x674] sm:$0xf] %vm7196, %v6621
      %7611 = vst.msk [vmem:[%s221 + $0x678] sm:$0xf] %vm7196, %v6622
      %7612 = vst.msk [vmem:[%s221 + $0x67c] sm:$0xf] %vm7196, %v6623
      %7613 = vst.msk [vmem:[%s221 + $0x680] sm:$0xf] %vm7196, %v6624
      %7614 = vst.msk [vmem:[%s221 + $0x684] sm:$0xf] %vm7196, %v6625
      %7615 = vst.msk [vmem:[%s221 + $0x688] sm:$0xf] %vm7196, %v6626
      %7616 = vst.msk [vmem:[%s221 + $0x68c] sm:$0xf] %vm7196, %v6627
      %7617 = vst.msk [vmem:[%s221 + $0x690] sm:$0xf] %vm7196, %v6628
      %7618 = vst.msk [vmem:[%s221 + $0x694] sm:$0xf] %vm7196, %v6629
      %7619 = vst.msk [vmem:[%s221 + $0x698] sm:$0xf] %vm7196, %v6630
      %7620 = vst.msk [vmem:[%s221 + $0x69c] sm:$0xf] %vm7196, %v6631
      %7621 = vst.msk [vmem:[%s221 + $0x6a0] sm:$0xf] %vm7196, %v6632
      %7622 = vst.msk [vmem:[%s221 + $0x6a4] sm:$0xf] %vm7196, %v6633
      %7623 = vst.msk [vmem:[%s221 + $0x6a8] sm:$0xf] %vm7196, %v6634
      %7624 = vst.msk [vmem:[%s221 + $0x6ac] sm:$0xf] %vm7196, %v6635
      %7625 = vst.msk [vmem:[%s221 + $0x6b0] sm:$0xf] %vm7196, %v6636
      %7626 = vst.msk [vmem:[%s221 + $0x6b4] sm:$0xf] %vm7196, %v6637
      %7627 = vst.msk [vmem:[%s221 + $0x6b8] sm:$0xf] %vm7196, %v6638
      %7628 = vst.msk [vmem:[%s221 + $0x6bc] sm:$0xf] %vm7196, %v6639
      %7629 = vst.msk [vmem:[%s221 + $0x6c0] sm:$0xf] %vm7196, %v6640
      %7630 = vst.msk [vmem:[%s221 + $0x6c4] sm:$0xf] %vm7196, %v6641
      %7631 = vst.msk [vmem:[%s221 + $0x6c8] sm:$0xf] %vm7196, %v6642
      %7632 = vst.msk [vmem:[%s221 + $0x6cc] sm:$0xf] %vm7196, %v6643
      %7633 = vst.msk [vmem:[%s221 + $0x6d0] sm:$0xf] %vm7196, %v6644
      %7634 = vst.msk [vmem:[%s221 + $0x6d4] sm:$0xf] %vm7196, %v6645
      %7635 = vst.msk [vmem:[%s221 + $0x6d8] sm:$0xf] %vm7196, %v6646
      %7636 = vst.msk [vmem:[%s221 + $0x6dc] sm:$0xf] %vm7196, %v6647
      %7637 = vst.msk [vmem:[%s221 + $0x6e0] sm:$0xf] %vm7196, %v6648
      %7638 = vst.msk [vmem:[%s221 + $0x6e4] sm:$0xf] %vm7196, %v6649
      %7639 = vst.msk [vmem:[%s221 + $0x6e8] sm:$0xf] %vm7196, %v6650
      %7640 = vst.msk [vmem:[%s221 + $0x6ec] sm:$0xf] %vm7196, %v6651
      %7641 = vst.msk [vmem:[%s221 + $0x6f0] sm:$0xf] %vm7196, %v6652
      %7642 = vst.msk [vmem:[%s221 + $0x6f4] sm:$0xf] %vm7196, %v6653
      %7643 = vst.msk [vmem:[%s221 + $0x6f8] sm:$0xf] %vm7196, %v6654
      %7644 = vst.msk [vmem:[%s221 + $0x6fc] sm:$0xf] %vm7196, %v6655
      %7645 = vst.msk [vmem:[%s221 + $0x700] sm:$0xf] %vm7196, %v6656
      %7646 = vst.msk [vmem:[%s221 + $0x704] sm:$0xf] %vm7196, %v6657
      %7647 = vst.msk [vmem:[%s221 + $0x708] sm:$0xf] %vm7196, %v6658
      %7648 = vst.msk [vmem:[%s221 + $0x70c] sm:$0xf] %vm7196, %v6659
      %7649 = vst.msk [vmem:[%s221 + $0x710] sm:$0xf] %vm7196, %v6660
      %7650 = vst.msk [vmem:[%s221 + $0x714] sm:$0xf] %vm7196, %v6661
      %7651 = vst.msk [vmem:[%s221 + $0x718] sm:$0xf] %vm7196, %v6662
      %7652 = vst.msk [vmem:[%s221 + $0x71c] sm:$0xf] %vm7196, %v6663
      %7653 = vst.msk [vmem:[%s221 + $0x720] sm:$0xf] %vm7196, %v6664
      %7654 = vst.msk [vmem:[%s221 + $0x724] sm:$0xf] %vm7196, %v6665
      %7655 = vst.msk [vmem:[%s221 + $0x728] sm:$0xf] %vm7196, %v6666
      %7656 = vst.msk [vmem:[%s221 + $0x72c] sm:$0xf] %vm7196, %v6667
      %7657 = vst.msk [vmem:[%s221 + $0x730] sm:$0xf] %vm7196, %v6668
      %7658 = vst.msk [vmem:[%s221 + $0x734] sm:$0xf] %vm7196, %v6669
      %7659 = vst.msk [vmem:[%s221 + $0x738] sm:$0xf] %vm7196, %v6670
      %7660 = vst.msk [vmem:[%s221 + $0x73c] sm:$0xf] %vm7196, %v6671
      %7661 = vst.msk [vmem:[%s221 + $0x740] sm:$0xf] %vm7196, %v6672
      %7662 = vst.msk [vmem:[%s221 + $0x744] sm:$0xf] %vm7196, %v6673
      %7663 = vst.msk [vmem:[%s221 + $0x748] sm:$0xf] %vm7196, %v6674
      %7664 = vst.msk [vmem:[%s221 + $0x74c] sm:$0xf] %vm7196, %v6675
      %7665 = vst.msk [vmem:[%s221 + $0x750] sm:$0xf] %vm7196, %v6676
      %7666 = vst.msk [vmem:[%s221 + $0x754] sm:$0xf] %vm7196, %v6677
      %7667 = vst.msk [vmem:[%s221 + $0x758] sm:$0xf] %vm7196, %v6678
      %7668 = vst.msk [vmem:[%s221 + $0x75c] sm:$0xf] %vm7196, %v6679
      %7669 = vst.msk [vmem:[%s221 + $0x760] sm:$0xf] %vm7196, %v6680
      %7670 = vst.msk [vmem:[%s221 + $0x764] sm:$0xf] %vm7196, %v6681
      %7671 = vst.msk [vmem:[%s221 + $0x768] sm:$0xf] %vm7196, %v6682
      %7672 = vst.msk [vmem:[%s221 + $0x76c] sm:$0xf] %vm7196, %v6683
      %7673 = vst.msk [vmem:[%s221 + $0x770] sm:$0xf] %vm7196, %v6684
      %7674 = vst.msk [vmem:[%s221 + $0x774] sm:$0xf] %vm7196, %v6685
      %7675 = vst.msk [vmem:[%s221 + $0x778] sm:$0xf] %vm7196, %v6686
      %7676 = vst.msk [vmem:[%s221 + $0x77c] sm:$0xf] %vm7196, %v6687
      %7677 = vst.msk [vmem:[%s221 + $0x780] sm:$0xf] %vm7196, %v6688
      %7678 = vst.msk [vmem:[%s221 + $0x784] sm:$0xf] %vm7196, %v6689
      %7679 = vst.msk [vmem:[%s221 + $0x788] sm:$0xf] %vm7196, %v6690
      %7680 = vst.msk [vmem:[%s221 + $0x78c] sm:$0xf] %vm7196, %v6691
      %7681 = vst.msk [vmem:[%s221 + $0x790] sm:$0xf] %vm7196, %v6692
      %7682 = vst.msk [vmem:[%s221 + $0x794] sm:$0xf] %vm7196, %v6693
      %7683 = vst.msk [vmem:[%s221 + $0x798] sm:$0xf] %vm7196, %v6694
      %7684 = vst.msk [vmem:[%s221 + $0x79c] sm:$0xf] %vm7196, %v6695
      %7685 = vst.msk [vmem:[%s221 + $0x7a0] sm:$0xf] %vm7196, %v6696
      %7686 = vst.msk [vmem:[%s221 + $0x7a4] sm:$0xf] %vm7196, %v6697
      %7687 = vst.msk [vmem:[%s221 + $0x7a8] sm:$0xf] %vm7196, %v6698
      %7688 = vst.msk [vmem:[%s221 + $0x7ac] sm:$0xf] %vm7196, %v6699
      %7689 = vst.msk [vmem:[%s221 + $0x7b0] sm:$0xf] %vm7196, %v6700
      %7690 = vst.msk [vmem:[%s221 + $0x7b4] sm:$0xf] %vm7196, %v6701
      %p7691 = scmp.lt.s32.totalorder %s19, 23
      %s7692 = scalar_select %p7691, %s19, 23
      %p7693 = scmp.lt.s32.totalorder %s18, 0
      %s7694 = scalar_select %p7693, %s18, 0
      %s7695 = smul.addr %s7692, 494
      %s7696 = sadd.s32 %s7694, %s7695
      %s7697 = smul.addr %s7696, 4
      %s7698 = scalar_lea.vmem %s3, %s7697
      // Predicated region
      $region33: #{_conv2d_impl.1} parent=31 // pred_check
        %p7699 = pneg %p124
      $region34: #{_conv2d_impl.1} parent=31 // pred_check_branch
        %7701 = sbr.rel (%p7699) target = $region36
      $region35: #{_conv2d_impl.1} parent=31 // pred_region
        _
      $region36: #{_conv2d_impl.1} parent=31 // pred_fallthru
        _
    $region32: #{_conv2d_impl.1} parent=5 // pred_fallthru
      _
    %p7702 = scmp.le.s32.totalorder 2, %s9
    // Predicated region
    $region37: #{_conv2d_impl.1} parent=5 // pred_check
      %p7703 = pneg %p7702
    $region38: #{_conv2d_impl.1} parent=5 // pred_check_branch
      %7705 = sbr.rel (%p7703) target = $region40
    $region39: #{_conv2d_impl.1} parent=5 // pred_region
      %s7706 = ssub.s32 %s9, 2
      // Predicated region
      $region41: #{_conv2d_impl.1} parent=39 // pred_check
        %p7707 = pneg %p130
      $region42: #{_conv2d_impl.1} parent=39 // pred_check_branch
        %7709 = sbr.rel (%p7707) target = $region44
      $region43: #{_conv2d_impl.1} parent=39 // pred_region
        %p7710 = scmp.lt.s32.totalorder %s21, 23
        %s7711 = scalar_select %p7710, %s21, 23
        %p7712 = scmp.lt.s32.totalorder %s20, 0
        %s7713 = scalar_select %p7712, %s20, 0
        %s7714 = smul.addr %s7711, 494
        %s7715 = sadd.s32 %s7713, %s7714
        %s7716 = smul.addr %s7715, 4
        %s7717 = scalar_lea.vmem %s3, %s7716
      $region44: #{_conv2d_impl.1} parent=39 // pred_fallthru
        _
    $region40: #{_conv2d_impl.1} parent=5 // pred_fallthru
      _
  $region6: #{_conv2d_impl.1} parent=0 // loop_footer
    %s13 = sadd.s32 1, %s9
  $region7: #{_conv2d_impl.1} parent=0 // loop_footer_branch
    %8 = sbr.rel target = $region3
  $region8: #{_conv2d_impl.1} parent=0 // loop_exit
    _

</llo_original>
